<compile_context>
chip_gen: v6e
topology: v6e:2x2x1
jax: 0.10.0
libtpu: 0.0.40
codegen_flags: <defaults>
</compile_context>

<pallas_src>
import jax
import jax.numpy as jnp
from jax.experimental import pallas as pl
from jax.experimental.pallas import tpu as pltpu


LAYER_DIMS = [1024, 512, 256, 512, 1024, 2048]
BN_EPS = 1e-5


def _detect_v7x():
    """Best-effort chip detection; only used to enable the 2-TC fc6 split."""
    try:
        return "v7" in jax.devices()[0].device_kind.lower()
    except Exception:
        return False


_FC6_COL_BLOCKS = 2 if _detect_v7x() else 1   # v7x: split fc6 over both TCs


# ------------------------------- kernel -------------------------------------

def _policy_fused_kernel(x_ref,
                         w1_ref, s1_ref,
                         w2_ref, s2_ref,
                         w3_ref, s3_ref,
                         w4_ref, s4_ref,
                         w5_ref, s5_ref,
                         w6_ref, b6_ref,
                         o_ref):
    """Whole-network forward; activations never leave VMEM between layers.

    x_ref:  (B, K0) f32 input
    wN_ref: (K, N)  bf16 pre-transposed weights (BN scale folded in for N<6)
    sN_ref: (1, N)  f32 folded shift = bn_beta - bn_mean*scale + bias*scale
    b6_ref: (1, Nt) f32 fc6 bias tile (no BN on the last layer)
    o_ref:  (B, Nt) f32 output tile
    """
    x = x_ref[...].astype(jnp.bfloat16)                 # feed MXU native bf16
    for w_ref, s_ref in ((w1_ref, s1_ref), (w2_ref, s2_ref),
                         (w3_ref, s3_ref), (w4_ref, s4_ref),
                         (w5_ref, s5_ref)):
        acc = jnp.dot(x, w_ref[...], preferred_element_type=jnp.float32)
        x = jnp.maximum(acc + s_ref[...], 0.0).astype(jnp.bfloat16)
    acc = jnp.dot(x, w6_ref[...], preferred_element_type=jnp.float32)
    o_ref[...] = (acc + b6_ref[...]).astype(o_ref.dtype)


def policy_pallas(state, prepared):
    """state: (B, input_dim) f32, prepared: output of prepare_params()."""
    B = state.shape[0]
    n_out = LAYER_DIMS[-1]
    col_blocks = _FC6_COL_BLOCKS
    tn = n_out // col_blocks

    x = state.astype(jnp.float32)
    flat_args = [x]
    in_specs = [pl.BlockSpec(x.shape, lambda j: (0, 0))]
    for i, layer in enumerate(prepared):
        w = layer["w_t"]
        v = layer["shift"] if i < 5 else layer["b"]
        flat_args += [w, v]
        if i < 5:
            # Constant index maps: DMA'd once, not re-fetched across grid steps.
            in_specs += [pl.BlockSpec(w.shape, lambda j: (0, 0)),
                         pl.BlockSpec(v.shape, lambda j: (0, 0))]
        else:
            # fc6 weight / bias tiled over output columns (v7x 2-TC split).
            in_specs += [pl.BlockSpec((w.shape[0], tn), lambda j: (0, j)),
                         pl.BlockSpec((1, tn), lambda j: (0, j))]

    return pl.pallas_call(
        _policy_fused_kernel,
        out_shape=jax.ShapeDtypeStruct((B, n_out), jnp.float32),
        grid=(col_blocks,),
        in_specs=in_specs,
        out_specs=pl.BlockSpec((B, tn), lambda j: (0, j)),
        compiler_params=pltpu.CompilerParams(
            dimension_semantics=("parallel",),
            vmem_limit_bytes=24 * 1024 * 1024),
    )(*flat_args)


policy_forward = jax.jit(policy_pallas)


# --------------------------- parameter handling ------------------------------

def init_params(input_dim, key):
    """Deterministic synthetic parameters matching Policy.__init__ shapes."""
    params = []
    in_dim = input_dim
    for i, out_dim in enumerate(LAYER_DIMS):
        key, k_w, k_b, k_g, k_be, k_m, k_v = jax.random.split(key, 7)
        w = jax.random.normal(k_w, (out_dim, in_dim), jnp.float32) / jnp.sqrt(
            jnp.float32(in_dim))
        b = 0.01 * jax.random.normal(k_b, (out_dim,), jnp.float32)
        layer = {"w": w, "b": b}
        if i < 5:  # bn1..bn5 (fc6 has no batchnorm); non-trivial running stats
            layer["bn_gamma"] = 1.0 + 0.1 * jax.random.normal(
                k_g, (out_dim,), jnp.float32)
            layer["bn_beta"] = 0.1 * jax.random.normal(k_be, (out_dim,), jnp.float32)
            layer["bn_mean"] = 0.1 * jax.random.normal(k_m, (out_dim,), jnp.float32)
            layer["bn_var"] = jax.random.uniform(
                k_v, (out_dim,), jnp.float32, 0.5, 1.5)
        params.append(layer)
        in_dim = out_dim
    return params


def prepare_params(params):
    """One-time prep (outside jit): transpose weights to (in, out), fold the
    eval-mode BatchNorm scale into the bf16 weights, and fold BN shift + Linear
    bias into a single per-feature f32 shift vector."""
    prepared = []
    for i, layer in enumerate(params):
        w_t = jnp.asarray(layer["w"].T)                          # (in, out) f32
        if i < 5:
            inv_std = 1.0 / jnp.sqrt(layer["bn_var"] + BN_EPS)
            scale = layer["bn_gamma"] * inv_std
            shift = (layer["bn_beta"] - layer["bn_mean"] * scale
                     + layer["b"] * scale)                       # bias folded in
            prepared.append({
                "w_t": (w_t * scale[None, :]).astype(jnp.bfloat16),  # scale folded
                "shift": shift.reshape(1, -1).astype(jnp.float32),   # (1, N)
            })
        else:
            prepared.append({
                "w_t": w_t.astype(jnp.bfloat16),
                "b": layer["b"].reshape(1, -1).astype(jnp.float32),  # (1, N)
            })
    return prepared


# ------------------------------- references ----------------------------------

def policy_forward_ref(state, prepared):
    """Same math as the kernel (bf16 weights & activations, f32 accumulation)."""
    x = state.astype(jnp.bfloat16)
    for i, layer in enumerate(prepared):
        y = jnp.dot(x, layer["w_t"], preferred_element_type=jnp.float32)
        if i < 5:
            x = jnp.maximum(y + layer["shift"], 0.0).astype(jnp.bfloat16)
        else:
            x = y + layer["b"]
    return x


def policy_forward_ref_f32(state, params):
    """Original full-f32 module math (eval-mode BN, dropout = identity)."""
    x = state
    for i, layer in enumerate(params):
        x = x @ layer["w"].T + layer["b"]
        if i < 5:
            inv_std = 1.0 / jnp.sqrt(layer["bn_var"] + BN_EPS)
            x = layer["bn_gamma"] * (x - layer["bn_mean"]) * inv_std + layer["bn_beta"]
            x = jnp.maximum(x, 0.0)
    return x


# --------------------------------- main ---------------------------------------

if __name__ == "__main__":
    key = jax.random.PRNGKey(0)
    k_x, k_p = jax.random.split(key)

    batch = 8
    input_dim = 32
    state = jax.random.normal(k_x, (batch, input_dim), jnp.float32)

    params = init_params(input_dim, k_p)
    prepared = prepare_params(params)   # one-time: transpose + bf16 + BN fold

    out = policy_forward(state, prepared)
    out = jax.block_until_ready(out)
    assert out.shape == (batch, LAYER_DIMS[-1]), out.shape

    # Strict check: identical math (same bf16 weights/activations, f32 accum).
    ref = policy_forward_ref(state, prepared)
    max_err = float(jnp.max(jnp.abs(out - ref)))
    assert jnp.allclose(out, ref, atol=5e-3, rtol=5e-3), max_err

    # Fidelity check vs. the original f32 module (diff: bf16 weight/act storage).
    ref32 = policy_forward_ref_f32(state, params)
    max_err32 = float(jnp.max(jnp.abs(out - ref32)))
    assert jnp.allclose(out, ref32, atol=5e-2, rtol=5e-2), max_err32

    print("KERNEL_OK")
</pallas_src>

<mosaic_0001>
module attributes {stable_mosaic.version = 11 : i64} {
  func.func @_policy_fused_kernel(%arg0: i32, %arg1: memref<8x32xf32, #tpu.memory_space<vmem>>, %arg2: memref<32x1024xbf16, #tpu.memory_space<vmem>>, %arg3: memref<1x1024xf32, #tpu.memory_space<vmem>>, %arg4: memref<1024x512xbf16, #tpu.memory_space<vmem>>, %arg5: memref<1x512xf32, #tpu.memory_space<vmem>>, %arg6: memref<512x256xbf16, #tpu.memory_space<vmem>>, %arg7: memref<1x256xf32, #tpu.memory_space<vmem>>, %arg8: memref<256x512xbf16, #tpu.memory_space<vmem>>, %arg9: memref<1x512xf32, #tpu.memory_space<vmem>>, %arg10: memref<512x1024xbf16, #tpu.memory_space<vmem>>, %arg11: memref<1x1024xf32, #tpu.memory_space<vmem>>, %arg12: memref<1024x2048xbf16, #tpu.memory_space<vmem>>, %arg13: memref<1x2048xf32, #tpu.memory_space<vmem>>, %arg14: memref<8x2048xf32, #tpu.memory_space<vmem>>) attributes {dimension_semantics = [#tpu.dimension_semantics<parallel>], iteration_bounds = array<i64: 1>, scalar_prefetch = 0 : i64, scratch_operands = 0 : i64, tpu.core_type = #tpu.core_type<tc>, window_params = [{pipeline_mode = #tpu.pipeline_mode<synchronous>, transform_indices = @transform_0, window_bounds = array<i64: 8, 32>}, {pipeline_mode = #tpu.pipeline_mode<synchronous>, transform_indices = @transform_1, window_bounds = array<i64: 32, 1024>}, {pipeline_mode = #tpu.pipeline_mode<synchronous>, transform_indices = @transform_2, window_bounds = array<i64: 1, 1024>}, {pipeline_mode = #tpu.pipeline_mode<synchronous>, transform_indices = @transform_3, window_bounds = array<i64: 1024, 512>}, {pipeline_mode = #tpu.pipeline_mode<synchronous>, transform_indices = @transform_4, window_bounds = array<i64: 1, 512>}, {pipeline_mode = #tpu.pipeline_mode<synchronous>, transform_indices = @transform_5, window_bounds = array<i64: 512, 256>}, {pipeline_mode = #tpu.pipeline_mode<synchronous>, transform_indices = @transform_6, window_bounds = array<i64: 1, 256>}, {pipeline_mode = #tpu.pipeline_mode<synchronous>, transform_indices = @transform_7, window_bounds = array<i64: 256, 512>}, {pipeline_mode = #tpu.pipeline_mode<synchronous>, transform_indices = @transform_8, window_bounds = array<i64: 1, 512>}, {pipeline_mode = #tpu.pipeline_mode<synchronous>, transform_indices = @transform_9, window_bounds = array<i64: 512, 1024>}, {pipeline_mode = #tpu.pipeline_mode<synchronous>, transform_indices = @transform_10, window_bounds = array<i64: 1, 1024>}, {transform_indices = @transform_11, window_bounds = array<i64: 1024, 2048>}, {transform_indices = @transform_12, window_bounds = array<i64: 1, 2048>}, {transform_indices = @transform_13, window_bounds = array<i64: 8, 2048>}]} {
    %c0 = arith.constant 0 : index
    %c0_0 = arith.constant 0 : index
    %0 = vector.load %arg1[%c0, %c0_0] : memref<8x32xf32, #tpu.memory_space<vmem>>, vector<8x32xf32>
    %1 = arith.truncf %0 : vector<8x32xf32> to vector<8x32xbf16>
    %c0_1 = arith.constant 0 : index
    %c0_2 = arith.constant 0 : index
    %2 = vector.load %arg2[%c0_1, %c0_2] : memref<32x1024xbf16, #tpu.memory_space<vmem>>, vector<32x1024xbf16>
    %cst = arith.constant dense<0.000000e+00> : vector<8x1024xf32>
    %3 = tpu.matmul %1, %2, %cst {dimension_numbers = #tpu.dot_dimension_numbers<[1], [0], [0], [1], [0, 0, 1, 1], [], []>} : vector<8x32xbf16>, vector<32x1024xbf16>, vector<8x1024xf32> -> vector<8x1024xf32>
    %c0_3 = arith.constant 0 : index
    %c0_4 = arith.constant 0 : index
    %4 = vector.load %arg3[%c0_3, %c0_4] : memref<1x1024xf32, #tpu.memory_space<vmem>>, vector<1x1024xf32>
    %5 = vector.broadcast %4 : vector<1x1024xf32> to vector<8x1024xf32>
    %6 = arith.addf %3, %5 : vector<8x1024xf32>
    %cst_5 = arith.constant 0.000000e+00 : f32
    %7 = vector.broadcast %cst_5 : f32 to vector<8x1024xf32>
    %8 = arith.maximumf %6, %7 : vector<8x1024xf32>
    %9 = arith.truncf %8 : vector<8x1024xf32> to vector<8x1024xbf16>
    %c0_6 = arith.constant 0 : index
    %c0_7 = arith.constant 0 : index
    %10 = vector.load %arg4[%c0_6, %c0_7] : memref<1024x512xbf16, #tpu.memory_space<vmem>>, vector<1024x512xbf16>
    %cst_8 = arith.constant dense<0.000000e+00> : vector<8x512xf32>
    %11 = tpu.matmul %9, %10, %cst_8 {dimension_numbers = #tpu.dot_dimension_numbers<[1], [0], [0], [1], [0, 0, 1, 1], [], []>} : vector<8x1024xbf16>, vector<1024x512xbf16>, vector<8x512xf32> -> vector<8x512xf32>
    %c0_9 = arith.constant 0 : index
    %c0_10 = arith.constant 0 : index
    %12 = vector.load %arg5[%c0_9, %c0_10] : memref<1x512xf32, #tpu.memory_space<vmem>>, vector<1x512xf32>
    %13 = vector.broadcast %12 : vector<1x512xf32> to vector<8x512xf32>
    %14 = arith.addf %11, %13 : vector<8x512xf32>
    %cst_11 = arith.constant 0.000000e+00 : f32
    %15 = vector.broadcast %cst_11 : f32 to vector<8x512xf32>
    %16 = arith.maximumf %14, %15 : vector<8x512xf32>
    %17 = arith.truncf %16 : vector<8x512xf32> to vector<8x512xbf16>
    %c0_12 = arith.constant 0 : index
    %c0_13 = arith.constant 0 : index
    %18 = vector.load %arg6[%c0_12, %c0_13] : memref<512x256xbf16, #tpu.memory_space<vmem>>, vector<512x256xbf16>
    %cst_14 = arith.constant dense<0.000000e+00> : vector<8x256xf32>
    %19 = tpu.matmul %17, %18, %cst_14 {dimension_numbers = #tpu.dot_dimension_numbers<[1], [0], [0], [1], [0, 0, 1, 1], [], []>} : vector<8x512xbf16>, vector<512x256xbf16>, vector<8x256xf32> -> vector<8x256xf32>
    %c0_15 = arith.constant 0 : index
    %c0_16 = arith.constant 0 : index
    %20 = vector.load %arg7[%c0_15, %c0_16] : memref<1x256xf32, #tpu.memory_space<vmem>>, vector<1x256xf32>
    %21 = vector.broadcast %20 : vector<1x256xf32> to vector<8x256xf32>
    %22 = arith.addf %19, %21 : vector<8x256xf32>
    %cst_17 = arith.constant 0.000000e+00 : f32
    %23 = vector.broadcast %cst_17 : f32 to vector<8x256xf32>
    %24 = arith.maximumf %22, %23 : vector<8x256xf32>
    %25 = arith.truncf %24 : vector<8x256xf32> to vector<8x256xbf16>
    %c0_18 = arith.constant 0 : index
    %c0_19 = arith.constant 0 : index
    %26 = vector.load %arg8[%c0_18, %c0_19] : memref<256x512xbf16, #tpu.memory_space<vmem>>, vector<256x512xbf16>
    %cst_20 = arith.constant dense<0.000000e+00> : vector<8x512xf32>
    %27 = tpu.matmul %25, %26, %cst_20 {dimension_numbers = #tpu.dot_dimension_numbers<[1], [0], [0], [1], [0, 0, 1, 1], [], []>} : vector<8x256xbf16>, vector<256x512xbf16>, vector<8x512xf32> -> vector<8x512xf32>
    %c0_21 = arith.constant 0 : index
    %c0_22 = arith.constant 0 : index
    %28 = vector.load %arg9[%c0_21, %c0_22] : memref<1x512xf32, #tpu.memory_space<vmem>>, vector<1x512xf32>
    %29 = vector.broadcast %28 : vector<1x512xf32> to vector<8x512xf32>
    %30 = arith.addf %27, %29 : vector<8x512xf32>
    %cst_23 = arith.constant 0.000000e+00 : f32
    %31 = vector.broadcast %cst_23 : f32 to vector<8x512xf32>
    %32 = arith.maximumf %30, %31 : vector<8x512xf32>
    %33 = arith.truncf %32 : vector<8x512xf32> to vector<8x512xbf16>
    %c0_24 = arith.constant 0 : index
    %c0_25 = arith.constant 0 : index
    %34 = vector.load %arg10[%c0_24, %c0_25] : memref<512x1024xbf16, #tpu.memory_space<vmem>>, vector<512x1024xbf16>
    %cst_26 = arith.constant dense<0.000000e+00> : vector<8x1024xf32>
    %35 = tpu.matmul %33, %34, %cst_26 {dimension_numbers = #tpu.dot_dimension_numbers<[1], [0], [0], [1], [0, 0, 1, 1], [], []>} : vector<8x512xbf16>, vector<512x1024xbf16>, vector<8x1024xf32> -> vector<8x1024xf32>
    %c0_27 = arith.constant 0 : index
    %c0_28 = arith.constant 0 : index
    %36 = vector.load %arg11[%c0_27, %c0_28] : memref<1x1024xf32, #tpu.memory_space<vmem>>, vector<1x1024xf32>
    %37 = vector.broadcast %36 : vector<1x1024xf32> to vector<8x1024xf32>
    %38 = arith.addf %35, %37 : vector<8x1024xf32>
    %cst_29 = arith.constant 0.000000e+00 : f32
    %39 = vector.broadcast %cst_29 : f32 to vector<8x1024xf32>
    %40 = arith.maximumf %38, %39 : vector<8x1024xf32>
    %41 = arith.truncf %40 : vector<8x1024xf32> to vector<8x1024xbf16>
    %c0_30 = arith.constant 0 : index
    %c0_31 = arith.constant 0 : index
    %42 = vector.load %arg12[%c0_30, %c0_31] : memref<1024x2048xbf16, #tpu.memory_space<vmem>>, vector<1024x2048xbf16>
    %cst_32 = arith.constant dense<0.000000e+00> : vector<8x2048xf32>
    %43 = tpu.matmul %41, %42, %cst_32 {dimension_numbers = #tpu.dot_dimension_numbers<[1], [0], [0], [1], [0, 0, 1, 1], [], []>} : vector<8x1024xbf16>, vector<1024x2048xbf16>, vector<8x2048xf32> -> vector<8x2048xf32>
    %c0_33 = arith.constant 0 : index
    %c0_34 = arith.constant 0 : index
    %44 = vector.load %arg13[%c0_33, %c0_34] : memref<1x2048xf32, #tpu.memory_space<vmem>>, vector<1x2048xf32>
    %45 = vector.broadcast %44 : vector<1x2048xf32> to vector<8x2048xf32>
    %46 = arith.addf %43, %45 : vector<8x2048xf32>
    %c0_35 = arith.constant 0 : index
    %c0_36 = arith.constant 0 : index
    %47 = vector.load %arg14[%c0_35, %c0_36] : memref<8x2048xf32, #tpu.memory_space<vmem>>, vector<8x2048xf32>
    tpu.vector_store %arg14[%c0_35, %c0_36], %46 {strides = array<i32>} : memref<8x2048xf32, #tpu.memory_space<vmem>>, vector<8x2048xf32>,
    return
  }
  func.func @transform_0(%arg0: i32) -> (i32, i32) {
    %c0_i32 = arith.constant 0 : i32
    %c0_i32_0 = arith.constant 0 : i32
    %c0_i32_1 = arith.constant 0 : i32
    return %c0_i32, %c0_i32_0 : i32, i32
  }
  func.func @transform_1(%arg0: i32) -> (i32, i32) {
    %c0_i32 = arith.constant 0 : i32
    %c0_i32_0 = arith.constant 0 : i32
    %c0_i32_1 = arith.constant 0 : i32
    return %c0_i32, %c0_i32_0 : i32, i32
  }
  func.func @transform_2(%arg0: i32) -> (i32, i32) {
    %c0_i32 = arith.constant 0 : i32
    %c0_i32_0 = arith.constant 0 : i32
    %c0_i32_1 = arith.constant 0 : i32
    return %c0_i32, %c0_i32_0 : i32, i32
  }
  func.func @transform_3(%arg0: i32) -> (i32, i32) {
    %c0_i32 = arith.constant 0 : i32
    %c0_i32_0 = arith.constant 0 : i32
    %c0_i32_1 = arith.constant 0 : i32
    return %c0_i32, %c0_i32_0 : i32, i32
  }
  func.func @transform_4(%arg0: i32) -> (i32, i32) {
    %c0_i32 = arith.constant 0 : i32
    %c0_i32_0 = arith.constant 0 : i32
    %c0_i32_1 = arith.constant 0 : i32
    return %c0_i32, %c0_i32_0 : i32, i32
  }
  func.func @transform_5(%arg0: i32) -> (i32, i32) {
    %c0_i32 = arith.constant 0 : i32
    %c0_i32_0 = arith.constant 0 : i32
    %c0_i32_1 = arith.constant 0 : i32
    return %c0_i32, %c0_i32_0 : i32, i32
  }
  func.func @transform_6(%arg0: i32) -> (i32, i32) {
    %c0_i32 = arith.constant 0 : i32
    %c0_i32_0 = arith.constant 0 : i32
    %c0_i32_1 = arith.constant 0 : i32
    return %c0_i32, %c0_i32_0 : i32, i32
  }
  func.func @transform_7(%arg0: i32) -> (i32, i32) {
    %c0_i32 = arith.constant 0 : i32
    %c0_i32_0 = arith.constant 0 : i32
    %c0_i32_1 = arith.constant 0 : i32
    return %c0_i32, %c0_i32_0 : i32, i32
  }
  func.func @transform_8(%arg0: i32) -> (i32, i32) {
    %c0_i32 = arith.constant 0 : i32
    %c0_i32_0 = arith.constant 0 : i32
    %c0_i32_1 = arith.constant 0 : i32
    return %c0_i32, %c0_i32_0 : i32, i32
  }
  func.func @transform_9(%arg0: i32) -> (i32, i32) {
    %c0_i32 = arith.constant 0 : i32
    %c0_i32_0 = arith.constant 0 : i32
    %c0_i32_1 = arith.constant 0 : i32
    return %c0_i32, %c0_i32_0 : i32, i32
  }
  func.func @transform_10(%arg0: i32) -> (i32, i32) {
    %c0_i32 = arith.constant 0 : i32
    %c0_i32_0 = arith.constant 0 : i32
    %c0_i32_1 = arith.constant 0 : i32
    return %c0_i32, %c0_i32_0 : i32, i32
  }
  func.func @transform_11(%arg0: i32) -> (i32, i32) {
    %c0_i32 = arith.constant 0 : i32
    %c0_i32_0 = arith.constant 0 : i32
    return %c0_i32, %arg0 : i32, i32
  }
  func.func @transform_12(%arg0: i32) -> (i32, i32) {
    %c0_i32 = arith.constant 0 : i32
    %c0_i32_0 = arith.constant 0 : i32
    return %c0_i32, %arg0 : i32, i32
  }
  func.func @transform_13(%arg0: i32) -> (i32, i32) {
    %c0_i32 = arith.constant 0 : i32
    %c0_i32_0 = arith.constant 0 : i32
    return %c0_i32, %arg0 : i32, i32
  }
}

</mosaic_0001>

<llo_original>
// kernel: policy_pallas.1
$region0: #{policy_pallas.1}
  #allocation0 [shape = 'u32[]', space=smem, size = 0x4, offset = 0x4, fixed_abs, tag = 'smem constant byte address 0x4 - core index']
  #allocation1 [shape = 'u32[144,128]{1,0:T(1,128)}', space=vmem, size = 0x12000, scoped, tag = 'internal scratch']
  %s0 = inlined_call_operand.hbm [shape: f32[8,32], index: 0, kind: input, shape index: {}]
  %s1 = inlined_call_operand.hbm [shape: bf16[32,1024], index: 1, kind: input, shape index: {}]
  %s2 = inlined_call_operand.hbm [shape: f32[1,1024], index: 2, kind: input, shape index: {}]
  %s3 = inlined_call_operand.hbm [shape: bf16[1024,512], index: 3, kind: input, shape index: {}]
  %s4 = inlined_call_operand.hbm [shape: f32[1,512], index: 4, kind: input, shape index: {}]
  %s5 = inlined_call_operand.hbm [shape: bf16[512,256], index: 5, kind: input, shape index: {}]
  %s6 = inlined_call_operand.hbm [shape: f32[1,256], index: 6, kind: input, shape index: {}]
  %s7 = inlined_call_operand.hbm [shape: bf16[256,512], index: 7, kind: input, shape index: {}]
  %s8 = inlined_call_operand.hbm [shape: f32[1,512], index: 8, kind: input, shape index: {}]
  %s9 = inlined_call_operand.hbm [shape: bf16[512,1024], index: 9, kind: input, shape index: {}]
  %s10 = inlined_call_operand.hbm [shape: f32[1,1024], index: 10, kind: input, shape index: {}]
  %s11 = inlined_call_operand.hbm [shape: bf16[1024,2048], index: 11, kind: input, shape index: {}]
  %s12 = inlined_call_operand.hbm [shape: f32[1,2048], index: 12, kind: input, shape index: {}]
  %s13 = inlined_call_operand.hbm [shape: f32[8,2048], index: 13, kind: output, shape index: {}]
  %s14 = sld [smem:[#allocation0]]
  $region114: #{policy_pallas.1} parent=0
    _
  %s16 = ssub.s32 1, %s14
  %s17 = scalar_select 0, %s16, %s14
  $region1: #{policy_pallas.1} parent=0
    #allocation2 [shape = 'u8[4096]{0}', space=vmem, size = 0x1000, scoped, tag = 'input window, operand 0, single buffered']
    #allocation3 [shape = 's32[1]{0}', space=sflag, size = 0x4, scoped, tag = 'scoped memory for policy_pallas.1']
    #allocation4 [shape = 's32[1]{0}', space=sflag, size = 0x4, scoped, tag = 'scoped memory for policy_pallas.1']
    #allocation5 [shape = 'u8[65536]{0}', space=vmem, size = 0x10000, scoped, tag = 'input window, operand 1, single buffered']
    #allocation6 [shape = 's32[1]{0}', space=sflag, size = 0x4, scoped, tag = 'scoped memory for policy_pallas.1']
    #allocation7 [shape = 'u8[4096]{0}', space=vmem, size = 0x1000, scoped, tag = 'input window, operand 2, single buffered']
    #allocation8 [shape = 'u8[1048576]{0}', space=vmem, size = 0x100000, scoped, tag = 'input window, operand 3, single buffered']
    #allocation9 [shape = 's32[1]{0}', space=sflag, size = 0x4, scoped, tag = 'scoped memory for policy_pallas.1']
    #allocation10 [shape = 'u8[2048]{0}', space=vmem, size = 0x800, scoped, tag = 'input window, operand 4, single buffered']
    #allocation11 [shape = 'u8[262144]{0}', space=vmem, size = 0x40000, scoped, tag = 'input window, operand 5, single buffered']
    #allocation12 [shape = 's32[1]{0}', space=sflag, size = 0x4, scoped, tag = 'scoped memory for policy_pallas.1']
    #allocation13 [shape = 'u8[1024]{0}', space=vmem, size = 0x400, scoped, tag = 'input window, operand 6, single buffered']
    #allocation14 [shape = 'u8[262144]{0}', space=vmem, size = 0x40000, scoped, tag = 'input window, operand 7, single buffered']
    #allocation15 [shape = 's32[1]{0}', space=sflag, size = 0x4, scoped, tag = 'scoped memory for policy_pallas.1']
    #allocation16 [shape = 'u8[2048]{0}', space=vmem, size = 0x800, scoped, tag = 'input window, operand 8, single buffered']
    #allocation17 [shape = 'u8[1048576]{0}', space=vmem, size = 0x100000, scoped, tag = 'input window, operand 9, single buffered']
    #allocation18 [shape = 's32[1]{0}', space=sflag, size = 0x4, scoped, tag = 'scoped memory for policy_pallas.1']
    #allocation19 [shape = 'u8[4096]{0}', space=vmem, size = 0x1000, scoped, tag = 'input window, operand 10, single buffered']
    #allocation20 [shape = 'u8[4194304]{0}', space=vmem, size = 0x400000, scoped, tag = 'input window, operand 11, single buffered']
    #allocation21 [shape = 's32[1]{0}', space=sflag, size = 0x4, scoped, tag = 'scoped memory for policy_pallas.1']
    #allocation22 [shape = 'u8[8192]{0}', space=vmem, size = 0x2000, scoped, tag = 'input window, operand 12, single buffered']
    #allocation23 [shape = 'u8[65536]{0}', space=vmem, size = 0x10000, scoped, tag = 'output window, operand 0, single buffered']
    %18 = vsyncpa [#allocation3], 0
    %19 = vsyncpa [#allocation6], 0
    %20 = vsyncpa [#allocation9], 0
    %21 = vsyncpa [#allocation12], 0
    %22 = vsyncpa [#allocation15], 0
    %23 = vsyncpa [#allocation18], 0
    %24 = vsyncpa [#allocation21], 0
    %25 = vsyncpa [#allocation4], 0
    // Predicated region
    $region2: #{policy_pallas.1} parent=1 // pred_check
      _
    $region3: #{policy_pallas.1} parent=1 // pred_check_branch
      %27 = sbr.rel (0) target = $region5
    $region4: #{policy_pallas.1} parent=1 // pred_region
      %s29 = ssub.s32 128, 128
      %30 = vsyncadd [#allocation3], %s29
      %s32 = sshll.u32 [#allocation2], 4
      %s33 = int_to_ptr.vmem [resolvable:$true] %s32
      %35 = dma.hbm_to_vmem [thread:$0]  %s0, 128, %s33, [#allocation3]
    $region5: #{policy_pallas.1} parent=1 // pred_fallthru
      _
    // Predicated region
    $region6: #{policy_pallas.1} parent=1 // pred_check
      _
    $region7: #{policy_pallas.1} parent=1 // pred_check_branch
      %37 = sbr.rel (0) target = $region9
    $region8: #{policy_pallas.1} parent=1 // pred_region
      %s39 = ssub.s32 2048, 2048
      %40 = vsyncadd [#allocation6], %s39
      %s41 = sshll.u32 [#allocation5], 4
      %s42 = int_to_ptr.vmem [resolvable:$true] %s41
      %47 = dma.hbm_to_vmem [thread:$0]  %s1, 2048, %s42, [#allocation6], 512, 512, 32
    $region9: #{policy_pallas.1} parent=1 // pred_fallthru
      _
    // Predicated region
    $region10: #{policy_pallas.1} parent=1 // pred_check
      _
    $region11: #{policy_pallas.1} parent=1 // pred_check_branch
      %49 = sbr.rel (0) target = $region13
    $region12: #{policy_pallas.1} parent=1 // pred_region
      %s51 = ssub.s32 128, 128
      %52 = vsyncadd [#allocation6], %s51
      %s54 = sshll.u32 [#allocation7], 4
      %s55 = int_to_ptr.vmem [resolvable:$true] %s54
      %57 = dma.hbm_to_vmem [thread:$0]  %s2, 128, %s55, [#allocation6]
    $region13: #{policy_pallas.1} parent=1 // pred_fallthru
      _
    // Predicated region
    $region14: #{policy_pallas.1} parent=1 // pred_check
      _
    $region15: #{policy_pallas.1} parent=1 // pred_check_branch
      %59 = sbr.rel (0) target = $region17
    $region16: #{policy_pallas.1} parent=1 // pred_region
      %s61 = ssub.s32 32768, 32768
      %62 = vsyncadd [#allocation9], %s61
      %s63 = sshll.u32 [#allocation8], 4
      %s64 = int_to_ptr.vmem [resolvable:$true] %s63
      %69 = dma.hbm_to_vmem [thread:$0]  %s3, 32768, %s64, [#allocation9], 256, 256, 16
    $region17: #{policy_pallas.1} parent=1 // pred_fallthru
      _
    // Predicated region
    $region18: #{policy_pallas.1} parent=1 // pred_check
      _
    $region19: #{policy_pallas.1} parent=1 // pred_check_branch
      %71 = sbr.rel (0) target = $region21
    $region20: #{policy_pallas.1} parent=1 // pred_region
      %s73 = ssub.s32 64, 64
      %74 = vsyncadd [#allocation9], %s73
      %s76 = sshll.u32 [#allocation10], 4
      %s77 = int_to_ptr.vmem [resolvable:$true] %s76
      %79 = dma.hbm_to_vmem [thread:$0]  %s4, 64, %s77, [#allocation9]
    $region21: #{policy_pallas.1} parent=1 // pred_fallthru
      _
    // Predicated region
    $region22: #{policy_pallas.1} parent=1 // pred_check
      _
    $region23: #{policy_pallas.1} parent=1 // pred_check_branch
      %81 = sbr.rel (0) target = $region25
    $region24: #{policy_pallas.1} parent=1 // pred_region
      %s83 = ssub.s32 8192, 8192
      %84 = vsyncadd [#allocation12], %s83
      %s85 = sshll.u32 [#allocation11], 4
      %s86 = int_to_ptr.vmem [resolvable:$true] %s85
      %91 = dma.hbm_to_vmem [thread:$0]  %s5, 8192, %s86, [#allocation12], 128, 128, 8
    $region25: #{policy_pallas.1} parent=1 // pred_fallthru
      _
    // Predicated region
    $region26: #{policy_pallas.1} parent=1 // pred_check
      _
    $region27: #{policy_pallas.1} parent=1 // pred_check_branch
      %93 = sbr.rel (0) target = $region29
    $region28: #{policy_pallas.1} parent=1 // pred_region
      %s95 = ssub.s32 32, 32
      %96 = vsyncadd [#allocation12], %s95
      %s98 = sshll.u32 [#allocation13], 4
      %s99 = int_to_ptr.vmem [resolvable:$true] %s98
      %101 = dma.hbm_to_vmem [thread:$0]  %s6, 32, %s99, [#allocation12]
    $region29: #{policy_pallas.1} parent=1 // pred_fallthru
      _
    // Predicated region
    $region30: #{policy_pallas.1} parent=1 // pred_check
      _
    $region31: #{policy_pallas.1} parent=1 // pred_check_branch
      %103 = sbr.rel (0) target = $region33
    $region32: #{policy_pallas.1} parent=1 // pred_region
      %s105 = ssub.s32 8192, 8192
      %106 = vsyncadd [#allocation15], %s105
      %s107 = sshll.u32 [#allocation14], 4
      %s108 = int_to_ptr.vmem [resolvable:$true] %s107
      %113 = dma.hbm_to_vmem [thread:$0]  %s7, 8192, %s108, [#allocation15], 256, 256, 16
    $region33: #{policy_pallas.1} parent=1 // pred_fallthru
      _
    // Predicated region
    $region34: #{policy_pallas.1} parent=1 // pred_check
      _
    $region35: #{policy_pallas.1} parent=1 // pred_check_branch
      %115 = sbr.rel (0) target = $region37
    $region36: #{policy_pallas.1} parent=1 // pred_region
      %s117 = ssub.s32 64, 64
      %118 = vsyncadd [#allocation15], %s117
      %s120 = sshll.u32 [#allocation16], 4
      %s121 = int_to_ptr.vmem [resolvable:$true] %s120
      %123 = dma.hbm_to_vmem [thread:$0]  %s8, 64, %s121, [#allocation15]
    $region37: #{policy_pallas.1} parent=1 // pred_fallthru
      _
    // Predicated region
    $region38: #{policy_pallas.1} parent=1 // pred_check
      _
    $region39: #{policy_pallas.1} parent=1 // pred_check_branch
      %125 = sbr.rel (0) target = $region41
    $region40: #{policy_pallas.1} parent=1 // pred_region
      %s127 = ssub.s32 32768, 32768
      %128 = vsyncadd [#allocation18], %s127
      %s129 = sshll.u32 [#allocation17], 4
      %s130 = int_to_ptr.vmem [resolvable:$true] %s129
      %135 = dma.hbm_to_vmem [thread:$0]  %s9, 32768, %s130, [#allocation18], 512, 512, 32
    $region41: #{policy_pallas.1} parent=1 // pred_fallthru
      _
    // Predicated region
    $region42: #{policy_pallas.1} parent=1 // pred_check
      _
    $region43: #{policy_pallas.1} parent=1 // pred_check_branch
      %137 = sbr.rel (0) target = $region45
    $region44: #{policy_pallas.1} parent=1 // pred_region
      %s139 = ssub.s32 128, 128
      %140 = vsyncadd [#allocation18], %s139
      %s142 = sshll.u32 [#allocation19], 4
      %s143 = int_to_ptr.vmem [resolvable:$true] %s142
      %145 = dma.hbm_to_vmem [thread:$0]  %s10, 128, %s143, [#allocation18]
    $region45: #{policy_pallas.1} parent=1 // pred_fallthru
      _
    // Predicated region
    $region46: #{policy_pallas.1} parent=1 // pred_check
      _
    $region47: #{policy_pallas.1} parent=1 // pred_check_branch
      %147 = sbr.rel (0) target = $region49
    $region48: #{policy_pallas.1} parent=1 // pred_region
      %s149 = ssub.s32 131072, 131072
      %150 = vsyncadd [#allocation21], %s149
      %s151 = sshll.u32 [#allocation20], 4
      %s152 = int_to_ptr.vmem [resolvable:$true] %s151
      %157 = dma.hbm_to_vmem [thread:$0]  %s11, 131072, %s152, [#allocation21], 1024, 1024, 64
    $region49: #{policy_pallas.1} parent=1 // pred_fallthru
      _
    // Predicated region
    $region50: #{policy_pallas.1} parent=1 // pred_check
      _
    $region51: #{policy_pallas.1} parent=1 // pred_check_branch
      %159 = sbr.rel (0) target = $region53
    $region52: #{policy_pallas.1} parent=1 // pred_region
      %s161 = ssub.s32 256, 256
      %162 = vsyncadd [#allocation21], %s161
      %s164 = sshll.u32 [#allocation22], 4
      %s165 = int_to_ptr.vmem [resolvable:$true] %s164
      %167 = dma.hbm_to_vmem [thread:$0]  %s12, 256, %s165, [#allocation21]
    $region53: #{policy_pallas.1} parent=1 // pred_fallthru
      _
    // Predicated region
    $region54: #{policy_pallas.1} parent=1 // pred_check
      _
    $region55: #{policy_pallas.1} parent=1 // pred_check_branch
      %169 = sbr.rel (0) target = $region57
    $region56: #{policy_pallas.1} parent=1 // pred_region
      %170 = dma.done [#allocation3], 128
    $region57: #{policy_pallas.1} parent=1 // pred_fallthru
      _
    // Predicated region
    $region58: #{policy_pallas.1} parent=1 // pred_check
      _
    $region59: #{policy_pallas.1} parent=1 // pred_check_branch
      %172 = sbr.rel (0) target = $region61
    $region60: #{policy_pallas.1} parent=1 // pred_region
      %173 = dma.done [#allocation6], 2048
    $region61: #{policy_pallas.1} parent=1 // pred_fallthru
      _
    // Predicated region
    $region62: #{policy_pallas.1} parent=1 // pred_check
      _
    $region63: #{policy_pallas.1} parent=1 // pred_check_branch
      %175 = sbr.rel (0) target = $region65
    $region64: #{policy_pallas.1} parent=1 // pred_region
      %176 = dma.done [#allocation6], 128
    $region65: #{policy_pallas.1} parent=1 // pred_fallthru
      _
    // Predicated region
    $region66: #{policy_pallas.1} parent=1 // pred_check
      _
    $region67: #{policy_pallas.1} parent=1 // pred_check_branch
      %178 = sbr.rel (0) target = $region69
    $region68: #{policy_pallas.1} parent=1 // pred_region
      %179 = dma.done [#allocation9], 32768
    $region69: #{policy_pallas.1} parent=1 // pred_fallthru
      _
    // Predicated region
    $region70: #{policy_pallas.1} parent=1 // pred_check
      _
    $region71: #{policy_pallas.1} parent=1 // pred_check_branch
      %181 = sbr.rel (0) target = $region73
    $region72: #{policy_pallas.1} parent=1 // pred_region
      %182 = dma.done [#allocation9], 64
    $region73: #{policy_pallas.1} parent=1 // pred_fallthru
      _
    // Predicated region
    $region74: #{policy_pallas.1} parent=1 // pred_check
      _
    $region75: #{policy_pallas.1} parent=1 // pred_check_branch
      %184 = sbr.rel (0) target = $region77
    $region76: #{policy_pallas.1} parent=1 // pred_region
      %185 = dma.done [#allocation12], 8192
    $region77: #{policy_pallas.1} parent=1 // pred_fallthru
      _
    // Predicated region
    $region78: #{policy_pallas.1} parent=1 // pred_check
      _
    $region79: #{policy_pallas.1} parent=1 // pred_check_branch
      %187 = sbr.rel (0) target = $region81
    $region80: #{policy_pallas.1} parent=1 // pred_region
      %188 = dma.done [#allocation12], 32
    $region81: #{policy_pallas.1} parent=1 // pred_fallthru
      _
    // Predicated region
    $region82: #{policy_pallas.1} parent=1 // pred_check
      _
    $region83: #{policy_pallas.1} parent=1 // pred_check_branch
      %190 = sbr.rel (0) target = $region85
    $region84: #{policy_pallas.1} parent=1 // pred_region
      %191 = dma.done [#allocation15], 8192
    $region85: #{policy_pallas.1} parent=1 // pred_fallthru
      _
    // Predicated region
    $region86: #{policy_pallas.1} parent=1 // pred_check
      _
    $region87: #{policy_pallas.1} parent=1 // pred_check_branch
      %193 = sbr.rel (0) target = $region89
    $region88: #{policy_pallas.1} parent=1 // pred_region
      %194 = dma.done [#allocation15], 64
    $region89: #{policy_pallas.1} parent=1 // pred_fallthru
      _
    // Predicated region
    $region90: #{policy_pallas.1} parent=1 // pred_check
      _
    $region91: #{policy_pallas.1} parent=1 // pred_check_branch
      %196 = sbr.rel (0) target = $region93
    $region92: #{policy_pallas.1} parent=1 // pred_region
      %197 = dma.done [#allocation18], 32768
    $region93: #{policy_pallas.1} parent=1 // pred_fallthru
      _
    // Predicated region
    $region94: #{policy_pallas.1} parent=1 // pred_check
      _
    $region95: #{policy_pallas.1} parent=1 // pred_check_branch
      %199 = sbr.rel (0) target = $region97
    $region96: #{policy_pallas.1} parent=1 // pred_region
      %200 = dma.done [#allocation18], 128
    $region97: #{policy_pallas.1} parent=1 // pred_fallthru
      _
    // Predicated region
    $region98: #{policy_pallas.1} parent=1 // pred_check
      _
    $region99: #{policy_pallas.1} parent=1 // pred_check_branch
      %202 = sbr.rel (0) target = $region101
    $region100: #{policy_pallas.1} parent=1 // pred_region
      %203 = dma.done [#allocation21], 131072
    $region101: #{policy_pallas.1} parent=1 // pred_fallthru
      _
    // Predicated region
    $region102: #{policy_pallas.1} parent=1 // pred_check
      _
    $region103: #{policy_pallas.1} parent=1 // pred_check_branch
      %205 = sbr.rel (0) target = $region105
    $region104: #{policy_pallas.1} parent=1 // pred_region
      %206 = dma.done [#allocation21], 256
    $region105: #{policy_pallas.1} parent=1 // pred_fallthru
      _
    %v208 = vld [vmem:[#allocation2] sm:$0xff]
    %v209 = vpack.c.bf16 %v208, %v208
    %v210 = vld [vmem:[#allocation5] sm:$0xff]
    %v211 = vld [vmem:[#allocation5 + $0x8] sm:$0xff]
    %v212 = vld [vmem:[#allocation5 + $0x10] sm:$0xff]
    %v213 = vld [vmem:[#allocation5 + $0x18] sm:$0xff]
    %v214 = vld [vmem:[#allocation5 + $0x20] sm:$0xff]
    %v215 = vld [vmem:[#allocation5 + $0x28] sm:$0xff]
    %v216 = vld [vmem:[#allocation5 + $0x30] sm:$0xff]
    %v217 = vld [vmem:[#allocation5 + $0x38] sm:$0xff]
    %v218 = vld [vmem:[#allocation5 + $0x40] sm:$0xff]
    %v219 = vld [vmem:[#allocation5 + $0x48] sm:$0xff]
    %v220 = vld [vmem:[#allocation5 + $0x50] sm:$0xff]
    %v221 = vld [vmem:[#allocation5 + $0x58] sm:$0xff]
    %v222 = vld [vmem:[#allocation5 + $0x60] sm:$0xff]
    %v223 = vld [vmem:[#allocation5 + $0x68] sm:$0xff]
    %v224 = vld [vmem:[#allocation5 + $0x70] sm:$0xff]
    %v225 = vld [vmem:[#allocation5 + $0x78] sm:$0xff]
    %v226 = vld [vmem:[#allocation7] sm:$0xff]
    %v228 = vlaneseq
    %v229 = vshrl.u32 %v228, 7
    %v230 = vsub.s32 0, %v229
    %v231 = vrot.slane %v226, %v230
    %v232 = vlaneseq
    %v233 = vshrl.u32 %v232, 7
    %v234 = vsub.s32 1, %v233
    %v235 = vrot.slane %v226, %v234
    %v236 = vlaneseq
    %v237 = vshrl.u32 %v236, 7
    %v238 = vsub.s32 2, %v237
    %v239 = vrot.slane %v226, %v238
    %v240 = vlaneseq
    %v241 = vshrl.u32 %v240, 7
    %v242 = vsub.s32 3, %v241
    %v243 = vrot.slane %v226, %v242
    %v244 = vlaneseq
    %v245 = vshrl.u32 %v244, 7
    %v246 = vsub.s32 4, %v245
    %v247 = vrot.slane %v226, %v246
    %v248 = vlaneseq
    %v249 = vshrl.u32 %v248, 7
    %v250 = vsub.s32 5, %v249
    %v251 = vrot.slane %v226, %v250
    %v252 = vlaneseq
    %v253 = vshrl.u32 %v252, 7
    %v254 = vsub.s32 6, %v253
    %v255 = vrot.slane %v226, %v254
    %v256 = vlaneseq
    %v257 = vshrl.u32 %v256, 7
    %v258 = vsub.s32 7, %v257
    %v259 = vrot.slane %v226, %v258
    %v284 = vunpack.c.l.b16 %v210
    %v285 = vunpack.c.h.b16 %v210
    %v286 = vunpack.c.l.b16 %v211
    %v287 = vunpack.c.h.b16 %v211
    %v288 = vunpack.c.l.b16 %v212
    %v289 = vunpack.c.h.b16 %v212
    %v290 = vunpack.c.l.b16 %v213
    %v291 = vunpack.c.h.b16 %v213
    %v292 = vunpack.c.l.b16 %v214
    %v293 = vunpack.c.h.b16 %v214
    %v294 = vunpack.c.l.b16 %v215
    %v295 = vunpack.c.h.b16 %v215
    %v296 = vunpack.c.l.b16 %v216
    %v297 = vunpack.c.h.b16 %v216
    %v298 = vunpack.c.l.b16 %v217
    %v299 = vunpack.c.h.b16 %v217
    %v300 = vunpack.c.l.b16 %v218
    %v301 = vunpack.c.h.b16 %v218
    %v302 = vunpack.c.l.b16 %v219
    %v303 = vunpack.c.h.b16 %v219
    %v304 = vunpack.c.l.b16 %v220
    %v305 = vunpack.c.h.b16 %v220
    %v306 = vunpack.c.l.b16 %v221
    %v307 = vunpack.c.h.b16 %v221
    %v308 = vunpack.c.l.b16 %v222
    %v309 = vunpack.c.h.b16 %v222
    %v310 = vunpack.c.l.b16 %v223
    %v311 = vunpack.c.h.b16 %v223
    %v312 = vunpack.c.l.b16 %v224
    %v313 = vunpack.c.h.b16 %v224
    %v314 = vunpack.c.l.b16 %v225
    %v315 = vunpack.c.h.b16 %v225
    %v316 = vpack.c.b16 %v292, %v284
    %v317 = vpack.c.b16 %v293, %v285
    %v318 = vpack.c.b16 %v294, %v286
    %v319 = vpack.c.b16 %v295, %v287
    %v320 = vpack.c.b16 %v296, %v288
    %v321 = vpack.c.b16 %v297, %v289
    %v322 = vpack.c.b16 %v298, %v290
    %v323 = vpack.c.b16 %v299, %v291
    %v324 = vpack.c.b16 %v308, %v300
    %v325 = vpack.c.b16 %v309, %v301
    %v326 = vpack.c.b16 %v310, %v302
    %v327 = vpack.c.b16 %v311, %v303
    %v328 = vpack.c.b16 %v312, %v304
    %v329 = vpack.c.b16 %v313, %v305
    %v330 = vpack.c.b16 %v314, %v306
    %v331 = vpack.c.b16 %v315, %v307
    %vm348 = vcmask 261120
    %v350 = vsel %vm348, %v209, 0
    %352 = vmatprep.subr.bf16.mxu0 0
    %353 = vmatpush1.bf16.msra.mxu0 0
    %354 = vmatprep.subr.bf16.mxu0 0
    %355 = vmatpush1.bf16.msra.mxu0 0
    %356 = vmatprep.subr.bf16.mxu0 0
    %357 = vmatpush1.bf16.msra.mxu0 0
    %358 = vmatprep.subr.bf16.mxu0 0
    %359 = vmatpush1.bf16.msra.mxu0 0
    %360 = vmatprep.subr.bf16.mxu0 0
    %361 = vmatpush1.bf16.msra.mxu0 0
    %362 = vmatprep.subr.bf16.mxu0 0
    %363 = vmatpush1.bf16.msra.mxu0 0
    %364 = vmatprep.subr.bf16.mxu0 %v325
    %365 = vmatpush1.bf16.msra.mxu0 %v324
    %366 = vmatprep.subr.bf16.mxu0 %v317
    %367 = vmatpush1.bf16.msra.mxu0 %v316
    %368 = vmatprep.subr.bf16.mxu0 0
    %369 = vmatpush2.bf16.msra.mxu0 0
    %370 = vmatprep.subr.bf16.mxu0 0
    %371 = vmatpush2.bf16.msra.mxu0 0
    %372 = vmatprep.subr.bf16.mxu0 0
    %373 = vmatpush2.bf16.msra.mxu0 0
    %374 = vmatprep.subr.bf16.mxu0 0
    %375 = vmatpush2.bf16.msra.mxu0 0
    %376 = vmatprep.subr.bf16.mxu0 0
    %377 = vmatpush2.bf16.msra.mxu0 0
    %378 = vmatprep.subr.bf16.mxu0 0
    %379 = vmatpush2.bf16.msra.mxu0 0
    %380 = vmatprep.subr.bf16.mxu0 0
    %381 = vmatpush2.bf16.msra.mxu0 0
    %382 = vmatprep.subr.bf16.mxu0 0
    %383 = vmatpush2.bf16.msra.mxu0 0
    %384 = vmatprep.mubr.bf16.mxu0 0
    %385 = vmatmul.mubr.bf16.gmra.mxu0 %v350
    %v386 = vpop.f32.mrf.mxu0
    %v387 = vadd.f32 %v231, %v386
    %v388 = vpop.f32.mrf.mxu0
    %v389 = vadd.f32 %v235, %v388
    %v390 = vpop.f32.mrf.mxu0
    %v391 = vpop.f32.mrf.mxu0
    %392 = vdwg.mxu0
    %393 = vmatprep.subr.bf16.mxu0 0
    %394 = vmatpush1.bf16.msra.mxu0 0
    %395 = vmatprep.subr.bf16.mxu0 0
    %396 = vmatpush1.bf16.msra.mxu0 0
    %397 = vmatprep.subr.bf16.mxu0 0
    %398 = vmatpush1.bf16.msra.mxu0 0
    %399 = vmatprep.subr.bf16.mxu0 0
    %400 = vmatpush1.bf16.msra.mxu0 0
    %401 = vmatprep.subr.bf16.mxu0 0
    %402 = vmatpush1.bf16.msra.mxu0 0
    %403 = vmatprep.subr.bf16.mxu0 0
    %404 = vmatpush1.bf16.msra.mxu0 0
    %405 = vmatprep.subr.bf16.mxu0 %v327
    %406 = vmatpush1.bf16.msra.mxu0 %v326
    %407 = vmatprep.subr.bf16.mxu0 %v319
    %408 = vmatpush1.bf16.msra.mxu0 %v318
    %409 = vmatprep.subr.bf16.mxu0 0
    %410 = vmatpush2.bf16.msra.mxu0 0
    %411 = vmatprep.subr.bf16.mxu0 0
    %412 = vmatpush2.bf16.msra.mxu0 0
    %413 = vmatprep.subr.bf16.mxu0 0
    %414 = vmatpush2.bf16.msra.mxu0 0
    %415 = vmatprep.subr.bf16.mxu0 0
    %416 = vmatpush2.bf16.msra.mxu0 0
    %417 = vmatprep.subr.bf16.mxu0 0
    %418 = vmatpush2.bf16.msra.mxu0 0
    %419 = vmatprep.subr.bf16.mxu0 0
    %420 = vmatpush2.bf16.msra.mxu0 0
    %421 = vmatprep.subr.bf16.mxu0 0
    %422 = vmatpush2.bf16.msra.mxu0 0
    %423 = vmatprep.subr.bf16.mxu0 0
    %424 = vmatpush2.bf16.msra.mxu0 0
    %425 = vmatprep.mubr.bf16.mxu0 0
    %426 = vmatmul.mubr.bf16.gmra.mxu0 %v350
    %v427 = vpop.f32.mrf.mxu0
    %v428 = vadd.f32 %v239, %v427
    %v429 = vpop.f32.mrf.mxu0
    %v430 = vadd.f32 %v243, %v429
    %v431 = vpop.f32.mrf.mxu0
    %v432 = vpop.f32.mrf.mxu0
    %433 = vdwg.mxu0
    %434 = vmatprep.subr.bf16.mxu0 0
    %435 = vmatpush1.bf16.msra.mxu0 0
    %436 = vmatprep.subr.bf16.mxu0 0
    %437 = vmatpush1.bf16.msra.mxu0 0
    %438 = vmatprep.subr.bf16.mxu0 0
    %439 = vmatpush1.bf16.msra.mxu0 0
    %440 = vmatprep.subr.bf16.mxu0 0
    %441 = vmatpush1.bf16.msra.mxu0 0
    %442 = vmatprep.subr.bf16.mxu0 0
    %443 = vmatpush1.bf16.msra.mxu0 0
    %444 = vmatprep.subr.bf16.mxu0 0
    %445 = vmatpush1.bf16.msra.mxu0 0
    %446 = vmatprep.subr.bf16.mxu0 %v329
    %447 = vmatpush1.bf16.msra.mxu0 %v328
    %448 = vmatprep.subr.bf16.mxu0 %v321
    %449 = vmatpush1.bf16.msra.mxu0 %v320
    %450 = vmatprep.subr.bf16.mxu0 0
    %451 = vmatpush2.bf16.msra.mxu0 0
    %452 = vmatprep.subr.bf16.mxu0 0
    %453 = vmatpush2.bf16.msra.mxu0 0
    %454 = vmatprep.subr.bf16.mxu0 0
    %455 = vmatpush2.bf16.msra.mxu0 0
    %456 = vmatprep.subr.bf16.mxu0 0
    %457 = vmatpush2.bf16.msra.mxu0 0
    %458 = vmatprep.subr.bf16.mxu0 0
    %459 = vmatpush2.bf16.msra.mxu0 0
    %460 = vmatprep.subr.bf16.mxu0 0
    %461 = vmatpush2.bf16.msra.mxu0 0
    %462 = vmatprep.subr.bf16.mxu0 0
    %463 = vmatpush2.bf16.msra.mxu0 0
    %464 = vmatprep.subr.bf16.mxu0 0
    %465 = vmatpush2.bf16.msra.mxu0 0
    %466 = vmatprep.mubr.bf16.mxu0 0
    %467 = vmatmul.mubr.bf16.gmra.mxu0 %v350
    %v468 = vpop.f32.mrf.mxu0
    %v469 = vadd.f32 %v247, %v468
    %v470 = vpop.f32.mrf.mxu0
    %v471 = vadd.f32 %v251, %v470
    %v472 = vpop.f32.mrf.mxu0
    %v473 = vpop.f32.mrf.mxu0
    %474 = vdwg.mxu0
    %475 = vmatprep.subr.bf16.mxu0 0
    %476 = vmatpush1.bf16.msra.mxu0 0
    %477 = vmatprep.subr.bf16.mxu0 0
    %478 = vmatpush1.bf16.msra.mxu0 0
    %479 = vmatprep.subr.bf16.mxu0 0
    %480 = vmatpush1.bf16.msra.mxu0 0
    %481 = vmatprep.subr.bf16.mxu0 0
    %482 = vmatpush1.bf16.msra.mxu0 0
    %483 = vmatprep.subr.bf16.mxu0 0
    %484 = vmatpush1.bf16.msra.mxu0 0
    %485 = vmatprep.subr.bf16.mxu0 0
    %486 = vmatpush1.bf16.msra.mxu0 0
    %487 = vmatprep.subr.bf16.mxu0 %v331
    %488 = vmatpush1.bf16.msra.mxu0 %v330
    %489 = vmatprep.subr.bf16.mxu0 %v323
    %490 = vmatpush1.bf16.msra.mxu0 %v322
    %491 = vmatprep.subr.bf16.mxu0 0
    %492 = vmatpush2.bf16.msra.mxu0 0
    %493 = vmatprep.subr.bf16.mxu0 0
    %494 = vmatpush2.bf16.msra.mxu0 0
    %495 = vmatprep.subr.bf16.mxu0 0
    %496 = vmatpush2.bf16.msra.mxu0 0
    %497 = vmatprep.subr.bf16.mxu0 0
    %498 = vmatpush2.bf16.msra.mxu0 0
    %499 = vmatprep.subr.bf16.mxu0 0
    %500 = vmatpush2.bf16.msra.mxu0 0
    %501 = vmatprep.subr.bf16.mxu0 0
    %502 = vmatpush2.bf16.msra.mxu0 0
    %503 = vmatprep.subr.bf16.mxu0 0
    %504 = vmatpush2.bf16.msra.mxu0 0
    %505 = vmatprep.subr.bf16.mxu0 0
    %506 = vmatpush2.bf16.msra.mxu0 0
    %507 = vmatprep.mubr.bf16.mxu0 0
    %508 = vmatmul.mubr.bf16.gmra.mxu0 %v350
    %v509 = vpop.f32.mrf.mxu0
    %v510 = vadd.f32 %v255, %v509
    %v511 = vpop.f32.mrf.mxu0
    %v512 = vadd.f32 %v259, %v511
    %v513 = vpop.f32.mrf.mxu0
    %v514 = vpop.f32.mrf.mxu0
    %515 = vdwg.mxu0
    %v516 = vmax.f32 %v387, 0.0
    %v517 = vmax.f32 %v389, 0.0
    %v518 = vmax.f32 %v428, 0.0
    %v519 = vmax.f32 %v430, 0.0
    %v520 = vmax.f32 %v469, 0.0
    %v521 = vmax.f32 %v471, 0.0
    %v522 = vmax.f32 %v510, 0.0
    %v523 = vmax.f32 %v512, 0.0
    %v524 = vpack.c.bf16 %v516, %v516
    %v525 = vpack.c.bf16 %v517, %v517
    %v526 = vpack.c.bf16 %v518, %v518
    %v527 = vpack.c.bf16 %v519, %v519
    %v528 = vpack.c.bf16 %v520, %v520
    %v529 = vpack.c.bf16 %v521, %v521
    %v530 = vpack.c.bf16 %v522, %v522
    %v531 = vpack.c.bf16 %v523, %v523
    %v532 = vld [vmem:[#allocation8] sm:$0xff]
    %v533 = vld [vmem:[#allocation8 + $0x8] sm:$0xff]
    %v534 = vld [vmem:[#allocation8 + $0x10] sm:$0xff]
    %v535 = vld [vmem:[#allocation8 + $0x18] sm:$0xff]
    %v536 = vld [vmem:[#allocation8 + $0x20] sm:$0xff]
    %v537 = vld [vmem:[#allocation8 + $0x28] sm:$0xff]
    %v538 = vld [vmem:[#allocation8 + $0x30] sm:$0xff]
    %v539 = vld [vmem:[#allocation8 + $0x38] sm:$0xff]
    %v540 = vld [vmem:[#allocation8 + $0x40] sm:$0xff]
    %v541 = vld [vmem:[#allocation8 + $0x48] sm:$0xff]
    %v542 = vld [vmem:[#allocation8 + $0x50] sm:$0xff]
    %v543 = vld [vmem:[#allocation8 + $0x58] sm:$0xff]
    %v544 = vld [vmem:[#allocation8 + $0x60] sm:$0xff]
    %v545 = vld [vmem:[#allocation8 + $0x68] sm:$0xff]
    %v546 = vld [vmem:[#allocation8 + $0x70] sm:$0xff]
    %v547 = vld [vmem:[#allocation8 + $0x78] sm:$0xff]
    %v548 = vld [vmem:[#allocation8 + $0x80] sm:$0xff]
    %v549 = vld [vmem:[#allocation8 + $0x88] sm:$0xff]
    %v550 = vld [vmem:[#allocation8 + $0x90] sm:$0xff]
    %v551 = vld [vmem:[#allocation8 + $0x98] sm:$0xff]
    %v552 = vld [vmem:[#allocation8 + $0xa0] sm:$0xff]
    %v553 = vld [vmem:[#allocation8 + $0xa8] sm:$0xff]
    %v554 = vld [vmem:[#allocation8 + $0xb0] sm:$0xff]
    %v555 = vld [vmem:[#allocation8 + $0xb8] sm:$0xff]
    %v556 = vld [vmem:[#allocation8 + $0xc0] sm:$0xff]
    %v557 = vld [vmem:[#allocation8 + $0xc8] sm:$0xff]
    %v558 = vld [vmem:[#allocation8 + $0xd0] sm:$0xff]
    %v559 = vld [vmem:[#allocation8 + $0xd8] sm:$0xff]
    %v560 = vld [vmem:[#allocation8 + $0xe0] sm:$0xff]
    %v561 = vld [vmem:[#allocation8 + $0xe8] sm:$0xff]
    %v562 = vld [vmem:[#allocation8 + $0xf0] sm:$0xff]
    %v563 = vld [vmem:[#allocation8 + $0xf8] sm:$0xff]
    %v564 = vld [vmem:[#allocation8 + $0x100] sm:$0xff]
    %v565 = vld [vmem:[#allocation8 + $0x108] sm:$0xff]
    %v566 = vld [vmem:[#allocation8 + $0x110] sm:$0xff]
    %v567 = vld [vmem:[#allocation8 + $0x118] sm:$0xff]
    %v568 = vld [vmem:[#allocation8 + $0x120] sm:$0xff]
    %v569 = vld [vmem:[#allocation8 + $0x128] sm:$0xff]
    %v570 = vld [vmem:[#allocation8 + $0x130] sm:$0xff]
    %v571 = vld [vmem:[#allocation8 + $0x138] sm:$0xff]
    %v572 = vld [vmem:[#allocation8 + $0x140] sm:$0xff]
    %v573 = vld [vmem:[#allocation8 + $0x148] sm:$0xff]
    %v574 = vld [vmem:[#allocation8 + $0x150] sm:$0xff]
    %v575 = vld [vmem:[#allocation8 + $0x158] sm:$0xff]
    %v576 = vld [vmem:[#allocation8 + $0x160] sm:$0xff]
    %v577 = vld [vmem:[#allocation8 + $0x168] sm:$0xff]
    %v578 = vld [vmem:[#allocation8 + $0x170] sm:$0xff]
    %v579 = vld [vmem:[#allocation8 + $0x178] sm:$0xff]
    %v580 = vld [vmem:[#allocation8 + $0x180] sm:$0xff]
    %v581 = vld [vmem:[#allocation8 + $0x188] sm:$0xff]
    %v582 = vld [vmem:[#allocation8 + $0x190] sm:$0xff]
    %v583 = vld [vmem:[#allocation8 + $0x198] sm:$0xff]
    %v584 = vld [vmem:[#allocation8 + $0x1a0] sm:$0xff]
    %v585 = vld [vmem:[#allocation8 + $0x1a8] sm:$0xff]
    %v586 = vld [vmem:[#allocation8 + $0x1b0] sm:$0xff]
    %v587 = vld [vmem:[#allocation8 + $0x1b8] sm:$0xff]
    %v588 = vld [vmem:[#allocation8 + $0x1c0] sm:$0xff]
    %v589 = vld [vmem:[#allocation8 + $0x1c8] sm:$0xff]
    %v590 = vld [vmem:[#allocation8 + $0x1d0] sm:$0xff]
    %v591 = vld [vmem:[#allocation8 + $0x1d8] sm:$0xff]
    %v592 = vld [vmem:[#allocation8 + $0x1e0] sm:$0xff]
    %v593 = vld [vmem:[#allocation8 + $0x1e8] sm:$0xff]
    %v594 = vld [vmem:[#allocation8 + $0x1f0] sm:$0xff]
    %v595 = vld [vmem:[#allocation8 + $0x1f8] sm:$0xff]
    %v596 = vld [vmem:[#allocation8 + $0x200] sm:$0xff]
    %v597 = vld [vmem:[#allocation8 + $0x208] sm:$0xff]
    %v598 = vld [vmem:[#allocation8 + $0x210] sm:$0xff]
    %v599 = vld [vmem:[#allocation8 + $0x218] sm:$0xff]
    %v600 = vld [vmem:[#allocation8 + $0x220] sm:$0xff]
    %v601 = vld [vmem:[#allocation8 + $0x228] sm:$0xff]
    %v602 = vld [vmem:[#allocation8 + $0x230] sm:$0xff]
    %v603 = vld [vmem:[#allocation8 + $0x238] sm:$0xff]
    %v604 = vld [vmem:[#allocation8 + $0x240] sm:$0xff]
    %v605 = vld [vmem:[#allocation8 + $0x248] sm:$0xff]
    %v606 = vld [vmem:[#allocation8 + $0x250] sm:$0xff]
    %v607 = vld [vmem:[#allocation8 + $0x258] sm:$0xff]
    %v608 = vld [vmem:[#allocation8 + $0x260] sm:$0xff]
    %v609 = vld [vmem:[#allocation8 + $0x268] sm:$0xff]
    %v610 = vld [vmem:[#allocation8 + $0x270] sm:$0xff]
    %v611 = vld [vmem:[#allocation8 + $0x278] sm:$0xff]
    %v612 = vld [vmem:[#allocation8 + $0x280] sm:$0xff]
    %v613 = vld [vmem:[#allocation8 + $0x288] sm:$0xff]
    %v614 = vld [vmem:[#allocation8 + $0x290] sm:$0xff]
    %v615 = vld [vmem:[#allocation8 + $0x298] sm:$0xff]
    %v616 = vld [vmem:[#allocation8 + $0x2a0] sm:$0xff]
    %v617 = vld [vmem:[#allocation8 + $0x2a8] sm:$0xff]
    %v618 = vld [vmem:[#allocation8 + $0x2b0] sm:$0xff]
    %v619 = vld [vmem:[#allocation8 + $0x2b8] sm:$0xff]
    %v620 = vld [vmem:[#allocation8 + $0x2c0] sm:$0xff]
    %v621 = vld [vmem:[#allocation8 + $0x2c8] sm:$0xff]
    %v622 = vld [vmem:[#allocation8 + $0x2d0] sm:$0xff]
    %v623 = vld [vmem:[#allocation8 + $0x2d8] sm:$0xff]
    %v624 = vld [vmem:[#allocation8 + $0x2e0] sm:$0xff]
    %v625 = vld [vmem:[#allocation8 + $0x2e8] sm:$0xff]
    %v626 = vld [vmem:[#allocation8 + $0x2f0] sm:$0xff]
    %v627 = vld [vmem:[#allocation8 + $0x2f8] sm:$0xff]
    %v628 = vld [vmem:[#allocation8 + $0x300] sm:$0xff]
    %v629 = vld [vmem:[#allocation8 + $0x308] sm:$0xff]
    %v630 = vld [vmem:[#allocation8 + $0x310] sm:$0xff]
    %v631 = vld [vmem:[#allocation8 + $0x318] sm:$0xff]
    %v632 = vld [vmem:[#allocation8 + $0x320] sm:$0xff]
    %v633 = vld [vmem:[#allocation8 + $0x328] sm:$0xff]
    %v634 = vld [vmem:[#allocation8 + $0x330] sm:$0xff]
    %v635 = vld [vmem:[#allocation8 + $0x338] sm:$0xff]
    %v636 = vld [vmem:[#allocation8 + $0x340] sm:$0xff]
    %v637 = vld [vmem:[#allocation8 + $0x348] sm:$0xff]
    %v638 = vld [vmem:[#allocation8 + $0x350] sm:$0xff]
    %v639 = vld [vmem:[#allocation8 + $0x358] sm:$0xff]
    %v640 = vld [vmem:[#allocation8 + $0x360] sm:$0xff]
    %v641 = vld [vmem:[#allocation8 + $0x368] sm:$0xff]
    %v642 = vld [vmem:[#allocation8 + $0x370] sm:$0xff]
    %v643 = vld [vmem:[#allocation8 + $0x378] sm:$0xff]
    %v644 = vld [vmem:[#allocation8 + $0x380] sm:$0xff]
    %v645 = vld [vmem:[#allocation8 + $0x388] sm:$0xff]
    %v646 = vld [vmem:[#allocation8 + $0x390] sm:$0xff]
    %v647 = vld [vmem:[#allocation8 + $0x398] sm:$0xff]
    %v648 = vld [vmem:[#allocation8 + $0x3a0] sm:$0xff]
    %v649 = vld [vmem:[#allocation8 + $0x3a8] sm:$0xff]
    %v650 = vld [vmem:[#allocation8 + $0x3b0] sm:$0xff]
    %v651 = vld [vmem:[#allocation8 + $0x3b8] sm:$0xff]
    %v652 = vld [vmem:[#allocation8 + $0x3c0] sm:$0xff]
    %v653 = vld [vmem:[#allocation8 + $0x3c8] sm:$0xff]
    %v654 = vld [vmem:[#allocation8 + $0x3d0] sm:$0xff]
    %v655 = vld [vmem:[#allocation8 + $0x3d8] sm:$0xff]
    %v656 = vld [vmem:[#allocation8 + $0x3e0] sm:$0xff]
    %v657 = vld [vmem:[#allocation8 + $0x3e8] sm:$0xff]
    %v658 = vld [vmem:[#allocation8 + $0x3f0] sm:$0xff]
    %v659 = vld [vmem:[#allocation8 + $0x3f8] sm:$0xff]
    %v660 = vld [vmem:[#allocation8 + $0x400] sm:$0xff]
    %v661 = vld [vmem:[#allocation8 + $0x408] sm:$0xff]
    %v662 = vld [vmem:[#allocation8 + $0x410] sm:$0xff]
    %v663 = vld [vmem:[#allocation8 + $0x418] sm:$0xff]
    %v664 = vld [vmem:[#allocation8 + $0x420] sm:$0xff]
    %v665 = vld [vmem:[#allocation8 + $0x428] sm:$0xff]
    %v666 = vld [vmem:[#allocation8 + $0x430] sm:$0xff]
    %v667 = vld [vmem:[#allocation8 + $0x438] sm:$0xff]
    %v668 = vld [vmem:[#allocation8 + $0x440] sm:$0xff]
    %v669 = vld [vmem:[#allocation8 + $0x448] sm:$0xff]
    %v670 = vld [vmem:[#allocation8 + $0x450] sm:$0xff]
    %v671 = vld [vmem:[#allocation8 + $0x458] sm:$0xff]
    %v672 = vld [vmem:[#allocation8 + $0x460] sm:$0xff]
    %v673 = vld [vmem:[#allocation8 + $0x468] sm:$0xff]
    %v674 = vld [vmem:[#allocation8 + $0x470] sm:$0xff]
    %v675 = vld [vmem:[#allocation8 + $0x478] sm:$0xff]
    %v676 = vld [vmem:[#allocation8 + $0x480] sm:$0xff]
    %v677 = vld [vmem:[#allocation8 + $0x488] sm:$0xff]
    %v678 = vld [vmem:[#allocation8 + $0x490] sm:$0xff]
    %v679 = vld [vmem:[#allocation8 + $0x498] sm:$0xff]
    %v680 = vld [vmem:[#allocation8 + $0x4a0] sm:$0xff]
    %v681 = vld [vmem:[#allocation8 + $0x4a8] sm:$0xff]
    %v682 = vld [vmem:[#allocation8 + $0x4b0] sm:$0xff]
    %v683 = vld [vmem:[#allocation8 + $0x4b8] sm:$0xff]
    %v684 = vld [vmem:[#allocation8 + $0x4c0] sm:$0xff]
    %v685 = vld [vmem:[#allocation8 + $0x4c8] sm:$0xff]
    %v686 = vld [vmem:[#allocation8 + $0x4d0] sm:$0xff]
    %v687 = vld [vmem:[#allocation8 + $0x4d8] sm:$0xff]
    %v688 = vld [vmem:[#allocation8 + $0x4e0] sm:$0xff]
    %v689 = vld [vmem:[#allocation8 + $0x4e8] sm:$0xff]
    %v690 = vld [vmem:[#allocation8 + $0x4f0] sm:$0xff]
    %v691 = vld [vmem:[#allocation8 + $0x4f8] sm:$0xff]
    %v692 = vld [vmem:[#allocation8 + $0x500] sm:$0xff]
    %v693 = vld [vmem:[#allocation8 + $0x508] sm:$0xff]
    %v694 = vld [vmem:[#allocation8 + $0x510] sm:$0xff]
    %v695 = vld [vmem:[#allocation8 + $0x518] sm:$0xff]
    %v696 = vld [vmem:[#allocation8 + $0x520] sm:$0xff]
    %v697 = vld [vmem:[#allocation8 + $0x528] sm:$0xff]
    %v698 = vld [vmem:[#allocation8 + $0x530] sm:$0xff]
    %v699 = vld [vmem:[#allocation8 + $0x538] sm:$0xff]
    %v700 = vld [vmem:[#allocation8 + $0x540] sm:$0xff]
    %v701 = vld [vmem:[#allocation8 + $0x548] sm:$0xff]
    %v702 = vld [vmem:[#allocation8 + $0x550] sm:$0xff]
    %v703 = vld [vmem:[#allocation8 + $0x558] sm:$0xff]
    %v704 = vld [vmem:[#allocation8 + $0x560] sm:$0xff]
    %v705 = vld [vmem:[#allocation8 + $0x568] sm:$0xff]
    %v706 = vld [vmem:[#allocation8 + $0x570] sm:$0xff]
    %v707 = vld [vmem:[#allocation8 + $0x578] sm:$0xff]
    %v708 = vld [vmem:[#allocation8 + $0x580] sm:$0xff]
    %v709 = vld [vmem:[#allocation8 + $0x588] sm:$0xff]
    %v710 = vld [vmem:[#allocation8 + $0x590] sm:$0xff]
    %v711 = vld [vmem:[#allocation8 + $0x598] sm:$0xff]
    %v712 = vld [vmem:[#allocation8 + $0x5a0] sm:$0xff]
    %v713 = vld [vmem:[#allocation8 + $0x5a8] sm:$0xff]
    %v714 = vld [vmem:[#allocation8 + $0x5b0] sm:$0xff]
    %v715 = vld [vmem:[#allocation8 + $0x5b8] sm:$0xff]
    %v716 = vld [vmem:[#allocation8 + $0x5c0] sm:$0xff]
    %v717 = vld [vmem:[#allocation8 + $0x5c8] sm:$0xff]
    %v718 = vld [vmem:[#allocation8 + $0x5d0] sm:$0xff]
    %v719 = vld [vmem:[#allocation8 + $0x5d8] sm:$0xff]
    %v720 = vld [vmem:[#allocation8 + $0x5e0] sm:$0xff]
    %v721 = vld [vmem:[#allocation8 + $0x5e8] sm:$0xff]
    %v722 = vld [vmem:[#allocation8 + $0x5f0] sm:$0xff]
    %v723 = vld [vmem:[#allocation8 + $0x5f8] sm:$0xff]
    %v724 = vld [vmem:[#allocation8 + $0x600] sm:$0xff]
    %v725 = vld [vmem:[#allocation8 + $0x608] sm:$0xff]
    %v726 = vld [vmem:[#allocation8 + $0x610] sm:$0xff]
    %v727 = vld [vmem:[#allocation8 + $0x618] sm:$0xff]
    %v728 = vld [vmem:[#allocation8 + $0x620] sm:$0xff]
    %v729 = vld [vmem:[#allocation8 + $0x628] sm:$0xff]
    %v730 = vld [vmem:[#allocation8 + $0x630] sm:$0xff]
    %v731 = vld [vmem:[#allocation8 + $0x638] sm:$0xff]
    %v732 = vld [vmem:[#allocation8 + $0x640] sm:$0xff]
    %v733 = vld [vmem:[#allocation8 + $0x648] sm:$0xff]
    %v734 = vld [vmem:[#allocation8 + $0x650] sm:$0xff]
    %v735 = vld [vmem:[#allocation8 + $0x658] sm:$0xff]
    %v736 = vld [vmem:[#allocation8 + $0x660] sm:$0xff]
    %v737 = vld [vmem:[#allocation8 + $0x668] sm:$0xff]
    %v738 = vld [vmem:[#allocation8 + $0x670] sm:$0xff]
    %v739 = vld [vmem:[#allocation8 + $0x678] sm:$0xff]
    %v740 = vld [vmem:[#allocation8 + $0x680] sm:$0xff]
    %v741 = vld [vmem:[#allocation8 + $0x688] sm:$0xff]
    %v742 = vld [vmem:[#allocation8 + $0x690] sm:$0xff]
    %v743 = vld [vmem:[#allocation8 + $0x698] sm:$0xff]
    %v744 = vld [vmem:[#allocation8 + $0x6a0] sm:$0xff]
    %v745 = vld [vmem:[#allocation8 + $0x6a8] sm:$0xff]
    %v746 = vld [vmem:[#allocation8 + $0x6b0] sm:$0xff]
    %v747 = vld [vmem:[#allocation8 + $0x6b8] sm:$0xff]
    %v748 = vld [vmem:[#allocation8 + $0x6c0] sm:$0xff]
    %v749 = vld [vmem:[#allocation8 + $0x6c8] sm:$0xff]
    %v750 = vld [vmem:[#allocation8 + $0x6d0] sm:$0xff]
    %v751 = vld [vmem:[#allocation8 + $0x6d8] sm:$0xff]
    %v752 = vld [vmem:[#allocation8 + $0x6e0] sm:$0xff]
    %v753 = vld [vmem:[#allocation8 + $0x6e8] sm:$0xff]
    %v754 = vld [vmem:[#allocation8 + $0x6f0] sm:$0xff]
    %v755 = vld [vmem:[#allocation8 + $0x6f8] sm:$0xff]
    %v756 = vld [vmem:[#allocation8 + $0x700] sm:$0xff]
    %v757 = vld [vmem:[#allocation8 + $0x708] sm:$0xff]
    %v758 = vld [vmem:[#allocation8 + $0x710] sm:$0xff]
    %v759 = vld [vmem:[#allocation8 + $0x718] sm:$0xff]
    %v760 = vld [vmem:[#allocation8 + $0x720] sm:$0xff]
    %v761 = vld [vmem:[#allocation8 + $0x728] sm:$0xff]
    %v762 = vld [vmem:[#allocation8 + $0x730] sm:$0xff]
    %v763 = vld [vmem:[#allocation8 + $0x738] sm:$0xff]
    %v764 = vld [vmem:[#allocation8 + $0x740] sm:$0xff]
    %v765 = vld [vmem:[#allocation8 + $0x748] sm:$0xff]
    %v766 = vld [vmem:[#allocation8 + $0x750] sm:$0xff]
    %v767 = vld [vmem:[#allocation8 + $0x758] sm:$0xff]
    %v768 = vld [vmem:[#allocation8 + $0x760] sm:$0xff]
    %v769 = vld [vmem:[#allocation8 + $0x768] sm:$0xff]
    %v770 = vld [vmem:[#allocation8 + $0x770] sm:$0xff]
    %v771 = vld [vmem:[#allocation8 + $0x778] sm:$0xff]
    %v772 = vld [vmem:[#allocation8 + $0x780] sm:$0xff]
    %v773 = vld [vmem:[#allocation8 + $0x788] sm:$0xff]
    %v774 = vld [vmem:[#allocation8 + $0x790] sm:$0xff]
    %v775 = vld [vmem:[#allocation8 + $0x798] sm:$0xff]
    %v776 = vld [vmem:[#allocation8 + $0x7a0] sm:$0xff]
    %v777 = vld [vmem:[#allocation8 + $0x7a8] sm:$0xff]
    %v778 = vld [vmem:[#allocation8 + $0x7b0] sm:$0xff]
    %v779 = vld [vmem:[#allocation8 + $0x7b8] sm:$0xff]
    %v780 = vld [vmem:[#allocation8 + $0x7c0] sm:$0xff]
    %v781 = vld [vmem:[#allocation8 + $0x7c8] sm:$0xff]
    %v782 = vld [vmem:[#allocation8 + $0x7d0] sm:$0xff]
    %v783 = vld [vmem:[#allocation8 + $0x7d8] sm:$0xff]
    %v784 = vld [vmem:[#allocation8 + $0x7e0] sm:$0xff]
    %v785 = vld [vmem:[#allocation8 + $0x7e8] sm:$0xff]
    %v786 = vld [vmem:[#allocation8 + $0x7f0] sm:$0xff]
    %v787 = vld [vmem:[#allocation8 + $0x7f8] sm:$0xff]
    %v788 = vld [vmem:[#allocation10] sm:$0xf]
    %v790 = vlaneseq
    %v791 = vshrl.u32 %v790, 7
    %v792 = vsub.s32 0, %v791
    %v793 = vrot.slane %v788, %v792
    %v794 = vlaneseq
    %v795 = vshrl.u32 %v794, 7
    %v796 = vsub.s32 1, %v795
    %v797 = vrot.slane %v788, %v796
    %v798 = vlaneseq
    %v799 = vshrl.u32 %v798, 7
    %v800 = vsub.s32 2, %v799
    %v801 = vrot.slane %v788, %v800
    %v802 = vlaneseq
    %v803 = vshrl.u32 %v802, 7
    %v804 = vsub.s32 3, %v803
    %v805 = vrot.slane %v788, %v804
    %v1066 = vunpack.c.l.b16 %v532
    %v1067 = vunpack.c.h.b16 %v532
    %v1068 = vunpack.c.l.b16 %v533
    %v1069 = vunpack.c.h.b16 %v533
    %v1070 = vunpack.c.l.b16 %v534
    %v1071 = vunpack.c.h.b16 %v534
    %v1072 = vunpack.c.l.b16 %v535
    %v1073 = vunpack.c.h.b16 %v535
    %v1074 = vunpack.c.l.b16 %v536
    %v1075 = vunpack.c.h.b16 %v536
    %v1076 = vunpack.c.l.b16 %v537
    %v1077 = vunpack.c.h.b16 %v537
    %v1078 = vunpack.c.l.b16 %v538
    %v1079 = vunpack.c.h.b16 %v538
    %v1080 = vunpack.c.l.b16 %v539
    %v1081 = vunpack.c.h.b16 %v539
    %v1082 = vunpack.c.l.b16 %v540
    %v1083 = vunpack.c.h.b16 %v540
    %v1084 = vunpack.c.l.b16 %v541
    %v1085 = vunpack.c.h.b16 %v541
    %v1086 = vunpack.c.l.b16 %v542
    %v1087 = vunpack.c.h.b16 %v542
    %v1088 = vunpack.c.l.b16 %v543
    %v1089 = vunpack.c.h.b16 %v543
    %v1090 = vunpack.c.l.b16 %v544
    %v1091 = vunpack.c.h.b16 %v544
    %v1092 = vunpack.c.l.b16 %v545
    %v1093 = vunpack.c.h.b16 %v545
    %v1094 = vunpack.c.l.b16 %v546
    %v1095 = vunpack.c.h.b16 %v546
    %v1096 = vunpack.c.l.b16 %v547
    %v1097 = vunpack.c.h.b16 %v547
    %v1098 = vunpack.c.l.b16 %v548
    %v1099 = vunpack.c.h.b16 %v548
    %v1100 = vunpack.c.l.b16 %v549
    %v1101 = vunpack.c.h.b16 %v549
    %v1102 = vunpack.c.l.b16 %v550
    %v1103 = vunpack.c.h.b16 %v550
    %v1104 = vunpack.c.l.b16 %v551
    %v1105 = vunpack.c.h.b16 %v551
    %v1106 = vunpack.c.l.b16 %v552
    %v1107 = vunpack.c.h.b16 %v552
    %v1108 = vunpack.c.l.b16 %v553
    %v1109 = vunpack.c.h.b16 %v553
    %v1110 = vunpack.c.l.b16 %v554
    %v1111 = vunpack.c.h.b16 %v554
    %v1112 = vunpack.c.l.b16 %v555
    %v1113 = vunpack.c.h.b16 %v555
    %v1114 = vunpack.c.l.b16 %v556
    %v1115 = vunpack.c.h.b16 %v556
    %v1116 = vunpack.c.l.b16 %v557
    %v1117 = vunpack.c.h.b16 %v557
    %v1118 = vunpack.c.l.b16 %v558
    %v1119 = vunpack.c.h.b16 %v558
    %v1120 = vunpack.c.l.b16 %v559
    %v1121 = vunpack.c.h.b16 %v559
    %v1122 = vunpack.c.l.b16 %v560
    %v1123 = vunpack.c.h.b16 %v560
    %v1124 = vunpack.c.l.b16 %v561
    %v1125 = vunpack.c.h.b16 %v561
    %v1126 = vunpack.c.l.b16 %v562
    %v1127 = vunpack.c.h.b16 %v562
    %v1128 = vunpack.c.l.b16 %v563
    %v1129 = vunpack.c.h.b16 %v563
    %v1130 = vunpack.c.l.b16 %v564
    %v1131 = vunpack.c.h.b16 %v564
    %v1132 = vunpack.c.l.b16 %v565
    %v1133 = vunpack.c.h.b16 %v565
    %v1134 = vunpack.c.l.b16 %v566
    %v1135 = vunpack.c.h.b16 %v566
    %v1136 = vunpack.c.l.b16 %v567
    %v1137 = vunpack.c.h.b16 %v567
    %v1138 = vunpack.c.l.b16 %v568
    %v1139 = vunpack.c.h.b16 %v568
    %v1140 = vunpack.c.l.b16 %v569
    %v1141 = vunpack.c.h.b16 %v569
    %v1142 = vunpack.c.l.b16 %v570
    %v1143 = vunpack.c.h.b16 %v570
    %v1144 = vunpack.c.l.b16 %v571
    %v1145 = vunpack.c.h.b16 %v571
    %v1146 = vunpack.c.l.b16 %v572
    %v1147 = vunpack.c.h.b16 %v572
    %v1148 = vunpack.c.l.b16 %v573
    %v1149 = vunpack.c.h.b16 %v573
    %v1150 = vunpack.c.l.b16 %v574
    %v1151 = vunpack.c.h.b16 %v574
    %v1152 = vunpack.c.l.b16 %v575
    %v1153 = vunpack.c.h.b16 %v575
    %v1154 = vunpack.c.l.b16 %v576
    %v1155 = vunpack.c.h.b16 %v576
    %v1156 = vunpack.c.l.b16 %v577
    %v1157 = vunpack.c.h.b16 %v577
    %v1158 = vunpack.c.l.b16 %v578
    %v1159 = vunpack.c.h.b16 %v578
    %v1160 = vunpack.c.l.b16 %v579
    %v1161 = vunpack.c.h.b16 %v579
    %v1162 = vunpack.c.l.b16 %v580
    %v1163 = vunpack.c.h.b16 %v580
    %v1164 = vunpack.c.l.b16 %v581
    %v1165 = vunpack.c.h.b16 %v581
    %v1166 = vunpack.c.l.b16 %v582
    %v1167 = vunpack.c.h.b16 %v582
    %v1168 = vunpack.c.l.b16 %v583
    %v1169 = vunpack.c.h.b16 %v583
    %v1170 = vunpack.c.l.b16 %v584
    %v1171 = vunpack.c.h.b16 %v584
    %v1172 = vunpack.c.l.b16 %v585
    %v1173 = vunpack.c.h.b16 %v585
    %v1174 = vunpack.c.l.b16 %v586
    %v1175 = vunpack.c.h.b16 %v586
    %v1176 = vunpack.c.l.b16 %v587
    %v1177 = vunpack.c.h.b16 %v587
    %v1178 = vunpack.c.l.b16 %v588
    %v1179 = vunpack.c.h.b16 %v588
    %v1180 = vunpack.c.l.b16 %v589
    %v1181 = vunpack.c.h.b16 %v589
    %v1182 = vunpack.c.l.b16 %v590
    %v1183 = vunpack.c.h.b16 %v590
    %v1184 = vunpack.c.l.b16 %v591
    %v1185 = vunpack.c.h.b16 %v591
    %v1186 = vunpack.c.l.b16 %v592
    %v1187 = vunpack.c.h.b16 %v592
    %v1188 = vunpack.c.l.b16 %v593
    %v1189 = vunpack.c.h.b16 %v593
    %v1190 = vunpack.c.l.b16 %v594
    %v1191 = vunpack.c.h.b16 %v594
    %v1192 = vunpack.c.l.b16 %v595
    %v1193 = vunpack.c.h.b16 %v595
    %v1194 = vunpack.c.l.b16 %v596
    %v1195 = vunpack.c.h.b16 %v596
    %v1196 = vunpack.c.l.b16 %v597
    %v1197 = vunpack.c.h.b16 %v597
    %v1198 = vunpack.c.l.b16 %v598
    %v1199 = vunpack.c.h.b16 %v598
    %v1200 = vunpack.c.l.b16 %v599
    %v1201 = vunpack.c.h.b16 %v599
    %v1202 = vunpack.c.l.b16 %v600
    %v1203 = vunpack.c.h.b16 %v600
    %v1204 = vunpack.c.l.b16 %v601
    %v1205 = vunpack.c.h.b16 %v601
    %v1206 = vunpack.c.l.b16 %v602
    %v1207 = vunpack.c.h.b16 %v602
    %v1208 = vunpack.c.l.b16 %v603
    %v1209 = vunpack.c.h.b16 %v603
    %v1210 = vunpack.c.l.b16 %v604
    %v1211 = vunpack.c.h.b16 %v604
    %v1212 = vunpack.c.l.b16 %v605
    %v1213 = vunpack.c.h.b16 %v605
    %v1214 = vunpack.c.l.b16 %v606
    %v1215 = vunpack.c.h.b16 %v606
    %v1216 = vunpack.c.l.b16 %v607
    %v1217 = vunpack.c.h.b16 %v607
    %v1218 = vunpack.c.l.b16 %v608
    %v1219 = vunpack.c.h.b16 %v608
    %v1220 = vunpack.c.l.b16 %v609
    %v1221 = vunpack.c.h.b16 %v609
    %v1222 = vunpack.c.l.b16 %v610
    %v1223 = vunpack.c.h.b16 %v610
    %v1224 = vunpack.c.l.b16 %v611
    %v1225 = vunpack.c.h.b16 %v611
    %v1226 = vunpack.c.l.b16 %v612
    %v1227 = vunpack.c.h.b16 %v612
    %v1228 = vunpack.c.l.b16 %v613
    %v1229 = vunpack.c.h.b16 %v613
    %v1230 = vunpack.c.l.b16 %v614
    %v1231 = vunpack.c.h.b16 %v614
    %v1232 = vunpack.c.l.b16 %v615
    %v1233 = vunpack.c.h.b16 %v615
    %v1234 = vunpack.c.l.b16 %v616
    %v1235 = vunpack.c.h.b16 %v616
    %v1236 = vunpack.c.l.b16 %v617
    %v1237 = vunpack.c.h.b16 %v617
    %v1238 = vunpack.c.l.b16 %v618
    %v1239 = vunpack.c.h.b16 %v618
    %v1240 = vunpack.c.l.b16 %v619
    %v1241 = vunpack.c.h.b16 %v619
    %v1242 = vunpack.c.l.b16 %v620
    %v1243 = vunpack.c.h.b16 %v620
    %v1244 = vunpack.c.l.b16 %v621
    %v1245 = vunpack.c.h.b16 %v621
    %v1246 = vunpack.c.l.b16 %v622
    %v1247 = vunpack.c.h.b16 %v622
    %v1248 = vunpack.c.l.b16 %v623
    %v1249 = vunpack.c.h.b16 %v623
    %v1250 = vunpack.c.l.b16 %v624
    %v1251 = vunpack.c.h.b16 %v624
    %v1252 = vunpack.c.l.b16 %v625
    %v1253 = vunpack.c.h.b16 %v625
    %v1254 = vunpack.c.l.b16 %v626
    %v1255 = vunpack.c.h.b16 %v626
    %v1256 = vunpack.c.l.b16 %v627
    %v1257 = vunpack.c.h.b16 %v627
    %v1258 = vunpack.c.l.b16 %v628
    %v1259 = vunpack.c.h.b16 %v628
    %v1260 = vunpack.c.l.b16 %v629
    %v1261 = vunpack.c.h.b16 %v629
    %v1262 = vunpack.c.l.b16 %v630
    %v1263 = vunpack.c.h.b16 %v630
    %v1264 = vunpack.c.l.b16 %v631
    %v1265 = vunpack.c.h.b16 %v631
    %v1266 = vunpack.c.l.b16 %v632
    %v1267 = vunpack.c.h.b16 %v632
    %v1268 = vunpack.c.l.b16 %v633
    %v1269 = vunpack.c.h.b16 %v633
    %v1270 = vunpack.c.l.b16 %v634
    %v1271 = vunpack.c.h.b16 %v634
    %v1272 = vunpack.c.l.b16 %v635
    %v1273 = vunpack.c.h.b16 %v635
    %v1274 = vunpack.c.l.b16 %v636
    %v1275 = vunpack.c.h.b16 %v636
    %v1276 = vunpack.c.l.b16 %v637
    %v1277 = vunpack.c.h.b16 %v637
    %v1278 = vunpack.c.l.b16 %v638
    %v1279 = vunpack.c.h.b16 %v638
    %v1280 = vunpack.c.l.b16 %v639
    %v1281 = vunpack.c.h.b16 %v639
    %v1282 = vunpack.c.l.b16 %v640
    %v1283 = vunpack.c.h.b16 %v640
    %v1284 = vunpack.c.l.b16 %v641
    %v1285 = vunpack.c.h.b16 %v641
    %v1286 = vunpack.c.l.b16 %v642
    %v1287 = vunpack.c.h.b16 %v642
    %v1288 = vunpack.c.l.b16 %v643
    %v1289 = vunpack.c.h.b16 %v643
    %v1290 = vunpack.c.l.b16 %v644
    %v1291 = vunpack.c.h.b16 %v644
    %v1292 = vunpack.c.l.b16 %v645
    %v1293 = vunpack.c.h.b16 %v645
    %v1294 = vunpack.c.l.b16 %v646
    %v1295 = vunpack.c.h.b16 %v646
    %v1296 = vunpack.c.l.b16 %v647
    %v1297 = vunpack.c.h.b16 %v647
    %v1298 = vunpack.c.l.b16 %v648
    %v1299 = vunpack.c.h.b16 %v648
    %v1300 = vunpack.c.l.b16 %v649
    %v1301 = vunpack.c.h.b16 %v649
    %v1302 = vunpack.c.l.b16 %v650
    %v1303 = vunpack.c.h.b16 %v650
    %v1304 = vunpack.c.l.b16 %v651
    %v1305 = vunpack.c.h.b16 %v651
    %v1306 = vunpack.c.l.b16 %v652
    %v1307 = vunpack.c.h.b16 %v652
    %v1308 = vunpack.c.l.b16 %v653
    %v1309 = vunpack.c.h.b16 %v653
    %v1310 = vunpack.c.l.b16 %v654
    %v1311 = vunpack.c.h.b16 %v654
    %v1312 = vunpack.c.l.b16 %v655
    %v1313 = vunpack.c.h.b16 %v655
    %v1314 = vunpack.c.l.b16 %v656
    %v1315 = vunpack.c.h.b16 %v656
    %v1316 = vunpack.c.l.b16 %v657
    %v1317 = vunpack.c.h.b16 %v657
    %v1318 = vunpack.c.l.b16 %v658
    %v1319 = vunpack.c.h.b16 %v658
    %v1320 = vunpack.c.l.b16 %v659
    %v1321 = vunpack.c.h.b16 %v659
    %v1322 = vunpack.c.l.b16 %v660
    %v1323 = vunpack.c.h.b16 %v660
    %v1324 = vunpack.c.l.b16 %v661
    %v1325 = vunpack.c.h.b16 %v661
    %v1326 = vunpack.c.l.b16 %v662
    %v1327 = vunpack.c.h.b16 %v662
    %v1328 = vunpack.c.l.b16 %v663
    %v1329 = vunpack.c.h.b16 %v663
    %v1330 = vunpack.c.l.b16 %v664
    %v1331 = vunpack.c.h.b16 %v664
    %v1332 = vunpack.c.l.b16 %v665
    %v1333 = vunpack.c.h.b16 %v665
    %v1334 = vunpack.c.l.b16 %v666
    %v1335 = vunpack.c.h.b16 %v666
    %v1336 = vunpack.c.l.b16 %v667
    %v1337 = vunpack.c.h.b16 %v667
    %v1338 = vunpack.c.l.b16 %v668
    %v1339 = vunpack.c.h.b16 %v668
    %v1340 = vunpack.c.l.b16 %v669
    %v1341 = vunpack.c.h.b16 %v669
    %v1342 = vunpack.c.l.b16 %v670
    %v1343 = vunpack.c.h.b16 %v670
    %v1344 = vunpack.c.l.b16 %v671
    %v1345 = vunpack.c.h.b16 %v671
    %v1346 = vunpack.c.l.b16 %v672
    %v1347 = vunpack.c.h.b16 %v672
    %v1348 = vunpack.c.l.b16 %v673
    %v1349 = vunpack.c.h.b16 %v673
    %v1350 = vunpack.c.l.b16 %v674
    %v1351 = vunpack.c.h.b16 %v674
    %v1352 = vunpack.c.l.b16 %v675
    %v1353 = vunpack.c.h.b16 %v675
    %v1354 = vunpack.c.l.b16 %v676
    %v1355 = vunpack.c.h.b16 %v676
    %v1356 = vunpack.c.l.b16 %v677
    %v1357 = vunpack.c.h.b16 %v677
    %v1358 = vunpack.c.l.b16 %v678
    %v1359 = vunpack.c.h.b16 %v678
    %v1360 = vunpack.c.l.b16 %v679
    %v1361 = vunpack.c.h.b16 %v679
    %v1362 = vunpack.c.l.b16 %v680
    %v1363 = vunpack.c.h.b16 %v680
    %v1364 = vunpack.c.l.b16 %v681
    %v1365 = vunpack.c.h.b16 %v681
    %v1366 = vunpack.c.l.b16 %v682
    %v1367 = vunpack.c.h.b16 %v682
    %v1368 = vunpack.c.l.b16 %v683
    %v1369 = vunpack.c.h.b16 %v683
    %v1370 = vunpack.c.l.b16 %v684
    %v1371 = vunpack.c.h.b16 %v684
    %v1372 = vunpack.c.l.b16 %v685
    %v1373 = vunpack.c.h.b16 %v685
    %v1374 = vunpack.c.l.b16 %v686
    %v1375 = vunpack.c.h.b16 %v686
    %v1376 = vunpack.c.l.b16 %v687
    %v1377 = vunpack.c.h.b16 %v687
    %v1378 = vunpack.c.l.b16 %v688
    %v1379 = vunpack.c.h.b16 %v688
    %v1380 = vunpack.c.l.b16 %v689
    %v1381 = vunpack.c.h.b16 %v689
    %v1382 = vunpack.c.l.b16 %v690
    %v1383 = vunpack.c.h.b16 %v690
    %v1384 = vunpack.c.l.b16 %v691
    %v1385 = vunpack.c.h.b16 %v691
    %v1386 = vunpack.c.l.b16 %v692
    %v1387 = vunpack.c.h.b16 %v692
    %v1388 = vunpack.c.l.b16 %v693
    %v1389 = vunpack.c.h.b16 %v693
    %v1390 = vunpack.c.l.b16 %v694
    %v1391 = vunpack.c.h.b16 %v694
    %v1392 = vunpack.c.l.b16 %v695
    %v1393 = vunpack.c.h.b16 %v695
    %v1394 = vunpack.c.l.b16 %v696
    %v1395 = vunpack.c.h.b16 %v696
    %v1396 = vunpack.c.l.b16 %v697
    %v1397 = vunpack.c.h.b16 %v697
    %v1398 = vunpack.c.l.b16 %v698
    %v1399 = vunpack.c.h.b16 %v698
    %v1400 = vunpack.c.l.b16 %v699
    %v1401 = vunpack.c.h.b16 %v699
    %v1402 = vunpack.c.l.b16 %v700
    %v1403 = vunpack.c.h.b16 %v700
    %v1404 = vunpack.c.l.b16 %v701
    %v1405 = vunpack.c.h.b16 %v701
    %v1406 = vunpack.c.l.b16 %v702
    %v1407 = vunpack.c.h.b16 %v702
    %v1408 = vunpack.c.l.b16 %v703
    %v1409 = vunpack.c.h.b16 %v703
    %v1410 = vunpack.c.l.b16 %v704
    %v1411 = vunpack.c.h.b16 %v704
    %v1412 = vunpack.c.l.b16 %v705
    %v1413 = vunpack.c.h.b16 %v705
    %v1414 = vunpack.c.l.b16 %v706
    %v1415 = vunpack.c.h.b16 %v706
    %v1416 = vunpack.c.l.b16 %v707
    %v1417 = vunpack.c.h.b16 %v707
    %v1418 = vunpack.c.l.b16 %v708
    %v1419 = vunpack.c.h.b16 %v708
    %v1420 = vunpack.c.l.b16 %v709
    %v1421 = vunpack.c.h.b16 %v709
    %v1422 = vunpack.c.l.b16 %v710
    %v1423 = vunpack.c.h.b16 %v710
    %v1424 = vunpack.c.l.b16 %v711
    %v1425 = vunpack.c.h.b16 %v711
    %v1426 = vunpack.c.l.b16 %v712
    %v1427 = vunpack.c.h.b16 %v712
    %v1428 = vunpack.c.l.b16 %v713
    %v1429 = vunpack.c.h.b16 %v713
    %v1430 = vunpack.c.l.b16 %v714
    %v1431 = vunpack.c.h.b16 %v714
    %v1432 = vunpack.c.l.b16 %v715
    %v1433 = vunpack.c.h.b16 %v715
    %v1434 = vunpack.c.l.b16 %v716
    %v1435 = vunpack.c.h.b16 %v716
    %v1436 = vunpack.c.l.b16 %v717
    %v1437 = vunpack.c.h.b16 %v717
    %v1438 = vunpack.c.l.b16 %v718
    %v1439 = vunpack.c.h.b16 %v718
    %v1440 = vunpack.c.l.b16 %v719
    %v1441 = vunpack.c.h.b16 %v719
    %v1442 = vunpack.c.l.b16 %v720
    %v1443 = vunpack.c.h.b16 %v720
    %v1444 = vunpack.c.l.b16 %v721
    %v1445 = vunpack.c.h.b16 %v721
    %v1446 = vunpack.c.l.b16 %v722
    %v1447 = vunpack.c.h.b16 %v722
    %v1448 = vunpack.c.l.b16 %v723
    %v1449 = vunpack.c.h.b16 %v723
    %v1450 = vunpack.c.l.b16 %v724
    %v1451 = vunpack.c.h.b16 %v724
    %v1452 = vunpack.c.l.b16 %v725
    %v1453 = vunpack.c.h.b16 %v725
    %v1454 = vunpack.c.l.b16 %v726
    %v1455 = vunpack.c.h.b16 %v726
    %v1456 = vunpack.c.l.b16 %v727
    %v1457 = vunpack.c.h.b16 %v727
    %v1458 = vunpack.c.l.b16 %v728
    %v1459 = vunpack.c.h.b16 %v728
    %v1460 = vunpack.c.l.b16 %v729
    %v1461 = vunpack.c.h.b16 %v729
    %v1462 = vunpack.c.l.b16 %v730
    %v1463 = vunpack.c.h.b16 %v730
    %v1464 = vunpack.c.l.b16 %v731
    %v1465 = vunpack.c.h.b16 %v731
    %v1466 = vunpack.c.l.b16 %v732
    %v1467 = vunpack.c.h.b16 %v732
    %v1468 = vunpack.c.l.b16 %v733
    %v1469 = vunpack.c.h.b16 %v733
    %v1470 = vunpack.c.l.b16 %v734
    %v1471 = vunpack.c.h.b16 %v734
    %v1472 = vunpack.c.l.b16 %v735
    %v1473 = vunpack.c.h.b16 %v735
    %v1474 = vunpack.c.l.b16 %v736
    %v1475 = vunpack.c.h.b16 %v736
    %v1476 = vunpack.c.l.b16 %v737
    %v1477 = vunpack.c.h.b16 %v737
    %v1478 = vunpack.c.l.b16 %v738
    %v1479 = vunpack.c.h.b16 %v738
    %v1480 = vunpack.c.l.b16 %v739
    %v1481 = vunpack.c.h.b16 %v739
    %v1482 = vunpack.c.l.b16 %v740
    %v1483 = vunpack.c.h.b16 %v740
    %v1484 = vunpack.c.l.b16 %v741
    %v1485 = vunpack.c.h.b16 %v741
    %v1486 = vunpack.c.l.b16 %v742
    %v1487 = vunpack.c.h.b16 %v742
    %v1488 = vunpack.c.l.b16 %v743
    %v1489 = vunpack.c.h.b16 %v743
    %v1490 = vunpack.c.l.b16 %v744
    %v1491 = vunpack.c.h.b16 %v744
    %v1492 = vunpack.c.l.b16 %v745
    %v1493 = vunpack.c.h.b16 %v745
    %v1494 = vunpack.c.l.b16 %v746
    %v1495 = vunpack.c.h.b16 %v746
    %v1496 = vunpack.c.l.b16 %v747
    %v1497 = vunpack.c.h.b16 %v747
    %v1498 = vunpack.c.l.b16 %v748
    %v1499 = vunpack.c.h.b16 %v748
    %v1500 = vunpack.c.l.b16 %v749
    %v1501 = vunpack.c.h.b16 %v749
    %v1502 = vunpack.c.l.b16 %v750
    %v1503 = vunpack.c.h.b16 %v750
    %v1504 = vunpack.c.l.b16 %v751
    %v1505 = vunpack.c.h.b16 %v751
    %v1506 = vunpack.c.l.b16 %v752
    %v1507 = vunpack.c.h.b16 %v752
    %v1508 = vunpack.c.l.b16 %v753
    %v1509 = vunpack.c.h.b16 %v753
    %v1510 = vunpack.c.l.b16 %v754
    %v1511 = vunpack.c.h.b16 %v754
    %v1512 = vunpack.c.l.b16 %v755
    %v1513 = vunpack.c.h.b16 %v755
    %v1514 = vunpack.c.l.b16 %v756
    %v1515 = vunpack.c.h.b16 %v756
    %v1516 = vunpack.c.l.b16 %v757
    %v1517 = vunpack.c.h.b16 %v757
    %v1518 = vunpack.c.l.b16 %v758
    %v1519 = vunpack.c.h.b16 %v758
    %v1520 = vunpack.c.l.b16 %v759
    %v1521 = vunpack.c.h.b16 %v759
    %v1522 = vunpack.c.l.b16 %v760
    %v1523 = vunpack.c.h.b16 %v760
    %v1524 = vunpack.c.l.b16 %v761
    %v1525 = vunpack.c.h.b16 %v761
    %v1526 = vunpack.c.l.b16 %v762
    %v1527 = vunpack.c.h.b16 %v762
    %v1528 = vunpack.c.l.b16 %v763
    %v1529 = vunpack.c.h.b16 %v763
    %v1530 = vunpack.c.l.b16 %v764
    %v1531 = vunpack.c.h.b16 %v764
    %v1532 = vunpack.c.l.b16 %v765
    %v1533 = vunpack.c.h.b16 %v765
    %v1534 = vunpack.c.l.b16 %v766
    %v1535 = vunpack.c.h.b16 %v766
    %v1536 = vunpack.c.l.b16 %v767
    %v1537 = vunpack.c.h.b16 %v767
    %v1538 = vunpack.c.l.b16 %v768
    %v1539 = vunpack.c.h.b16 %v768
    %v1540 = vunpack.c.l.b16 %v769
    %v1541 = vunpack.c.h.b16 %v769
    %v1542 = vunpack.c.l.b16 %v770
    %v1543 = vunpack.c.h.b16 %v770
    %v1544 = vunpack.c.l.b16 %v771
    %v1545 = vunpack.c.h.b16 %v771
    %v1546 = vunpack.c.l.b16 %v772
    %v1547 = vunpack.c.h.b16 %v772
    %v1548 = vunpack.c.l.b16 %v773
    %v1549 = vunpack.c.h.b16 %v773
    %v1550 = vunpack.c.l.b16 %v774
    %v1551 = vunpack.c.h.b16 %v774
    %v1552 = vunpack.c.l.b16 %v775
    %v1553 = vunpack.c.h.b16 %v775
    %v1554 = vunpack.c.l.b16 %v776
    %v1555 = vunpack.c.h.b16 %v776
    %v1556 = vunpack.c.l.b16 %v777
    %v1557 = vunpack.c.h.b16 %v777
    %v1558 = vunpack.c.l.b16 %v778
    %v1559 = vunpack.c.h.b16 %v778
    %v1560 = vunpack.c.l.b16 %v779
    %v1561 = vunpack.c.h.b16 %v779
    %v1562 = vunpack.c.l.b16 %v780
    %v1563 = vunpack.c.h.b16 %v780
    %v1564 = vunpack.c.l.b16 %v781
    %v1565 = vunpack.c.h.b16 %v781
    %v1566 = vunpack.c.l.b16 %v782
    %v1567 = vunpack.c.h.b16 %v782
    %v1568 = vunpack.c.l.b16 %v783
    %v1569 = vunpack.c.h.b16 %v783
    %v1570 = vunpack.c.l.b16 %v784
    %v1571 = vunpack.c.h.b16 %v784
    %v1572 = vunpack.c.l.b16 %v785
    %v1573 = vunpack.c.h.b16 %v785
    %v1574 = vunpack.c.l.b16 %v786
    %v1575 = vunpack.c.h.b16 %v786
    %v1576 = vunpack.c.l.b16 %v787
    %v1577 = vunpack.c.h.b16 %v787
    %v1578 = vpack.c.b16 %v1070, %v1066
    %v1579 = vpack.c.b16 %v1071, %v1067
    %v1580 = vpack.c.b16 %v1072, %v1068
    %v1581 = vpack.c.b16 %v1073, %v1069
    %v1582 = vpack.c.b16 %v1078, %v1074
    %v1583 = vpack.c.b16 %v1079, %v1075
    %v1584 = vpack.c.b16 %v1080, %v1076
    %v1585 = vpack.c.b16 %v1081, %v1077
    %v1586 = vpack.c.b16 %v1086, %v1082
    %v1587 = vpack.c.b16 %v1087, %v1083
    %v1588 = vpack.c.b16 %v1088, %v1084
    %v1589 = vpack.c.b16 %v1089, %v1085
    %v1590 = vpack.c.b16 %v1094, %v1090
    %v1591 = vpack.c.b16 %v1095, %v1091
    %v1592 = vpack.c.b16 %v1096, %v1092
    %v1593 = vpack.c.b16 %v1097, %v1093
    %v1594 = vpack.c.b16 %v1102, %v1098
    %v1595 = vpack.c.b16 %v1103, %v1099
    %v1596 = vpack.c.b16 %v1104, %v1100
    %v1597 = vpack.c.b16 %v1105, %v1101
    %v1598 = vpack.c.b16 %v1110, %v1106
    %v1599 = vpack.c.b16 %v1111, %v1107
    %v1600 = vpack.c.b16 %v1112, %v1108
    %v1601 = vpack.c.b16 %v1113, %v1109
    %v1602 = vpack.c.b16 %v1118, %v1114
    %v1603 = vpack.c.b16 %v1119, %v1115
    %v1604 = vpack.c.b16 %v1120, %v1116
    %v1605 = vpack.c.b16 %v1121, %v1117
    %v1606 = vpack.c.b16 %v1126, %v1122
    %v1607 = vpack.c.b16 %v1127, %v1123
    %v1608 = vpack.c.b16 %v1128, %v1124
    %v1609 = vpack.c.b16 %v1129, %v1125
    %v1610 = vpack.c.b16 %v1134, %v1130
    %v1611 = vpack.c.b16 %v1135, %v1131
    %v1612 = vpack.c.b16 %v1136, %v1132
    %v1613 = vpack.c.b16 %v1137, %v1133
    %v1614 = vpack.c.b16 %v1142, %v1138
    %v1615 = vpack.c.b16 %v1143, %v1139
    %v1616 = vpack.c.b16 %v1144, %v1140
    %v1617 = vpack.c.b16 %v1145, %v1141
    %v1618 = vpack.c.b16 %v1150, %v1146
    %v1619 = vpack.c.b16 %v1151, %v1147
    %v1620 = vpack.c.b16 %v1152, %v1148
    %v1621 = vpack.c.b16 %v1153, %v1149
    %v1622 = vpack.c.b16 %v1158, %v1154
    %v1623 = vpack.c.b16 %v1159, %v1155
    %v1624 = vpack.c.b16 %v1160, %v1156
    %v1625 = vpack.c.b16 %v1161, %v1157
    %v1626 = vpack.c.b16 %v1166, %v1162
    %v1627 = vpack.c.b16 %v1167, %v1163
    %v1628 = vpack.c.b16 %v1168, %v1164
    %v1629 = vpack.c.b16 %v1169, %v1165
    %v1630 = vpack.c.b16 %v1174, %v1170
    %v1631 = vpack.c.b16 %v1175, %v1171
    %v1632 = vpack.c.b16 %v1176, %v1172
    %v1633 = vpack.c.b16 %v1177, %v1173
    %v1634 = vpack.c.b16 %v1182, %v1178
    %v1635 = vpack.c.b16 %v1183, %v1179
    %v1636 = vpack.c.b16 %v1184, %v1180
    %v1637 = vpack.c.b16 %v1185, %v1181
    %v1638 = vpack.c.b16 %v1190, %v1186
    %v1639 = vpack.c.b16 %v1191, %v1187
    %v1640 = vpack.c.b16 %v1192, %v1188
    %v1641 = vpack.c.b16 %v1193, %v1189
    %v1642 = vpack.c.b16 %v1198, %v1194
    %v1643 = vpack.c.b16 %v1199, %v1195
    %v1644 = vpack.c.b16 %v1200, %v1196
    %v1645 = vpack.c.b16 %v1201, %v1197
    %v1646 = vpack.c.b16 %v1206, %v1202
    %v1647 = vpack.c.b16 %v1207, %v1203
    %v1648 = vpack.c.b16 %v1208, %v1204
    %v1649 = vpack.c.b16 %v1209, %v1205
    %v1650 = vpack.c.b16 %v1214, %v1210
    %v1651 = vpack.c.b16 %v1215, %v1211
    %v1652 = vpack.c.b16 %v1216, %v1212
    %v1653 = vpack.c.b16 %v1217, %v1213
    %v1654 = vpack.c.b16 %v1222, %v1218
    %v1655 = vpack.c.b16 %v1223, %v1219
    %v1656 = vpack.c.b16 %v1224, %v1220
    %v1657 = vpack.c.b16 %v1225, %v1221
    %v1658 = vpack.c.b16 %v1230, %v1226
    %v1659 = vpack.c.b16 %v1231, %v1227
    %v1660 = vpack.c.b16 %v1232, %v1228
    %v1661 = vpack.c.b16 %v1233, %v1229
    %v1662 = vpack.c.b16 %v1238, %v1234
    %v1663 = vpack.c.b16 %v1239, %v1235
    %v1664 = vpack.c.b16 %v1240, %v1236
    %v1665 = vpack.c.b16 %v1241, %v1237
    %v1666 = vpack.c.b16 %v1246, %v1242
    %v1667 = vpack.c.b16 %v1247, %v1243
    %v1668 = vpack.c.b16 %v1248, %v1244
    %v1669 = vpack.c.b16 %v1249, %v1245
    %v1670 = vpack.c.b16 %v1254, %v1250
    %v1671 = vpack.c.b16 %v1255, %v1251
    %v1672 = vpack.c.b16 %v1256, %v1252
    %v1673 = vpack.c.b16 %v1257, %v1253
    %v1674 = vpack.c.b16 %v1262, %v1258
    %v1675 = vpack.c.b16 %v1263, %v1259
    %v1676 = vpack.c.b16 %v1264, %v1260
    %v1677 = vpack.c.b16 %v1265, %v1261
    %v1678 = vpack.c.b16 %v1270, %v1266
    %v1679 = vpack.c.b16 %v1271, %v1267
    %v1680 = vpack.c.b16 %v1272, %v1268
    %v1681 = vpack.c.b16 %v1273, %v1269
    %v1682 = vpack.c.b16 %v1278, %v1274
    %v1683 = vpack.c.b16 %v1279, %v1275
    %v1684 = vpack.c.b16 %v1280, %v1276
    %v1685 = vpack.c.b16 %v1281, %v1277
    %v1686 = vpack.c.b16 %v1286, %v1282
    %v1687 = vpack.c.b16 %v1287, %v1283
    %v1688 = vpack.c.b16 %v1288, %v1284
    %v1689 = vpack.c.b16 %v1289, %v1285
    %v1690 = vpack.c.b16 %v1294, %v1290
    %v1691 = vpack.c.b16 %v1295, %v1291
    %v1692 = vpack.c.b16 %v1296, %v1292
    %v1693 = vpack.c.b16 %v1297, %v1293
    %v1694 = vpack.c.b16 %v1302, %v1298
    %v1695 = vpack.c.b16 %v1303, %v1299
    %v1696 = vpack.c.b16 %v1304, %v1300
    %v1697 = vpack.c.b16 %v1305, %v1301
    %v1698 = vpack.c.b16 %v1310, %v1306
    %v1699 = vpack.c.b16 %v1311, %v1307
    %v1700 = vpack.c.b16 %v1312, %v1308
    %v1701 = vpack.c.b16 %v1313, %v1309
    %v1702 = vpack.c.b16 %v1318, %v1314
    %v1703 = vpack.c.b16 %v1319, %v1315
    %v1704 = vpack.c.b16 %v1320, %v1316
    %v1705 = vpack.c.b16 %v1321, %v1317
    %v1706 = vpack.c.b16 %v1326, %v1322
    %v1707 = vpack.c.b16 %v1327, %v1323
    %v1708 = vpack.c.b16 %v1328, %v1324
    %v1709 = vpack.c.b16 %v1329, %v1325
    %v1710 = vpack.c.b16 %v1334, %v1330
    %v1711 = vpack.c.b16 %v1335, %v1331
    %v1712 = vpack.c.b16 %v1336, %v1332
    %v1713 = vpack.c.b16 %v1337, %v1333
    %v1714 = vpack.c.b16 %v1342, %v1338
    %v1715 = vpack.c.b16 %v1343, %v1339
    %v1716 = vpack.c.b16 %v1344, %v1340
    %v1717 = vpack.c.b16 %v1345, %v1341
    %v1718 = vpack.c.b16 %v1350, %v1346
    %v1719 = vpack.c.b16 %v1351, %v1347
    %v1720 = vpack.c.b16 %v1352, %v1348
    %v1721 = vpack.c.b16 %v1353, %v1349
    %v1722 = vpack.c.b16 %v1358, %v1354
    %v1723 = vpack.c.b16 %v1359, %v1355
    %v1724 = vpack.c.b16 %v1360, %v1356
    %v1725 = vpack.c.b16 %v1361, %v1357
    %v1726 = vpack.c.b16 %v1366, %v1362
    %v1727 = vpack.c.b16 %v1367, %v1363
    %v1728 = vpack.c.b16 %v1368, %v1364
    %v1729 = vpack.c.b16 %v1369, %v1365
    %v1730 = vpack.c.b16 %v1374, %v1370
    %v1731 = vpack.c.b16 %v1375, %v1371
    %v1732 = vpack.c.b16 %v1376, %v1372
    %v1733 = vpack.c.b16 %v1377, %v1373
    %v1734 = vpack.c.b16 %v1382, %v1378
    %v1735 = vpack.c.b16 %v1383, %v1379
    %v1736 = vpack.c.b16 %v1384, %v1380
    %v1737 = vpack.c.b16 %v1385, %v1381
    %v1738 = vpack.c.b16 %v1390, %v1386
    %v1739 = vpack.c.b16 %v1391, %v1387
    %v1740 = vpack.c.b16 %v1392, %v1388
    %v1741 = vpack.c.b16 %v1393, %v1389
    %v1742 = vpack.c.b16 %v1398, %v1394
    %v1743 = vpack.c.b16 %v1399, %v1395
    %v1744 = vpack.c.b16 %v1400, %v1396
    %v1745 = vpack.c.b16 %v1401, %v1397
    %v1746 = vpack.c.b16 %v1406, %v1402
    %v1747 = vpack.c.b16 %v1407, %v1403
    %v1748 = vpack.c.b16 %v1408, %v1404
    %v1749 = vpack.c.b16 %v1409, %v1405
    %v1750 = vpack.c.b16 %v1414, %v1410
    %v1751 = vpack.c.b16 %v1415, %v1411
    %v1752 = vpack.c.b16 %v1416, %v1412
    %v1753 = vpack.c.b16 %v1417, %v1413
    %v1754 = vpack.c.b16 %v1422, %v1418
    %v1755 = vpack.c.b16 %v1423, %v1419
    %v1756 = vpack.c.b16 %v1424, %v1420
    %v1757 = vpack.c.b16 %v1425, %v1421
    %v1758 = vpack.c.b16 %v1430, %v1426
    %v1759 = vpack.c.b16 %v1431, %v1427
    %v1760 = vpack.c.b16 %v1432, %v1428
    %v1761 = vpack.c.b16 %v1433, %v1429
    %v1762 = vpack.c.b16 %v1438, %v1434
    %v1763 = vpack.c.b16 %v1439, %v1435
    %v1764 = vpack.c.b16 %v1440, %v1436
    %v1765 = vpack.c.b16 %v1441, %v1437
    %v1766 = vpack.c.b16 %v1446, %v1442
    %v1767 = vpack.c.b16 %v1447, %v1443
    %v1768 = vpack.c.b16 %v1448, %v1444
    %v1769 = vpack.c.b16 %v1449, %v1445
    %v1770 = vpack.c.b16 %v1454, %v1450
    %v1771 = vpack.c.b16 %v1455, %v1451
    %v1772 = vpack.c.b16 %v1456, %v1452
    %v1773 = vpack.c.b16 %v1457, %v1453
    %v1774 = vpack.c.b16 %v1462, %v1458
    %v1775 = vpack.c.b16 %v1463, %v1459
    %v1776 = vpack.c.b16 %v1464, %v1460
    %v1777 = vpack.c.b16 %v1465, %v1461
    %v1778 = vpack.c.b16 %v1470, %v1466
    %v1779 = vpack.c.b16 %v1471, %v1467
    %v1780 = vpack.c.b16 %v1472, %v1468
    %v1781 = vpack.c.b16 %v1473, %v1469
    %v1782 = vpack.c.b16 %v1478, %v1474
    %v1783 = vpack.c.b16 %v1479, %v1475
    %v1784 = vpack.c.b16 %v1480, %v1476
    %v1785 = vpack.c.b16 %v1481, %v1477
    %v1786 = vpack.c.b16 %v1486, %v1482
    %v1787 = vpack.c.b16 %v1487, %v1483
    %v1788 = vpack.c.b16 %v1488, %v1484
    %v1789 = vpack.c.b16 %v1489, %v1485
    %v1790 = vpack.c.b16 %v1494, %v1490
    %v1791 = vpack.c.b16 %v1495, %v1491
    %v1792 = vpack.c.b16 %v1496, %v1492
    %v1793 = vpack.c.b16 %v1497, %v1493
    %v1794 = vpack.c.b16 %v1502, %v1498
    %v1795 = vpack.c.b16 %v1503, %v1499
    %v1796 = vpack.c.b16 %v1504, %v1500
    %v1797 = vpack.c.b16 %v1505, %v1501
    %v1798 = vpack.c.b16 %v1510, %v1506
    %v1799 = vpack.c.b16 %v1511, %v1507
    %v1800 = vpack.c.b16 %v1512, %v1508
    %v1801 = vpack.c.b16 %v1513, %v1509
    %v1802 = vpack.c.b16 %v1518, %v1514
    %v1803 = vpack.c.b16 %v1519, %v1515
    %v1804 = vpack.c.b16 %v1520, %v1516
    %v1805 = vpack.c.b16 %v1521, %v1517
    %v1806 = vpack.c.b16 %v1526, %v1522
    %v1807 = vpack.c.b16 %v1527, %v1523
    %v1808 = vpack.c.b16 %v1528, %v1524
    %v1809 = vpack.c.b16 %v1529, %v1525
    %v1810 = vpack.c.b16 %v1534, %v1530
    %v1811 = vpack.c.b16 %v1535, %v1531
    %v1812 = vpack.c.b16 %v1536, %v1532
    %v1813 = vpack.c.b16 %v1537, %v1533
    %v1814 = vpack.c.b16 %v1542, %v1538
    %v1815 = vpack.c.b16 %v1543, %v1539
    %v1816 = vpack.c.b16 %v1544, %v1540
    %v1817 = vpack.c.b16 %v1545, %v1541
    %v1818 = vpack.c.b16 %v1550, %v1546
    %v1819 = vpack.c.b16 %v1551, %v1547
    %v1820 = vpack.c.b16 %v1552, %v1548
    %v1821 = vpack.c.b16 %v1553, %v1549
    %v1822 = vpack.c.b16 %v1558, %v1554
    %v1823 = vpack.c.b16 %v1559, %v1555
    %v1824 = vpack.c.b16 %v1560, %v1556
    %v1825 = vpack.c.b16 %v1561, %v1557
    %v1826 = vpack.c.b16 %v1566, %v1562
    %v1827 = vpack.c.b16 %v1567, %v1563
    %v1828 = vpack.c.b16 %v1568, %v1564
    %v1829 = vpack.c.b16 %v1569, %v1565
    %v1830 = vpack.c.b16 %v1574, %v1570
    %v1831 = vpack.c.b16 %v1575, %v1571
    %v1832 = vpack.c.b16 %v1576, %v1572
    %v1833 = vpack.c.b16 %v1577, %v1573
    %2090 = vmatprep.subr.bf16.mxu0 %v1607
    %2091 = vmatpush1.bf16.msra.mxu0 %v1606
    %2092 = vmatprep.subr.bf16.mxu0 %v1603
    %2093 = vmatpush1.bf16.msra.mxu0 %v1602
    %2094 = vmatprep.subr.bf16.mxu0 %v1599
    %2095 = vmatpush1.bf16.msra.mxu0 %v1598
    %2096 = vmatprep.subr.bf16.mxu0 %v1595
    %2097 = vmatpush1.bf16.msra.mxu0 %v1594
    %2098 = vmatprep.subr.bf16.mxu0 %v1591
    %2099 = vmatpush1.bf16.msra.mxu0 %v1590
    %2100 = vmatprep.subr.bf16.mxu0 %v1587
    %2101 = vmatpush1.bf16.msra.mxu0 %v1586
    %2102 = vmatprep.subr.bf16.mxu0 %v1583
    %2103 = vmatpush1.bf16.msra.mxu0 %v1582
    %2104 = vmatprep.subr.bf16.mxu0 %v1579
    %2105 = vmatpush1.bf16.msra.mxu0 %v1578
    %2106 = vmatprep.subr.bf16.mxu0 %v1639
    %2107 = vmatpush2.bf16.msra.mxu0 %v1638
    %2108 = vmatprep.subr.bf16.mxu0 %v1635
    %2109 = vmatpush2.bf16.msra.mxu0 %v1634
    %2110 = vmatprep.subr.bf16.mxu0 %v1631
    %2111 = vmatpush2.bf16.msra.mxu0 %v1630
    %2112 = vmatprep.subr.bf16.mxu0 %v1627
    %2113 = vmatpush2.bf16.msra.mxu0 %v1626
    %2114 = vmatprep.subr.bf16.mxu0 %v1623
    %2115 = vmatpush2.bf16.msra.mxu0 %v1622
    %2116 = vmatprep.subr.bf16.mxu0 %v1619
    %2117 = vmatpush2.bf16.msra.mxu0 %v1618
    %2118 = vmatprep.subr.bf16.mxu0 %v1615
    %2119 = vmatpush2.bf16.msra.mxu0 %v1614
    %2120 = vmatprep.subr.bf16.mxu0 %v1611
    %2121 = vmatpush2.bf16.msra.mxu0 %v1610
    %2122 = vmatprep.mubr.bf16.mxu0 %v525
    %2123 = vmatmul.mubr.bf16.gmra.mxu0 %v524
    %v2124 = vpop.f32.mrf.mxu0
    %v2125 = vadd.f32 %v793, %v2124
    %v2126 = vpop.f32.mrf.mxu0
    %v2127 = vadd.f32 %v797, %v2126
    %v2128 = vpop.f32.mrf.mxu0
    %v2129 = vpop.f32.mrf.mxu0
    %2130 = vdwg.mxu0
    %2131 = vmatprep.subr.bf16.mxu0 %v1671
    %2132 = vmatpush1.bf16.msra.mxu0 %v1670
    %2133 = vmatprep.subr.bf16.mxu0 %v1667
    %2134 = vmatpush1.bf16.msra.mxu0 %v1666
    %2135 = vmatprep.subr.bf16.mxu0 %v1663
    %2136 = vmatpush1.bf16.msra.mxu0 %v1662
    %2137 = vmatprep.subr.bf16.mxu0 %v1659
    %2138 = vmatpush1.bf16.msra.mxu0 %v1658
    %2139 = vmatprep.subr.bf16.mxu0 %v1655
    %2140 = vmatpush1.bf16.msra.mxu0 %v1654
    %2141 = vmatprep.subr.bf16.mxu0 %v1651
    %2142 = vmatpush1.bf16.msra.mxu0 %v1650
    %2143 = vmatprep.subr.bf16.mxu0 %v1647
    %2144 = vmatpush1.bf16.msra.mxu0 %v1646
    %2145 = vmatprep.subr.bf16.mxu0 %v1643
    %2146 = vmatpush1.bf16.msra.mxu0 %v1642
    %2147 = vmatprep.subr.bf16.mxu0 %v1703
    %2148 = vmatpush2.bf16.msra.mxu0 %v1702
    %2149 = vmatprep.subr.bf16.mxu0 %v1699
    %2150 = vmatpush2.bf16.msra.mxu0 %v1698
    %2151 = vmatprep.subr.bf16.mxu0 %v1695
    %2152 = vmatpush2.bf16.msra.mxu0 %v1694
    %2153 = vmatprep.subr.bf16.mxu0 %v1691
    %2154 = vmatpush2.bf16.msra.mxu0 %v1690
    %2155 = vmatprep.subr.bf16.mxu0 %v1687
    %2156 = vmatpush2.bf16.msra.mxu0 %v1686
    %2157 = vmatprep.subr.bf16.mxu0 %v1683
    %2158 = vmatpush2.bf16.msra.mxu0 %v1682
    %2159 = vmatprep.subr.bf16.mxu0 %v1679
    %2160 = vmatpush2.bf16.msra.mxu0 %v1678
    %2161 = vmatprep.subr.bf16.mxu0 %v1675
    %2162 = vmatpush2.bf16.msra.mxu0 %v1674
    %2163 = vmatprep.mubr.bf16.mxu0 %v527
    %2164 = vmatmul.mubr.bf16.gmra.mxu0 %v526
    %v2165 = vpop.f32.mrf.mxu0
    %v2166 = vadd.f32 %v2125, %v2165
    %v2167 = vpop.f32.mrf.mxu0
    %v2168 = vadd.f32 %v2127, %v2167
    %v2169 = vpop.f32.mrf.mxu0
    %v2170 = vpop.f32.mrf.mxu0
    %2171 = vdwg.mxu0
    %2172 = vmatprep.subr.bf16.mxu0 %v1735
    %2173 = vmatpush1.bf16.msra.mxu0 %v1734
    %2174 = vmatprep.subr.bf16.mxu0 %v1731
    %2175 = vmatpush1.bf16.msra.mxu0 %v1730
    %2176 = vmatprep.subr.bf16.mxu0 %v1727
    %2177 = vmatpush1.bf16.msra.mxu0 %v1726
    %2178 = vmatprep.subr.bf16.mxu0 %v1723
    %2179 = vmatpush1.bf16.msra.mxu0 %v1722
    %2180 = vmatprep.subr.bf16.mxu0 %v1719
    %2181 = vmatpush1.bf16.msra.mxu0 %v1718
    %2182 = vmatprep.subr.bf16.mxu0 %v1715
    %2183 = vmatpush1.bf16.msra.mxu0 %v1714
    %2184 = vmatprep.subr.bf16.mxu0 %v1711
    %2185 = vmatpush1.bf16.msra.mxu0 %v1710
    %2186 = vmatprep.subr.bf16.mxu0 %v1707
    %2187 = vmatpush1.bf16.msra.mxu0 %v1706
    %2188 = vmatprep.subr.bf16.mxu0 %v1767
    %2189 = vmatpush2.bf16.msra.mxu0 %v1766
    %2190 = vmatprep.subr.bf16.mxu0 %v1763
    %2191 = vmatpush2.bf16.msra.mxu0 %v1762
    %2192 = vmatprep.subr.bf16.mxu0 %v1759
    %2193 = vmatpush2.bf16.msra.mxu0 %v1758
    %2194 = vmatprep.subr.bf16.mxu0 %v1755
    %2195 = vmatpush2.bf16.msra.mxu0 %v1754
    %2196 = vmatprep.subr.bf16.mxu0 %v1751
    %2197 = vmatpush2.bf16.msra.mxu0 %v1750
    %2198 = vmatprep.subr.bf16.mxu0 %v1747
    %2199 = vmatpush2.bf16.msra.mxu0 %v1746
    %2200 = vmatprep.subr.bf16.mxu0 %v1743
    %2201 = vmatpush2.bf16.msra.mxu0 %v1742
    %2202 = vmatprep.subr.bf16.mxu0 %v1739
    %2203 = vmatpush2.bf16.msra.mxu0 %v1738
    %2204 = vmatprep.mubr.bf16.mxu0 %v529
    %2205 = vmatmul.mubr.bf16.gmra.mxu0 %v528
    %v2206 = vpop.f32.mrf.mxu0
    %v2207 = vadd.f32 %v2166, %v2206
    %v2208 = vpop.f32.mrf.mxu0
    %v2209 = vadd.f32 %v2168, %v2208
    %v2210 = vpop.f32.mrf.mxu0
    %v2211 = vpop.f32.mrf.mxu0
    %2212 = vdwg.mxu0
    %2213 = vmatprep.subr.bf16.mxu0 %v1799
    %2214 = vmatpush1.bf16.msra.mxu0 %v1798
    %2215 = vmatprep.subr.bf16.mxu0 %v1795
    %2216 = vmatpush1.bf16.msra.mxu0 %v1794
    %2217 = vmatprep.subr.bf16.mxu0 %v1791
    %2218 = vmatpush1.bf16.msra.mxu0 %v1790
    %2219 = vmatprep.subr.bf16.mxu0 %v1787
    %2220 = vmatpush1.bf16.msra.mxu0 %v1786
    %2221 = vmatprep.subr.bf16.mxu0 %v1783
    %2222 = vmatpush1.bf16.msra.mxu0 %v1782
    %2223 = vmatprep.subr.bf16.mxu0 %v1779
    %2224 = vmatpush1.bf16.msra.mxu0 %v1778
    %2225 = vmatprep.subr.bf16.mxu0 %v1775
    %2226 = vmatpush1.bf16.msra.mxu0 %v1774
    %2227 = vmatprep.subr.bf16.mxu0 %v1771
    %2228 = vmatpush1.bf16.msra.mxu0 %v1770
    %2229 = vmatprep.subr.bf16.mxu0 %v1831
    %2230 = vmatpush2.bf16.msra.mxu0 %v1830
    %2231 = vmatprep.subr.bf16.mxu0 %v1827
    %2232 = vmatpush2.bf16.msra.mxu0 %v1826
    %2233 = vmatprep.subr.bf16.mxu0 %v1823
    %2234 = vmatpush2.bf16.msra.mxu0 %v1822
    %2235 = vmatprep.subr.bf16.mxu0 %v1819
    %2236 = vmatpush2.bf16.msra.mxu0 %v1818
    %2237 = vmatprep.subr.bf16.mxu0 %v1815
    %2238 = vmatpush2.bf16.msra.mxu0 %v1814
    %2239 = vmatprep.subr.bf16.mxu0 %v1811
    %2240 = vmatpush2.bf16.msra.mxu0 %v1810
    %2241 = vmatprep.subr.bf16.mxu0 %v1807
    %2242 = vmatpush2.bf16.msra.mxu0 %v1806
    %2243 = vmatprep.subr.bf16.mxu0 %v1803
    %2244 = vmatpush2.bf16.msra.mxu0 %v1802
    %2245 = vmatprep.mubr.bf16.mxu0 %v531
    %2246 = vmatmul.mubr.bf16.gmra.mxu0 %v530
    %v2247 = vpop.f32.mrf.mxu0
    %v2248 = vadd.f32 %v2207, %v2247
    %v2249 = vpop.f32.mrf.mxu0
    %v2250 = vadd.f32 %v2209, %v2249
    %v2251 = vpop.f32.mrf.mxu0
    %v2252 = vpop.f32.mrf.mxu0
    %2253 = vdwg.mxu0
    %2254 = vmatprep.subr.bf16.mxu0 %v1609
    %2255 = vmatpush1.bf16.msra.mxu0 %v1608
    %2256 = vmatprep.subr.bf16.mxu0 %v1605
    %2257 = vmatpush1.bf16.msra.mxu0 %v1604
    %2258 = vmatprep.subr.bf16.mxu0 %v1601
    %2259 = vmatpush1.bf16.msra.mxu0 %v1600
    %2260 = vmatprep.subr.bf16.mxu0 %v1597
    %2261 = vmatpush1.bf16.msra.mxu0 %v1596
    %2262 = vmatprep.subr.bf16.mxu0 %v1593
    %2263 = vmatpush1.bf16.msra.mxu0 %v1592
    %2264 = vmatprep.subr.bf16.mxu0 %v1589
    %2265 = vmatpush1.bf16.msra.mxu0 %v1588
    %2266 = vmatprep.subr.bf16.mxu0 %v1585
    %2267 = vmatpush1.bf16.msra.mxu0 %v1584
    %2268 = vmatprep.subr.bf16.mxu0 %v1581
    %2269 = vmatpush1.bf16.msra.mxu0 %v1580
    %2270 = vmatprep.subr.bf16.mxu0 %v1641
    %2271 = vmatpush2.bf16.msra.mxu0 %v1640
    %2272 = vmatprep.subr.bf16.mxu0 %v1637
    %2273 = vmatpush2.bf16.msra.mxu0 %v1636
    %2274 = vmatprep.subr.bf16.mxu0 %v1633
    %2275 = vmatpush2.bf16.msra.mxu0 %v1632
    %2276 = vmatprep.subr.bf16.mxu0 %v1629
    %2277 = vmatpush2.bf16.msra.mxu0 %v1628
    %2278 = vmatprep.subr.bf16.mxu0 %v1625
    %2279 = vmatpush2.bf16.msra.mxu0 %v1624
    %2280 = vmatprep.subr.bf16.mxu0 %v1621
    %2281 = vmatpush2.bf16.msra.mxu0 %v1620
    %2282 = vmatprep.subr.bf16.mxu0 %v1617
    %2283 = vmatpush2.bf16.msra.mxu0 %v1616
    %2284 = vmatprep.subr.bf16.mxu0 %v1613
    %2285 = vmatpush2.bf16.msra.mxu0 %v1612
    %2286 = vmatprep.mubr.bf16.mxu0 %v525
    %2287 = vmatmul.mubr.bf16.gmra.mxu0 %v524
    %v2288 = vpop.f32.mrf.mxu0
    %v2289 = vadd.f32 %v801, %v2288
    %v2290 = vpop.f32.mrf.mxu0
    %v2291 = vadd.f32 %v805, %v2290
    %v2292 = vpop.f32.mrf.mxu0
    %v2293 = vpop.f32.mrf.mxu0
    %2294 = vdwg.mxu0
    %2295 = vmatprep.subr.bf16.mxu0 %v1673
    %2296 = vmatpush1.bf16.msra.mxu0 %v1672
    %2297 = vmatprep.subr.bf16.mxu0 %v1669
    %2298 = vmatpush1.bf16.msra.mxu0 %v1668
    %2299 = vmatprep.subr.bf16.mxu0 %v1665
    %2300 = vmatpush1.bf16.msra.mxu0 %v1664
    %2301 = vmatprep.subr.bf16.mxu0 %v1661
    %2302 = vmatpush1.bf16.msra.mxu0 %v1660
    %2303 = vmatprep.subr.bf16.mxu0 %v1657
    %2304 = vmatpush1.bf16.msra.mxu0 %v1656
    %2305 = vmatprep.subr.bf16.mxu0 %v1653
    %2306 = vmatpush1.bf16.msra.mxu0 %v1652
    %2307 = vmatprep.subr.bf16.mxu0 %v1649
    %2308 = vmatpush1.bf16.msra.mxu0 %v1648
    %2309 = vmatprep.subr.bf16.mxu0 %v1645
    %2310 = vmatpush1.bf16.msra.mxu0 %v1644
    %2311 = vmatprep.subr.bf16.mxu0 %v1705
    %2312 = vmatpush2.bf16.msra.mxu0 %v1704
    %2313 = vmatprep.subr.bf16.mxu0 %v1701
    %2314 = vmatpush2.bf16.msra.mxu0 %v1700
    %2315 = vmatprep.subr.bf16.mxu0 %v1697
    %2316 = vmatpush2.bf16.msra.mxu0 %v1696
    %2317 = vmatprep.subr.bf16.mxu0 %v1693
    %2318 = vmatpush2.bf16.msra.mxu0 %v1692
    %2319 = vmatprep.subr.bf16.mxu0 %v1689
    %2320 = vmatpush2.bf16.msra.mxu0 %v1688
    %2321 = vmatprep.subr.bf16.mxu0 %v1685
    %2322 = vmatpush2.bf16.msra.mxu0 %v1684
    %2323 = vmatprep.subr.bf16.mxu0 %v1681
    %2324 = vmatpush2.bf16.msra.mxu0 %v1680
    %2325 = vmatprep.subr.bf16.mxu0 %v1677
    %2326 = vmatpush2.bf16.msra.mxu0 %v1676
    %2327 = vmatprep.mubr.bf16.mxu0 %v527
    %2328 = vmatmul.mubr.bf16.gmra.mxu0 %v526
    %v2329 = vpop.f32.mrf.mxu0
    %v2330 = vadd.f32 %v2289, %v2329
    %v2331 = vpop.f32.mrf.mxu0
    %v2332 = vadd.f32 %v2291, %v2331
    %v2333 = vpop.f32.mrf.mxu0
    %v2334 = vpop.f32.mrf.mxu0
    %2335 = vdwg.mxu0
    %2336 = vmatprep.subr.bf16.mxu0 %v1737
    %2337 = vmatpush1.bf16.msra.mxu0 %v1736
    %2338 = vmatprep.subr.bf16.mxu0 %v1733
    %2339 = vmatpush1.bf16.msra.mxu0 %v1732
    %2340 = vmatprep.subr.bf16.mxu0 %v1729
    %2341 = vmatpush1.bf16.msra.mxu0 %v1728
    %2342 = vmatprep.subr.bf16.mxu0 %v1725
    %2343 = vmatpush1.bf16.msra.mxu0 %v1724
    %2344 = vmatprep.subr.bf16.mxu0 %v1721
    %2345 = vmatpush1.bf16.msra.mxu0 %v1720
    %2346 = vmatprep.subr.bf16.mxu0 %v1717
    %2347 = vmatpush1.bf16.msra.mxu0 %v1716
    %2348 = vmatprep.subr.bf16.mxu0 %v1713
    %2349 = vmatpush1.bf16.msra.mxu0 %v1712
    %2350 = vmatprep.subr.bf16.mxu0 %v1709
    %2351 = vmatpush1.bf16.msra.mxu0 %v1708
    %2352 = vmatprep.subr.bf16.mxu0 %v1769
    %2353 = vmatpush2.bf16.msra.mxu0 %v1768
    %2354 = vmatprep.subr.bf16.mxu0 %v1765
    %2355 = vmatpush2.bf16.msra.mxu0 %v1764
    %2356 = vmatprep.subr.bf16.mxu0 %v1761
    %2357 = vmatpush2.bf16.msra.mxu0 %v1760
    %2358 = vmatprep.subr.bf16.mxu0 %v1757
    %2359 = vmatpush2.bf16.msra.mxu0 %v1756
    %2360 = vmatprep.subr.bf16.mxu0 %v1753
    %2361 = vmatpush2.bf16.msra.mxu0 %v1752
    %2362 = vmatprep.subr.bf16.mxu0 %v1749
    %2363 = vmatpush2.bf16.msra.mxu0 %v1748
    %2364 = vmatprep.subr.bf16.mxu0 %v1745
    %2365 = vmatpush2.bf16.msra.mxu0 %v1744
    %2366 = vmatprep.subr.bf16.mxu0 %v1741
    %2367 = vmatpush2.bf16.msra.mxu0 %v1740
    %2368 = vmatprep.mubr.bf16.mxu0 %v529
    %2369 = vmatmul.mubr.bf16.gmra.mxu0 %v528
    %v2370 = vpop.f32.mrf.mxu0
    %v2371 = vadd.f32 %v2330, %v2370
    %v2372 = vpop.f32.mrf.mxu0
    %v2373 = vadd.f32 %v2332, %v2372
    %v2374 = vpop.f32.mrf.mxu0
    %v2375 = vpop.f32.mrf.mxu0
    %2376 = vdwg.mxu0
    %2377 = vmatprep.subr.bf16.mxu0 %v1801
    %2378 = vmatpush1.bf16.msra.mxu0 %v1800
    %2379 = vmatprep.subr.bf16.mxu0 %v1797
    %2380 = vmatpush1.bf16.msra.mxu0 %v1796
    %2381 = vmatprep.subr.bf16.mxu0 %v1793
    %2382 = vmatpush1.bf16.msra.mxu0 %v1792
    %2383 = vmatprep.subr.bf16.mxu0 %v1789
    %2384 = vmatpush1.bf16.msra.mxu0 %v1788
    %2385 = vmatprep.subr.bf16.mxu0 %v1785
    %2386 = vmatpush1.bf16.msra.mxu0 %v1784
    %2387 = vmatprep.subr.bf16.mxu0 %v1781
    %2388 = vmatpush1.bf16.msra.mxu0 %v1780
    %2389 = vmatprep.subr.bf16.mxu0 %v1777
    %2390 = vmatpush1.bf16.msra.mxu0 %v1776
    %2391 = vmatprep.subr.bf16.mxu0 %v1773
    %2392 = vmatpush1.bf16.msra.mxu0 %v1772
    %2393 = vmatprep.subr.bf16.mxu0 %v1833
    %2394 = vmatpush2.bf16.msra.mxu0 %v1832
    %2395 = vmatprep.subr.bf16.mxu0 %v1829
    %2396 = vmatpush2.bf16.msra.mxu0 %v1828
    %2397 = vmatprep.subr.bf16.mxu0 %v1825
    %2398 = vmatpush2.bf16.msra.mxu0 %v1824
    %2399 = vmatprep.subr.bf16.mxu0 %v1821
    %2400 = vmatpush2.bf16.msra.mxu0 %v1820
    %2401 = vmatprep.subr.bf16.mxu0 %v1817
    %2402 = vmatpush2.bf16.msra.mxu0 %v1816
    %2403 = vmatprep.subr.bf16.mxu0 %v1813
    %2404 = vmatpush2.bf16.msra.mxu0 %v1812
    %2405 = vmatprep.subr.bf16.mxu0 %v1809
    %2406 = vmatpush2.bf16.msra.mxu0 %v1808
    %2407 = vmatprep.subr.bf16.mxu0 %v1805
    %2408 = vmatpush2.bf16.msra.mxu0 %v1804
    %2409 = vmatprep.mubr.bf16.mxu0 %v531
    %2410 = vmatmul.mubr.bf16.gmra.mxu0 %v530
    %v2411 = vpop.f32.mrf.mxu0
    %v2412 = vadd.f32 %v2371, %v2411
    %v2413 = vpop.f32.mrf.mxu0
    %v2414 = vadd.f32 %v2373, %v2413
    %v2415 = vpop.f32.mrf.mxu0
    %v2416 = vpop.f32.mrf.mxu0
    %2417 = vdwg.mxu0
    %v2418 = vmax.f32 %v2248, 0.0
    %v2419 = vmax.f32 %v2250, 0.0
    %v2420 = vmax.f32 %v2412, 0.0
    %v2421 = vmax.f32 %v2414, 0.0
    %v2422 = vpack.c.bf16 %v2418, %v2418
    %v2423 = vpack.c.bf16 %v2419, %v2419
    %v2424 = vpack.c.bf16 %v2420, %v2420
    %v2425 = vpack.c.bf16 %v2421, %v2421
    %v2426 = vld [vmem:[#allocation11] sm:$0xff]
    %v2427 = vld [vmem:[#allocation11 + $0x8] sm:$0xff]
    %v2428 = vld [vmem:[#allocation11 + $0x10] sm:$0xff]
    %v2429 = vld [vmem:[#allocation11 + $0x18] sm:$0xff]
    %v2430 = vld [vmem:[#allocation11 + $0x20] sm:$0xff]
    %v2431 = vld [vmem:[#allocation11 + $0x28] sm:$0xff]
    %v2432 = vld [vmem:[#allocation11 + $0x30] sm:$0xff]
    %v2433 = vld [vmem:[#allocation11 + $0x38] sm:$0xff]
    %v2434 = vld [vmem:[#allocation11 + $0x40] sm:$0xff]
    %v2435 = vld [vmem:[#allocation11 + $0x48] sm:$0xff]
    %v2436 = vld [vmem:[#allocation11 + $0x50] sm:$0xff]
    %v2437 = vld [vmem:[#allocation11 + $0x58] sm:$0xff]
    %v2438 = vld [vmem:[#allocation11 + $0x60] sm:$0xff]
    %v2439 = vld [vmem:[#allocation11 + $0x68] sm:$0xff]
    %v2440 = vld [vmem:[#allocation11 + $0x70] sm:$0xff]
    %v2441 = vld [vmem:[#allocation11 + $0x78] sm:$0xff]
    %v2442 = vld [vmem:[#allocation11 + $0x80] sm:$0xff]
    %v2443 = vld [vmem:[#allocation11 + $0x88] sm:$0xff]
    %v2444 = vld [vmem:[#allocation11 + $0x90] sm:$0xff]
    %v2445 = vld [vmem:[#allocation11 + $0x98] sm:$0xff]
    %v2446 = vld [vmem:[#allocation11 + $0xa0] sm:$0xff]
    %v2447 = vld [vmem:[#allocation11 + $0xa8] sm:$0xff]
    %v2448 = vld [vmem:[#allocation11 + $0xb0] sm:$0xff]
    %v2449 = vld [vmem:[#allocation11 + $0xb8] sm:$0xff]
    %v2450 = vld [vmem:[#allocation11 + $0xc0] sm:$0xff]
    %v2451 = vld [vmem:[#allocation11 + $0xc8] sm:$0xff]
    %v2452 = vld [vmem:[#allocation11 + $0xd0] sm:$0xff]
    %v2453 = vld [vmem:[#allocation11 + $0xd8] sm:$0xff]
    %v2454 = vld [vmem:[#allocation11 + $0xe0] sm:$0xff]
    %v2455 = vld [vmem:[#allocation11 + $0xe8] sm:$0xff]
    %v2456 = vld [vmem:[#allocation11 + $0xf0] sm:$0xff]
    %v2457 = vld [vmem:[#allocation11 + $0xf8] sm:$0xff]
    %v2458 = vld [vmem:[#allocation11 + $0x100] sm:$0xff]
    %v2459 = vld [vmem:[#allocation11 + $0x108] sm:$0xff]
    %v2460 = vld [vmem:[#allocation11 + $0x110] sm:$0xff]
    %v2461 = vld [vmem:[#allocation11 + $0x118] sm:$0xff]
    %v2462 = vld [vmem:[#allocation11 + $0x120] sm:$0xff]
    %v2463 = vld [vmem:[#allocation11 + $0x128] sm:$0xff]
    %v2464 = vld [vmem:[#allocation11 + $0x130] sm:$0xff]
    %v2465 = vld [vmem:[#allocation11 + $0x138] sm:$0xff]
    %v2466 = vld [vmem:[#allocation11 + $0x140] sm:$0xff]
    %v2467 = vld [vmem:[#allocation11 + $0x148] sm:$0xff]
    %v2468 = vld [vmem:[#allocation11 + $0x150] sm:$0xff]
    %v2469 = vld [vmem:[#allocation11 + $0x158] sm:$0xff]
    %v2470 = vld [vmem:[#allocation11 + $0x160] sm:$0xff]
    %v2471 = vld [vmem:[#allocation11 + $0x168] sm:$0xff]
    %v2472 = vld [vmem:[#allocation11 + $0x170] sm:$0xff]
    %v2473 = vld [vmem:[#allocation11 + $0x178] sm:$0xff]
    %v2474 = vld [vmem:[#allocation11 + $0x180] sm:$0xff]
    %v2475 = vld [vmem:[#allocation11 + $0x188] sm:$0xff]
    %v2476 = vld [vmem:[#allocation11 + $0x190] sm:$0xff]
    %v2477 = vld [vmem:[#allocation11 + $0x198] sm:$0xff]
    %v2478 = vld [vmem:[#allocation11 + $0x1a0] sm:$0xff]
    %v2479 = vld [vmem:[#allocation11 + $0x1a8] sm:$0xff]
    %v2480 = vld [vmem:[#allocation11 + $0x1b0] sm:$0xff]
    %v2481 = vld [vmem:[#allocation11 + $0x1b8] sm:$0xff]
    %v2482 = vld [vmem:[#allocation11 + $0x1c0] sm:$0xff]
    %v2483 = vld [vmem:[#allocation11 + $0x1c8] sm:$0xff]
    %v2484 = vld [vmem:[#allocation11 + $0x1d0] sm:$0xff]
    %v2485 = vld [vmem:[#allocation11 + $0x1d8] sm:$0xff]
    %v2486 = vld [vmem:[#allocation11 + $0x1e0] sm:$0xff]
    %v2487 = vld [vmem:[#allocation11 + $0x1e8] sm:$0xff]
    %v2488 = vld [vmem:[#allocation11 + $0x1f0] sm:$0xff]
    %v2489 = vld [vmem:[#allocation11 + $0x1f8] sm:$0xff]
    %v2490 = vld [vmem:[#allocation13] sm:$0x3]
    %v2492 = vlaneseq
    %v2493 = vshrl.u32 %v2492, 7
    %v2494 = vsub.s32 0, %v2493
    %v2495 = vrot.slane %v2490, %v2494
    %v2496 = vlaneseq
    %v2497 = vshrl.u32 %v2496, 7
    %v2498 = vsub.s32 1, %v2497
    %v2499 = vrot.slane %v2490, %v2498
    %v2566 = vunpack.c.l.b16 %v2426
    %v2567 = vunpack.c.h.b16 %v2426
    %v2568 = vunpack.c.l.b16 %v2427
    %v2569 = vunpack.c.h.b16 %v2427
    %v2570 = vunpack.c.l.b16 %v2428
    %v2571 = vunpack.c.h.b16 %v2428
    %v2572 = vunpack.c.l.b16 %v2429
    %v2573 = vunpack.c.h.b16 %v2429
    %v2574 = vunpack.c.l.b16 %v2430
    %v2575 = vunpack.c.h.b16 %v2430
    %v2576 = vunpack.c.l.b16 %v2431
    %v2577 = vunpack.c.h.b16 %v2431
    %v2578 = vunpack.c.l.b16 %v2432
    %v2579 = vunpack.c.h.b16 %v2432
    %v2580 = vunpack.c.l.b16 %v2433
    %v2581 = vunpack.c.h.b16 %v2433
    %v2582 = vunpack.c.l.b16 %v2434
    %v2583 = vunpack.c.h.b16 %v2434
    %v2584 = vunpack.c.l.b16 %v2435
    %v2585 = vunpack.c.h.b16 %v2435
    %v2586 = vunpack.c.l.b16 %v2436
    %v2587 = vunpack.c.h.b16 %v2436
    %v2588 = vunpack.c.l.b16 %v2437
    %v2589 = vunpack.c.h.b16 %v2437
    %v2590 = vunpack.c.l.b16 %v2438
    %v2591 = vunpack.c.h.b16 %v2438
    %v2592 = vunpack.c.l.b16 %v2439
    %v2593 = vunpack.c.h.b16 %v2439
    %v2594 = vunpack.c.l.b16 %v2440
    %v2595 = vunpack.c.h.b16 %v2440
    %v2596 = vunpack.c.l.b16 %v2441
    %v2597 = vunpack.c.h.b16 %v2441
    %v2598 = vunpack.c.l.b16 %v2442
    %v2599 = vunpack.c.h.b16 %v2442
    %v2600 = vunpack.c.l.b16 %v2443
    %v2601 = vunpack.c.h.b16 %v2443
    %v2602 = vunpack.c.l.b16 %v2444
    %v2603 = vunpack.c.h.b16 %v2444
    %v2604 = vunpack.c.l.b16 %v2445
    %v2605 = vunpack.c.h.b16 %v2445
    %v2606 = vunpack.c.l.b16 %v2446
    %v2607 = vunpack.c.h.b16 %v2446
    %v2608 = vunpack.c.l.b16 %v2447
    %v2609 = vunpack.c.h.b16 %v2447
    %v2610 = vunpack.c.l.b16 %v2448
    %v2611 = vunpack.c.h.b16 %v2448
    %v2612 = vunpack.c.l.b16 %v2449
    %v2613 = vunpack.c.h.b16 %v2449
    %v2614 = vunpack.c.l.b16 %v2450
    %v2615 = vunpack.c.h.b16 %v2450
    %v2616 = vunpack.c.l.b16 %v2451
    %v2617 = vunpack.c.h.b16 %v2451
    %v2618 = vunpack.c.l.b16 %v2452
    %v2619 = vunpack.c.h.b16 %v2452
    %v2620 = vunpack.c.l.b16 %v2453
    %v2621 = vunpack.c.h.b16 %v2453
    %v2622 = vunpack.c.l.b16 %v2454
    %v2623 = vunpack.c.h.b16 %v2454
    %v2624 = vunpack.c.l.b16 %v2455
    %v2625 = vunpack.c.h.b16 %v2455
    %v2626 = vunpack.c.l.b16 %v2456
    %v2627 = vunpack.c.h.b16 %v2456
    %v2628 = vunpack.c.l.b16 %v2457
    %v2629 = vunpack.c.h.b16 %v2457
    %v2630 = vunpack.c.l.b16 %v2458
    %v2631 = vunpack.c.h.b16 %v2458
    %v2632 = vunpack.c.l.b16 %v2459
    %v2633 = vunpack.c.h.b16 %v2459
    %v2634 = vunpack.c.l.b16 %v2460
    %v2635 = vunpack.c.h.b16 %v2460
    %v2636 = vunpack.c.l.b16 %v2461
    %v2637 = vunpack.c.h.b16 %v2461
    %v2638 = vunpack.c.l.b16 %v2462
    %v2639 = vunpack.c.h.b16 %v2462
    %v2640 = vunpack.c.l.b16 %v2463
    %v2641 = vunpack.c.h.b16 %v2463
    %v2642 = vunpack.c.l.b16 %v2464
    %v2643 = vunpack.c.h.b16 %v2464
    %v2644 = vunpack.c.l.b16 %v2465
    %v2645 = vunpack.c.h.b16 %v2465
    %v2646 = vunpack.c.l.b16 %v2466
    %v2647 = vunpack.c.h.b16 %v2466
    %v2648 = vunpack.c.l.b16 %v2467
    %v2649 = vunpack.c.h.b16 %v2467
    %v2650 = vunpack.c.l.b16 %v2468
    %v2651 = vunpack.c.h.b16 %v2468
    %v2652 = vunpack.c.l.b16 %v2469
    %v2653 = vunpack.c.h.b16 %v2469
    %v2654 = vunpack.c.l.b16 %v2470
    %v2655 = vunpack.c.h.b16 %v2470
    %v2656 = vunpack.c.l.b16 %v2471
    %v2657 = vunpack.c.h.b16 %v2471
    %v2658 = vunpack.c.l.b16 %v2472
    %v2659 = vunpack.c.h.b16 %v2472
    %v2660 = vunpack.c.l.b16 %v2473
    %v2661 = vunpack.c.h.b16 %v2473
    %v2662 = vunpack.c.l.b16 %v2474
    %v2663 = vunpack.c.h.b16 %v2474
    %v2664 = vunpack.c.l.b16 %v2475
    %v2665 = vunpack.c.h.b16 %v2475
    %v2666 = vunpack.c.l.b16 %v2476
    %v2667 = vunpack.c.h.b16 %v2476
    %v2668 = vunpack.c.l.b16 %v2477
    %v2669 = vunpack.c.h.b16 %v2477
    %v2670 = vunpack.c.l.b16 %v2478
    %v2671 = vunpack.c.h.b16 %v2478
    %v2672 = vunpack.c.l.b16 %v2479
    %v2673 = vunpack.c.h.b16 %v2479
    %v2674 = vunpack.c.l.b16 %v2480
    %v2675 = vunpack.c.h.b16 %v2480
    %v2676 = vunpack.c.l.b16 %v2481
    %v2677 = vunpack.c.h.b16 %v2481
    %v2678 = vunpack.c.l.b16 %v2482
    %v2679 = vunpack.c.h.b16 %v2482
    %v2680 = vunpack.c.l.b16 %v2483
    %v2681 = vunpack.c.h.b16 %v2483
    %v2682 = vunpack.c.l.b16 %v2484
    %v2683 = vunpack.c.h.b16 %v2484
    %v2684 = vunpack.c.l.b16 %v2485
    %v2685 = vunpack.c.h.b16 %v2485
    %v2686 = vunpack.c.l.b16 %v2486
    %v2687 = vunpack.c.h.b16 %v2486
    %v2688 = vunpack.c.l.b16 %v2487
    %v2689 = vunpack.c.h.b16 %v2487
    %v2690 = vunpack.c.l.b16 %v2488
    %v2691 = vunpack.c.h.b16 %v2488
    %v2692 = vunpack.c.l.b16 %v2489
    %v2693 = vunpack.c.h.b16 %v2489
    %v2694 = vpack.c.b16 %v2568, %v2566
    %v2695 = vpack.c.b16 %v2569, %v2567
    %v2696 = vpack.c.b16 %v2572, %v2570
    %v2697 = vpack.c.b16 %v2573, %v2571
    %v2698 = vpack.c.b16 %v2576, %v2574
    %v2699 = vpack.c.b16 %v2577, %v2575
    %v2700 = vpack.c.b16 %v2580, %v2578
    %v2701 = vpack.c.b16 %v2581, %v2579
    %v2702 = vpack.c.b16 %v2584, %v2582
    %v2703 = vpack.c.b16 %v2585, %v2583
    %v2704 = vpack.c.b16 %v2588, %v2586
    %v2705 = vpack.c.b16 %v2589, %v2587
    %v2706 = vpack.c.b16 %v2592, %v2590
    %v2707 = vpack.c.b16 %v2593, %v2591
    %v2708 = vpack.c.b16 %v2596, %v2594
    %v2709 = vpack.c.b16 %v2597, %v2595
    %v2710 = vpack.c.b16 %v2600, %v2598
    %v2711 = vpack.c.b16 %v2601, %v2599
    %v2712 = vpack.c.b16 %v2604, %v2602
    %v2713 = vpack.c.b16 %v2605, %v2603
    %v2714 = vpack.c.b16 %v2608, %v2606
    %v2715 = vpack.c.b16 %v2609, %v2607
    %v2716 = vpack.c.b16 %v2612, %v2610
    %v2717 = vpack.c.b16 %v2613, %v2611
    %v2718 = vpack.c.b16 %v2616, %v2614
    %v2719 = vpack.c.b16 %v2617, %v2615
    %v2720 = vpack.c.b16 %v2620, %v2618
    %v2721 = vpack.c.b16 %v2621, %v2619
    %v2722 = vpack.c.b16 %v2624, %v2622
    %v2723 = vpack.c.b16 %v2625, %v2623
    %v2724 = vpack.c.b16 %v2628, %v2626
    %v2725 = vpack.c.b16 %v2629, %v2627
    %v2726 = vpack.c.b16 %v2632, %v2630
    %v2727 = vpack.c.b16 %v2633, %v2631
    %v2728 = vpack.c.b16 %v2636, %v2634
    %v2729 = vpack.c.b16 %v2637, %v2635
    %v2730 = vpack.c.b16 %v2640, %v2638
    %v2731 = vpack.c.b16 %v2641, %v2639
    %v2732 = vpack.c.b16 %v2644, %v2642
    %v2733 = vpack.c.b16 %v2645, %v2643
    %v2734 = vpack.c.b16 %v2648, %v2646
    %v2735 = vpack.c.b16 %v2649, %v2647
    %v2736 = vpack.c.b16 %v2652, %v2650
    %v2737 = vpack.c.b16 %v2653, %v2651
    %v2738 = vpack.c.b16 %v2656, %v2654
    %v2739 = vpack.c.b16 %v2657, %v2655
    %v2740 = vpack.c.b16 %v2660, %v2658
    %v2741 = vpack.c.b16 %v2661, %v2659
    %v2742 = vpack.c.b16 %v2664, %v2662
    %v2743 = vpack.c.b16 %v2665, %v2663
    %v2744 = vpack.c.b16 %v2668, %v2666
    %v2745 = vpack.c.b16 %v2669, %v2667
    %v2746 = vpack.c.b16 %v2672, %v2670
    %v2747 = vpack.c.b16 %v2673, %v2671
    %v2748 = vpack.c.b16 %v2676, %v2674
    %v2749 = vpack.c.b16 %v2677, %v2675
    %v2750 = vpack.c.b16 %v2680, %v2678
    %v2751 = vpack.c.b16 %v2681, %v2679
    %v2752 = vpack.c.b16 %v2684, %v2682
    %v2753 = vpack.c.b16 %v2685, %v2683
    %v2754 = vpack.c.b16 %v2688, %v2686
    %v2755 = vpack.c.b16 %v2689, %v2687
    %v2756 = vpack.c.b16 %v2692, %v2690
    %v2757 = vpack.c.b16 %v2693, %v2691
    %2822 = vmatprep.subr.bf16.mxu0 %v2709
    %2823 = vmatpush1.bf16.msra.mxu0 %v2708
    %2824 = vmatprep.subr.bf16.mxu0 %v2707
    %2825 = vmatpush1.bf16.msra.mxu0 %v2706
    %2826 = vmatprep.subr.bf16.mxu0 %v2705
    %2827 = vmatpush1.bf16.msra.mxu0 %v2704
    %2828 = vmatprep.subr.bf16.mxu0 %v2703
    %2829 = vmatpush1.bf16.msra.mxu0 %v2702
    %2830 = vmatprep.subr.bf16.mxu0 %v2701
    %2831 = vmatpush1.bf16.msra.mxu0 %v2700
    %2832 = vmatprep.subr.bf16.mxu0 %v2699
    %2833 = vmatpush1.bf16.msra.mxu0 %v2698
    %2834 = vmatprep.subr.bf16.mxu0 %v2697
    %2835 = vmatpush1.bf16.msra.mxu0 %v2696
    %2836 = vmatprep.subr.bf16.mxu0 %v2695
    %2837 = vmatpush1.bf16.msra.mxu0 %v2694
    %2838 = vmatprep.subr.bf16.mxu0 %v2725
    %2839 = vmatpush2.bf16.msra.mxu0 %v2724
    %2840 = vmatprep.subr.bf16.mxu0 %v2723
    %2841 = vmatpush2.bf16.msra.mxu0 %v2722
    %2842 = vmatprep.subr.bf16.mxu0 %v2721
    %2843 = vmatpush2.bf16.msra.mxu0 %v2720
    %2844 = vmatprep.subr.bf16.mxu0 %v2719
    %2845 = vmatpush2.bf16.msra.mxu0 %v2718
    %2846 = vmatprep.subr.bf16.mxu0 %v2717
    %2847 = vmatpush2.bf16.msra.mxu0 %v2716
    %2848 = vmatprep.subr.bf16.mxu0 %v2715
    %2849 = vmatpush2.bf16.msra.mxu0 %v2714
    %2850 = vmatprep.subr.bf16.mxu0 %v2713
    %2851 = vmatpush2.bf16.msra.mxu0 %v2712
    %2852 = vmatprep.subr.bf16.mxu0 %v2711
    %2853 = vmatpush2.bf16.msra.mxu0 %v2710
    %2854 = vmatprep.mubr.bf16.mxu0 %v2423
    %2855 = vmatmul.mubr.bf16.gmra.mxu0 %v2422
    %v2856 = vpop.f32.mrf.mxu0
    %v2857 = vadd.f32 %v2495, %v2856
    %v2858 = vpop.f32.mrf.mxu0
    %v2859 = vadd.f32 %v2499, %v2858
    %v2860 = vpop.f32.mrf.mxu0
    %v2861 = vpop.f32.mrf.mxu0
    %2862 = vdwg.mxu0
    %2863 = vmatprep.subr.bf16.mxu0 %v2741
    %2864 = vmatpush1.bf16.msra.mxu0 %v2740
    %2865 = vmatprep.subr.bf16.mxu0 %v2739
    %2866 = vmatpush1.bf16.msra.mxu0 %v2738
    %2867 = vmatprep.subr.bf16.mxu0 %v2737
    %2868 = vmatpush1.bf16.msra.mxu0 %v2736
    %2869 = vmatprep.subr.bf16.mxu0 %v2735
    %2870 = vmatpush1.bf16.msra.mxu0 %v2734
    %2871 = vmatprep.subr.bf16.mxu0 %v2733
    %2872 = vmatpush1.bf16.msra.mxu0 %v2732
    %2873 = vmatprep.subr.bf16.mxu0 %v2731
    %2874 = vmatpush1.bf16.msra.mxu0 %v2730
    %2875 = vmatprep.subr.bf16.mxu0 %v2729
    %2876 = vmatpush1.bf16.msra.mxu0 %v2728
    %2877 = vmatprep.subr.bf16.mxu0 %v2727
    %2878 = vmatpush1.bf16.msra.mxu0 %v2726
    %2879 = vmatprep.subr.bf16.mxu0 %v2757
    %2880 = vmatpush2.bf16.msra.mxu0 %v2756
    %2881 = vmatprep.subr.bf16.mxu0 %v2755
    %2882 = vmatpush2.bf16.msra.mxu0 %v2754
    %2883 = vmatprep.subr.bf16.mxu0 %v2753
    %2884 = vmatpush2.bf16.msra.mxu0 %v2752
    %2885 = vmatprep.subr.bf16.mxu0 %v2751
    %2886 = vmatpush2.bf16.msra.mxu0 %v2750
    %2887 = vmatprep.subr.bf16.mxu0 %v2749
    %2888 = vmatpush2.bf16.msra.mxu0 %v2748
    %2889 = vmatprep.subr.bf16.mxu0 %v2747
    %2890 = vmatpush2.bf16.msra.mxu0 %v2746
    %2891 = vmatprep.subr.bf16.mxu0 %v2745
    %2892 = vmatpush2.bf16.msra.mxu0 %v2744
    %2893 = vmatprep.subr.bf16.mxu0 %v2743
    %2894 = vmatpush2.bf16.msra.mxu0 %v2742
    %2895 = vmatprep.mubr.bf16.mxu0 %v2425
    %2896 = vmatmul.mubr.bf16.gmra.mxu0 %v2424
    %v2897 = vpop.f32.mrf.mxu0
    %v2898 = vadd.f32 %v2857, %v2897
    %v2899 = vpop.f32.mrf.mxu0
    %v2900 = vadd.f32 %v2859, %v2899
    %v2901 = vpop.f32.mrf.mxu0
    %v2902 = vpop.f32.mrf.mxu0
    %2903 = vdwg.mxu0
    %v2904 = vmax.f32 %v2898, 0.0
    %v2905 = vmax.f32 %v2900, 0.0
    %v2906 = vpack.c.bf16 %v2904, %v2904
    %v2907 = vpack.c.bf16 %v2905, %v2905
    %v2908 = vld [vmem:[#allocation14] sm:$0xff]
    %v2909 = vld [vmem:[#allocation14 + $0x8] sm:$0xff]
    %v2910 = vld [vmem:[#allocation14 + $0x10] sm:$0xff]
    %v2911 = vld [vmem:[#allocation14 + $0x18] sm:$0xff]
    %v2912 = vld [vmem:[#allocation14 + $0x20] sm:$0xff]
    %v2913 = vld [vmem:[#allocation14 + $0x28] sm:$0xff]
    %v2914 = vld [vmem:[#allocation14 + $0x30] sm:$0xff]
    %v2915 = vld [vmem:[#allocation14 + $0x38] sm:$0xff]
    %v2916 = vld [vmem:[#allocation14 + $0x40] sm:$0xff]
    %v2917 = vld [vmem:[#allocation14 + $0x48] sm:$0xff]
    %v2918 = vld [vmem:[#allocation14 + $0x50] sm:$0xff]
    %v2919 = vld [vmem:[#allocation14 + $0x58] sm:$0xff]
    %v2920 = vld [vmem:[#allocation14 + $0x60] sm:$0xff]
    %v2921 = vld [vmem:[#allocation14 + $0x68] sm:$0xff]
    %v2922 = vld [vmem:[#allocation14 + $0x70] sm:$0xff]
    %v2923 = vld [vmem:[#allocation14 + $0x78] sm:$0xff]
    %v2924 = vld [vmem:[#allocation14 + $0x80] sm:$0xff]
    %v2925 = vld [vmem:[#allocation14 + $0x88] sm:$0xff]
    %v2926 = vld [vmem:[#allocation14 + $0x90] sm:$0xff]
    %v2927 = vld [vmem:[#allocation14 + $0x98] sm:$0xff]
    %v2928 = vld [vmem:[#allocation14 + $0xa0] sm:$0xff]
    %v2929 = vld [vmem:[#allocation14 + $0xa8] sm:$0xff]
    %v2930 = vld [vmem:[#allocation14 + $0xb0] sm:$0xff]
    %v2931 = vld [vmem:[#allocation14 + $0xb8] sm:$0xff]
    %v2932 = vld [vmem:[#allocation14 + $0xc0] sm:$0xff]
    %v2933 = vld [vmem:[#allocation14 + $0xc8] sm:$0xff]
    %v2934 = vld [vmem:[#allocation14 + $0xd0] sm:$0xff]
    %v2935 = vld [vmem:[#allocation14 + $0xd8] sm:$0xff]
    %v2936 = vld [vmem:[#allocation14 + $0xe0] sm:$0xff]
    %v2937 = vld [vmem:[#allocation14 + $0xe8] sm:$0xff]
    %v2938 = vld [vmem:[#allocation14 + $0xf0] sm:$0xff]
    %v2939 = vld [vmem:[#allocation14 + $0xf8] sm:$0xff]
    %v2940 = vld [vmem:[#allocation14 + $0x100] sm:$0xff]
    %v2941 = vld [vmem:[#allocation14 + $0x108] sm:$0xff]
    %v2942 = vld [vmem:[#allocation14 + $0x110] sm:$0xff]
    %v2943 = vld [vmem:[#allocation14 + $0x118] sm:$0xff]
    %v2944 = vld [vmem:[#allocation14 + $0x120] sm:$0xff]
    %v2945 = vld [vmem:[#allocation14 + $0x128] sm:$0xff]
    %v2946 = vld [vmem:[#allocation14 + $0x130] sm:$0xff]
    %v2947 = vld [vmem:[#allocation14 + $0x138] sm:$0xff]
    %v2948 = vld [vmem:[#allocation14 + $0x140] sm:$0xff]
    %v2949 = vld [vmem:[#allocation14 + $0x148] sm:$0xff]
    %v2950 = vld [vmem:[#allocation14 + $0x150] sm:$0xff]
    %v2951 = vld [vmem:[#allocation14 + $0x158] sm:$0xff]
    %v2952 = vld [vmem:[#allocation14 + $0x160] sm:$0xff]
    %v2953 = vld [vmem:[#allocation14 + $0x168] sm:$0xff]
    %v2954 = vld [vmem:[#allocation14 + $0x170] sm:$0xff]
    %v2955 = vld [vmem:[#allocation14 + $0x178] sm:$0xff]
    %v2956 = vld [vmem:[#allocation14 + $0x180] sm:$0xff]
    %v2957 = vld [vmem:[#allocation14 + $0x188] sm:$0xff]
    %v2958 = vld [vmem:[#allocation14 + $0x190] sm:$0xff]
    %v2959 = vld [vmem:[#allocation14 + $0x198] sm:$0xff]
    %v2960 = vld [vmem:[#allocation14 + $0x1a0] sm:$0xff]
    %v2961 = vld [vmem:[#allocation14 + $0x1a8] sm:$0xff]
    %v2962 = vld [vmem:[#allocation14 + $0x1b0] sm:$0xff]
    %v2963 = vld [vmem:[#allocation14 + $0x1b8] sm:$0xff]
    %v2964 = vld [vmem:[#allocation14 + $0x1c0] sm:$0xff]
    %v2965 = vld [vmem:[#allocation14 + $0x1c8] sm:$0xff]
    %v2966 = vld [vmem:[#allocation14 + $0x1d0] sm:$0xff]
    %v2967 = vld [vmem:[#allocation14 + $0x1d8] sm:$0xff]
    %v2968 = vld [vmem:[#allocation14 + $0x1e0] sm:$0xff]
    %v2969 = vld [vmem:[#allocation14 + $0x1e8] sm:$0xff]
    %v2970 = vld [vmem:[#allocation14 + $0x1f0] sm:$0xff]
    %v2971 = vld [vmem:[#allocation14 + $0x1f8] sm:$0xff]
    %v2972 = vld [vmem:[#allocation16] sm:$0xf]
    %v2974 = vlaneseq
    %v2975 = vshrl.u32 %v2974, 7
    %v2976 = vsub.s32 0, %v2975
    %v2977 = vrot.slane %v2972, %v2976
    %v2978 = vlaneseq
    %v2979 = vshrl.u32 %v2978, 7
    %v2980 = vsub.s32 1, %v2979
    %v2981 = vrot.slane %v2972, %v2980
    %v2982 = vlaneseq
    %v2983 = vshrl.u32 %v2982, 7
    %v2984 = vsub.s32 2, %v2983
    %v2985 = vrot.slane %v2972, %v2984
    %v2986 = vlaneseq
    %v2987 = vshrl.u32 %v2986, 7
    %v2988 = vsub.s32 3, %v2987
    %v2989 = vrot.slane %v2972, %v2988
    %v3058 = vunpack.c.l.b16 %v2908
    %v3059 = vunpack.c.h.b16 %v2908
    %v3060 = vunpack.c.l.b16 %v2909
    %v3061 = vunpack.c.h.b16 %v2909
    %v3062 = vunpack.c.l.b16 %v2910
    %v3063 = vunpack.c.h.b16 %v2910
    %v3064 = vunpack.c.l.b16 %v2911
    %v3065 = vunpack.c.h.b16 %v2911
    %v3066 = vunpack.c.l.b16 %v2912
    %v3067 = vunpack.c.h.b16 %v2912
    %v3068 = vunpack.c.l.b16 %v2913
    %v3069 = vunpack.c.h.b16 %v2913
    %v3070 = vunpack.c.l.b16 %v2914
    %v3071 = vunpack.c.h.b16 %v2914
    %v3072 = vunpack.c.l.b16 %v2915
    %v3073 = vunpack.c.h.b16 %v2915
    %v3074 = vunpack.c.l.b16 %v2916
    %v3075 = vunpack.c.h.b16 %v2916
    %v3076 = vunpack.c.l.b16 %v2917
    %v3077 = vunpack.c.h.b16 %v2917
    %v3078 = vunpack.c.l.b16 %v2918
    %v3079 = vunpack.c.h.b16 %v2918
    %v3080 = vunpack.c.l.b16 %v2919
    %v3081 = vunpack.c.h.b16 %v2919
    %v3082 = vunpack.c.l.b16 %v2920
    %v3083 = vunpack.c.h.b16 %v2920
    %v3084 = vunpack.c.l.b16 %v2921
    %v3085 = vunpack.c.h.b16 %v2921
    %v3086 = vunpack.c.l.b16 %v2922
    %v3087 = vunpack.c.h.b16 %v2922
    %v3088 = vunpack.c.l.b16 %v2923
    %v3089 = vunpack.c.h.b16 %v2923
    %v3090 = vunpack.c.l.b16 %v2924
    %v3091 = vunpack.c.h.b16 %v2924
    %v3092 = vunpack.c.l.b16 %v2925
    %v3093 = vunpack.c.h.b16 %v2925
    %v3094 = vunpack.c.l.b16 %v2926
    %v3095 = vunpack.c.h.b16 %v2926
    %v3096 = vunpack.c.l.b16 %v2927
    %v3097 = vunpack.c.h.b16 %v2927
    %v3098 = vunpack.c.l.b16 %v2928
    %v3099 = vunpack.c.h.b16 %v2928
    %v3100 = vunpack.c.l.b16 %v2929
    %v3101 = vunpack.c.h.b16 %v2929
    %v3102 = vunpack.c.l.b16 %v2930
    %v3103 = vunpack.c.h.b16 %v2930
    %v3104 = vunpack.c.l.b16 %v2931
    %v3105 = vunpack.c.h.b16 %v2931
    %v3106 = vunpack.c.l.b16 %v2932
    %v3107 = vunpack.c.h.b16 %v2932
    %v3108 = vunpack.c.l.b16 %v2933
    %v3109 = vunpack.c.h.b16 %v2933
    %v3110 = vunpack.c.l.b16 %v2934
    %v3111 = vunpack.c.h.b16 %v2934
    %v3112 = vunpack.c.l.b16 %v2935
    %v3113 = vunpack.c.h.b16 %v2935
    %v3114 = vunpack.c.l.b16 %v2936
    %v3115 = vunpack.c.h.b16 %v2936
    %v3116 = vunpack.c.l.b16 %v2937
    %v3117 = vunpack.c.h.b16 %v2937
    %v3118 = vunpack.c.l.b16 %v2938
    %v3119 = vunpack.c.h.b16 %v2938
    %v3120 = vunpack.c.l.b16 %v2939
    %v3121 = vunpack.c.h.b16 %v2939
    %v3122 = vunpack.c.l.b16 %v2940
    %v3123 = vunpack.c.h.b16 %v2940
    %v3124 = vunpack.c.l.b16 %v2941
    %v3125 = vunpack.c.h.b16 %v2941
    %v3126 = vunpack.c.l.b16 %v2942
    %v3127 = vunpack.c.h.b16 %v2942
    %v3128 = vunpack.c.l.b16 %v2943
    %v3129 = vunpack.c.h.b16 %v2943
    %v3130 = vunpack.c.l.b16 %v2944
    %v3131 = vunpack.c.h.b16 %v2944
    %v3132 = vunpack.c.l.b16 %v2945
    %v3133 = vunpack.c.h.b16 %v2945
    %v3134 = vunpack.c.l.b16 %v2946
    %v3135 = vunpack.c.h.b16 %v2946
    %v3136 = vunpack.c.l.b16 %v2947
    %v3137 = vunpack.c.h.b16 %v2947
    %v3138 = vunpack.c.l.b16 %v2948
    %v3139 = vunpack.c.h.b16 %v2948
    %v3140 = vunpack.c.l.b16 %v2949
    %v3141 = vunpack.c.h.b16 %v2949
    %v3142 = vunpack.c.l.b16 %v2950
    %v3143 = vunpack.c.h.b16 %v2950
    %v3144 = vunpack.c.l.b16 %v2951
    %v3145 = vunpack.c.h.b16 %v2951
    %v3146 = vunpack.c.l.b16 %v2952
    %v3147 = vunpack.c.h.b16 %v2952
    %v3148 = vunpack.c.l.b16 %v2953
    %v3149 = vunpack.c.h.b16 %v2953
    %v3150 = vunpack.c.l.b16 %v2954
    %v3151 = vunpack.c.h.b16 %v2954
    %v3152 = vunpack.c.l.b16 %v2955
    %v3153 = vunpack.c.h.b16 %v2955
    %v3154 = vunpack.c.l.b16 %v2956
    %v3155 = vunpack.c.h.b16 %v2956
    %v3156 = vunpack.c.l.b16 %v2957
    %v3157 = vunpack.c.h.b16 %v2957
    %v3158 = vunpack.c.l.b16 %v2958
    %v3159 = vunpack.c.h.b16 %v2958
    %v3160 = vunpack.c.l.b16 %v2959
    %v3161 = vunpack.c.h.b16 %v2959
    %v3162 = vunpack.c.l.b16 %v2960
    %v3163 = vunpack.c.h.b16 %v2960
    %v3164 = vunpack.c.l.b16 %v2961
    %v3165 = vunpack.c.h.b16 %v2961
    %v3166 = vunpack.c.l.b16 %v2962
    %v3167 = vunpack.c.h.b16 %v2962
    %v3168 = vunpack.c.l.b16 %v2963
    %v3169 = vunpack.c.h.b16 %v2963
    %v3170 = vunpack.c.l.b16 %v2964
    %v3171 = vunpack.c.h.b16 %v2964
    %v3172 = vunpack.c.l.b16 %v2965
    %v3173 = vunpack.c.h.b16 %v2965
    %v3174 = vunpack.c.l.b16 %v2966
    %v3175 = vunpack.c.h.b16 %v2966
    %v3176 = vunpack.c.l.b16 %v2967
    %v3177 = vunpack.c.h.b16 %v2967
    %v3178 = vunpack.c.l.b16 %v2968
    %v3179 = vunpack.c.h.b16 %v2968
    %v3180 = vunpack.c.l.b16 %v2969
    %v3181 = vunpack.c.h.b16 %v2969
    %v3182 = vunpack.c.l.b16 %v2970
    %v3183 = vunpack.c.h.b16 %v2970
    %v3184 = vunpack.c.l.b16 %v2971
    %v3185 = vunpack.c.h.b16 %v2971
    %v3186 = vpack.c.b16 %v3062, %v3058
    %v3187 = vpack.c.b16 %v3063, %v3059
    %v3188 = vpack.c.b16 %v3064, %v3060
    %v3189 = vpack.c.b16 %v3065, %v3061
    %v3190 = vpack.c.b16 %v3070, %v3066
    %v3191 = vpack.c.b16 %v3071, %v3067
    %v3192 = vpack.c.b16 %v3072, %v3068
    %v3193 = vpack.c.b16 %v3073, %v3069
    %v3194 = vpack.c.b16 %v3078, %v3074
    %v3195 = vpack.c.b16 %v3079, %v3075
    %v3196 = vpack.c.b16 %v3080, %v3076
    %v3197 = vpack.c.b16 %v3081, %v3077
    %v3198 = vpack.c.b16 %v3086, %v3082
    %v3199 = vpack.c.b16 %v3087, %v3083
    %v3200 = vpack.c.b16 %v3088, %v3084
    %v3201 = vpack.c.b16 %v3089, %v3085
    %v3202 = vpack.c.b16 %v3094, %v3090
    %v3203 = vpack.c.b16 %v3095, %v3091
    %v3204 = vpack.c.b16 %v3096, %v3092
    %v3205 = vpack.c.b16 %v3097, %v3093
    %v3206 = vpack.c.b16 %v3102, %v3098
    %v3207 = vpack.c.b16 %v3103, %v3099
    %v3208 = vpack.c.b16 %v3104, %v3100
    %v3209 = vpack.c.b16 %v3105, %v3101
    %v3210 = vpack.c.b16 %v3110, %v3106
    %v3211 = vpack.c.b16 %v3111, %v3107
    %v3212 = vpack.c.b16 %v3112, %v3108
    %v3213 = vpack.c.b16 %v3113, %v3109
    %v3214 = vpack.c.b16 %v3118, %v3114
    %v3215 = vpack.c.b16 %v3119, %v3115
    %v3216 = vpack.c.b16 %v3120, %v3116
    %v3217 = vpack.c.b16 %v3121, %v3117
    %v3218 = vpack.c.b16 %v3126, %v3122
    %v3219 = vpack.c.b16 %v3127, %v3123
    %v3220 = vpack.c.b16 %v3128, %v3124
    %v3221 = vpack.c.b16 %v3129, %v3125
    %v3222 = vpack.c.b16 %v3134, %v3130
    %v3223 = vpack.c.b16 %v3135, %v3131
    %v3224 = vpack.c.b16 %v3136, %v3132
    %v3225 = vpack.c.b16 %v3137, %v3133
    %v3226 = vpack.c.b16 %v3142, %v3138
    %v3227 = vpack.c.b16 %v3143, %v3139
    %v3228 = vpack.c.b16 %v3144, %v3140
    %v3229 = vpack.c.b16 %v3145, %v3141
    %v3230 = vpack.c.b16 %v3150, %v3146
    %v3231 = vpack.c.b16 %v3151, %v3147
    %v3232 = vpack.c.b16 %v3152, %v3148
    %v3233 = vpack.c.b16 %v3153, %v3149
    %v3234 = vpack.c.b16 %v3158, %v3154
    %v3235 = vpack.c.b16 %v3159, %v3155
    %v3236 = vpack.c.b16 %v3160, %v3156
    %v3237 = vpack.c.b16 %v3161, %v3157
    %v3238 = vpack.c.b16 %v3166, %v3162
    %v3239 = vpack.c.b16 %v3167, %v3163
    %v3240 = vpack.c.b16 %v3168, %v3164
    %v3241 = vpack.c.b16 %v3169, %v3165
    %v3242 = vpack.c.b16 %v3174, %v3170
    %v3243 = vpack.c.b16 %v3175, %v3171
    %v3244 = vpack.c.b16 %v3176, %v3172
    %v3245 = vpack.c.b16 %v3177, %v3173
    %v3246 = vpack.c.b16 %v3182, %v3178
    %v3247 = vpack.c.b16 %v3183, %v3179
    %v3248 = vpack.c.b16 %v3184, %v3180
    %v3249 = vpack.c.b16 %v3185, %v3181
    %3314 = vmatprep.subr.bf16.mxu0 %v3215
    %3315 = vmatpush1.bf16.msra.mxu0 %v3214
    %3316 = vmatprep.subr.bf16.mxu0 %v3211
    %3317 = vmatpush1.bf16.msra.mxu0 %v3210
    %3318 = vmatprep.subr.bf16.mxu0 %v3207
    %3319 = vmatpush1.bf16.msra.mxu0 %v3206
    %3320 = vmatprep.subr.bf16.mxu0 %v3203
    %3321 = vmatpush1.bf16.msra.mxu0 %v3202
    %3322 = vmatprep.subr.bf16.mxu0 %v3199
    %3323 = vmatpush1.bf16.msra.mxu0 %v3198
    %3324 = vmatprep.subr.bf16.mxu0 %v3195
    %3325 = vmatpush1.bf16.msra.mxu0 %v3194
    %3326 = vmatprep.subr.bf16.mxu0 %v3191
    %3327 = vmatpush1.bf16.msra.mxu0 %v3190
    %3328 = vmatprep.subr.bf16.mxu0 %v3187
    %3329 = vmatpush1.bf16.msra.mxu0 %v3186
    %3330 = vmatprep.subr.bf16.mxu0 %v3247
    %3331 = vmatpush2.bf16.msra.mxu0 %v3246
    %3332 = vmatprep.subr.bf16.mxu0 %v3243
    %3333 = vmatpush2.bf16.msra.mxu0 %v3242
    %3334 = vmatprep.subr.bf16.mxu0 %v3239
    %3335 = vmatpush2.bf16.msra.mxu0 %v3238
    %3336 = vmatprep.subr.bf16.mxu0 %v3235
    %3337 = vmatpush2.bf16.msra.mxu0 %v3234
    %3338 = vmatprep.subr.bf16.mxu0 %v3231
    %3339 = vmatpush2.bf16.msra.mxu0 %v3230
    %3340 = vmatprep.subr.bf16.mxu0 %v3227
    %3341 = vmatpush2.bf16.msra.mxu0 %v3226
    %3342 = vmatprep.subr.bf16.mxu0 %v3223
    %3343 = vmatpush2.bf16.msra.mxu0 %v3222
    %3344 = vmatprep.subr.bf16.mxu0 %v3219
    %3345 = vmatpush2.bf16.msra.mxu0 %v3218
    %3346 = vmatprep.mubr.bf16.mxu0 %v2907
    %3347 = vmatmul.mubr.bf16.gmra.mxu0 %v2906
    %v3348 = vpop.f32.mrf.mxu0
    %v3349 = vadd.f32 %v2977, %v3348
    %v3350 = vpop.f32.mrf.mxu0
    %v3351 = vadd.f32 %v2981, %v3350
    %v3352 = vpop.f32.mrf.mxu0
    %v3353 = vpop.f32.mrf.mxu0
    %3354 = vdwg.mxu0
    %3355 = vmatprep.subr.bf16.mxu0 %v3217
    %3356 = vmatpush1.bf16.msra.mxu0 %v3216
    %3357 = vmatprep.subr.bf16.mxu0 %v3213
    %3358 = vmatpush1.bf16.msra.mxu0 %v3212
    %3359 = vmatprep.subr.bf16.mxu0 %v3209
    %3360 = vmatpush1.bf16.msra.mxu0 %v3208
    %3361 = vmatprep.subr.bf16.mxu0 %v3205
    %3362 = vmatpush1.bf16.msra.mxu0 %v3204
    %3363 = vmatprep.subr.bf16.mxu0 %v3201
    %3364 = vmatpush1.bf16.msra.mxu0 %v3200
    %3365 = vmatprep.subr.bf16.mxu0 %v3197
    %3366 = vmatpush1.bf16.msra.mxu0 %v3196
    %3367 = vmatprep.subr.bf16.mxu0 %v3193
    %3368 = vmatpush1.bf16.msra.mxu0 %v3192
    %3369 = vmatprep.subr.bf16.mxu0 %v3189
    %3370 = vmatpush1.bf16.msra.mxu0 %v3188
    %3371 = vmatprep.subr.bf16.mxu0 %v3249
    %3372 = vmatpush2.bf16.msra.mxu0 %v3248
    %3373 = vmatprep.subr.bf16.mxu0 %v3245
    %3374 = vmatpush2.bf16.msra.mxu0 %v3244
    %3375 = vmatprep.subr.bf16.mxu0 %v3241
    %3376 = vmatpush2.bf16.msra.mxu0 %v3240
    %3377 = vmatprep.subr.bf16.mxu0 %v3237
    %3378 = vmatpush2.bf16.msra.mxu0 %v3236
    %3379 = vmatprep.subr.bf16.mxu0 %v3233
    %3380 = vmatpush2.bf16.msra.mxu0 %v3232
    %3381 = vmatprep.subr.bf16.mxu0 %v3229
    %3382 = vmatpush2.bf16.msra.mxu0 %v3228
    %3383 = vmatprep.subr.bf16.mxu0 %v3225
    %3384 = vmatpush2.bf16.msra.mxu0 %v3224
    %3385 = vmatprep.subr.bf16.mxu0 %v3221
    %3386 = vmatpush2.bf16.msra.mxu0 %v3220
    %3387 = vmatprep.mubr.bf16.mxu0 %v2907
    %3388 = vmatmul.mubr.bf16.gmra.mxu0 %v2906
    %v3389 = vpop.f32.mrf.mxu0
    %v3390 = vadd.f32 %v2985, %v3389
    %v3391 = vpop.f32.mrf.mxu0
    %v3392 = vadd.f32 %v2989, %v3391
    %v3393 = vpop.f32.mrf.mxu0
    %v3394 = vpop.f32.mrf.mxu0
    %3395 = vdwg.mxu0
    %v3396 = vmax.f32 %v3349, 0.0
    %v3397 = vmax.f32 %v3351, 0.0
    %v3398 = vmax.f32 %v3390, 0.0
    %v3399 = vmax.f32 %v3392, 0.0
    %v3400 = vpack.c.bf16 %v3396, %v3396
    %v3401 = vpack.c.bf16 %v3397, %v3397
    %v3402 = vpack.c.bf16 %v3398, %v3398
    %v3403 = vpack.c.bf16 %v3399, %v3399
    %v3404 = vld [vmem:[#allocation17] sm:$0xff]
    %v3405 = vld [vmem:[#allocation17 + $0x8] sm:$0xff]
    %v3406 = vld [vmem:[#allocation17 + $0x10] sm:$0xff]
    %v3407 = vld [vmem:[#allocation17 + $0x18] sm:$0xff]
    %v3408 = vld [vmem:[#allocation17 + $0x20] sm:$0xff]
    %v3409 = vld [vmem:[#allocation17 + $0x28] sm:$0xff]
    %v3410 = vld [vmem:[#allocation17 + $0x30] sm:$0xff]
    %v3411 = vld [vmem:[#allocation17 + $0x38] sm:$0xff]
    %v3412 = vld [vmem:[#allocation17 + $0x40] sm:$0xff]
    %v3413 = vld [vmem:[#allocation17 + $0x48] sm:$0xff]
    %v3414 = vld [vmem:[#allocation17 + $0x50] sm:$0xff]
    %v3415 = vld [vmem:[#allocation17 + $0x58] sm:$0xff]
    %v3416 = vld [vmem:[#allocation17 + $0x60] sm:$0xff]
    %v3417 = vld [vmem:[#allocation17 + $0x68] sm:$0xff]
    %v3418 = vld [vmem:[#allocation17 + $0x70] sm:$0xff]
    %v3419 = vld [vmem:[#allocation17 + $0x78] sm:$0xff]
    %v3420 = vld [vmem:[#allocation17 + $0x80] sm:$0xff]
    %v3421 = vld [vmem:[#allocation17 + $0x88] sm:$0xff]
    %v3422 = vld [vmem:[#allocation17 + $0x90] sm:$0xff]
    %v3423 = vld [vmem:[#allocation17 + $0x98] sm:$0xff]
    %v3424 = vld [vmem:[#allocation17 + $0xa0] sm:$0xff]
    %v3425 = vld [vmem:[#allocation17 + $0xa8] sm:$0xff]
    %v3426 = vld [vmem:[#allocation17 + $0xb0] sm:$0xff]
    %v3427 = vld [vmem:[#allocation17 + $0xb8] sm:$0xff]
    %v3428 = vld [vmem:[#allocation17 + $0xc0] sm:$0xff]
    %v3429 = vld [vmem:[#allocation17 + $0xc8] sm:$0xff]
    %v3430 = vld [vmem:[#allocation17 + $0xd0] sm:$0xff]
    %v3431 = vld [vmem:[#allocation17 + $0xd8] sm:$0xff]
    %v3432 = vld [vmem:[#allocation17 + $0xe0] sm:$0xff]
    %v3433 = vld [vmem:[#allocation17 + $0xe8] sm:$0xff]
    %v3434 = vld [vmem:[#allocation17 + $0xf0] sm:$0xff]
    %v3435 = vld [vmem:[#allocation17 + $0xf8] sm:$0xff]
    %v3436 = vld [vmem:[#allocation17 + $0x100] sm:$0xff]
    %v3437 = vld [vmem:[#allocation17 + $0x108] sm:$0xff]
    %v3438 = vld [vmem:[#allocation17 + $0x110] sm:$0xff]
    %v3439 = vld [vmem:[#allocation17 + $0x118] sm:$0xff]
    %v3440 = vld [vmem:[#allocation17 + $0x120] sm:$0xff]
    %v3441 = vld [vmem:[#allocation17 + $0x128] sm:$0xff]
    %v3442 = vld [vmem:[#allocation17 + $0x130] sm:$0xff]
    %v3443 = vld [vmem:[#allocation17 + $0x138] sm:$0xff]
    %v3444 = vld [vmem:[#allocation17 + $0x140] sm:$0xff]
    %v3445 = vld [vmem:[#allocation17 + $0x148] sm:$0xff]
    %v3446 = vld [vmem:[#allocation17 + $0x150] sm:$0xff]
    %v3447 = vld [vmem:[#allocation17 + $0x158] sm:$0xff]
    %v3448 = vld [vmem:[#allocation17 + $0x160] sm:$0xff]
    %v3449 = vld [vmem:[#allocation17 + $0x168] sm:$0xff]
    %v3450 = vld [vmem:[#allocation17 + $0x170] sm:$0xff]
    %v3451 = vld [vmem:[#allocation17 + $0x178] sm:$0xff]
    %v3452 = vld [vmem:[#allocation17 + $0x180] sm:$0xff]
    %v3453 = vld [vmem:[#allocation17 + $0x188] sm:$0xff]
    %v3454 = vld [vmem:[#allocation17 + $0x190] sm:$0xff]
    %v3455 = vld [vmem:[#allocation17 + $0x198] sm:$0xff]
    %v3456 = vld [vmem:[#allocation17 + $0x1a0] sm:$0xff]
    %v3457 = vld [vmem:[#allocation17 + $0x1a8] sm:$0xff]
    %v3458 = vld [vmem:[#allocation17 + $0x1b0] sm:$0xff]
    %v3459 = vld [vmem:[#allocation17 + $0x1b8] sm:$0xff]
    %v3460 = vld [vmem:[#allocation17 + $0x1c0] sm:$0xff]
    %v3461 = vld [vmem:[#allocation17 + $0x1c8] sm:$0xff]
    %v3462 = vld [vmem:[#allocation17 + $0x1d0] sm:$0xff]
    %v3463 = vld [vmem:[#allocation17 + $0x1d8] sm:$0xff]
    %v3464 = vld [vmem:[#allocation17 + $0x1e0] sm:$0xff]
    %v3465 = vld [vmem:[#allocation17 + $0x1e8] sm:$0xff]
    %v3466 = vld [vmem:[#allocation17 + $0x1f0] sm:$0xff]
    %v3467 = vld [vmem:[#allocation17 + $0x1f8] sm:$0xff]
    %v3468 = vld [vmem:[#allocation17 + $0x200] sm:$0xff]
    %v3469 = vld [vmem:[#allocation17 + $0x208] sm:$0xff]
    %v3470 = vld [vmem:[#allocation17 + $0x210] sm:$0xff]
    %v3471 = vld [vmem:[#allocation17 + $0x218] sm:$0xff]
    %v3472 = vld [vmem:[#allocation17 + $0x220] sm:$0xff]
    %v3473 = vld [vmem:[#allocation17 + $0x228] sm:$0xff]
    %v3474 = vld [vmem:[#allocation17 + $0x230] sm:$0xff]
    %v3475 = vld [vmem:[#allocation17 + $0x238] sm:$0xff]
    %v3476 = vld [vmem:[#allocation17 + $0x240] sm:$0xff]
    %v3477 = vld [vmem:[#allocation17 + $0x248] sm:$0xff]
    %v3478 = vld [vmem:[#allocation17 + $0x250] sm:$0xff]
    %v3479 = vld [vmem:[#allocation17 + $0x258] sm:$0xff]
    %v3480 = vld [vmem:[#allocation17 + $0x260] sm:$0xff]
    %v3481 = vld [vmem:[#allocation17 + $0x268] sm:$0xff]
    %v3482 = vld [vmem:[#allocation17 + $0x270] sm:$0xff]
    %v3483 = vld [vmem:[#allocation17 + $0x278] sm:$0xff]
    %v3484 = vld [vmem:[#allocation17 + $0x280] sm:$0xff]
    %v3485 = vld [vmem:[#allocation17 + $0x288] sm:$0xff]
    %v3486 = vld [vmem:[#allocation17 + $0x290] sm:$0xff]
    %v3487 = vld [vmem:[#allocation17 + $0x298] sm:$0xff]
    %v3488 = vld [vmem:[#allocation17 + $0x2a0] sm:$0xff]
    %v3489 = vld [vmem:[#allocation17 + $0x2a8] sm:$0xff]
    %v3490 = vld [vmem:[#allocation17 + $0x2b0] sm:$0xff]
    %v3491 = vld [vmem:[#allocation17 + $0x2b8] sm:$0xff]
    %v3492 = vld [vmem:[#allocation17 + $0x2c0] sm:$0xff]
    %v3493 = vld [vmem:[#allocation17 + $0x2c8] sm:$0xff]
    %v3494 = vld [vmem:[#allocation17 + $0x2d0] sm:$0xff]
    %v3495 = vld [vmem:[#allocation17 + $0x2d8] sm:$0xff]
    %v3496 = vld [vmem:[#allocation17 + $0x2e0] sm:$0xff]
    %v3497 = vld [vmem:[#allocation17 + $0x2e8] sm:$0xff]
    %v3498 = vld [vmem:[#allocation17 + $0x2f0] sm:$0xff]
    %v3499 = vld [vmem:[#allocation17 + $0x2f8] sm:$0xff]
    %v3500 = vld [vmem:[#allocation17 + $0x300] sm:$0xff]
    %v3501 = vld [vmem:[#allocation17 + $0x308] sm:$0xff]
    %v3502 = vld [vmem:[#allocation17 + $0x310] sm:$0xff]
    %v3503 = vld [vmem:[#allocation17 + $0x318] sm:$0xff]
    %v3504 = vld [vmem:[#allocation17 + $0x320] sm:$0xff]
    %v3505 = vld [vmem:[#allocation17 + $0x328] sm:$0xff]
    %v3506 = vld [vmem:[#allocation17 + $0x330] sm:$0xff]
    %v3507 = vld [vmem:[#allocation17 + $0x338] sm:$0xff]
    %v3508 = vld [vmem:[#allocation17 + $0x340] sm:$0xff]
    %v3509 = vld [vmem:[#allocation17 + $0x348] sm:$0xff]
    %v3510 = vld [vmem:[#allocation17 + $0x350] sm:$0xff]
    %v3511 = vld [vmem:[#allocation17 + $0x358] sm:$0xff]
    %v3512 = vld [vmem:[#allocation17 + $0x360] sm:$0xff]
    %v3513 = vld [vmem:[#allocation17 + $0x368] sm:$0xff]
    %v3514 = vld [vmem:[#allocation17 + $0x370] sm:$0xff]
    %v3515 = vld [vmem:[#allocation17 + $0x378] sm:$0xff]
    %v3516 = vld [vmem:[#allocation17 + $0x380] sm:$0xff]
    %v3517 = vld [vmem:[#allocation17 + $0x388] sm:$0xff]
    %v3518 = vld [vmem:[#allocation17 + $0x390] sm:$0xff]
    %v3519 = vld [vmem:[#allocation17 + $0x398] sm:$0xff]
    %v3520 = vld [vmem:[#allocation17 + $0x3a0] sm:$0xff]
    %v3521 = vld [vmem:[#allocation17 + $0x3a8] sm:$0xff]
    %v3522 = vld [vmem:[#allocation17 + $0x3b0] sm:$0xff]
    %v3523 = vld [vmem:[#allocation17 + $0x3b8] sm:$0xff]
    %v3524 = vld [vmem:[#allocation17 + $0x3c0] sm:$0xff]
    %v3525 = vld [vmem:[#allocation17 + $0x3c8] sm:$0xff]
    %v3526 = vld [vmem:[#allocation17 + $0x3d0] sm:$0xff]
    %v3527 = vld [vmem:[#allocation17 + $0x3d8] sm:$0xff]
    %v3528 = vld [vmem:[#allocation17 + $0x3e0] sm:$0xff]
    %v3529 = vld [vmem:[#allocation17 + $0x3e8] sm:$0xff]
    %v3530 = vld [vmem:[#allocation17 + $0x3f0] sm:$0xff]
    %v3531 = vld [vmem:[#allocation17 + $0x3f8] sm:$0xff]
    %v3532 = vld [vmem:[#allocation17 + $0x400] sm:$0xff]
    %v3533 = vld [vmem:[#allocation17 + $0x408] sm:$0xff]
    %v3534 = vld [vmem:[#allocation17 + $0x410] sm:$0xff]
    %v3535 = vld [vmem:[#allocation17 + $0x418] sm:$0xff]
    %v3536 = vld [vmem:[#allocation17 + $0x420] sm:$0xff]
    %v3537 = vld [vmem:[#allocation17 + $0x428] sm:$0xff]
    %v3538 = vld [vmem:[#allocation17 + $0x430] sm:$0xff]
    %v3539 = vld [vmem:[#allocation17 + $0x438] sm:$0xff]
    %v3540 = vld [vmem:[#allocation17 + $0x440] sm:$0xff]
    %v3541 = vld [vmem:[#allocation17 + $0x448] sm:$0xff]
    %v3542 = vld [vmem:[#allocation17 + $0x450] sm:$0xff]
    %v3543 = vld [vmem:[#allocation17 + $0x458] sm:$0xff]
    %v3544 = vld [vmem:[#allocation17 + $0x460] sm:$0xff]
    %v3545 = vld [vmem:[#allocation17 + $0x468] sm:$0xff]
    %v3546 = vld [vmem:[#allocation17 + $0x470] sm:$0xff]
    %v3547 = vld [vmem:[#allocation17 + $0x478] sm:$0xff]
    %v3548 = vld [vmem:[#allocation17 + $0x480] sm:$0xff]
    %v3549 = vld [vmem:[#allocation17 + $0x488] sm:$0xff]
    %v3550 = vld [vmem:[#allocation17 + $0x490] sm:$0xff]
    %v3551 = vld [vmem:[#allocation17 + $0x498] sm:$0xff]
    %v3552 = vld [vmem:[#allocation17 + $0x4a0] sm:$0xff]
    %v3553 = vld [vmem:[#allocation17 + $0x4a8] sm:$0xff]
    %v3554 = vld [vmem:[#allocation17 + $0x4b0] sm:$0xff]
    %v3555 = vld [vmem:[#allocation17 + $0x4b8] sm:$0xff]
    %v3556 = vld [vmem:[#allocation17 + $0x4c0] sm:$0xff]
    %v3557 = vld [vmem:[#allocation17 + $0x4c8] sm:$0xff]
    %v3558 = vld [vmem:[#allocation17 + $0x4d0] sm:$0xff]
    %v3559 = vld [vmem:[#allocation17 + $0x4d8] sm:$0xff]
    %v3560 = vld [vmem:[#allocation17 + $0x4e0] sm:$0xff]
    %v3561 = vld [vmem:[#allocation17 + $0x4e8] sm:$0xff]
    %v3562 = vld [vmem:[#allocation17 + $0x4f0] sm:$0xff]
    %v3563 = vld [vmem:[#allocation17 + $0x4f8] sm:$0xff]
    %v3564 = vld [vmem:[#allocation17 + $0x500] sm:$0xff]
    %v3565 = vld [vmem:[#allocation17 + $0x508] sm:$0xff]
    %v3566 = vld [vmem:[#allocation17 + $0x510] sm:$0xff]
    %v3567 = vld [vmem:[#allocation17 + $0x518] sm:$0xff]
    %v3568 = vld [vmem:[#allocation17 + $0x520] sm:$0xff]
    %v3569 = vld [vmem:[#allocation17 + $0x528] sm:$0xff]
    %v3570 = vld [vmem:[#allocation17 + $0x530] sm:$0xff]
    %v3571 = vld [vmem:[#allocation17 + $0x538] sm:$0xff]
    %v3572 = vld [vmem:[#allocation17 + $0x540] sm:$0xff]
    %v3573 = vld [vmem:[#allocation17 + $0x548] sm:$0xff]
    %v3574 = vld [vmem:[#allocation17 + $0x550] sm:$0xff]
    %v3575 = vld [vmem:[#allocation17 + $0x558] sm:$0xff]
    %v3576 = vld [vmem:[#allocation17 + $0x560] sm:$0xff]
    %v3577 = vld [vmem:[#allocation17 + $0x568] sm:$0xff]
    %v3578 = vld [vmem:[#allocation17 + $0x570] sm:$0xff]
    %v3579 = vld [vmem:[#allocation17 + $0x578] sm:$0xff]
    %v3580 = vld [vmem:[#allocation17 + $0x580] sm:$0xff]
    %v3581 = vld [vmem:[#allocation17 + $0x588] sm:$0xff]
    %v3582 = vld [vmem:[#allocation17 + $0x590] sm:$0xff]
    %v3583 = vld [vmem:[#allocation17 + $0x598] sm:$0xff]
    %v3584 = vld [vmem:[#allocation17 + $0x5a0] sm:$0xff]
    %v3585 = vld [vmem:[#allocation17 + $0x5a8] sm:$0xff]
    %v3586 = vld [vmem:[#allocation17 + $0x5b0] sm:$0xff]
    %v3587 = vld [vmem:[#allocation17 + $0x5b8] sm:$0xff]
    %v3588 = vld [vmem:[#allocation17 + $0x5c0] sm:$0xff]
    %v3589 = vld [vmem:[#allocation17 + $0x5c8] sm:$0xff]
    %v3590 = vld [vmem:[#allocation17 + $0x5d0] sm:$0xff]
    %v3591 = vld [vmem:[#allocation17 + $0x5d8] sm:$0xff]
    %v3592 = vld [vmem:[#allocation17 + $0x5e0] sm:$0xff]
    %v3593 = vld [vmem:[#allocation17 + $0x5e8] sm:$0xff]
    %v3594 = vld [vmem:[#allocation17 + $0x5f0] sm:$0xff]
    %v3595 = vld [vmem:[#allocation17 + $0x5f8] sm:$0xff]
    %v3596 = vld [vmem:[#allocation17 + $0x600] sm:$0xff]
    %v3597 = vld [vmem:[#allocation17 + $0x608] sm:$0xff]
    %v3598 = vld [vmem:[#allocation17 + $0x610] sm:$0xff]
    %v3599 = vld [vmem:[#allocation17 + $0x618] sm:$0xff]
    %v3600 = vld [vmem:[#allocation17 + $0x620] sm:$0xff]
    %v3601 = vld [vmem:[#allocation17 + $0x628] sm:$0xff]
    %v3602 = vld [vmem:[#allocation17 + $0x630] sm:$0xff]
    %v3603 = vld [vmem:[#allocation17 + $0x638] sm:$0xff]
    %v3604 = vld [vmem:[#allocation17 + $0x640] sm:$0xff]
    %v3605 = vld [vmem:[#allocation17 + $0x648] sm:$0xff]
    %v3606 = vld [vmem:[#allocation17 + $0x650] sm:$0xff]
    %v3607 = vld [vmem:[#allocation17 + $0x658] sm:$0xff]
    %v3608 = vld [vmem:[#allocation17 + $0x660] sm:$0xff]
    %v3609 = vld [vmem:[#allocation17 + $0x668] sm:$0xff]
    %v3610 = vld [vmem:[#allocation17 + $0x670] sm:$0xff]
    %v3611 = vld [vmem:[#allocation17 + $0x678] sm:$0xff]
    %v3612 = vld [vmem:[#allocation17 + $0x680] sm:$0xff]
    %v3613 = vld [vmem:[#allocation17 + $0x688] sm:$0xff]
    %v3614 = vld [vmem:[#allocation17 + $0x690] sm:$0xff]
    %v3615 = vld [vmem:[#allocation17 + $0x698] sm:$0xff]
    %v3616 = vld [vmem:[#allocation17 + $0x6a0] sm:$0xff]
    %v3617 = vld [vmem:[#allocation17 + $0x6a8] sm:$0xff]
    %v3618 = vld [vmem:[#allocation17 + $0x6b0] sm:$0xff]
    %v3619 = vld [vmem:[#allocation17 + $0x6b8] sm:$0xff]
    %v3620 = vld [vmem:[#allocation17 + $0x6c0] sm:$0xff]
    %v3621 = vld [vmem:[#allocation17 + $0x6c8] sm:$0xff]
    %v3622 = vld [vmem:[#allocation17 + $0x6d0] sm:$0xff]
    %v3623 = vld [vmem:[#allocation17 + $0x6d8] sm:$0xff]
    %v3624 = vld [vmem:[#allocation17 + $0x6e0] sm:$0xff]
    %v3625 = vld [vmem:[#allocation17 + $0x6e8] sm:$0xff]
    %v3626 = vld [vmem:[#allocation17 + $0x6f0] sm:$0xff]
    %v3627 = vld [vmem:[#allocation17 + $0x6f8] sm:$0xff]
    %v3628 = vld [vmem:[#allocation17 + $0x700] sm:$0xff]
    %v3629 = vld [vmem:[#allocation17 + $0x708] sm:$0xff]
    %v3630 = vld [vmem:[#allocation17 + $0x710] sm:$0xff]
    %v3631 = vld [vmem:[#allocation17 + $0x718] sm:$0xff]
    %v3632 = vld [vmem:[#allocation17 + $0x720] sm:$0xff]
    %v3633 = vld [vmem:[#allocation17 + $0x728] sm:$0xff]
    %v3634 = vld [vmem:[#allocation17 + $0x730] sm:$0xff]
    %v3635 = vld [vmem:[#allocation17 + $0x738] sm:$0xff]
    %v3636 = vld [vmem:[#allocation17 + $0x740] sm:$0xff]
    %v3637 = vld [vmem:[#allocation17 + $0x748] sm:$0xff]
    %v3638 = vld [vmem:[#allocation17 + $0x750] sm:$0xff]
    %v3639 = vld [vmem:[#allocation17 + $0x758] sm:$0xff]
    %v3640 = vld [vmem:[#allocation17 + $0x760] sm:$0xff]
    %v3641 = vld [vmem:[#allocation17 + $0x768] sm:$0xff]
    %v3642 = vld [vmem:[#allocation17 + $0x770] sm:$0xff]
    %v3643 = vld [vmem:[#allocation17 + $0x778] sm:$0xff]
    %v3644 = vld [vmem:[#allocation17 + $0x780] sm:$0xff]
    %v3645 = vld [vmem:[#allocation17 + $0x788] sm:$0xff]
    %v3646 = vld [vmem:[#allocation17 + $0x790] sm:$0xff]
    %v3647 = vld [vmem:[#allocation17 + $0x798] sm:$0xff]
    %v3648 = vld [vmem:[#allocation17 + $0x7a0] sm:$0xff]
    %v3649 = vld [vmem:[#allocation17 + $0x7a8] sm:$0xff]
    %v3650 = vld [vmem:[#allocation17 + $0x7b0] sm:$0xff]
    %v3651 = vld [vmem:[#allocation17 + $0x7b8] sm:$0xff]
    %v3652 = vld [vmem:[#allocation17 + $0x7c0] sm:$0xff]
    %v3653 = vld [vmem:[#allocation17 + $0x7c8] sm:$0xff]
    %v3654 = vld [vmem:[#allocation17 + $0x7d0] sm:$0xff]
    %v3655 = vld [vmem:[#allocation17 + $0x7d8] sm:$0xff]
    %v3656 = vld [vmem:[#allocation17 + $0x7e0] sm:$0xff]
    %v3657 = vld [vmem:[#allocation17 + $0x7e8] sm:$0xff]
    %v3658 = vld [vmem:[#allocation17 + $0x7f0] sm:$0xff]
    %v3659 = vld [vmem:[#allocation17 + $0x7f8] sm:$0xff]
    %v3660 = vld [vmem:[#allocation19] sm:$0xff]
    %v3662 = vlaneseq
    %v3663 = vshrl.u32 %v3662, 7
    %v3664 = vsub.s32 0, %v3663
    %v3665 = vrot.slane %v3660, %v3664
    %v3666 = vlaneseq
    %v3667 = vshrl.u32 %v3666, 7
    %v3668 = vsub.s32 1, %v3667
    %v3669 = vrot.slane %v3660, %v3668
    %v3670 = vlaneseq
    %v3671 = vshrl.u32 %v3670, 7
    %v3672 = vsub.s32 2, %v3671
    %v3673 = vrot.slane %v3660, %v3672
    %v3674 = vlaneseq
    %v3675 = vshrl.u32 %v3674, 7
    %v3676 = vsub.s32 3, %v3675
    %v3677 = vrot.slane %v3660, %v3676
    %v3678 = vlaneseq
    %v3679 = vshrl.u32 %v3678, 7
    %v3680 = vsub.s32 4, %v3679
    %v3681 = vrot.slane %v3660, %v3680
    %v3682 = vlaneseq
    %v3683 = vshrl.u32 %v3682, 7
    %v3684 = vsub.s32 5, %v3683
    %v3685 = vrot.slane %v3660, %v3684
    %v3686 = vlaneseq
    %v3687 = vshrl.u32 %v3686, 7
    %v3688 = vsub.s32 6, %v3687
    %v3689 = vrot.slane %v3660, %v3688
    %v3690 = vlaneseq
    %v3691 = vshrl.u32 %v3690, 7
    %v3692 = vsub.s32 7, %v3691
    %v3693 = vrot.slane %v3660, %v3692
    %v3958 = vunpack.c.l.b16 %v3404
    %v3959 = vunpack.c.h.b16 %v3404
    %v3960 = vunpack.c.l.b16 %v3405
    %v3961 = vunpack.c.h.b16 %v3405
    %v3962 = vunpack.c.l.b16 %v3406
    %v3963 = vunpack.c.h.b16 %v3406
    %v3964 = vunpack.c.l.b16 %v3407
    %v3965 = vunpack.c.h.b16 %v3407
    %v3966 = vunpack.c.l.b16 %v3408
    %v3967 = vunpack.c.h.b16 %v3408
    %v3968 = vunpack.c.l.b16 %v3409
    %v3969 = vunpack.c.h.b16 %v3409
    %v3970 = vunpack.c.l.b16 %v3410
    %v3971 = vunpack.c.h.b16 %v3410
    %v3972 = vunpack.c.l.b16 %v3411
    %v3973 = vunpack.c.h.b16 %v3411
    %v3974 = vunpack.c.l.b16 %v3412
    %v3975 = vunpack.c.h.b16 %v3412
    %v3976 = vunpack.c.l.b16 %v3413
    %v3977 = vunpack.c.h.b16 %v3413
    %v3978 = vunpack.c.l.b16 %v3414
    %v3979 = vunpack.c.h.b16 %v3414
    %v3980 = vunpack.c.l.b16 %v3415
    %v3981 = vunpack.c.h.b16 %v3415
    %v3982 = vunpack.c.l.b16 %v3416
    %v3983 = vunpack.c.h.b16 %v3416
    %v3984 = vunpack.c.l.b16 %v3417
    %v3985 = vunpack.c.h.b16 %v3417
    %v3986 = vunpack.c.l.b16 %v3418
    %v3987 = vunpack.c.h.b16 %v3418
    %v3988 = vunpack.c.l.b16 %v3419
    %v3989 = vunpack.c.h.b16 %v3419
    %v3990 = vunpack.c.l.b16 %v3420
    %v3991 = vunpack.c.h.b16 %v3420
    %v3992 = vunpack.c.l.b16 %v3421
    %v3993 = vunpack.c.h.b16 %v3421
    %v3994 = vunpack.c.l.b16 %v3422
    %v3995 = vunpack.c.h.b16 %v3422
    %v3996 = vunpack.c.l.b16 %v3423
    %v3997 = vunpack.c.h.b16 %v3423
    %v3998 = vunpack.c.l.b16 %v3424
    %v3999 = vunpack.c.h.b16 %v3424
    %v4000 = vunpack.c.l.b16 %v3425
    %v4001 = vunpack.c.h.b16 %v3425
    %v4002 = vunpack.c.l.b16 %v3426
    %v4003 = vunpack.c.h.b16 %v3426
    %v4004 = vunpack.c.l.b16 %v3427
    %v4005 = vunpack.c.h.b16 %v3427
    %v4006 = vunpack.c.l.b16 %v3428
    %v4007 = vunpack.c.h.b16 %v3428
    %v4008 = vunpack.c.l.b16 %v3429
    %v4009 = vunpack.c.h.b16 %v3429
    %v4010 = vunpack.c.l.b16 %v3430
    %v4011 = vunpack.c.h.b16 %v3430
    %v4012 = vunpack.c.l.b16 %v3431
    %v4013 = vunpack.c.h.b16 %v3431
    %v4014 = vunpack.c.l.b16 %v3432
    %v4015 = vunpack.c.h.b16 %v3432
    %v4016 = vunpack.c.l.b16 %v3433
    %v4017 = vunpack.c.h.b16 %v3433
    %v4018 = vunpack.c.l.b16 %v3434
    %v4019 = vunpack.c.h.b16 %v3434
    %v4020 = vunpack.c.l.b16 %v3435
    %v4021 = vunpack.c.h.b16 %v3435
    %v4022 = vunpack.c.l.b16 %v3436
    %v4023 = vunpack.c.h.b16 %v3436
    %v4024 = vunpack.c.l.b16 %v3437
    %v4025 = vunpack.c.h.b16 %v3437
    %v4026 = vunpack.c.l.b16 %v3438
    %v4027 = vunpack.c.h.b16 %v3438
    %v4028 = vunpack.c.l.b16 %v3439
    %v4029 = vunpack.c.h.b16 %v3439
    %v4030 = vunpack.c.l.b16 %v3440
    %v4031 = vunpack.c.h.b16 %v3440
    %v4032 = vunpack.c.l.b16 %v3441
    %v4033 = vunpack.c.h.b16 %v3441
    %v4034 = vunpack.c.l.b16 %v3442
    %v4035 = vunpack.c.h.b16 %v3442
    %v4036 = vunpack.c.l.b16 %v3443
    %v4037 = vunpack.c.h.b16 %v3443
    %v4038 = vunpack.c.l.b16 %v3444
    %v4039 = vunpack.c.h.b16 %v3444
    %v4040 = vunpack.c.l.b16 %v3445
    %v4041 = vunpack.c.h.b16 %v3445
    %v4042 = vunpack.c.l.b16 %v3446
    %v4043 = vunpack.c.h.b16 %v3446
    %v4044 = vunpack.c.l.b16 %v3447
    %v4045 = vunpack.c.h.b16 %v3447
    %v4046 = vunpack.c.l.b16 %v3448
    %v4047 = vunpack.c.h.b16 %v3448
    %v4048 = vunpack.c.l.b16 %v3449
    %v4049 = vunpack.c.h.b16 %v3449
    %v4050 = vunpack.c.l.b16 %v3450
    %v4051 = vunpack.c.h.b16 %v3450
    %v4052 = vunpack.c.l.b16 %v3451
    %v4053 = vunpack.c.h.b16 %v3451
    %v4054 = vunpack.c.l.b16 %v3452
    %v4055 = vunpack.c.h.b16 %v3452
    %v4056 = vunpack.c.l.b16 %v3453
    %v4057 = vunpack.c.h.b16 %v3453
    %v4058 = vunpack.c.l.b16 %v3454
    %v4059 = vunpack.c.h.b16 %v3454
    %v4060 = vunpack.c.l.b16 %v3455
    %v4061 = vunpack.c.h.b16 %v3455
    %v4062 = vunpack.c.l.b16 %v3456
    %v4063 = vunpack.c.h.b16 %v3456
    %v4064 = vunpack.c.l.b16 %v3457
    %v4065 = vunpack.c.h.b16 %v3457
    %v4066 = vunpack.c.l.b16 %v3458
    %v4067 = vunpack.c.h.b16 %v3458
    %v4068 = vunpack.c.l.b16 %v3459
    %v4069 = vunpack.c.h.b16 %v3459
    %v4070 = vunpack.c.l.b16 %v3460
    %v4071 = vunpack.c.h.b16 %v3460
    %v4072 = vunpack.c.l.b16 %v3461
    %v4073 = vunpack.c.h.b16 %v3461
    %v4074 = vunpack.c.l.b16 %v3462
    %v4075 = vunpack.c.h.b16 %v3462
    %v4076 = vunpack.c.l.b16 %v3463
    %v4077 = vunpack.c.h.b16 %v3463
    %v4078 = vunpack.c.l.b16 %v3464
    %v4079 = vunpack.c.h.b16 %v3464
    %v4080 = vunpack.c.l.b16 %v3465
    %v4081 = vunpack.c.h.b16 %v3465
    %v4082 = vunpack.c.l.b16 %v3466
    %v4083 = vunpack.c.h.b16 %v3466
    %v4084 = vunpack.c.l.b16 %v3467
    %v4085 = vunpack.c.h.b16 %v3467
    %v4086 = vunpack.c.l.b16 %v3468
    %v4087 = vunpack.c.h.b16 %v3468
    %v4088 = vunpack.c.l.b16 %v3469
    %v4089 = vunpack.c.h.b16 %v3469
    %v4090 = vunpack.c.l.b16 %v3470
    %v4091 = vunpack.c.h.b16 %v3470
    %v4092 = vunpack.c.l.b16 %v3471
    %v4093 = vunpack.c.h.b16 %v3471
    %v4094 = vunpack.c.l.b16 %v3472
    %v4095 = vunpack.c.h.b16 %v3472
    %v4096 = vunpack.c.l.b16 %v3473
    %v4097 = vunpack.c.h.b16 %v3473
    %v4098 = vunpack.c.l.b16 %v3474
    %v4099 = vunpack.c.h.b16 %v3474
    %v4100 = vunpack.c.l.b16 %v3475
    %v4101 = vunpack.c.h.b16 %v3475
    %v4102 = vunpack.c.l.b16 %v3476
    %v4103 = vunpack.c.h.b16 %v3476
    %v4104 = vunpack.c.l.b16 %v3477
    %v4105 = vunpack.c.h.b16 %v3477
    %v4106 = vunpack.c.l.b16 %v3478
    %v4107 = vunpack.c.h.b16 %v3478
    %v4108 = vunpack.c.l.b16 %v3479
    %v4109 = vunpack.c.h.b16 %v3479
    %v4110 = vunpack.c.l.b16 %v3480
    %v4111 = vunpack.c.h.b16 %v3480
    %v4112 = vunpack.c.l.b16 %v3481
    %v4113 = vunpack.c.h.b16 %v3481
    %v4114 = vunpack.c.l.b16 %v3482
    %v4115 = vunpack.c.h.b16 %v3482
    %v4116 = vunpack.c.l.b16 %v3483
    %v4117 = vunpack.c.h.b16 %v3483
    %v4118 = vunpack.c.l.b16 %v3484
    %v4119 = vunpack.c.h.b16 %v3484
    %v4120 = vunpack.c.l.b16 %v3485
    %v4121 = vunpack.c.h.b16 %v3485
    %v4122 = vunpack.c.l.b16 %v3486
    %v4123 = vunpack.c.h.b16 %v3486
    %v4124 = vunpack.c.l.b16 %v3487
    %v4125 = vunpack.c.h.b16 %v3487
    %v4126 = vunpack.c.l.b16 %v3488
    %v4127 = vunpack.c.h.b16 %v3488
    %v4128 = vunpack.c.l.b16 %v3489
    %v4129 = vunpack.c.h.b16 %v3489
    %v4130 = vunpack.c.l.b16 %v3490
    %v4131 = vunpack.c.h.b16 %v3490
    %v4132 = vunpack.c.l.b16 %v3491
    %v4133 = vunpack.c.h.b16 %v3491
    %v4134 = vunpack.c.l.b16 %v3492
    %v4135 = vunpack.c.h.b16 %v3492
    %v4136 = vunpack.c.l.b16 %v3493
    %v4137 = vunpack.c.h.b16 %v3493
    %v4138 = vunpack.c.l.b16 %v3494
    %v4139 = vunpack.c.h.b16 %v3494
    %v4140 = vunpack.c.l.b16 %v3495
    %v4141 = vunpack.c.h.b16 %v3495
    %v4142 = vunpack.c.l.b16 %v3496
    %v4143 = vunpack.c.h.b16 %v3496
    %v4144 = vunpack.c.l.b16 %v3497
    %v4145 = vunpack.c.h.b16 %v3497
    %v4146 = vunpack.c.l.b16 %v3498
    %v4147 = vunpack.c.h.b16 %v3498
    %v4148 = vunpack.c.l.b16 %v3499
    %v4149 = vunpack.c.h.b16 %v3499
    %v4150 = vunpack.c.l.b16 %v3500
    %v4151 = vunpack.c.h.b16 %v3500
    %v4152 = vunpack.c.l.b16 %v3501
    %v4153 = vunpack.c.h.b16 %v3501
    %v4154 = vunpack.c.l.b16 %v3502
    %v4155 = vunpack.c.h.b16 %v3502
    %v4156 = vunpack.c.l.b16 %v3503
    %v4157 = vunpack.c.h.b16 %v3503
    %v4158 = vunpack.c.l.b16 %v3504
    %v4159 = vunpack.c.h.b16 %v3504
    %v4160 = vunpack.c.l.b16 %v3505
    %v4161 = vunpack.c.h.b16 %v3505
    %v4162 = vunpack.c.l.b16 %v3506
    %v4163 = vunpack.c.h.b16 %v3506
    %v4164 = vunpack.c.l.b16 %v3507
    %v4165 = vunpack.c.h.b16 %v3507
    %v4166 = vunpack.c.l.b16 %v3508
    %v4167 = vunpack.c.h.b16 %v3508
    %v4168 = vunpack.c.l.b16 %v3509
    %v4169 = vunpack.c.h.b16 %v3509
    %v4170 = vunpack.c.l.b16 %v3510
    %v4171 = vunpack.c.h.b16 %v3510
    %v4172 = vunpack.c.l.b16 %v3511
    %v4173 = vunpack.c.h.b16 %v3511
    %v4174 = vunpack.c.l.b16 %v3512
    %v4175 = vunpack.c.h.b16 %v3512
    %v4176 = vunpack.c.l.b16 %v3513
    %v4177 = vunpack.c.h.b16 %v3513
    %v4178 = vunpack.c.l.b16 %v3514
    %v4179 = vunpack.c.h.b16 %v3514
    %v4180 = vunpack.c.l.b16 %v3515
    %v4181 = vunpack.c.h.b16 %v3515
    %v4182 = vunpack.c.l.b16 %v3516
    %v4183 = vunpack.c.h.b16 %v3516
    %v4184 = vunpack.c.l.b16 %v3517
    %v4185 = vunpack.c.h.b16 %v3517
    %v4186 = vunpack.c.l.b16 %v3518
    %v4187 = vunpack.c.h.b16 %v3518
    %v4188 = vunpack.c.l.b16 %v3519
    %v4189 = vunpack.c.h.b16 %v3519
    %v4190 = vunpack.c.l.b16 %v3520
    %v4191 = vunpack.c.h.b16 %v3520
    %v4192 = vunpack.c.l.b16 %v3521
    %v4193 = vunpack.c.h.b16 %v3521
    %v4194 = vunpack.c.l.b16 %v3522
    %v4195 = vunpack.c.h.b16 %v3522
    %v4196 = vunpack.c.l.b16 %v3523
    %v4197 = vunpack.c.h.b16 %v3523
    %v4198 = vunpack.c.l.b16 %v3524
    %v4199 = vunpack.c.h.b16 %v3524
    %v4200 = vunpack.c.l.b16 %v3525
    %v4201 = vunpack.c.h.b16 %v3525
    %v4202 = vunpack.c.l.b16 %v3526
    %v4203 = vunpack.c.h.b16 %v3526
    %v4204 = vunpack.c.l.b16 %v3527
    %v4205 = vunpack.c.h.b16 %v3527
    %v4206 = vunpack.c.l.b16 %v3528
    %v4207 = vunpack.c.h.b16 %v3528
    %v4208 = vunpack.c.l.b16 %v3529
    %v4209 = vunpack.c.h.b16 %v3529
    %v4210 = vunpack.c.l.b16 %v3530
    %v4211 = vunpack.c.h.b16 %v3530
    %v4212 = vunpack.c.l.b16 %v3531
    %v4213 = vunpack.c.h.b16 %v3531
    %v4214 = vunpack.c.l.b16 %v3532
    %v4215 = vunpack.c.h.b16 %v3532
    %v4216 = vunpack.c.l.b16 %v3533
    %v4217 = vunpack.c.h.b16 %v3533
    %v4218 = vunpack.c.l.b16 %v3534
    %v4219 = vunpack.c.h.b16 %v3534
    %v4220 = vunpack.c.l.b16 %v3535
    %v4221 = vunpack.c.h.b16 %v3535
    %v4222 = vunpack.c.l.b16 %v3536
    %v4223 = vunpack.c.h.b16 %v3536
    %v4224 = vunpack.c.l.b16 %v3537
    %v4225 = vunpack.c.h.b16 %v3537
    %v4226 = vunpack.c.l.b16 %v3538
    %v4227 = vunpack.c.h.b16 %v3538
    %v4228 = vunpack.c.l.b16 %v3539
    %v4229 = vunpack.c.h.b16 %v3539
    %v4230 = vunpack.c.l.b16 %v3540
    %v4231 = vunpack.c.h.b16 %v3540
    %v4232 = vunpack.c.l.b16 %v3541
    %v4233 = vunpack.c.h.b16 %v3541
    %v4234 = vunpack.c.l.b16 %v3542
    %v4235 = vunpack.c.h.b16 %v3542
    %v4236 = vunpack.c.l.b16 %v3543
    %v4237 = vunpack.c.h.b16 %v3543
    %v4238 = vunpack.c.l.b16 %v3544
    %v4239 = vunpack.c.h.b16 %v3544
    %v4240 = vunpack.c.l.b16 %v3545
    %v4241 = vunpack.c.h.b16 %v3545
    %v4242 = vunpack.c.l.b16 %v3546
    %v4243 = vunpack.c.h.b16 %v3546
    %v4244 = vunpack.c.l.b16 %v3547
    %v4245 = vunpack.c.h.b16 %v3547
    %v4246 = vunpack.c.l.b16 %v3548
    %v4247 = vunpack.c.h.b16 %v3548
    %v4248 = vunpack.c.l.b16 %v3549
    %v4249 = vunpack.c.h.b16 %v3549
    %v4250 = vunpack.c.l.b16 %v3550
    %v4251 = vunpack.c.h.b16 %v3550
    %v4252 = vunpack.c.l.b16 %v3551
    %v4253 = vunpack.c.h.b16 %v3551
    %v4254 = vunpack.c.l.b16 %v3552
    %v4255 = vunpack.c.h.b16 %v3552
    %v4256 = vunpack.c.l.b16 %v3553
    %v4257 = vunpack.c.h.b16 %v3553
    %v4258 = vunpack.c.l.b16 %v3554
    %v4259 = vunpack.c.h.b16 %v3554
    %v4260 = vunpack.c.l.b16 %v3555
    %v4261 = vunpack.c.h.b16 %v3555
    %v4262 = vunpack.c.l.b16 %v3556
    %v4263 = vunpack.c.h.b16 %v3556
    %v4264 = vunpack.c.l.b16 %v3557
    %v4265 = vunpack.c.h.b16 %v3557
    %v4266 = vunpack.c.l.b16 %v3558
    %v4267 = vunpack.c.h.b16 %v3558
    %v4268 = vunpack.c.l.b16 %v3559
    %v4269 = vunpack.c.h.b16 %v3559
    %v4270 = vunpack.c.l.b16 %v3560
    %v4271 = vunpack.c.h.b16 %v3560
    %v4272 = vunpack.c.l.b16 %v3561
    %v4273 = vunpack.c.h.b16 %v3561
    %v4274 = vunpack.c.l.b16 %v3562
    %v4275 = vunpack.c.h.b16 %v3562
    %v4276 = vunpack.c.l.b16 %v3563
    %v4277 = vunpack.c.h.b16 %v3563
    %v4278 = vunpack.c.l.b16 %v3564
    %v4279 = vunpack.c.h.b16 %v3564
    %v4280 = vunpack.c.l.b16 %v3565
    %v4281 = vunpack.c.h.b16 %v3565
    %v4282 = vunpack.c.l.b16 %v3566
    %v4283 = vunpack.c.h.b16 %v3566
    %v4284 = vunpack.c.l.b16 %v3567
    %v4285 = vunpack.c.h.b16 %v3567
    %v4286 = vunpack.c.l.b16 %v3568
    %v4287 = vunpack.c.h.b16 %v3568
    %v4288 = vunpack.c.l.b16 %v3569
    %v4289 = vunpack.c.h.b16 %v3569
    %v4290 = vunpack.c.l.b16 %v3570
    %v4291 = vunpack.c.h.b16 %v3570
    %v4292 = vunpack.c.l.b16 %v3571
    %v4293 = vunpack.c.h.b16 %v3571
    %v4294 = vunpack.c.l.b16 %v3572
    %v4295 = vunpack.c.h.b16 %v3572
    %v4296 = vunpack.c.l.b16 %v3573
    %v4297 = vunpack.c.h.b16 %v3573
    %v4298 = vunpack.c.l.b16 %v3574
    %v4299 = vunpack.c.h.b16 %v3574
    %v4300 = vunpack.c.l.b16 %v3575
    %v4301 = vunpack.c.h.b16 %v3575
    %v4302 = vunpack.c.l.b16 %v3576
    %v4303 = vunpack.c.h.b16 %v3576
    %v4304 = vunpack.c.l.b16 %v3577
    %v4305 = vunpack.c.h.b16 %v3577
    %v4306 = vunpack.c.l.b16 %v3578
    %v4307 = vunpack.c.h.b16 %v3578
    %v4308 = vunpack.c.l.b16 %v3579
    %v4309 = vunpack.c.h.b16 %v3579
    %v4310 = vunpack.c.l.b16 %v3580
    %v4311 = vunpack.c.h.b16 %v3580
    %v4312 = vunpack.c.l.b16 %v3581
    %v4313 = vunpack.c.h.b16 %v3581
    %v4314 = vunpack.c.l.b16 %v3582
    %v4315 = vunpack.c.h.b16 %v3582
    %v4316 = vunpack.c.l.b16 %v3583
    %v4317 = vunpack.c.h.b16 %v3583
    %v4318 = vunpack.c.l.b16 %v3584
    %v4319 = vunpack.c.h.b16 %v3584
    %v4320 = vunpack.c.l.b16 %v3585
    %v4321 = vunpack.c.h.b16 %v3585
    %v4322 = vunpack.c.l.b16 %v3586
    %v4323 = vunpack.c.h.b16 %v3586
    %v4324 = vunpack.c.l.b16 %v3587
    %v4325 = vunpack.c.h.b16 %v3587
    %v4326 = vunpack.c.l.b16 %v3588
    %v4327 = vunpack.c.h.b16 %v3588
    %v4328 = vunpack.c.l.b16 %v3589
    %v4329 = vunpack.c.h.b16 %v3589
    %v4330 = vunpack.c.l.b16 %v3590
    %v4331 = vunpack.c.h.b16 %v3590
    %v4332 = vunpack.c.l.b16 %v3591
    %v4333 = vunpack.c.h.b16 %v3591
    %v4334 = vunpack.c.l.b16 %v3592
    %v4335 = vunpack.c.h.b16 %v3592
    %v4336 = vunpack.c.l.b16 %v3593
    %v4337 = vunpack.c.h.b16 %v3593
    %v4338 = vunpack.c.l.b16 %v3594
    %v4339 = vunpack.c.h.b16 %v3594
    %v4340 = vunpack.c.l.b16 %v3595
    %v4341 = vunpack.c.h.b16 %v3595
    %v4342 = vunpack.c.l.b16 %v3596
    %v4343 = vunpack.c.h.b16 %v3596
    %v4344 = vunpack.c.l.b16 %v3597
    %v4345 = vunpack.c.h.b16 %v3597
    %v4346 = vunpack.c.l.b16 %v3598
    %v4347 = vunpack.c.h.b16 %v3598
    %v4348 = vunpack.c.l.b16 %v3599
    %v4349 = vunpack.c.h.b16 %v3599
    %v4350 = vunpack.c.l.b16 %v3600
    %v4351 = vunpack.c.h.b16 %v3600
    %v4352 = vunpack.c.l.b16 %v3601
    %v4353 = vunpack.c.h.b16 %v3601
    %v4354 = vunpack.c.l.b16 %v3602
    %v4355 = vunpack.c.h.b16 %v3602
    %v4356 = vunpack.c.l.b16 %v3603
    %v4357 = vunpack.c.h.b16 %v3603
    %v4358 = vunpack.c.l.b16 %v3604
    %v4359 = vunpack.c.h.b16 %v3604
    %v4360 = vunpack.c.l.b16 %v3605
    %v4361 = vunpack.c.h.b16 %v3605
    %v4362 = vunpack.c.l.b16 %v3606
    %v4363 = vunpack.c.h.b16 %v3606
    %v4364 = vunpack.c.l.b16 %v3607
    %v4365 = vunpack.c.h.b16 %v3607
    %v4366 = vunpack.c.l.b16 %v3608
    %v4367 = vunpack.c.h.b16 %v3608
    %v4368 = vunpack.c.l.b16 %v3609
    %v4369 = vunpack.c.h.b16 %v3609
    %v4370 = vunpack.c.l.b16 %v3610
    %v4371 = vunpack.c.h.b16 %v3610
    %v4372 = vunpack.c.l.b16 %v3611
    %v4373 = vunpack.c.h.b16 %v3611
    %v4374 = vunpack.c.l.b16 %v3612
    %v4375 = vunpack.c.h.b16 %v3612
    %v4376 = vunpack.c.l.b16 %v3613
    %v4377 = vunpack.c.h.b16 %v3613
    %v4378 = vunpack.c.l.b16 %v3614
    %v4379 = vunpack.c.h.b16 %v3614
    %v4380 = vunpack.c.l.b16 %v3615
    %v4381 = vunpack.c.h.b16 %v3615
    %v4382 = vunpack.c.l.b16 %v3616
    %v4383 = vunpack.c.h.b16 %v3616
    %v4384 = vunpack.c.l.b16 %v3617
    %v4385 = vunpack.c.h.b16 %v3617
    %v4386 = vunpack.c.l.b16 %v3618
    %v4387 = vunpack.c.h.b16 %v3618
    %v4388 = vunpack.c.l.b16 %v3619
    %v4389 = vunpack.c.h.b16 %v3619
    %v4390 = vunpack.c.l.b16 %v3620
    %v4391 = vunpack.c.h.b16 %v3620
    %v4392 = vunpack.c.l.b16 %v3621
    %v4393 = vunpack.c.h.b16 %v3621
    %v4394 = vunpack.c.l.b16 %v3622
    %v4395 = vunpack.c.h.b16 %v3622
    %v4396 = vunpack.c.l.b16 %v3623
    %v4397 = vunpack.c.h.b16 %v3623
    %v4398 = vunpack.c.l.b16 %v3624
    %v4399 = vunpack.c.h.b16 %v3624
    %v4400 = vunpack.c.l.b16 %v3625
    %v4401 = vunpack.c.h.b16 %v3625
    %v4402 = vunpack.c.l.b16 %v3626
    %v4403 = vunpack.c.h.b16 %v3626
    %v4404 = vunpack.c.l.b16 %v3627
    %v4405 = vunpack.c.h.b16 %v3627
    %v4406 = vunpack.c.l.b16 %v3628
    %v4407 = vunpack.c.h.b16 %v3628
    %v4408 = vunpack.c.l.b16 %v3629
    %v4409 = vunpack.c.h.b16 %v3629
    %v4410 = vunpack.c.l.b16 %v3630
    %v4411 = vunpack.c.h.b16 %v3630
    %v4412 = vunpack.c.l.b16 %v3631
    %v4413 = vunpack.c.h.b16 %v3631
    %v4414 = vunpack.c.l.b16 %v3632
    %v4415 = vunpack.c.h.b16 %v3632
    %v4416 = vunpack.c.l.b16 %v3633
    %v4417 = vunpack.c.h.b16 %v3633
    %v4418 = vunpack.c.l.b16 %v3634
    %v4419 = vunpack.c.h.b16 %v3634
    %v4420 = vunpack.c.l.b16 %v3635
    %v4421 = vunpack.c.h.b16 %v3635
    %v4422 = vunpack.c.l.b16 %v3636
    %v4423 = vunpack.c.h.b16 %v3636
    %v4424 = vunpack.c.l.b16 %v3637
    %v4425 = vunpack.c.h.b16 %v3637
    %v4426 = vunpack.c.l.b16 %v3638
    %v4427 = vunpack.c.h.b16 %v3638
    %v4428 = vunpack.c.l.b16 %v3639
    %v4429 = vunpack.c.h.b16 %v3639
    %v4430 = vunpack.c.l.b16 %v3640
    %v4431 = vunpack.c.h.b16 %v3640
    %v4432 = vunpack.c.l.b16 %v3641
    %v4433 = vunpack.c.h.b16 %v3641
    %v4434 = vunpack.c.l.b16 %v3642
    %v4435 = vunpack.c.h.b16 %v3642
    %v4436 = vunpack.c.l.b16 %v3643
    %v4437 = vunpack.c.h.b16 %v3643
    %v4438 = vunpack.c.l.b16 %v3644
    %v4439 = vunpack.c.h.b16 %v3644
    %v4440 = vunpack.c.l.b16 %v3645
    %v4441 = vunpack.c.h.b16 %v3645
    %v4442 = vunpack.c.l.b16 %v3646
    %v4443 = vunpack.c.h.b16 %v3646
    %v4444 = vunpack.c.l.b16 %v3647
    %v4445 = vunpack.c.h.b16 %v3647
    %v4446 = vunpack.c.l.b16 %v3648
    %v4447 = vunpack.c.h.b16 %v3648
    %v4448 = vunpack.c.l.b16 %v3649
    %v4449 = vunpack.c.h.b16 %v3649
    %v4450 = vunpack.c.l.b16 %v3650
    %v4451 = vunpack.c.h.b16 %v3650
    %v4452 = vunpack.c.l.b16 %v3651
    %v4453 = vunpack.c.h.b16 %v3651
    %v4454 = vunpack.c.l.b16 %v3652
    %v4455 = vunpack.c.h.b16 %v3652
    %v4456 = vunpack.c.l.b16 %v3653
    %v4457 = vunpack.c.h.b16 %v3653
    %v4458 = vunpack.c.l.b16 %v3654
    %v4459 = vunpack.c.h.b16 %v3654
    %v4460 = vunpack.c.l.b16 %v3655
    %v4461 = vunpack.c.h.b16 %v3655
    %v4462 = vunpack.c.l.b16 %v3656
    %v4463 = vunpack.c.h.b16 %v3656
    %v4464 = vunpack.c.l.b16 %v3657
    %v4465 = vunpack.c.h.b16 %v3657
    %v4466 = vunpack.c.l.b16 %v3658
    %v4467 = vunpack.c.h.b16 %v3658
    %v4468 = vunpack.c.l.b16 %v3659
    %v4469 = vunpack.c.h.b16 %v3659
    %v4470 = vpack.c.b16 %v3966, %v3958
    %v4471 = vpack.c.b16 %v3967, %v3959
    %v4472 = vpack.c.b16 %v3968, %v3960
    %v4473 = vpack.c.b16 %v3969, %v3961
    %v4474 = vpack.c.b16 %v3970, %v3962
    %v4475 = vpack.c.b16 %v3971, %v3963
    %v4476 = vpack.c.b16 %v3972, %v3964
    %v4477 = vpack.c.b16 %v3973, %v3965
    %v4478 = vpack.c.b16 %v3982, %v3974
    %v4479 = vpack.c.b16 %v3983, %v3975
    %v4480 = vpack.c.b16 %v3984, %v3976
    %v4481 = vpack.c.b16 %v3985, %v3977
    %v4482 = vpack.c.b16 %v3986, %v3978
    %v4483 = vpack.c.b16 %v3987, %v3979
    %v4484 = vpack.c.b16 %v3988, %v3980
    %v4485 = vpack.c.b16 %v3989, %v3981
    %v4486 = vpack.c.b16 %v3998, %v3990
    %v4487 = vpack.c.b16 %v3999, %v3991
    %v4488 = vpack.c.b16 %v4000, %v3992
    %v4489 = vpack.c.b16 %v4001, %v3993
    %v4490 = vpack.c.b16 %v4002, %v3994
    %v4491 = vpack.c.b16 %v4003, %v3995
    %v4492 = vpack.c.b16 %v4004, %v3996
    %v4493 = vpack.c.b16 %v4005, %v3997
    %v4494 = vpack.c.b16 %v4014, %v4006
    %v4495 = vpack.c.b16 %v4015, %v4007
    %v4496 = vpack.c.b16 %v4016, %v4008
    %v4497 = vpack.c.b16 %v4017, %v4009
    %v4498 = vpack.c.b16 %v4018, %v4010
    %v4499 = vpack.c.b16 %v4019, %v4011
    %v4500 = vpack.c.b16 %v4020, %v4012
    %v4501 = vpack.c.b16 %v4021, %v4013
    %v4502 = vpack.c.b16 %v4030, %v4022
    %v4503 = vpack.c.b16 %v4031, %v4023
    %v4504 = vpack.c.b16 %v4032, %v4024
    %v4505 = vpack.c.b16 %v4033, %v4025
    %v4506 = vpack.c.b16 %v4034, %v4026
    %v4507 = vpack.c.b16 %v4035, %v4027
    %v4508 = vpack.c.b16 %v4036, %v4028
    %v4509 = vpack.c.b16 %v4037, %v4029
    %v4510 = vpack.c.b16 %v4046, %v4038
    %v4511 = vpack.c.b16 %v4047, %v4039
    %v4512 = vpack.c.b16 %v4048, %v4040
    %v4513 = vpack.c.b16 %v4049, %v4041
    %v4514 = vpack.c.b16 %v4050, %v4042
    %v4515 = vpack.c.b16 %v4051, %v4043
    %v4516 = vpack.c.b16 %v4052, %v4044
    %v4517 = vpack.c.b16 %v4053, %v4045
    %v4518 = vpack.c.b16 %v4062, %v4054
    %v4519 = vpack.c.b16 %v4063, %v4055
    %v4520 = vpack.c.b16 %v4064, %v4056
    %v4521 = vpack.c.b16 %v4065, %v4057
    %v4522 = vpack.c.b16 %v4066, %v4058
    %v4523 = vpack.c.b16 %v4067, %v4059
    %v4524 = vpack.c.b16 %v4068, %v4060
    %v4525 = vpack.c.b16 %v4069, %v4061
    %v4526 = vpack.c.b16 %v4078, %v4070
    %v4527 = vpack.c.b16 %v4079, %v4071
    %v4528 = vpack.c.b16 %v4080, %v4072
    %v4529 = vpack.c.b16 %v4081, %v4073
    %v4530 = vpack.c.b16 %v4082, %v4074
    %v4531 = vpack.c.b16 %v4083, %v4075
    %v4532 = vpack.c.b16 %v4084, %v4076
    %v4533 = vpack.c.b16 %v4085, %v4077
    %v4534 = vpack.c.b16 %v4094, %v4086
    %v4535 = vpack.c.b16 %v4095, %v4087
    %v4536 = vpack.c.b16 %v4096, %v4088
    %v4537 = vpack.c.b16 %v4097, %v4089
    %v4538 = vpack.c.b16 %v4098, %v4090
    %v4539 = vpack.c.b16 %v4099, %v4091
    %v4540 = vpack.c.b16 %v4100, %v4092
    %v4541 = vpack.c.b16 %v4101, %v4093
    %v4542 = vpack.c.b16 %v4110, %v4102
    %v4543 = vpack.c.b16 %v4111, %v4103
    %v4544 = vpack.c.b16 %v4112, %v4104
    %v4545 = vpack.c.b16 %v4113, %v4105
    %v4546 = vpack.c.b16 %v4114, %v4106
    %v4547 = vpack.c.b16 %v4115, %v4107
    %v4548 = vpack.c.b16 %v4116, %v4108
    %v4549 = vpack.c.b16 %v4117, %v4109
    %v4550 = vpack.c.b16 %v4126, %v4118
    %v4551 = vpack.c.b16 %v4127, %v4119
    %v4552 = vpack.c.b16 %v4128, %v4120
    %v4553 = vpack.c.b16 %v4129, %v4121
    %v4554 = vpack.c.b16 %v4130, %v4122
    %v4555 = vpack.c.b16 %v4131, %v4123
    %v4556 = vpack.c.b16 %v4132, %v4124
    %v4557 = vpack.c.b16 %v4133, %v4125
    %v4558 = vpack.c.b16 %v4142, %v4134
    %v4559 = vpack.c.b16 %v4143, %v4135
    %v4560 = vpack.c.b16 %v4144, %v4136
    %v4561 = vpack.c.b16 %v4145, %v4137
    %v4562 = vpack.c.b16 %v4146, %v4138
    %v4563 = vpack.c.b16 %v4147, %v4139
    %v4564 = vpack.c.b16 %v4148, %v4140
    %v4565 = vpack.c.b16 %v4149, %v4141
    %v4566 = vpack.c.b16 %v4158, %v4150
    %v4567 = vpack.c.b16 %v4159, %v4151
    %v4568 = vpack.c.b16 %v4160, %v4152
    %v4569 = vpack.c.b16 %v4161, %v4153
    %v4570 = vpack.c.b16 %v4162, %v4154
    %v4571 = vpack.c.b16 %v4163, %v4155
    %v4572 = vpack.c.b16 %v4164, %v4156
    %v4573 = vpack.c.b16 %v4165, %v4157
    %v4574 = vpack.c.b16 %v4174, %v4166
    %v4575 = vpack.c.b16 %v4175, %v4167
    %v4576 = vpack.c.b16 %v4176, %v4168
    %v4577 = vpack.c.b16 %v4177, %v4169
    %v4578 = vpack.c.b16 %v4178, %v4170
    %v4579 = vpack.c.b16 %v4179, %v4171
    %v4580 = vpack.c.b16 %v4180, %v4172
    %v4581 = vpack.c.b16 %v4181, %v4173
    %v4582 = vpack.c.b16 %v4190, %v4182
    %v4583 = vpack.c.b16 %v4191, %v4183
    %v4584 = vpack.c.b16 %v4192, %v4184
    %v4585 = vpack.c.b16 %v4193, %v4185
    %v4586 = vpack.c.b16 %v4194, %v4186
    %v4587 = vpack.c.b16 %v4195, %v4187
    %v4588 = vpack.c.b16 %v4196, %v4188
    %v4589 = vpack.c.b16 %v4197, %v4189
    %v4590 = vpack.c.b16 %v4206, %v4198
    %v4591 = vpack.c.b16 %v4207, %v4199
    %v4592 = vpack.c.b16 %v4208, %v4200
    %v4593 = vpack.c.b16 %v4209, %v4201
    %v4594 = vpack.c.b16 %v4210, %v4202
    %v4595 = vpack.c.b16 %v4211, %v4203
    %v4596 = vpack.c.b16 %v4212, %v4204
    %v4597 = vpack.c.b16 %v4213, %v4205
    %v4598 = vpack.c.b16 %v4222, %v4214
    %v4599 = vpack.c.b16 %v4223, %v4215
    %v4600 = vpack.c.b16 %v4224, %v4216
    %v4601 = vpack.c.b16 %v4225, %v4217
    %v4602 = vpack.c.b16 %v4226, %v4218
    %v4603 = vpack.c.b16 %v4227, %v4219
    %v4604 = vpack.c.b16 %v4228, %v4220
    %v4605 = vpack.c.b16 %v4229, %v4221
    %v4606 = vpack.c.b16 %v4238, %v4230
    %v4607 = vpack.c.b16 %v4239, %v4231
    %v4608 = vpack.c.b16 %v4240, %v4232
    %v4609 = vpack.c.b16 %v4241, %v4233
    %v4610 = vpack.c.b16 %v4242, %v4234
    %v4611 = vpack.c.b16 %v4243, %v4235
    %v4612 = vpack.c.b16 %v4244, %v4236
    %v4613 = vpack.c.b16 %v4245, %v4237
    %v4614 = vpack.c.b16 %v4254, %v4246
    %v4615 = vpack.c.b16 %v4255, %v4247
    %v4616 = vpack.c.b16 %v4256, %v4248
    %v4617 = vpack.c.b16 %v4257, %v4249
    %v4618 = vpack.c.b16 %v4258, %v4250
    %v4619 = vpack.c.b16 %v4259, %v4251
    %v4620 = vpack.c.b16 %v4260, %v4252
    %v4621 = vpack.c.b16 %v4261, %v4253
    %v4622 = vpack.c.b16 %v4270, %v4262
    %v4623 = vpack.c.b16 %v4271, %v4263
    %v4624 = vpack.c.b16 %v4272, %v4264
    %v4625 = vpack.c.b16 %v4273, %v4265
    %v4626 = vpack.c.b16 %v4274, %v4266
    %v4627 = vpack.c.b16 %v4275, %v4267
    %v4628 = vpack.c.b16 %v4276, %v4268
    %v4629 = vpack.c.b16 %v4277, %v4269
    %v4630 = vpack.c.b16 %v4286, %v4278
    %v4631 = vpack.c.b16 %v4287, %v4279
    %v4632 = vpack.c.b16 %v4288, %v4280
    %v4633 = vpack.c.b16 %v4289, %v4281
    %v4634 = vpack.c.b16 %v4290, %v4282
    %v4635 = vpack.c.b16 %v4291, %v4283
    %v4636 = vpack.c.b16 %v4292, %v4284
    %v4637 = vpack.c.b16 %v4293, %v4285
    %v4638 = vpack.c.b16 %v4302, %v4294
    %v4639 = vpack.c.b16 %v4303, %v4295
    %v4640 = vpack.c.b16 %v4304, %v4296
    %v4641 = vpack.c.b16 %v4305, %v4297
    %v4642 = vpack.c.b16 %v4306, %v4298
    %v4643 = vpack.c.b16 %v4307, %v4299
    %v4644 = vpack.c.b16 %v4308, %v4300
    %v4645 = vpack.c.b16 %v4309, %v4301
    %v4646 = vpack.c.b16 %v4318, %v4310
    %v4647 = vpack.c.b16 %v4319, %v4311
    %v4648 = vpack.c.b16 %v4320, %v4312
    %v4649 = vpack.c.b16 %v4321, %v4313
    %v4650 = vpack.c.b16 %v4322, %v4314
    %v4651 = vpack.c.b16 %v4323, %v4315
    %v4652 = vpack.c.b16 %v4324, %v4316
    %v4653 = vpack.c.b16 %v4325, %v4317
    %v4654 = vpack.c.b16 %v4334, %v4326
    %v4655 = vpack.c.b16 %v4335, %v4327
    %v4656 = vpack.c.b16 %v4336, %v4328
    %v4657 = vpack.c.b16 %v4337, %v4329
    %v4658 = vpack.c.b16 %v4338, %v4330
    %v4659 = vpack.c.b16 %v4339, %v4331
    %v4660 = vpack.c.b16 %v4340, %v4332
    %v4661 = vpack.c.b16 %v4341, %v4333
    %v4662 = vpack.c.b16 %v4350, %v4342
    %v4663 = vpack.c.b16 %v4351, %v4343
    %v4664 = vpack.c.b16 %v4352, %v4344
    %v4665 = vpack.c.b16 %v4353, %v4345
    %v4666 = vpack.c.b16 %v4354, %v4346
    %v4667 = vpack.c.b16 %v4355, %v4347
    %v4668 = vpack.c.b16 %v4356, %v4348
    %v4669 = vpack.c.b16 %v4357, %v4349
    %v4670 = vpack.c.b16 %v4366, %v4358
    %v4671 = vpack.c.b16 %v4367, %v4359
    %v4672 = vpack.c.b16 %v4368, %v4360
    %v4673 = vpack.c.b16 %v4369, %v4361
    %v4674 = vpack.c.b16 %v4370, %v4362
    %v4675 = vpack.c.b16 %v4371, %v4363
    %v4676 = vpack.c.b16 %v4372, %v4364
    %v4677 = vpack.c.b16 %v4373, %v4365
    %v4678 = vpack.c.b16 %v4382, %v4374
    %v4679 = vpack.c.b16 %v4383, %v4375
    %v4680 = vpack.c.b16 %v4384, %v4376
    %v4681 = vpack.c.b16 %v4385, %v4377
    %v4682 = vpack.c.b16 %v4386, %v4378
    %v4683 = vpack.c.b16 %v4387, %v4379
    %v4684 = vpack.c.b16 %v4388, %v4380
    %v4685 = vpack.c.b16 %v4389, %v4381
    %v4686 = vpack.c.b16 %v4398, %v4390
    %v4687 = vpack.c.b16 %v4399, %v4391
    %v4688 = vpack.c.b16 %v4400, %v4392
    %v4689 = vpack.c.b16 %v4401, %v4393
    %v4690 = vpack.c.b16 %v4402, %v4394
    %v4691 = vpack.c.b16 %v4403, %v4395
    %v4692 = vpack.c.b16 %v4404, %v4396
    %v4693 = vpack.c.b16 %v4405, %v4397
    %v4694 = vpack.c.b16 %v4414, %v4406
    %v4695 = vpack.c.b16 %v4415, %v4407
    %v4696 = vpack.c.b16 %v4416, %v4408
    %v4697 = vpack.c.b16 %v4417, %v4409
    %v4698 = vpack.c.b16 %v4418, %v4410
    %v4699 = vpack.c.b16 %v4419, %v4411
    %v4700 = vpack.c.b16 %v4420, %v4412
    %v4701 = vpack.c.b16 %v4421, %v4413
    %v4702 = vpack.c.b16 %v4430, %v4422
    %v4703 = vpack.c.b16 %v4431, %v4423
    %v4704 = vpack.c.b16 %v4432, %v4424
    %v4705 = vpack.c.b16 %v4433, %v4425
    %v4706 = vpack.c.b16 %v4434, %v4426
    %v4707 = vpack.c.b16 %v4435, %v4427
    %v4708 = vpack.c.b16 %v4436, %v4428
    %v4709 = vpack.c.b16 %v4437, %v4429
    %v4710 = vpack.c.b16 %v4446, %v4438
    %v4711 = vpack.c.b16 %v4447, %v4439
    %v4712 = vpack.c.b16 %v4448, %v4440
    %v4713 = vpack.c.b16 %v4449, %v4441
    %v4714 = vpack.c.b16 %v4450, %v4442
    %v4715 = vpack.c.b16 %v4451, %v4443
    %v4716 = vpack.c.b16 %v4452, %v4444
    %v4717 = vpack.c.b16 %v4453, %v4445
    %v4718 = vpack.c.b16 %v4462, %v4454
    %v4719 = vpack.c.b16 %v4463, %v4455
    %v4720 = vpack.c.b16 %v4464, %v4456
    %v4721 = vpack.c.b16 %v4465, %v4457
    %v4722 = vpack.c.b16 %v4466, %v4458
    %v4723 = vpack.c.b16 %v4467, %v4459
    %v4724 = vpack.c.b16 %v4468, %v4460
    %v4725 = vpack.c.b16 %v4469, %v4461
    %4982 = vmatprep.subr.bf16.mxu0 %v4527
    %4983 = vmatpush1.bf16.msra.mxu0 %v4526
    %4984 = vmatprep.subr.bf16.mxu0 %v4519
    %4985 = vmatpush1.bf16.msra.mxu0 %v4518
    %4986 = vmatprep.subr.bf16.mxu0 %v4511
    %4987 = vmatpush1.bf16.msra.mxu0 %v4510
    %4988 = vmatprep.subr.bf16.mxu0 %v4503
    %4989 = vmatpush1.bf16.msra.mxu0 %v4502
    %4990 = vmatprep.subr.bf16.mxu0 %v4495
    %4991 = vmatpush1.bf16.msra.mxu0 %v4494
    %4992 = vmatprep.subr.bf16.mxu0 %v4487
    %4993 = vmatpush1.bf16.msra.mxu0 %v4486
    %4994 = vmatprep.subr.bf16.mxu0 %v4479
    %4995 = vmatpush1.bf16.msra.mxu0 %v4478
    %4996 = vmatprep.subr.bf16.mxu0 %v4471
    %4997 = vmatpush1.bf16.msra.mxu0 %v4470
    %4998 = vmatprep.subr.bf16.mxu0 %v4591
    %4999 = vmatpush2.bf16.msra.mxu0 %v4590
    %5000 = vmatprep.subr.bf16.mxu0 %v4583
    %5001 = vmatpush2.bf16.msra.mxu0 %v4582
    %5002 = vmatprep.subr.bf16.mxu0 %v4575
    %5003 = vmatpush2.bf16.msra.mxu0 %v4574
    %5004 = vmatprep.subr.bf16.mxu0 %v4567
    %5005 = vmatpush2.bf16.msra.mxu0 %v4566
    %5006 = vmatprep.subr.bf16.mxu0 %v4559
    %5007 = vmatpush2.bf16.msra.mxu0 %v4558
    %5008 = vmatprep.subr.bf16.mxu0 %v4551
    %5009 = vmatpush2.bf16.msra.mxu0 %v4550
    %5010 = vmatprep.subr.bf16.mxu0 %v4543
    %5011 = vmatpush2.bf16.msra.mxu0 %v4542
    %5012 = vmatprep.subr.bf16.mxu0 %v4535
    %5013 = vmatpush2.bf16.msra.mxu0 %v4534
    %5014 = vmatprep.mubr.bf16.mxu0 %v3401
    %5015 = vmatmul.mubr.bf16.gmra.mxu0 %v3400
    %v5016 = vpop.f32.mrf.mxu0
    %v5017 = vadd.f32 %v3665, %v5016
    %v5018 = vpop.f32.mrf.mxu0
    %v5019 = vadd.f32 %v3669, %v5018
    %v5020 = vpop.f32.mrf.mxu0
    %v5021 = vpop.f32.mrf.mxu0
    %5022 = vdwg.mxu0
    %5023 = vmatprep.subr.bf16.mxu0 %v4655
    %5024 = vmatpush1.bf16.msra.mxu0 %v4654
    %5025 = vmatprep.subr.bf16.mxu0 %v4647
    %5026 = vmatpush1.bf16.msra.mxu0 %v4646
    %5027 = vmatprep.subr.bf16.mxu0 %v4639
    %5028 = vmatpush1.bf16.msra.mxu0 %v4638
    %5029 = vmatprep.subr.bf16.mxu0 %v4631
    %5030 = vmatpush1.bf16.msra.mxu0 %v4630
    %5031 = vmatprep.subr.bf16.mxu0 %v4623
    %5032 = vmatpush1.bf16.msra.mxu0 %v4622
    %5033 = vmatprep.subr.bf16.mxu0 %v4615
    %5034 = vmatpush1.bf16.msra.mxu0 %v4614
    %5035 = vmatprep.subr.bf16.mxu0 %v4607
    %5036 = vmatpush1.bf16.msra.mxu0 %v4606
    %5037 = vmatprep.subr.bf16.mxu0 %v4599
    %5038 = vmatpush1.bf16.msra.mxu0 %v4598
    %5039 = vmatprep.subr.bf16.mxu0 %v4719
    %5040 = vmatpush2.bf16.msra.mxu0 %v4718
    %5041 = vmatprep.subr.bf16.mxu0 %v4711
    %5042 = vmatpush2.bf16.msra.mxu0 %v4710
    %5043 = vmatprep.subr.bf16.mxu0 %v4703
    %5044 = vmatpush2.bf16.msra.mxu0 %v4702
    %5045 = vmatprep.subr.bf16.mxu0 %v4695
    %5046 = vmatpush2.bf16.msra.mxu0 %v4694
    %5047 = vmatprep.subr.bf16.mxu0 %v4687
    %5048 = vmatpush2.bf16.msra.mxu0 %v4686
    %5049 = vmatprep.subr.bf16.mxu0 %v4679
    %5050 = vmatpush2.bf16.msra.mxu0 %v4678
    %5051 = vmatprep.subr.bf16.mxu0 %v4671
    %5052 = vmatpush2.bf16.msra.mxu0 %v4670
    %5053 = vmatprep.subr.bf16.mxu0 %v4663
    %5054 = vmatpush2.bf16.msra.mxu0 %v4662
    %5055 = vmatprep.mubr.bf16.mxu0 %v3403
    %5056 = vmatmul.mubr.bf16.gmra.mxu0 %v3402
    %v5057 = vpop.f32.mrf.mxu0
    %v5058 = vadd.f32 %v5017, %v5057
    %v5059 = vpop.f32.mrf.mxu0
    %v5060 = vadd.f32 %v5019, %v5059
    %v5061 = vpop.f32.mrf.mxu0
    %v5062 = vpop.f32.mrf.mxu0
    %5063 = vdwg.mxu0
    %5064 = vmatprep.subr.bf16.mxu0 %v4529
    %5065 = vmatpush1.bf16.msra.mxu0 %v4528
    %5066 = vmatprep.subr.bf16.mxu0 %v4521
    %5067 = vmatpush1.bf16.msra.mxu0 %v4520
    %5068 = vmatprep.subr.bf16.mxu0 %v4513
    %5069 = vmatpush1.bf16.msra.mxu0 %v4512
    %5070 = vmatprep.subr.bf16.mxu0 %v4505
    %5071 = vmatpush1.bf16.msra.mxu0 %v4504
    %5072 = vmatprep.subr.bf16.mxu0 %v4497
    %5073 = vmatpush1.bf16.msra.mxu0 %v4496
    %5074 = vmatprep.subr.bf16.mxu0 %v4489
    %5075 = vmatpush1.bf16.msra.mxu0 %v4488
    %5076 = vmatprep.subr.bf16.mxu0 %v4481
    %5077 = vmatpush1.bf16.msra.mxu0 %v4480
    %5078 = vmatprep.subr.bf16.mxu0 %v4473
    %5079 = vmatpush1.bf16.msra.mxu0 %v4472
    %5080 = vmatprep.subr.bf16.mxu0 %v4593
    %5081 = vmatpush2.bf16.msra.mxu0 %v4592
    %5082 = vmatprep.subr.bf16.mxu0 %v4585
    %5083 = vmatpush2.bf16.msra.mxu0 %v4584
    %5084 = vmatprep.subr.bf16.mxu0 %v4577
    %5085 = vmatpush2.bf16.msra.mxu0 %v4576
    %5086 = vmatprep.subr.bf16.mxu0 %v4569
    %5087 = vmatpush2.bf16.msra.mxu0 %v4568
    %5088 = vmatprep.subr.bf16.mxu0 %v4561
    %5089 = vmatpush2.bf16.msra.mxu0 %v4560
    %5090 = vmatprep.subr.bf16.mxu0 %v4553
    %5091 = vmatpush2.bf16.msra.mxu0 %v4552
    %5092 = vmatprep.subr.bf16.mxu0 %v4545
    %5093 = vmatpush2.bf16.msra.mxu0 %v4544
    %5094 = vmatprep.subr.bf16.mxu0 %v4537
    %5095 = vmatpush2.bf16.msra.mxu0 %v4536
    %5096 = vmatprep.mubr.bf16.mxu0 %v3401
    %5097 = vmatmul.mubr.bf16.gmra.mxu0 %v3400
    %v5098 = vpop.f32.mrf.mxu0
    %v5099 = vadd.f32 %v3673, %v5098
    %v5100 = vpop.f32.mrf.mxu0
    %v5101 = vadd.f32 %v3677, %v5100
    %v5102 = vpop.f32.mrf.mxu0
    %v5103 = vpop.f32.mrf.mxu0
    %5104 = vdwg.mxu0
    %5105 = vmatprep.subr.bf16.mxu0 %v4657
    %5106 = vmatpush1.bf16.msra.mxu0 %v4656
    %5107 = vmatprep.subr.bf16.mxu0 %v4649
    %5108 = vmatpush1.bf16.msra.mxu0 %v4648
    %5109 = vmatprep.subr.bf16.mxu0 %v4641
    %5110 = vmatpush1.bf16.msra.mxu0 %v4640
    %5111 = vmatprep.subr.bf16.mxu0 %v4633
    %5112 = vmatpush1.bf16.msra.mxu0 %v4632
    %5113 = vmatprep.subr.bf16.mxu0 %v4625
    %5114 = vmatpush1.bf16.msra.mxu0 %v4624
    %5115 = vmatprep.subr.bf16.mxu0 %v4617
    %5116 = vmatpush1.bf16.msra.mxu0 %v4616
    %5117 = vmatprep.subr.bf16.mxu0 %v4609
    %5118 = vmatpush1.bf16.msra.mxu0 %v4608
    %5119 = vmatprep.subr.bf16.mxu0 %v4601
    %5120 = vmatpush1.bf16.msra.mxu0 %v4600
    %5121 = vmatprep.subr.bf16.mxu0 %v4721
    %5122 = vmatpush2.bf16.msra.mxu0 %v4720
    %5123 = vmatprep.subr.bf16.mxu0 %v4713
    %5124 = vmatpush2.bf16.msra.mxu0 %v4712
    %5125 = vmatprep.subr.bf16.mxu0 %v4705
    %5126 = vmatpush2.bf16.msra.mxu0 %v4704
    %5127 = vmatprep.subr.bf16.mxu0 %v4697
    %5128 = vmatpush2.bf16.msra.mxu0 %v4696
    %5129 = vmatprep.subr.bf16.mxu0 %v4689
    %5130 = vmatpush2.bf16.msra.mxu0 %v4688
    %5131 = vmatprep.subr.bf16.mxu0 %v4681
    %5132 = vmatpush2.bf16.msra.mxu0 %v4680
    %5133 = vmatprep.subr.bf16.mxu0 %v4673
    %5134 = vmatpush2.bf16.msra.mxu0 %v4672
    %5135 = vmatprep.subr.bf16.mxu0 %v4665
    %5136 = vmatpush2.bf16.msra.mxu0 %v4664
    %5137 = vmatprep.mubr.bf16.mxu0 %v3403
    %5138 = vmatmul.mubr.bf16.gmra.mxu0 %v3402
    %v5139 = vpop.f32.mrf.mxu0
    %v5140 = vadd.f32 %v5099, %v5139
    %v5141 = vpop.f32.mrf.mxu0
    %v5142 = vadd.f32 %v5101, %v5141
    %v5143 = vpop.f32.mrf.mxu0
    %v5144 = vpop.f32.mrf.mxu0
    %5145 = vdwg.mxu0
    %5146 = vmatprep.subr.bf16.mxu0 %v4531
    %5147 = vmatpush1.bf16.msra.mxu0 %v4530
    %5148 = vmatprep.subr.bf16.mxu0 %v4523
    %5149 = vmatpush1.bf16.msra.mxu0 %v4522
    %5150 = vmatprep.subr.bf16.mxu0 %v4515
    %5151 = vmatpush1.bf16.msra.mxu0 %v4514
    %5152 = vmatprep.subr.bf16.mxu0 %v4507
    %5153 = vmatpush1.bf16.msra.mxu0 %v4506
    %5154 = vmatprep.subr.bf16.mxu0 %v4499
    %5155 = vmatpush1.bf16.msra.mxu0 %v4498
    %5156 = vmatprep.subr.bf16.mxu0 %v4491
    %5157 = vmatpush1.bf16.msra.mxu0 %v4490
    %5158 = vmatprep.subr.bf16.mxu0 %v4483
    %5159 = vmatpush1.bf16.msra.mxu0 %v4482
    %5160 = vmatprep.subr.bf16.mxu0 %v4475
    %5161 = vmatpush1.bf16.msra.mxu0 %v4474
    %5162 = vmatprep.subr.bf16.mxu0 %v4595
    %5163 = vmatpush2.bf16.msra.mxu0 %v4594
    %5164 = vmatprep.subr.bf16.mxu0 %v4587
    %5165 = vmatpush2.bf16.msra.mxu0 %v4586
    %5166 = vmatprep.subr.bf16.mxu0 %v4579
    %5167 = vmatpush2.bf16.msra.mxu0 %v4578
    %5168 = vmatprep.subr.bf16.mxu0 %v4571
    %5169 = vmatpush2.bf16.msra.mxu0 %v4570
    %5170 = vmatprep.subr.bf16.mxu0 %v4563
    %5171 = vmatpush2.bf16.msra.mxu0 %v4562
    %5172 = vmatprep.subr.bf16.mxu0 %v4555
    %5173 = vmatpush2.bf16.msra.mxu0 %v4554
    %5174 = vmatprep.subr.bf16.mxu0 %v4547
    %5175 = vmatpush2.bf16.msra.mxu0 %v4546
    %5176 = vmatprep.subr.bf16.mxu0 %v4539
    %5177 = vmatpush2.bf16.msra.mxu0 %v4538
    %5178 = vmatprep.mubr.bf16.mxu0 %v3401
    %5179 = vmatmul.mubr.bf16.gmra.mxu0 %v3400
    %v5180 = vpop.f32.mrf.mxu0
    %v5181 = vadd.f32 %v3681, %v5180
    %v5182 = vpop.f32.mrf.mxu0
    %v5183 = vadd.f32 %v3685, %v5182
    %v5184 = vpop.f32.mrf.mxu0
    %v5185 = vpop.f32.mrf.mxu0
    %5186 = vdwg.mxu0
    %5187 = vmatprep.subr.bf16.mxu0 %v4659
    %5188 = vmatpush1.bf16.msra.mxu0 %v4658
    %5189 = vmatprep.subr.bf16.mxu0 %v4651
    %5190 = vmatpush1.bf16.msra.mxu0 %v4650
    %5191 = vmatprep.subr.bf16.mxu0 %v4643
    %5192 = vmatpush1.bf16.msra.mxu0 %v4642
    %5193 = vmatprep.subr.bf16.mxu0 %v4635
    %5194 = vmatpush1.bf16.msra.mxu0 %v4634
    %5195 = vmatprep.subr.bf16.mxu0 %v4627
    %5196 = vmatpush1.bf16.msra.mxu0 %v4626
    %5197 = vmatprep.subr.bf16.mxu0 %v4619
    %5198 = vmatpush1.bf16.msra.mxu0 %v4618
    %5199 = vmatprep.subr.bf16.mxu0 %v4611
    %5200 = vmatpush1.bf16.msra.mxu0 %v4610
    %5201 = vmatprep.subr.bf16.mxu0 %v4603
    %5202 = vmatpush1.bf16.msra.mxu0 %v4602
    %5203 = vmatprep.subr.bf16.mxu0 %v4723
    %5204 = vmatpush2.bf16.msra.mxu0 %v4722
    %5205 = vmatprep.subr.bf16.mxu0 %v4715
    %5206 = vmatpush2.bf16.msra.mxu0 %v4714
    %5207 = vmatprep.subr.bf16.mxu0 %v4707
    %5208 = vmatpush2.bf16.msra.mxu0 %v4706
    %5209 = vmatprep.subr.bf16.mxu0 %v4699
    %5210 = vmatpush2.bf16.msra.mxu0 %v4698
    %5211 = vmatprep.subr.bf16.mxu0 %v4691
    %5212 = vmatpush2.bf16.msra.mxu0 %v4690
    %5213 = vmatprep.subr.bf16.mxu0 %v4683
    %5214 = vmatpush2.bf16.msra.mxu0 %v4682
    %5215 = vmatprep.subr.bf16.mxu0 %v4675
    %5216 = vmatpush2.bf16.msra.mxu0 %v4674
    %5217 = vmatprep.subr.bf16.mxu0 %v4667
    %5218 = vmatpush2.bf16.msra.mxu0 %v4666
    %5219 = vmatprep.mubr.bf16.mxu0 %v3403
    %5220 = vmatmul.mubr.bf16.gmra.mxu0 %v3402
    %v5221 = vpop.f32.mrf.mxu0
    %v5222 = vadd.f32 %v5181, %v5221
    %v5223 = vpop.f32.mrf.mxu0
    %v5224 = vadd.f32 %v5183, %v5223
    %v5225 = vpop.f32.mrf.mxu0
    %v5226 = vpop.f32.mrf.mxu0
    %5227 = vdwg.mxu0
    %5228 = vmatprep.subr.bf16.mxu0 %v4533
    %5229 = vmatpush1.bf16.msra.mxu0 %v4532
    %5230 = vmatprep.subr.bf16.mxu0 %v4525
    %5231 = vmatpush1.bf16.msra.mxu0 %v4524
    %5232 = vmatprep.subr.bf16.mxu0 %v4517
    %5233 = vmatpush1.bf16.msra.mxu0 %v4516
    %5234 = vmatprep.subr.bf16.mxu0 %v4509
    %5235 = vmatpush1.bf16.msra.mxu0 %v4508
    %5236 = vmatprep.subr.bf16.mxu0 %v4501
    %5237 = vmatpush1.bf16.msra.mxu0 %v4500
    %5238 = vmatprep.subr.bf16.mxu0 %v4493
    %5239 = vmatpush1.bf16.msra.mxu0 %v4492
    %5240 = vmatprep.subr.bf16.mxu0 %v4485
    %5241 = vmatpush1.bf16.msra.mxu0 %v4484
    %5242 = vmatprep.subr.bf16.mxu0 %v4477
    %5243 = vmatpush1.bf16.msra.mxu0 %v4476
    %5244 = vmatprep.subr.bf16.mxu0 %v4597
    %5245 = vmatpush2.bf16.msra.mxu0 %v4596
    %5246 = vmatprep.subr.bf16.mxu0 %v4589
    %5247 = vmatpush2.bf16.msra.mxu0 %v4588
    %5248 = vmatprep.subr.bf16.mxu0 %v4581
    %5249 = vmatpush2.bf16.msra.mxu0 %v4580
    %5250 = vmatprep.subr.bf16.mxu0 %v4573
    %5251 = vmatpush2.bf16.msra.mxu0 %v4572
    %5252 = vmatprep.subr.bf16.mxu0 %v4565
    %5253 = vmatpush2.bf16.msra.mxu0 %v4564
    %5254 = vmatprep.subr.bf16.mxu0 %v4557
    %5255 = vmatpush2.bf16.msra.mxu0 %v4556
    %5256 = vmatprep.subr.bf16.mxu0 %v4549
    %5257 = vmatpush2.bf16.msra.mxu0 %v4548
    %5258 = vmatprep.subr.bf16.mxu0 %v4541
    %5259 = vmatpush2.bf16.msra.mxu0 %v4540
    %5260 = vmatprep.mubr.bf16.mxu0 %v3401
    %5261 = vmatmul.mubr.bf16.gmra.mxu0 %v3400
    %v5262 = vpop.f32.mrf.mxu0
    %v5263 = vadd.f32 %v3689, %v5262
    %v5264 = vpop.f32.mrf.mxu0
    %v5265 = vadd.f32 %v3693, %v5264
    %v5266 = vpop.f32.mrf.mxu0
    %v5267 = vpop.f32.mrf.mxu0
    %5268 = vdwg.mxu0
    %5269 = vmatprep.subr.bf16.mxu0 %v4661
    %5270 = vmatpush1.bf16.msra.mxu0 %v4660
    %5271 = vmatprep.subr.bf16.mxu0 %v4653
    %5272 = vmatpush1.bf16.msra.mxu0 %v4652
    %5273 = vmatprep.subr.bf16.mxu0 %v4645
    %5274 = vmatpush1.bf16.msra.mxu0 %v4644
    %5275 = vmatprep.subr.bf16.mxu0 %v4637
    %5276 = vmatpush1.bf16.msra.mxu0 %v4636
    %5277 = vmatprep.subr.bf16.mxu0 %v4629
    %5278 = vmatpush1.bf16.msra.mxu0 %v4628
    %5279 = vmatprep.subr.bf16.mxu0 %v4621
    %5280 = vmatpush1.bf16.msra.mxu0 %v4620
    %5281 = vmatprep.subr.bf16.mxu0 %v4613
    %5282 = vmatpush1.bf16.msra.mxu0 %v4612
    %5283 = vmatprep.subr.bf16.mxu0 %v4605
    %5284 = vmatpush1.bf16.msra.mxu0 %v4604
    %5285 = vmatprep.subr.bf16.mxu0 %v4725
    %5286 = vmatpush2.bf16.msra.mxu0 %v4724
    %5287 = vmatprep.subr.bf16.mxu0 %v4717
    %5288 = vmatpush2.bf16.msra.mxu0 %v4716
    %5289 = vmatprep.subr.bf16.mxu0 %v4709
    %5290 = vmatpush2.bf16.msra.mxu0 %v4708
    %5291 = vmatprep.subr.bf16.mxu0 %v4701
    %5292 = vmatpush2.bf16.msra.mxu0 %v4700
    %5293 = vmatprep.subr.bf16.mxu0 %v4693
    %5294 = vmatpush2.bf16.msra.mxu0 %v4692
    %5295 = vmatprep.subr.bf16.mxu0 %v4685
    %5296 = vmatpush2.bf16.msra.mxu0 %v4684
    %5297 = vmatprep.subr.bf16.mxu0 %v4677
    %5298 = vmatpush2.bf16.msra.mxu0 %v4676
    %5299 = vmatprep.subr.bf16.mxu0 %v4669
    %5300 = vmatpush2.bf16.msra.mxu0 %v4668
    %5301 = vmatprep.mubr.bf16.mxu0 %v3403
    %5302 = vmatmul.mubr.bf16.gmra.mxu0 %v3402
    %v5303 = vpop.f32.mrf.mxu0
    %v5304 = vadd.f32 %v5263, %v5303
    %v5305 = vpop.f32.mrf.mxu0
    %v5306 = vadd.f32 %v5265, %v5305
    %v5307 = vpop.f32.mrf.mxu0
    %v5308 = vpop.f32.mrf.mxu0
    %5309 = vdwg.mxu0
    %v5310 = vmax.f32 %v5058, 0.0
    %v5311 = vmax.f32 %v5060, 0.0
    %v5312 = vmax.f32 %v5140, 0.0
    %v5313 = vmax.f32 %v5142, 0.0
    %v5314 = vmax.f32 %v5222, 0.0
    %v5315 = vmax.f32 %v5224, 0.0
    %v5316 = vmax.f32 %v5304, 0.0
    %v5317 = vmax.f32 %v5306, 0.0
    %v5318 = vpack.c.bf16 %v5310, %v5310
    %v5319 = vpack.c.bf16 %v5311, %v5311
    %v5320 = vpack.c.bf16 %v5312, %v5312
    %v5321 = vpack.c.bf16 %v5313, %v5313
    %v5322 = vpack.c.bf16 %v5314, %v5314
    %v5323 = vpack.c.bf16 %v5315, %v5315
    %v5324 = vpack.c.bf16 %v5316, %v5316
    %v5325 = vpack.c.bf16 %v5317, %v5317
    %v5326 = vld [vmem:[#allocation20] sm:$0xff]
    %v5327 = vld [vmem:[#allocation20 + $0x8] sm:$0xff]
    %v5328 = vld [vmem:[#allocation20 + $0x10] sm:$0xff]
    %v5329 = vld [vmem:[#allocation20 + $0x18] sm:$0xff]
    %v5330 = vld [vmem:[#allocation20 + $0x20] sm:$0xff]
    %v5331 = vld [vmem:[#allocation20 + $0x28] sm:$0xff]
    %v5332 = vld [vmem:[#allocation20 + $0x30] sm:$0xff]
    %v5333 = vld [vmem:[#allocation20 + $0x38] sm:$0xff]
    %v5334 = vld [vmem:[#allocation20 + $0x40] sm:$0xff]
    %v5335 = vld [vmem:[#allocation20 + $0x48] sm:$0xff]
    %v5336 = vld [vmem:[#allocation20 + $0x50] sm:$0xff]
    %v5337 = vld [vmem:[#allocation20 + $0x58] sm:$0xff]
    %v5338 = vld [vmem:[#allocation20 + $0x60] sm:$0xff]
    %v5339 = vld [vmem:[#allocation20 + $0x68] sm:$0xff]
    %v5340 = vld [vmem:[#allocation20 + $0x70] sm:$0xff]
    %v5341 = vld [vmem:[#allocation20 + $0x78] sm:$0xff]
    %v5342 = vld [vmem:[#allocation20 + $0x80] sm:$0xff]
    %v5343 = vld [vmem:[#allocation20 + $0x88] sm:$0xff]
    %v5344 = vld [vmem:[#allocation20 + $0x90] sm:$0xff]
    %v5345 = vld [vmem:[#allocation20 + $0x98] sm:$0xff]
    %v5346 = vld [vmem:[#allocation20 + $0xa0] sm:$0xff]
    %v5347 = vld [vmem:[#allocation20 + $0xa8] sm:$0xff]
    %v5348 = vld [vmem:[#allocation20 + $0xb0] sm:$0xff]
    %v5349 = vld [vmem:[#allocation20 + $0xb8] sm:$0xff]
    %v5350 = vld [vmem:[#allocation20 + $0xc0] sm:$0xff]
    %v5351 = vld [vmem:[#allocation20 + $0xc8] sm:$0xff]
    %v5352 = vld [vmem:[#allocation20 + $0xd0] sm:$0xff]
    %v5353 = vld [vmem:[#allocation20 + $0xd8] sm:$0xff]
    %v5354 = vld [vmem:[#allocation20 + $0xe0] sm:$0xff]
    %v5355 = vld [vmem:[#allocation20 + $0xe8] sm:$0xff]
    %v5356 = vld [vmem:[#allocation20 + $0xf0] sm:$0xff]
    %v5357 = vld [vmem:[#allocation20 + $0xf8] sm:$0xff]
    %v5358 = vld [vmem:[#allocation20 + $0x100] sm:$0xff]
    %v5359 = vld [vmem:[#allocation20 + $0x108] sm:$0xff]
    %v5360 = vld [vmem:[#allocation20 + $0x110] sm:$0xff]
    %v5361 = vld [vmem:[#allocation20 + $0x118] sm:$0xff]
    %v5362 = vld [vmem:[#allocation20 + $0x120] sm:$0xff]
    %v5363 = vld [vmem:[#allocation20 + $0x128] sm:$0xff]
    %v5364 = vld [vmem:[#allocation20 + $0x130] sm:$0xff]
    %v5365 = vld [vmem:[#allocation20 + $0x138] sm:$0xff]
    %v5366 = vld [vmem:[#allocation20 + $0x140] sm:$0xff]
    %v5367 = vld [vmem:[#allocation20 + $0x148] sm:$0xff]
    %v5368 = vld [vmem:[#allocation20 + $0x150] sm:$0xff]
    %v5369 = vld [vmem:[#allocation20 + $0x158] sm:$0xff]
    %v5370 = vld [vmem:[#allocation20 + $0x160] sm:$0xff]
    %v5371 = vld [vmem:[#allocation20 + $0x168] sm:$0xff]
    %v5372 = vld [vmem:[#allocation20 + $0x170] sm:$0xff]
    %v5373 = vld [vmem:[#allocation20 + $0x178] sm:$0xff]
    %v5374 = vld [vmem:[#allocation20 + $0x180] sm:$0xff]
    %v5375 = vld [vmem:[#allocation20 + $0x188] sm:$0xff]
    %v5376 = vld [vmem:[#allocation20 + $0x190] sm:$0xff]
    %v5377 = vld [vmem:[#allocation20 + $0x198] sm:$0xff]
    %v5378 = vld [vmem:[#allocation20 + $0x1a0] sm:$0xff]
    %v5379 = vld [vmem:[#allocation20 + $0x1a8] sm:$0xff]
    %v5380 = vld [vmem:[#allocation20 + $0x1b0] sm:$0xff]
    %v5381 = vld [vmem:[#allocation20 + $0x1b8] sm:$0xff]
    %v5382 = vld [vmem:[#allocation20 + $0x1c0] sm:$0xff]
    %v5383 = vld [vmem:[#allocation20 + $0x1c8] sm:$0xff]
    %v5384 = vld [vmem:[#allocation20 + $0x1d0] sm:$0xff]
    %v5385 = vld [vmem:[#allocation20 + $0x1d8] sm:$0xff]
    %v5386 = vld [vmem:[#allocation20 + $0x1e0] sm:$0xff]
    %v5387 = vld [vmem:[#allocation20 + $0x1e8] sm:$0xff]
    %v5388 = vld [vmem:[#allocation20 + $0x1f0] sm:$0xff]
    %v5389 = vld [vmem:[#allocation20 + $0x1f8] sm:$0xff]
    %v5390 = vld [vmem:[#allocation20 + $0x200] sm:$0xff]
    %v5391 = vld [vmem:[#allocation20 + $0x208] sm:$0xff]
    %v5392 = vld [vmem:[#allocation20 + $0x210] sm:$0xff]
    %v5393 = vld [vmem:[#allocation20 + $0x218] sm:$0xff]
    %v5394 = vld [vmem:[#allocation20 + $0x220] sm:$0xff]
    %v5395 = vld [vmem:[#allocation20 + $0x228] sm:$0xff]
    %v5396 = vld [vmem:[#allocation20 + $0x230] sm:$0xff]
    %v5397 = vld [vmem:[#allocation20 + $0x238] sm:$0xff]
    %v5398 = vld [vmem:[#allocation20 + $0x240] sm:$0xff]
    %v5399 = vld [vmem:[#allocation20 + $0x248] sm:$0xff]
    %v5400 = vld [vmem:[#allocation20 + $0x250] sm:$0xff]
    %v5401 = vld [vmem:[#allocation20 + $0x258] sm:$0xff]
    %v5402 = vld [vmem:[#allocation20 + $0x260] sm:$0xff]
    %v5403 = vld [vmem:[#allocation20 + $0x268] sm:$0xff]
    %v5404 = vld [vmem:[#allocation20 + $0x270] sm:$0xff]
    %v5405 = vld [vmem:[#allocation20 + $0x278] sm:$0xff]
    %v5406 = vld [vmem:[#allocation20 + $0x280] sm:$0xff]
    %v5407 = vld [vmem:[#allocation20 + $0x288] sm:$0xff]
    %v5408 = vld [vmem:[#allocation20 + $0x290] sm:$0xff]
    %v5409 = vld [vmem:[#allocation20 + $0x298] sm:$0xff]
    %v5410 = vld [vmem:[#allocation20 + $0x2a0] sm:$0xff]
    %v5411 = vld [vmem:[#allocation20 + $0x2a8] sm:$0xff]
    %v5412 = vld [vmem:[#allocation20 + $0x2b0] sm:$0xff]
    %v5413 = vld [vmem:[#allocation20 + $0x2b8] sm:$0xff]
    %v5414 = vld [vmem:[#allocation20 + $0x2c0] sm:$0xff]
    %v5415 = vld [vmem:[#allocation20 + $0x2c8] sm:$0xff]
    %v5416 = vld [vmem:[#allocation20 + $0x2d0] sm:$0xff]
    %v5417 = vld [vmem:[#allocation20 + $0x2d8] sm:$0xff]
    %v5418 = vld [vmem:[#allocation20 + $0x2e0] sm:$0xff]
    %v5419 = vld [vmem:[#allocation20 + $0x2e8] sm:$0xff]
    %v5420 = vld [vmem:[#allocation20 + $0x2f0] sm:$0xff]
    %v5421 = vld [vmem:[#allocation20 + $0x2f8] sm:$0xff]
    %v5422 = vld [vmem:[#allocation20 + $0x300] sm:$0xff]
    %v5423 = vld [vmem:[#allocation20 + $0x308] sm:$0xff]
    %v5424 = vld [vmem:[#allocation20 + $0x310] sm:$0xff]
    %v5425 = vld [vmem:[#allocation20 + $0x318] sm:$0xff]
    %v5426 = vld [vmem:[#allocation20 + $0x320] sm:$0xff]
    %v5427 = vld [vmem:[#allocation20 + $0x328] sm:$0xff]
    %v5428 = vld [vmem:[#allocation20 + $0x330] sm:$0xff]
    %v5429 = vld [vmem:[#allocation20 + $0x338] sm:$0xff]
    %v5430 = vld [vmem:[#allocation20 + $0x340] sm:$0xff]
    %v5431 = vld [vmem:[#allocation20 + $0x348] sm:$0xff]
    %v5432 = vld [vmem:[#allocation20 + $0x350] sm:$0xff]
    %v5433 = vld [vmem:[#allocation20 + $0x358] sm:$0xff]
    %v5434 = vld [vmem:[#allocation20 + $0x360] sm:$0xff]
    %v5435 = vld [vmem:[#allocation20 + $0x368] sm:$0xff]
    %v5436 = vld [vmem:[#allocation20 + $0x370] sm:$0xff]
    %v5437 = vld [vmem:[#allocation20 + $0x378] sm:$0xff]
    %v5438 = vld [vmem:[#allocation20 + $0x380] sm:$0xff]
    %v5439 = vld [vmem:[#allocation20 + $0x388] sm:$0xff]
    %v5440 = vld [vmem:[#allocation20 + $0x390] sm:$0xff]
    %v5441 = vld [vmem:[#allocation20 + $0x398] sm:$0xff]
    %v5442 = vld [vmem:[#allocation20 + $0x3a0] sm:$0xff]
    %v5443 = vld [vmem:[#allocation20 + $0x3a8] sm:$0xff]
    %v5444 = vld [vmem:[#allocation20 + $0x3b0] sm:$0xff]
    %v5445 = vld [vmem:[#allocation20 + $0x3b8] sm:$0xff]
    %v5446 = vld [vmem:[#allocation20 + $0x3c0] sm:$0xff]
    %v5447 = vld [vmem:[#allocation20 + $0x3c8] sm:$0xff]
    %v5448 = vld [vmem:[#allocation20 + $0x3d0] sm:$0xff]
    %v5449 = vld [vmem:[#allocation20 + $0x3d8] sm:$0xff]
    %v5450 = vld [vmem:[#allocation20 + $0x3e0] sm:$0xff]
    %v5451 = vld [vmem:[#allocation20 + $0x3e8] sm:$0xff]
    %v5452 = vld [vmem:[#allocation20 + $0x3f0] sm:$0xff]
    %v5453 = vld [vmem:[#allocation20 + $0x3f8] sm:$0xff]
    %v5454 = vld [vmem:[#allocation20 + $0x400] sm:$0xff]
    %v5455 = vld [vmem:[#allocation20 + $0x408] sm:$0xff]
    %v5456 = vld [vmem:[#allocation20 + $0x410] sm:$0xff]
    %v5457 = vld [vmem:[#allocation20 + $0x418] sm:$0xff]
    %v5458 = vld [vmem:[#allocation20 + $0x420] sm:$0xff]
    %v5459 = vld [vmem:[#allocation20 + $0x428] sm:$0xff]
    %v5460 = vld [vmem:[#allocation20 + $0x430] sm:$0xff]
    %v5461 = vld [vmem:[#allocation20 + $0x438] sm:$0xff]
    %v5462 = vld [vmem:[#allocation20 + $0x440] sm:$0xff]
    %v5463 = vld [vmem:[#allocation20 + $0x448] sm:$0xff]
    %v5464 = vld [vmem:[#allocation20 + $0x450] sm:$0xff]
    %v5465 = vld [vmem:[#allocation20 + $0x458] sm:$0xff]
    %v5466 = vld [vmem:[#allocation20 + $0x460] sm:$0xff]
    %v5467 = vld [vmem:[#allocation20 + $0x468] sm:$0xff]
    %v5468 = vld [vmem:[#allocation20 + $0x470] sm:$0xff]
    %v5469 = vld [vmem:[#allocation20 + $0x478] sm:$0xff]
    %v5470 = vld [vmem:[#allocation20 + $0x480] sm:$0xff]
    %v5471 = vld [vmem:[#allocation20 + $0x488] sm:$0xff]
    %v5472 = vld [vmem:[#allocation20 + $0x490] sm:$0xff]
    %v5473 = vld [vmem:[#allocation20 + $0x498] sm:$0xff]
    %v5474 = vld [vmem:[#allocation20 + $0x4a0] sm:$0xff]
    %v5475 = vld [vmem:[#allocation20 + $0x4a8] sm:$0xff]
    %v5476 = vld [vmem:[#allocation20 + $0x4b0] sm:$0xff]
    %v5477 = vld [vmem:[#allocation20 + $0x4b8] sm:$0xff]
    %v5478 = vld [vmem:[#allocation20 + $0x4c0] sm:$0xff]
    %v5479 = vld [vmem:[#allocation20 + $0x4c8] sm:$0xff]
    %v5480 = vld [vmem:[#allocation20 + $0x4d0] sm:$0xff]
    %v5481 = vld [vmem:[#allocation20 + $0x4d8] sm:$0xff]
    %v5482 = vld [vmem:[#allocation20 + $0x4e0] sm:$0xff]
    %v5483 = vld [vmem:[#allocation20 + $0x4e8] sm:$0xff]
    %v5484 = vld [vmem:[#allocation20 + $0x4f0] sm:$0xff]
    %v5485 = vld [vmem:[#allocation20 + $0x4f8] sm:$0xff]
    %v5486 = vld [vmem:[#allocation20 + $0x500] sm:$0xff]
    %v5487 = vld [vmem:[#allocation20 + $0x508] sm:$0xff]
    %v5488 = vld [vmem:[#allocation20 + $0x510] sm:$0xff]
    %v5489 = vld [vmem:[#allocation20 + $0x518] sm:$0xff]
    %v5490 = vld [vmem:[#allocation20 + $0x520] sm:$0xff]
    %v5491 = vld [vmem:[#allocation20 + $0x528] sm:$0xff]
    %v5492 = vld [vmem:[#allocation20 + $0x530] sm:$0xff]
    %v5493 = vld [vmem:[#allocation20 + $0x538] sm:$0xff]
    %v5494 = vld [vmem:[#allocation20 + $0x540] sm:$0xff]
    %v5495 = vld [vmem:[#allocation20 + $0x548] sm:$0xff]
    %v5496 = vld [vmem:[#allocation20 + $0x550] sm:$0xff]
    %v5497 = vld [vmem:[#allocation20 + $0x558] sm:$0xff]
    %v5498 = vld [vmem:[#allocation20 + $0x560] sm:$0xff]
    %v5499 = vld [vmem:[#allocation20 + $0x568] sm:$0xff]
    %v5500 = vld [vmem:[#allocation20 + $0x570] sm:$0xff]
    %v5501 = vld [vmem:[#allocation20 + $0x578] sm:$0xff]
    %v5502 = vld [vmem:[#allocation20 + $0x580] sm:$0xff]
    %v5503 = vld [vmem:[#allocation20 + $0x588] sm:$0xff]
    %v5504 = vld [vmem:[#allocation20 + $0x590] sm:$0xff]
    %v5505 = vld [vmem:[#allocation20 + $0x598] sm:$0xff]
    %v5506 = vld [vmem:[#allocation20 + $0x5a0] sm:$0xff]
    %v5507 = vld [vmem:[#allocation20 + $0x5a8] sm:$0xff]
    %v5508 = vld [vmem:[#allocation20 + $0x5b0] sm:$0xff]
    %v5509 = vld [vmem:[#allocation20 + $0x5b8] sm:$0xff]
    %v5510 = vld [vmem:[#allocation20 + $0x5c0] sm:$0xff]
    %v5511 = vld [vmem:[#allocation20 + $0x5c8] sm:$0xff]
    %v5512 = vld [vmem:[#allocation20 + $0x5d0] sm:$0xff]
    %v5513 = vld [vmem:[#allocation20 + $0x5d8] sm:$0xff]
    %v5514 = vld [vmem:[#allocation20 + $0x5e0] sm:$0xff]
    %v5515 = vld [vmem:[#allocation20 + $0x5e8] sm:$0xff]
    %v5516 = vld [vmem:[#allocation20 + $0x5f0] sm:$0xff]
    %v5517 = vld [vmem:[#allocation20 + $0x5f8] sm:$0xff]
    %v5518 = vld [vmem:[#allocation20 + $0x600] sm:$0xff]
    %v5519 = vld [vmem:[#allocation20 + $0x608] sm:$0xff]
    %v5520 = vld [vmem:[#allocation20 + $0x610] sm:$0xff]
    %v5521 = vld [vmem:[#allocation20 + $0x618] sm:$0xff]
    %v5522 = vld [vmem:[#allocation20 + $0x620] sm:$0xff]
    %v5523 = vld [vmem:[#allocation20 + $0x628] sm:$0xff]
    %v5524 = vld [vmem:[#allocation20 + $0x630] sm:$0xff]
    %v5525 = vld [vmem:[#allocation20 + $0x638] sm:$0xff]
    %v5526 = vld [vmem:[#allocation20 + $0x640] sm:$0xff]
    %v5527 = vld [vmem:[#allocation20 + $0x648] sm:$0xff]
    %v5528 = vld [vmem:[#allocation20 + $0x650] sm:$0xff]
    %v5529 = vld [vmem:[#allocation20 + $0x658] sm:$0xff]
    %v5530 = vld [vmem:[#allocation20 + $0x660] sm:$0xff]
    %v5531 = vld [vmem:[#allocation20 + $0x668] sm:$0xff]
    %v5532 = vld [vmem:[#allocation20 + $0x670] sm:$0xff]
    %v5533 = vld [vmem:[#allocation20 + $0x678] sm:$0xff]
    %v5534 = vld [vmem:[#allocation20 + $0x680] sm:$0xff]
    %v5535 = vld [vmem:[#allocation20 + $0x688] sm:$0xff]
    %v5536 = vld [vmem:[#allocation20 + $0x690] sm:$0xff]
    %v5537 = vld [vmem:[#allocation20 + $0x698] sm:$0xff]
    %v5538 = vld [vmem:[#allocation20 + $0x6a0] sm:$0xff]
    %v5539 = vld [vmem:[#allocation20 + $0x6a8] sm:$0xff]
    %v5540 = vld [vmem:[#allocation20 + $0x6b0] sm:$0xff]
    %v5541 = vld [vmem:[#allocation20 + $0x6b8] sm:$0xff]
    %v5542 = vld [vmem:[#allocation20 + $0x6c0] sm:$0xff]
    %v5543 = vld [vmem:[#allocation20 + $0x6c8] sm:$0xff]
    %v5544 = vld [vmem:[#allocation20 + $0x6d0] sm:$0xff]
    %v5545 = vld [vmem:[#allocation20 + $0x6d8] sm:$0xff]
    %v5546 = vld [vmem:[#allocation20 + $0x6e0] sm:$0xff]
    %v5547 = vld [vmem:[#allocation20 + $0x6e8] sm:$0xff]
    %v5548 = vld [vmem:[#allocation20 + $0x6f0] sm:$0xff]
    %v5549 = vld [vmem:[#allocation20 + $0x6f8] sm:$0xff]
    %v5550 = vld [vmem:[#allocation20 + $0x700] sm:$0xff]
    %v5551 = vld [vmem:[#allocation20 + $0x708] sm:$0xff]
    %v5552 = vld [vmem:[#allocation20 + $0x710] sm:$0xff]
    %v5553 = vld [vmem:[#allocation20 + $0x718] sm:$0xff]
    %v5554 = vld [vmem:[#allocation20 + $0x720] sm:$0xff]
    %v5555 = vld [vmem:[#allocation20 + $0x728] sm:$0xff]
    %v5556 = vld [vmem:[#allocation20 + $0x730] sm:$0xff]
    %v5557 = vld [vmem:[#allocation20 + $0x738] sm:$0xff]
    %v5558 = vld [vmem:[#allocation20 + $0x740] sm:$0xff]
    %v5559 = vld [vmem:[#allocation20 + $0x748] sm:$0xff]
    %v5560 = vld [vmem:[#allocation20 + $0x750] sm:$0xff]
    %v5561 = vld [vmem:[#allocation20 + $0x758] sm:$0xff]
    %v5562 = vld [vmem:[#allocation20 + $0x760] sm:$0xff]
    %v5563 = vld [vmem:[#allocation20 + $0x768] sm:$0xff]
    %v5564 = vld [vmem:[#allocation20 + $0x770] sm:$0xff]
    %v5565 = vld [vmem:[#allocation20 + $0x778] sm:$0xff]
    %v5566 = vld [vmem:[#allocation20 + $0x780] sm:$0xff]
    %v5567 = vld [vmem:[#allocation20 + $0x788] sm:$0xff]
    %v5568 = vld [vmem:[#allocation20 + $0x790] sm:$0xff]
    %v5569 = vld [vmem:[#allocation20 + $0x798] sm:$0xff]
    %v5570 = vld [vmem:[#allocation20 + $0x7a0] sm:$0xff]
    %v5571 = vld [vmem:[#allocation20 + $0x7a8] sm:$0xff]
    %v5572 = vld [vmem:[#allocation20 + $0x7b0] sm:$0xff]
    %v5573 = vld [vmem:[#allocation20 + $0x7b8] sm:$0xff]
    %v5574 = vld [vmem:[#allocation20 + $0x7c0] sm:$0xff]
    %v5575 = vld [vmem:[#allocation20 + $0x7c8] sm:$0xff]
    %v5576 = vld [vmem:[#allocation20 + $0x7d0] sm:$0xff]
    %v5577 = vld [vmem:[#allocation20 + $0x7d8] sm:$0xff]
    %v5578 = vld [vmem:[#allocation20 + $0x7e0] sm:$0xff]
    %v5579 = vld [vmem:[#allocation20 + $0x7e8] sm:$0xff]
    %v5580 = vld [vmem:[#allocation20 + $0x7f0] sm:$0xff]
    %v5581 = vld [vmem:[#allocation20 + $0x7f8] sm:$0xff]
    %v5582 = vld [vmem:[#allocation20 + $0x800] sm:$0xff]
    %v5583 = vld [vmem:[#allocation20 + $0x808] sm:$0xff]
    %v5584 = vld [vmem:[#allocation20 + $0x810] sm:$0xff]
    %v5585 = vld [vmem:[#allocation20 + $0x818] sm:$0xff]
    %v5586 = vld [vmem:[#allocation20 + $0x820] sm:$0xff]
    %v5587 = vld [vmem:[#allocation20 + $0x828] sm:$0xff]
    %v5588 = vld [vmem:[#allocation20 + $0x830] sm:$0xff]
    %v5589 = vld [vmem:[#allocation20 + $0x838] sm:$0xff]
    %v5590 = vld [vmem:[#allocation20 + $0x840] sm:$0xff]
    %v5591 = vld [vmem:[#allocation20 + $0x848] sm:$0xff]
    %v5592 = vld [vmem:[#allocation20 + $0x850] sm:$0xff]
    %v5593 = vld [vmem:[#allocation20 + $0x858] sm:$0xff]
    %v5594 = vld [vmem:[#allocation20 + $0x860] sm:$0xff]
    %v5595 = vld [vmem:[#allocation20 + $0x868] sm:$0xff]
    %v5596 = vld [vmem:[#allocation20 + $0x870] sm:$0xff]
    %v5597 = vld [vmem:[#allocation20 + $0x878] sm:$0xff]
    %v5598 = vld [vmem:[#allocation20 + $0x880] sm:$0xff]
    %v5599 = vld [vmem:[#allocation20 + $0x888] sm:$0xff]
    %v5600 = vld [vmem:[#allocation20 + $0x890] sm:$0xff]
    %v5601 = vld [vmem:[#allocation20 + $0x898] sm:$0xff]
    %v5602 = vld [vmem:[#allocation20 + $0x8a0] sm:$0xff]
    %v5603 = vld [vmem:[#allocation20 + $0x8a8] sm:$0xff]
    %v5604 = vld [vmem:[#allocation20 + $0x8b0] sm:$0xff]
    %v5605 = vld [vmem:[#allocation20 + $0x8b8] sm:$0xff]
    %v5606 = vld [vmem:[#allocation20 + $0x8c0] sm:$0xff]
    %v5607 = vld [vmem:[#allocation20 + $0x8c8] sm:$0xff]
    %v5608 = vld [vmem:[#allocation20 + $0x8d0] sm:$0xff]
    %v5609 = vld [vmem:[#allocation20 + $0x8d8] sm:$0xff]
    %v5610 = vld [vmem:[#allocation20 + $0x8e0] sm:$0xff]
    %v5611 = vld [vmem:[#allocation20 + $0x8e8] sm:$0xff]
    %v5612 = vld [vmem:[#allocation20 + $0x8f0] sm:$0xff]
    %v5613 = vld [vmem:[#allocation20 + $0x8f8] sm:$0xff]
    %v5614 = vld [vmem:[#allocation20 + $0x900] sm:$0xff]
    %v5615 = vld [vmem:[#allocation20 + $0x908] sm:$0xff]
    %v5616 = vld [vmem:[#allocation20 + $0x910] sm:$0xff]
    %v5617 = vld [vmem:[#allocation20 + $0x918] sm:$0xff]
    %v5618 = vld [vmem:[#allocation20 + $0x920] sm:$0xff]
    %v5619 = vld [vmem:[#allocation20 + $0x928] sm:$0xff]
    %v5620 = vld [vmem:[#allocation20 + $0x930] sm:$0xff]
    %v5621 = vld [vmem:[#allocation20 + $0x938] sm:$0xff]
    %v5622 = vld [vmem:[#allocation20 + $0x940] sm:$0xff]
    %v5623 = vld [vmem:[#allocation20 + $0x948] sm:$0xff]
    %v5624 = vld [vmem:[#allocation20 + $0x950] sm:$0xff]
    %v5625 = vld [vmem:[#allocation20 + $0x958] sm:$0xff]
    %v5626 = vld [vmem:[#allocation20 + $0x960] sm:$0xff]
    %v5627 = vld [vmem:[#allocation20 + $0x968] sm:$0xff]
    %v5628 = vld [vmem:[#allocation20 + $0x970] sm:$0xff]
    %v5629 = vld [vmem:[#allocation20 + $0x978] sm:$0xff]
    %v5630 = vld [vmem:[#allocation20 + $0x980] sm:$0xff]
    %v5631 = vld [vmem:[#allocation20 + $0x988] sm:$0xff]
    %v5632 = vld [vmem:[#allocation20 + $0x990] sm:$0xff]
    %v5633 = vld [vmem:[#allocation20 + $0x998] sm:$0xff]
    %v5634 = vld [vmem:[#allocation20 + $0x9a0] sm:$0xff]
    %v5635 = vld [vmem:[#allocation20 + $0x9a8] sm:$0xff]
    %v5636 = vld [vmem:[#allocation20 + $0x9b0] sm:$0xff]
    %v5637 = vld [vmem:[#allocation20 + $0x9b8] sm:$0xff]
    %v5638 = vld [vmem:[#allocation20 + $0x9c0] sm:$0xff]
    %v5639 = vld [vmem:[#allocation20 + $0x9c8] sm:$0xff]
    %v5640 = vld [vmem:[#allocation20 + $0x9d0] sm:$0xff]
    %v5641 = vld [vmem:[#allocation20 + $0x9d8] sm:$0xff]
    %v5642 = vld [vmem:[#allocation20 + $0x9e0] sm:$0xff]
    %v5643 = vld [vmem:[#allocation20 + $0x9e8] sm:$0xff]
    %v5644 = vld [vmem:[#allocation20 + $0x9f0] sm:$0xff]
    %v5645 = vld [vmem:[#allocation20 + $0x9f8] sm:$0xff]
    %v5646 = vld [vmem:[#allocation20 + $0xa00] sm:$0xff]
    %v5647 = vld [vmem:[#allocation20 + $0xa08] sm:$0xff]
    %v5648 = vld [vmem:[#allocation20 + $0xa10] sm:$0xff]
    %v5649 = vld [vmem:[#allocation20 + $0xa18] sm:$0xff]
    %v5650 = vld [vmem:[#allocation20 + $0xa20] sm:$0xff]
    %v5651 = vld [vmem:[#allocation20 + $0xa28] sm:$0xff]
    %v5652 = vld [vmem:[#allocation20 + $0xa30] sm:$0xff]
    %v5653 = vld [vmem:[#allocation20 + $0xa38] sm:$0xff]
    %v5654 = vld [vmem:[#allocation20 + $0xa40] sm:$0xff]
    %v5655 = vld [vmem:[#allocation20 + $0xa48] sm:$0xff]
    %v5656 = vld [vmem:[#allocation20 + $0xa50] sm:$0xff]
    %v5657 = vld [vmem:[#allocation20 + $0xa58] sm:$0xff]
    %v5658 = vld [vmem:[#allocation20 + $0xa60] sm:$0xff]
    %v5659 = vld [vmem:[#allocation20 + $0xa68] sm:$0xff]
    %v5660 = vld [vmem:[#allocation20 + $0xa70] sm:$0xff]
    %v5661 = vld [vmem:[#allocation20 + $0xa78] sm:$0xff]
    %v5662 = vld [vmem:[#allocation20 + $0xa80] sm:$0xff]
    %v5663 = vld [vmem:[#allocation20 + $0xa88] sm:$0xff]
    %v5664 = vld [vmem:[#allocation20 + $0xa90] sm:$0xff]
    %v5665 = vld [vmem:[#allocation20 + $0xa98] sm:$0xff]
    %v5666 = vld [vmem:[#allocation20 + $0xaa0] sm:$0xff]
    %v5667 = vld [vmem:[#allocation20 + $0xaa8] sm:$0xff]
    %v5668 = vld [vmem:[#allocation20 + $0xab0] sm:$0xff]
    %v5669 = vld [vmem:[#allocation20 + $0xab8] sm:$0xff]
    %v5670 = vld [vmem:[#allocation20 + $0xac0] sm:$0xff]
    %v5671 = vld [vmem:[#allocation20 + $0xac8] sm:$0xff]
    %v5672 = vld [vmem:[#allocation20 + $0xad0] sm:$0xff]
    %v5673 = vld [vmem:[#allocation20 + $0xad8] sm:$0xff]
    %v5674 = vld [vmem:[#allocation20 + $0xae0] sm:$0xff]
    %v5675 = vld [vmem:[#allocation20 + $0xae8] sm:$0xff]
    %v5676 = vld [vmem:[#allocation20 + $0xaf0] sm:$0xff]
    %v5677 = vld [vmem:[#allocation20 + $0xaf8] sm:$0xff]
    %v5678 = vld [vmem:[#allocation20 + $0xb00] sm:$0xff]
    %v5679 = vld [vmem:[#allocation20 + $0xb08] sm:$0xff]
    %v5680 = vld [vmem:[#allocation20 + $0xb10] sm:$0xff]
    %v5681 = vld [vmem:[#allocation20 + $0xb18] sm:$0xff]
    %v5682 = vld [vmem:[#allocation20 + $0xb20] sm:$0xff]
    %v5683 = vld [vmem:[#allocation20 + $0xb28] sm:$0xff]
    %v5684 = vld [vmem:[#allocation20 + $0xb30] sm:$0xff]
    %v5685 = vld [vmem:[#allocation20 + $0xb38] sm:$0xff]
    %v5686 = vld [vmem:[#allocation20 + $0xb40] sm:$0xff]
    %v5687 = vld [vmem:[#allocation20 + $0xb48] sm:$0xff]
    %v5688 = vld [vmem:[#allocation20 + $0xb50] sm:$0xff]
    %v5689 = vld [vmem:[#allocation20 + $0xb58] sm:$0xff]
    %v5690 = vld [vmem:[#allocation20 + $0xb60] sm:$0xff]
    %v5691 = vld [vmem:[#allocation20 + $0xb68] sm:$0xff]
    %v5692 = vld [vmem:[#allocation20 + $0xb70] sm:$0xff]
    %v5693 = vld [vmem:[#allocation20 + $0xb78] sm:$0xff]
    %v5694 = vld [vmem:[#allocation20 + $0xb80] sm:$0xff]
    %v5695 = vld [vmem:[#allocation20 + $0xb88] sm:$0xff]
    %v5696 = vld [vmem:[#allocation20 + $0xb90] sm:$0xff]
    %v5697 = vld [vmem:[#allocation20 + $0xb98] sm:$0xff]
    %v5698 = vld [vmem:[#allocation20 + $0xba0] sm:$0xff]
    %v5699 = vld [vmem:[#allocation20 + $0xba8] sm:$0xff]
    %v5700 = vld [vmem:[#allocation20 + $0xbb0] sm:$0xff]
    %v5701 = vld [vmem:[#allocation20 + $0xbb8] sm:$0xff]
    %v5702 = vld [vmem:[#allocation20 + $0xbc0] sm:$0xff]
    %v5703 = vld [vmem:[#allocation20 + $0xbc8] sm:$0xff]
    %v5704 = vld [vmem:[#allocation20 + $0xbd0] sm:$0xff]
    %v5705 = vld [vmem:[#allocation20 + $0xbd8] sm:$0xff]
    %v5706 = vld [vmem:[#allocation20 + $0xbe0] sm:$0xff]
    %v5707 = vld [vmem:[#allocation20 + $0xbe8] sm:$0xff]
    %v5708 = vld [vmem:[#allocation20 + $0xbf0] sm:$0xff]
    %v5709 = vld [vmem:[#allocation20 + $0xbf8] sm:$0xff]
    %v5710 = vld [vmem:[#allocation20 + $0xc00] sm:$0xff]
    %v5711 = vld [vmem:[#allocation20 + $0xc08] sm:$0xff]
    %v5712 = vld [vmem:[#allocation20 + $0xc10] sm:$0xff]
    %v5713 = vld [vmem:[#allocation20 + $0xc18] sm:$0xff]
    %v5714 = vld [vmem:[#allocation20 + $0xc20] sm:$0xff]
    %v5715 = vld [vmem:[#allocation20 + $0xc28] sm:$0xff]
    %v5716 = vld [vmem:[#allocation20 + $0xc30] sm:$0xff]
    %v5717 = vld [vmem:[#allocation20 + $0xc38] sm:$0xff]
    %v5718 = vld [vmem:[#allocation20 + $0xc40] sm:$0xff]
    %v5719 = vld [vmem:[#allocation20 + $0xc48] sm:$0xff]
    %v5720 = vld [vmem:[#allocation20 + $0xc50] sm:$0xff]
    %v5721 = vld [vmem:[#allocation20 + $0xc58] sm:$0xff]
    %v5722 = vld [vmem:[#allocation20 + $0xc60] sm:$0xff]
    %v5723 = vld [vmem:[#allocation20 + $0xc68] sm:$0xff]
    %v5724 = vld [vmem:[#allocation20 + $0xc70] sm:$0xff]
    %v5725 = vld [vmem:[#allocation20 + $0xc78] sm:$0xff]
    %v5726 = vld [vmem:[#allocation20 + $0xc80] sm:$0xff]
    %v5727 = vld [vmem:[#allocation20 + $0xc88] sm:$0xff]
    %v5728 = vld [vmem:[#allocation20 + $0xc90] sm:$0xff]
    %v5729 = vld [vmem:[#allocation20 + $0xc98] sm:$0xff]
    %v5730 = vld [vmem:[#allocation20 + $0xca0] sm:$0xff]
    %v5731 = vld [vmem:[#allocation20 + $0xca8] sm:$0xff]
    %v5732 = vld [vmem:[#allocation20 + $0xcb0] sm:$0xff]
    %v5733 = vld [vmem:[#allocation20 + $0xcb8] sm:$0xff]
    %v5734 = vld [vmem:[#allocation20 + $0xcc0] sm:$0xff]
    %v5735 = vld [vmem:[#allocation20 + $0xcc8] sm:$0xff]
    %v5736 = vld [vmem:[#allocation20 + $0xcd0] sm:$0xff]
    %v5737 = vld [vmem:[#allocation20 + $0xcd8] sm:$0xff]
    %v5738 = vld [vmem:[#allocation20 + $0xce0] sm:$0xff]
    %v5739 = vld [vmem:[#allocation20 + $0xce8] sm:$0xff]
    %v5740 = vld [vmem:[#allocation20 + $0xcf0] sm:$0xff]
    %v5741 = vld [vmem:[#allocation20 + $0xcf8] sm:$0xff]
    %v5742 = vld [vmem:[#allocation20 + $0xd00] sm:$0xff]
    %v5743 = vld [vmem:[#allocation20 + $0xd08] sm:$0xff]
    %v5744 = vld [vmem:[#allocation20 + $0xd10] sm:$0xff]
    %v5745 = vld [vmem:[#allocation20 + $0xd18] sm:$0xff]
    %v5746 = vld [vmem:[#allocation20 + $0xd20] sm:$0xff]
    %v5747 = vld [vmem:[#allocation20 + $0xd28] sm:$0xff]
    %v5748 = vld [vmem:[#allocation20 + $0xd30] sm:$0xff]
    %v5749 = vld [vmem:[#allocation20 + $0xd38] sm:$0xff]
    %v5750 = vld [vmem:[#allocation20 + $0xd40] sm:$0xff]
    %v5751 = vld [vmem:[#allocation20 + $0xd48] sm:$0xff]
    %v5752 = vld [vmem:[#allocation20 + $0xd50] sm:$0xff]
    %v5753 = vld [vmem:[#allocation20 + $0xd58] sm:$0xff]
    %v5754 = vld [vmem:[#allocation20 + $0xd60] sm:$0xff]
    %v5755 = vld [vmem:[#allocation20 + $0xd68] sm:$0xff]
    %v5756 = vld [vmem:[#allocation20 + $0xd70] sm:$0xff]
    %v5757 = vld [vmem:[#allocation20 + $0xd78] sm:$0xff]
    %v5758 = vld [vmem:[#allocation20 + $0xd80] sm:$0xff]
    %v5759 = vld [vmem:[#allocation20 + $0xd88] sm:$0xff]
    %v5760 = vld [vmem:[#allocation20 + $0xd90] sm:$0xff]
    %v5761 = vld [vmem:[#allocation20 + $0xd98] sm:$0xff]
    %v5762 = vld [vmem:[#allocation20 + $0xda0] sm:$0xff]
    %v5763 = vld [vmem:[#allocation20 + $0xda8] sm:$0xff]
    %v5764 = vld [vmem:[#allocation20 + $0xdb0] sm:$0xff]
    %v5765 = vld [vmem:[#allocation20 + $0xdb8] sm:$0xff]
    %v5766 = vld [vmem:[#allocation20 + $0xdc0] sm:$0xff]
    %v5767 = vld [vmem:[#allocation20 + $0xdc8] sm:$0xff]
    %v5768 = vld [vmem:[#allocation20 + $0xdd0] sm:$0xff]
    %v5769 = vld [vmem:[#allocation20 + $0xdd8] sm:$0xff]
    %v5770 = vld [vmem:[#allocation20 + $0xde0] sm:$0xff]
    %v5771 = vld [vmem:[#allocation20 + $0xde8] sm:$0xff]
    %v5772 = vld [vmem:[#allocation20 + $0xdf0] sm:$0xff]
    %v5773 = vld [vmem:[#allocation20 + $0xdf8] sm:$0xff]
    %v5774 = vld [vmem:[#allocation20 + $0xe00] sm:$0xff]
    %v5775 = vld [vmem:[#allocation20 + $0xe08] sm:$0xff]
    %v5776 = vld [vmem:[#allocation20 + $0xe10] sm:$0xff]
    %v5777 = vld [vmem:[#allocation20 + $0xe18] sm:$0xff]
    %v5778 = vld [vmem:[#allocation20 + $0xe20] sm:$0xff]
    %v5779 = vld [vmem:[#allocation20 + $0xe28] sm:$0xff]
    %v5780 = vld [vmem:[#allocation20 + $0xe30] sm:$0xff]
    %v5781 = vld [vmem:[#allocation20 + $0xe38] sm:$0xff]
    %v5782 = vld [vmem:[#allocation20 + $0xe40] sm:$0xff]
    %v5783 = vld [vmem:[#allocation20 + $0xe48] sm:$0xff]
    %v5784 = vld [vmem:[#allocation20 + $0xe50] sm:$0xff]
    %v5785 = vld [vmem:[#allocation20 + $0xe58] sm:$0xff]
    %v5786 = vld [vmem:[#allocation20 + $0xe60] sm:$0xff]
    %v5787 = vld [vmem:[#allocation20 + $0xe68] sm:$0xff]
    %v5788 = vld [vmem:[#allocation20 + $0xe70] sm:$0xff]
    %v5789 = vld [vmem:[#allocation20 + $0xe78] sm:$0xff]
    %v5790 = vld [vmem:[#allocation20 + $0xe80] sm:$0xff]
    %v5791 = vld [vmem:[#allocation20 + $0xe88] sm:$0xff]
    %v5792 = vld [vmem:[#allocation20 + $0xe90] sm:$0xff]
    %v5793 = vld [vmem:[#allocation20 + $0xe98] sm:$0xff]
    %v5794 = vld [vmem:[#allocation20 + $0xea0] sm:$0xff]
    %v5795 = vld [vmem:[#allocation20 + $0xea8] sm:$0xff]
    %v5796 = vld [vmem:[#allocation20 + $0xeb0] sm:$0xff]
    %v5797 = vld [vmem:[#allocation20 + $0xeb8] sm:$0xff]
    %v5798 = vld [vmem:[#allocation20 + $0xec0] sm:$0xff]
    %v5799 = vld [vmem:[#allocation20 + $0xec8] sm:$0xff]
    %v5800 = vld [vmem:[#allocation20 + $0xed0] sm:$0xff]
    %v5801 = vld [vmem:[#allocation20 + $0xed8] sm:$0xff]
    %v5802 = vld [vmem:[#allocation20 + $0xee0] sm:$0xff]
    %v5803 = vld [vmem:[#allocation20 + $0xee8] sm:$0xff]
    %v5804 = vld [vmem:[#allocation20 + $0xef0] sm:$0xff]
    %v5805 = vld [vmem:[#allocation20 + $0xef8] sm:$0xff]
    %v5806 = vld [vmem:[#allocation20 + $0xf00] sm:$0xff]
    %v5807 = vld [vmem:[#allocation20 + $0xf08] sm:$0xff]
    %v5808 = vld [vmem:[#allocation20 + $0xf10] sm:$0xff]
    %v5809 = vld [vmem:[#allocation20 + $0xf18] sm:$0xff]
    %v5810 = vld [vmem:[#allocation20 + $0xf20] sm:$0xff]
    %v5811 = vld [vmem:[#allocation20 + $0xf28] sm:$0xff]
    %v5812 = vld [vmem:[#allocation20 + $0xf30] sm:$0xff]
    %v5813 = vld [vmem:[#allocation20 + $0xf38] sm:$0xff]
    %v5814 = vld [vmem:[#allocation20 + $0xf40] sm:$0xff]
    %v5815 = vld [vmem:[#allocation20 + $0xf48] sm:$0xff]
    %v5816 = vld [vmem:[#allocation20 + $0xf50] sm:$0xff]
    %v5817 = vld [vmem:[#allocation20 + $0xf58] sm:$0xff]
    %v5818 = vld [vmem:[#allocation20 + $0xf60] sm:$0xff]
    %v5819 = vld [vmem:[#allocation20 + $0xf68] sm:$0xff]
    %v5820 = vld [vmem:[#allocation20 + $0xf70] sm:$0xff]
    %v5821 = vld [vmem:[#allocation20 + $0xf78] sm:$0xff]
    %v5822 = vld [vmem:[#allocation20 + $0xf80] sm:$0xff]
    %v5823 = vld [vmem:[#allocation20 + $0xf88] sm:$0xff]
    %v5824 = vld [vmem:[#allocation20 + $0xf90] sm:$0xff]
    %v5825 = vld [vmem:[#allocation20 + $0xf98] sm:$0xff]
    %v5826 = vld [vmem:[#allocation20 + $0xfa0] sm:$0xff]
    %v5827 = vld [vmem:[#allocation20 + $0xfa8] sm:$0xff]
    %v5828 = vld [vmem:[#allocation20 + $0xfb0] sm:$0xff]
    %v5829 = vld [vmem:[#allocation20 + $0xfb8] sm:$0xff]
    %v5830 = vld [vmem:[#allocation20 + $0xfc0] sm:$0xff]
    %v5831 = vld [vmem:[#allocation20 + $0xfc8] sm:$0xff]
    %v5832 = vld [vmem:[#allocation20 + $0xfd0] sm:$0xff]
    %v5833 = vld [vmem:[#allocation20 + $0xfd8] sm:$0xff]
    %v5834 = vld [vmem:[#allocation20 + $0xfe0] sm:$0xff]
    %v5835 = vld [vmem:[#allocation20 + $0xfe8] sm:$0xff]
    %v5836 = vld [vmem:[#allocation20 + $0xff0] sm:$0xff]
    %v5837 = vld [vmem:[#allocation20 + $0xff8] sm:$0xff]
    %v5838 = vld [vmem:[#allocation20 + $0x1000] sm:$0xff]
    %v5839 = vld [vmem:[#allocation20 + $0x1008] sm:$0xff]
    %v5840 = vld [vmem:[#allocation20 + $0x1010] sm:$0xff]
    %v5841 = vld [vmem:[#allocation20 + $0x1018] sm:$0xff]
    %v5842 = vld [vmem:[#allocation20 + $0x1020] sm:$0xff]
    %v5843 = vld [vmem:[#allocation20 + $0x1028] sm:$0xff]
    %v5844 = vld [vmem:[#allocation20 + $0x1030] sm:$0xff]
    %v5845 = vld [vmem:[#allocation20 + $0x1038] sm:$0xff]
    %v5846 = vld [vmem:[#allocation20 + $0x1040] sm:$0xff]
    %v5847 = vld [vmem:[#allocation20 + $0x1048] sm:$0xff]
    %v5848 = vld [vmem:[#allocation20 + $0x1050] sm:$0xff]
    %v5849 = vld [vmem:[#allocation20 + $0x1058] sm:$0xff]
    %v5850 = vld [vmem:[#allocation20 + $0x1060] sm:$0xff]
    %v5851 = vld [vmem:[#allocation20 + $0x1068] sm:$0xff]
    %v5852 = vld [vmem:[#allocation20 + $0x1070] sm:$0xff]
    %v5853 = vld [vmem:[#allocation20 + $0x1078] sm:$0xff]
    %v5854 = vld [vmem:[#allocation20 + $0x1080] sm:$0xff]
    %v5855 = vld [vmem:[#allocation20 + $0x1088] sm:$0xff]
    %v5856 = vld [vmem:[#allocation20 + $0x1090] sm:$0xff]
    %v5857 = vld [vmem:[#allocation20 + $0x1098] sm:$0xff]
    %v5858 = vld [vmem:[#allocation20 + $0x10a0] sm:$0xff]
    %v5859 = vld [vmem:[#allocation20 + $0x10a8] sm:$0xff]
    %v5860 = vld [vmem:[#allocation20 + $0x10b0] sm:$0xff]
    %v5861 = vld [vmem:[#allocation20 + $0x10b8] sm:$0xff]
    %v5862 = vld [vmem:[#allocation20 + $0x10c0] sm:$0xff]
    %v5863 = vld [vmem:[#allocation20 + $0x10c8] sm:$0xff]
    %v5864 = vld [vmem:[#allocation20 + $0x10d0] sm:$0xff]
    %v5865 = vld [vmem:[#allocation20 + $0x10d8] sm:$0xff]
    %v5866 = vld [vmem:[#allocation20 + $0x10e0] sm:$0xff]
    %v5867 = vld [vmem:[#allocation20 + $0x10e8] sm:$0xff]
    %v5868 = vld [vmem:[#allocation20 + $0x10f0] sm:$0xff]
    %v5869 = vld [vmem:[#allocation20 + $0x10f8] sm:$0xff]
    %v5870 = vld [vmem:[#allocation20 + $0x1100] sm:$0xff]
    %v5871 = vld [vmem:[#allocation20 + $0x1108] sm:$0xff]
    %v5872 = vld [vmem:[#allocation20 + $0x1110] sm:$0xff]
    %v5873 = vld [vmem:[#allocation20 + $0x1118] sm:$0xff]
    %v5874 = vld [vmem:[#allocation20 + $0x1120] sm:$0xff]
    %v5875 = vld [vmem:[#allocation20 + $0x1128] sm:$0xff]
    %v5876 = vld [vmem:[#allocation20 + $0x1130] sm:$0xff]
    %v5877 = vld [vmem:[#allocation20 + $0x1138] sm:$0xff]
    %v5878 = vld [vmem:[#allocation20 + $0x1140] sm:$0xff]
    %v5879 = vld [vmem:[#allocation20 + $0x1148] sm:$0xff]
    %v5880 = vld [vmem:[#allocation20 + $0x1150] sm:$0xff]
    %v5881 = vld [vmem:[#allocation20 + $0x1158] sm:$0xff]
    %v5882 = vld [vmem:[#allocation20 + $0x1160] sm:$0xff]
    %v5883 = vld [vmem:[#allocation20 + $0x1168] sm:$0xff]
    %v5884 = vld [vmem:[#allocation20 + $0x1170] sm:$0xff]
    %v5885 = vld [vmem:[#allocation20 + $0x1178] sm:$0xff]
    %v5886 = vld [vmem:[#allocation20 + $0x1180] sm:$0xff]
    %v5887 = vld [vmem:[#allocation20 + $0x1188] sm:$0xff]
    %v5888 = vld [vmem:[#allocation20 + $0x1190] sm:$0xff]
    %v5889 = vld [vmem:[#allocation20 + $0x1198] sm:$0xff]
    %v5890 = vld [vmem:[#allocation20 + $0x11a0] sm:$0xff]
    %v5891 = vld [vmem:[#allocation20 + $0x11a8] sm:$0xff]
    %v5892 = vld [vmem:[#allocation20 + $0x11b0] sm:$0xff]
    %v5893 = vld [vmem:[#allocation20 + $0x11b8] sm:$0xff]
    %v5894 = vld [vmem:[#allocation20 + $0x11c0] sm:$0xff]
    %v5895 = vld [vmem:[#allocation20 + $0x11c8] sm:$0xff]
    %v5896 = vld [vmem:[#allocation20 + $0x11d0] sm:$0xff]
    %v5897 = vld [vmem:[#allocation20 + $0x11d8] sm:$0xff]
    %v5898 = vld [vmem:[#allocation20 + $0x11e0] sm:$0xff]
    %v5899 = vld [vmem:[#allocation20 + $0x11e8] sm:$0xff]
    %v5900 = vld [vmem:[#allocation20 + $0x11f0] sm:$0xff]
    %v5901 = vld [vmem:[#allocation20 + $0x11f8] sm:$0xff]
    %v5902 = vld [vmem:[#allocation20 + $0x1200] sm:$0xff]
    %v5903 = vld [vmem:[#allocation20 + $0x1208] sm:$0xff]
    %v5904 = vld [vmem:[#allocation20 + $0x1210] sm:$0xff]
    %v5905 = vld [vmem:[#allocation20 + $0x1218] sm:$0xff]
    %v5906 = vld [vmem:[#allocation20 + $0x1220] sm:$0xff]
    %v5907 = vld [vmem:[#allocation20 + $0x1228] sm:$0xff]
    %v5908 = vld [vmem:[#allocation20 + $0x1230] sm:$0xff]
    %v5909 = vld [vmem:[#allocation20 + $0x1238] sm:$0xff]
    %v5910 = vld [vmem:[#allocation20 + $0x1240] sm:$0xff]
    %v5911 = vld [vmem:[#allocation20 + $0x1248] sm:$0xff]
    %v5912 = vld [vmem:[#allocation20 + $0x1250] sm:$0xff]
    %v5913 = vld [vmem:[#allocation20 + $0x1258] sm:$0xff]
    %v5914 = vld [vmem:[#allocation20 + $0x1260] sm:$0xff]
    %v5915 = vld [vmem:[#allocation20 + $0x1268] sm:$0xff]
    %v5916 = vld [vmem:[#allocation20 + $0x1270] sm:$0xff]
    %v5917 = vld [vmem:[#allocation20 + $0x1278] sm:$0xff]
    %v5918 = vld [vmem:[#allocation20 + $0x1280] sm:$0xff]
    %v5919 = vld [vmem:[#allocation20 + $0x1288] sm:$0xff]
    %v5920 = vld [vmem:[#allocation20 + $0x1290] sm:$0xff]
    %v5921 = vld [vmem:[#allocation20 + $0x1298] sm:$0xff]
    %v5922 = vld [vmem:[#allocation20 + $0x12a0] sm:$0xff]
    %v5923 = vld [vmem:[#allocation20 + $0x12a8] sm:$0xff]
    %v5924 = vld [vmem:[#allocation20 + $0x12b0] sm:$0xff]
    %v5925 = vld [vmem:[#allocation20 + $0x12b8] sm:$0xff]
    %v5926 = vld [vmem:[#allocation20 + $0x12c0] sm:$0xff]
    %v5927 = vld [vmem:[#allocation20 + $0x12c8] sm:$0xff]
    %v5928 = vld [vmem:[#allocation20 + $0x12d0] sm:$0xff]
    %v5929 = vld [vmem:[#allocation20 + $0x12d8] sm:$0xff]
    %v5930 = vld [vmem:[#allocation20 + $0x12e0] sm:$0xff]
    %v5931 = vld [vmem:[#allocation20 + $0x12e8] sm:$0xff]
    %v5932 = vld [vmem:[#allocation20 + $0x12f0] sm:$0xff]
    %v5933 = vld [vmem:[#allocation20 + $0x12f8] sm:$0xff]
    %v5934 = vld [vmem:[#allocation20 + $0x1300] sm:$0xff]
    %v5935 = vld [vmem:[#allocation20 + $0x1308] sm:$0xff]
    %v5936 = vld [vmem:[#allocation20 + $0x1310] sm:$0xff]
    %v5937 = vld [vmem:[#allocation20 + $0x1318] sm:$0xff]
    %v5938 = vld [vmem:[#allocation20 + $0x1320] sm:$0xff]
    %v5939 = vld [vmem:[#allocation20 + $0x1328] sm:$0xff]
    %v5940 = vld [vmem:[#allocation20 + $0x1330] sm:$0xff]
    %v5941 = vld [vmem:[#allocation20 + $0x1338] sm:$0xff]
    %v5942 = vld [vmem:[#allocation20 + $0x1340] sm:$0xff]
    %v5943 = vld [vmem:[#allocation20 + $0x1348] sm:$0xff]
    %v5944 = vld [vmem:[#allocation20 + $0x1350] sm:$0xff]
    %v5945 = vld [vmem:[#allocation20 + $0x1358] sm:$0xff]
    %v5946 = vld [vmem:[#allocation20 + $0x1360] sm:$0xff]
    %v5947 = vld [vmem:[#allocation20 + $0x1368] sm:$0xff]
    %v5948 = vld [vmem:[#allocation20 + $0x1370] sm:$0xff]
    %v5949 = vld [vmem:[#allocation20 + $0x1378] sm:$0xff]
    %v5950 = vld [vmem:[#allocation20 + $0x1380] sm:$0xff]
    %v5951 = vld [vmem:[#allocation20 + $0x1388] sm:$0xff]
    %v5952 = vld [vmem:[#allocation20 + $0x1390] sm:$0xff]
    %v5953 = vld [vmem:[#allocation20 + $0x1398] sm:$0xff]
    %v5954 = vld [vmem:[#allocation20 + $0x13a0] sm:$0xff]
    %v5955 = vld [vmem:[#allocation20 + $0x13a8] sm:$0xff]
    %v5956 = vld [vmem:[#allocation20 + $0x13b0] sm:$0xff]
    %v5957 = vld [vmem:[#allocation20 + $0x13b8] sm:$0xff]
    %v5958 = vld [vmem:[#allocation20 + $0x13c0] sm:$0xff]
    %v5959 = vld [vmem:[#allocation20 + $0x13c8] sm:$0xff]
    %v5960 = vld [vmem:[#allocation20 + $0x13d0] sm:$0xff]
    %v5961 = vld [vmem:[#allocation20 + $0x13d8] sm:$0xff]
    %v5962 = vld [vmem:[#allocation20 + $0x13e0] sm:$0xff]
    %v5963 = vld [vmem:[#allocation20 + $0x13e8] sm:$0xff]
    %v5964 = vld [vmem:[#allocation20 + $0x13f0] sm:$0xff]
    %v5965 = vld [vmem:[#allocation20 + $0x13f8] sm:$0xff]
    %v5966 = vld [vmem:[#allocation20 + $0x1400] sm:$0xff]
    %v5967 = vld [vmem:[#allocation20 + $0x1408] sm:$0xff]
    %v5968 = vld [vmem:[#allocation20 + $0x1410] sm:$0xff]
    %v5969 = vld [vmem:[#allocation20 + $0x1418] sm:$0xff]
    %v5970 = vld [vmem:[#allocation20 + $0x1420] sm:$0xff]
    %v5971 = vld [vmem:[#allocation20 + $0x1428] sm:$0xff]
    %v5972 = vld [vmem:[#allocation20 + $0x1430] sm:$0xff]
    %v5973 = vld [vmem:[#allocation20 + $0x1438] sm:$0xff]
    %v5974 = vld [vmem:[#allocation20 + $0x1440] sm:$0xff]
    %v5975 = vld [vmem:[#allocation20 + $0x1448] sm:$0xff]
    %v5976 = vld [vmem:[#allocation20 + $0x1450] sm:$0xff]
    %v5977 = vld [vmem:[#allocation20 + $0x1458] sm:$0xff]
    %v5978 = vld [vmem:[#allocation20 + $0x1460] sm:$0xff]
    %v5979 = vld [vmem:[#allocation20 + $0x1468] sm:$0xff]
    %v5980 = vld [vmem:[#allocation20 + $0x1470] sm:$0xff]
    %v5981 = vld [vmem:[#allocation20 + $0x1478] sm:$0xff]
    %v5982 = vld [vmem:[#allocation20 + $0x1480] sm:$0xff]
    %v5983 = vld [vmem:[#allocation20 + $0x1488] sm:$0xff]
    %v5984 = vld [vmem:[#allocation20 + $0x1490] sm:$0xff]
    %v5985 = vld [vmem:[#allocation20 + $0x1498] sm:$0xff]
    %v5986 = vld [vmem:[#allocation20 + $0x14a0] sm:$0xff]
    %v5987 = vld [vmem:[#allocation20 + $0x14a8] sm:$0xff]
    %v5988 = vld [vmem:[#allocation20 + $0x14b0] sm:$0xff]
    %v5989 = vld [vmem:[#allocation20 + $0x14b8] sm:$0xff]
    %v5990 = vld [vmem:[#allocation20 + $0x14c0] sm:$0xff]
    %v5991 = vld [vmem:[#allocation20 + $0x14c8] sm:$0xff]
    %v5992 = vld [vmem:[#allocation20 + $0x14d0] sm:$0xff]
    %v5993 = vld [vmem:[#allocation20 + $0x14d8] sm:$0xff]
    %v5994 = vld [vmem:[#allocation20 + $0x14e0] sm:$0xff]
    %v5995 = vld [vmem:[#allocation20 + $0x14e8] sm:$0xff]
    %v5996 = vld [vmem:[#allocation20 + $0x14f0] sm:$0xff]
    %v5997 = vld [vmem:[#allocation20 + $0x14f8] sm:$0xff]
    %v5998 = vld [vmem:[#allocation20 + $0x1500] sm:$0xff]
    %v5999 = vld [vmem:[#allocation20 + $0x1508] sm:$0xff]
    %v6000 = vld [vmem:[#allocation20 + $0x1510] sm:$0xff]
    %v6001 = vld [vmem:[#allocation20 + $0x1518] sm:$0xff]
    %v6002 = vld [vmem:[#allocation20 + $0x1520] sm:$0xff]
    %v6003 = vld [vmem:[#allocation20 + $0x1528] sm:$0xff]
    %v6004 = vld [vmem:[#allocation20 + $0x1530] sm:$0xff]
    %v6005 = vld [vmem:[#allocation20 + $0x1538] sm:$0xff]
    %v6006 = vld [vmem:[#allocation20 + $0x1540] sm:$0xff]
    %v6007 = vld [vmem:[#allocation20 + $0x1548] sm:$0xff]
    %v6008 = vld [vmem:[#allocation20 + $0x1550] sm:$0xff]
    %v6009 = vld [vmem:[#allocation20 + $0x1558] sm:$0xff]
    %v6010 = vld [vmem:[#allocation20 + $0x1560] sm:$0xff]
    %v6011 = vld [vmem:[#allocation20 + $0x1568] sm:$0xff]
    %v6012 = vld [vmem:[#allocation20 + $0x1570] sm:$0xff]
    %v6013 = vld [vmem:[#allocation20 + $0x1578] sm:$0xff]
    %v6014 = vld [vmem:[#allocation20 + $0x1580] sm:$0xff]
    %v6015 = vld [vmem:[#allocation20 + $0x1588] sm:$0xff]
    %v6016 = vld [vmem:[#allocation20 + $0x1590] sm:$0xff]
    %v6017 = vld [vmem:[#allocation20 + $0x1598] sm:$0xff]
    %v6018 = vld [vmem:[#allocation20 + $0x15a0] sm:$0xff]
    %v6019 = vld [vmem:[#allocation20 + $0x15a8] sm:$0xff]
    %v6020 = vld [vmem:[#allocation20 + $0x15b0] sm:$0xff]
    %v6021 = vld [vmem:[#allocation20 + $0x15b8] sm:$0xff]
    %v6022 = vld [vmem:[#allocation20 + $0x15c0] sm:$0xff]
    %v6023 = vld [vmem:[#allocation20 + $0x15c8] sm:$0xff]
    %v6024 = vld [vmem:[#allocation20 + $0x15d0] sm:$0xff]
    %v6025 = vld [vmem:[#allocation20 + $0x15d8] sm:$0xff]
    %v6026 = vld [vmem:[#allocation20 + $0x15e0] sm:$0xff]
    %v6027 = vld [vmem:[#allocation20 + $0x15e8] sm:$0xff]
    %v6028 = vld [vmem:[#allocation20 + $0x15f0] sm:$0xff]
    %v6029 = vld [vmem:[#allocation20 + $0x15f8] sm:$0xff]
    %v6030 = vld [vmem:[#allocation20 + $0x1600] sm:$0xff]
    %v6031 = vld [vmem:[#allocation20 + $0x1608] sm:$0xff]
    %v6032 = vld [vmem:[#allocation20 + $0x1610] sm:$0xff]
    %v6033 = vld [vmem:[#allocation20 + $0x1618] sm:$0xff]
    %v6034 = vld [vmem:[#allocation20 + $0x1620] sm:$0xff]
    %v6035 = vld [vmem:[#allocation20 + $0x1628] sm:$0xff]
    %v6036 = vld [vmem:[#allocation20 + $0x1630] sm:$0xff]
    %v6037 = vld [vmem:[#allocation20 + $0x1638] sm:$0xff]
    %v6038 = vld [vmem:[#allocation20 + $0x1640] sm:$0xff]
    %v6039 = vld [vmem:[#allocation20 + $0x1648] sm:$0xff]
    %v6040 = vld [vmem:[#allocation20 + $0x1650] sm:$0xff]
    %v6041 = vld [vmem:[#allocation20 + $0x1658] sm:$0xff]
    %v6042 = vld [vmem:[#allocation20 + $0x1660] sm:$0xff]
    %v6043 = vld [vmem:[#allocation20 + $0x1668] sm:$0xff]
    %v6044 = vld [vmem:[#allocation20 + $0x1670] sm:$0xff]
    %v6045 = vld [vmem:[#allocation20 + $0x1678] sm:$0xff]
    %v6046 = vld [vmem:[#allocation20 + $0x1680] sm:$0xff]
    %v6047 = vld [vmem:[#allocation20 + $0x1688] sm:$0xff]
    %v6048 = vld [vmem:[#allocation20 + $0x1690] sm:$0xff]
    %v6049 = vld [vmem:[#allocation20 + $0x1698] sm:$0xff]
    %v6050 = vld [vmem:[#allocation20 + $0x16a0] sm:$0xff]
    %v6051 = vld [vmem:[#allocation20 + $0x16a8] sm:$0xff]
    %v6052 = vld [vmem:[#allocation20 + $0x16b0] sm:$0xff]
    %v6053 = vld [vmem:[#allocation20 + $0x16b8] sm:$0xff]
    %v6054 = vld [vmem:[#allocation20 + $0x16c0] sm:$0xff]
    %v6055 = vld [vmem:[#allocation20 + $0x16c8] sm:$0xff]
    %v6056 = vld [vmem:[#allocation20 + $0x16d0] sm:$0xff]
    %v6057 = vld [vmem:[#allocation20 + $0x16d8] sm:$0xff]
    %v6058 = vld [vmem:[#allocation20 + $0x16e0] sm:$0xff]
    %v6059 = vld [vmem:[#allocation20 + $0x16e8] sm:$0xff]
    %v6060 = vld [vmem:[#allocation20 + $0x16f0] sm:$0xff]
    %v6061 = vld [vmem:[#allocation20 + $0x16f8] sm:$0xff]
    %v6062 = vld [vmem:[#allocation20 + $0x1700] sm:$0xff]
    %v6063 = vld [vmem:[#allocation20 + $0x1708] sm:$0xff]
    %v6064 = vld [vmem:[#allocation20 + $0x1710] sm:$0xff]
    %v6065 = vld [vmem:[#allocation20 + $0x1718] sm:$0xff]
    %v6066 = vld [vmem:[#allocation20 + $0x1720] sm:$0xff]
    %v6067 = vld [vmem:[#allocation20 + $0x1728] sm:$0xff]
    %v6068 = vld [vmem:[#allocation20 + $0x1730] sm:$0xff]
    %v6069 = vld [vmem:[#allocation20 + $0x1738] sm:$0xff]
    %v6070 = vld [vmem:[#allocation20 + $0x1740] sm:$0xff]
    %v6071 = vld [vmem:[#allocation20 + $0x1748] sm:$0xff]
    %v6072 = vld [vmem:[#allocation20 + $0x1750] sm:$0xff]
    %v6073 = vld [vmem:[#allocation20 + $0x1758] sm:$0xff]
    %v6074 = vld [vmem:[#allocation20 + $0x1760] sm:$0xff]
    %v6075 = vld [vmem:[#allocation20 + $0x1768] sm:$0xff]
    %v6076 = vld [vmem:[#allocation20 + $0x1770] sm:$0xff]
    %v6077 = vld [vmem:[#allocation20 + $0x1778] sm:$0xff]
    %v6078 = vld [vmem:[#allocation20 + $0x1780] sm:$0xff]
    %v6079 = vld [vmem:[#allocation20 + $0x1788] sm:$0xff]
    %v6080 = vld [vmem:[#allocation20 + $0x1790] sm:$0xff]
    %v6081 = vld [vmem:[#allocation20 + $0x1798] sm:$0xff]
    %v6082 = vld [vmem:[#allocation20 + $0x17a0] sm:$0xff]
    %v6083 = vld [vmem:[#allocation20 + $0x17a8] sm:$0xff]
    %v6084 = vld [vmem:[#allocation20 + $0x17b0] sm:$0xff]
    %v6085 = vld [vmem:[#allocation20 + $0x17b8] sm:$0xff]
    %v6086 = vld [vmem:[#allocation20 + $0x17c0] sm:$0xff]
    %v6087 = vld [vmem:[#allocation20 + $0x17c8] sm:$0xff]
    %v6088 = vld [vmem:[#allocation20 + $0x17d0] sm:$0xff]
    %v6089 = vld [vmem:[#allocation20 + $0x17d8] sm:$0xff]
    %v6090 = vld [vmem:[#allocation20 + $0x17e0] sm:$0xff]
    %v6091 = vld [vmem:[#allocation20 + $0x17e8] sm:$0xff]
    %v6092 = vld [vmem:[#allocation20 + $0x17f0] sm:$0xff]
    %v6093 = vld [vmem:[#allocation20 + $0x17f8] sm:$0xff]
    %v6094 = vld [vmem:[#allocation20 + $0x1800] sm:$0xff]
    %v6095 = vld [vmem:[#allocation20 + $0x1808] sm:$0xff]
    %v6096 = vld [vmem:[#allocation20 + $0x1810] sm:$0xff]
    %v6097 = vld [vmem:[#allocation20 + $0x1818] sm:$0xff]
    %v6098 = vld [vmem:[#allocation20 + $0x1820] sm:$0xff]
    %v6099 = vld [vmem:[#allocation20 + $0x1828] sm:$0xff]
    %v6100 = vld [vmem:[#allocation20 + $0x1830] sm:$0xff]
    %v6101 = vld [vmem:[#allocation20 + $0x1838] sm:$0xff]
    %v6102 = vld [vmem:[#allocation20 + $0x1840] sm:$0xff]
    %v6103 = vld [vmem:[#allocation20 + $0x1848] sm:$0xff]
    %v6104 = vld [vmem:[#allocation20 + $0x1850] sm:$0xff]
    %v6105 = vld [vmem:[#allocation20 + $0x1858] sm:$0xff]
    %v6106 = vld [vmem:[#allocation20 + $0x1860] sm:$0xff]
    %v6107 = vld [vmem:[#allocation20 + $0x1868] sm:$0xff]
    %v6108 = vld [vmem:[#allocation20 + $0x1870] sm:$0xff]
    %v6109 = vld [vmem:[#allocation20 + $0x1878] sm:$0xff]
    %v6110 = vld [vmem:[#allocation20 + $0x1880] sm:$0xff]
    %v6111 = vld [vmem:[#allocation20 + $0x1888] sm:$0xff]
    %v6112 = vld [vmem:[#allocation20 + $0x1890] sm:$0xff]
    %v6113 = vld [vmem:[#allocation20 + $0x1898] sm:$0xff]
    %v6114 = vld [vmem:[#allocation20 + $0x18a0] sm:$0xff]
    %v6115 = vld [vmem:[#allocation20 + $0x18a8] sm:$0xff]
    %v6116 = vld [vmem:[#allocation20 + $0x18b0] sm:$0xff]
    %v6117 = vld [vmem:[#allocation20 + $0x18b8] sm:$0xff]
    %v6118 = vld [vmem:[#allocation20 + $0x18c0] sm:$0xff]
    %v6119 = vld [vmem:[#allocation20 + $0x18c8] sm:$0xff]
    %v6120 = vld [vmem:[#allocation20 + $0x18d0] sm:$0xff]
    %v6121 = vld [vmem:[#allocation20 + $0x18d8] sm:$0xff]
    %v6122 = vld [vmem:[#allocation20 + $0x18e0] sm:$0xff]
    %v6123 = vld [vmem:[#allocation20 + $0x18e8] sm:$0xff]
    %v6124 = vld [vmem:[#allocation20 + $0x18f0] sm:$0xff]
    %v6125 = vld [vmem:[#allocation20 + $0x18f8] sm:$0xff]
    %v6126 = vld [vmem:[#allocation20 + $0x1900] sm:$0xff]
    %v6127 = vld [vmem:[#allocation20 + $0x1908] sm:$0xff]
    %v6128 = vld [vmem:[#allocation20 + $0x1910] sm:$0xff]
    %v6129 = vld [vmem:[#allocation20 + $0x1918] sm:$0xff]
    %v6130 = vld [vmem:[#allocation20 + $0x1920] sm:$0xff]
    %v6131 = vld [vmem:[#allocation20 + $0x1928] sm:$0xff]
    %v6132 = vld [vmem:[#allocation20 + $0x1930] sm:$0xff]
    %v6133 = vld [vmem:[#allocation20 + $0x1938] sm:$0xff]
    %v6134 = vld [vmem:[#allocation20 + $0x1940] sm:$0xff]
    %v6135 = vld [vmem:[#allocation20 + $0x1948] sm:$0xff]
    %v6136 = vld [vmem:[#allocation20 + $0x1950] sm:$0xff]
    %v6137 = vld [vmem:[#allocation20 + $0x1958] sm:$0xff]
    %v6138 = vld [vmem:[#allocation20 + $0x1960] sm:$0xff]
    %v6139 = vld [vmem:[#allocation20 + $0x1968] sm:$0xff]
    %v6140 = vld [vmem:[#allocation20 + $0x1970] sm:$0xff]
    %v6141 = vld [vmem:[#allocation20 + $0x1978] sm:$0xff]
    %v6142 = vld [vmem:[#allocation20 + $0x1980] sm:$0xff]
    %v6143 = vld [vmem:[#allocation20 + $0x1988] sm:$0xff]
    %v6144 = vld [vmem:[#allocation20 + $0x1990] sm:$0xff]
    %v6145 = vld [vmem:[#allocation20 + $0x1998] sm:$0xff]
    %v6146 = vld [vmem:[#allocation20 + $0x19a0] sm:$0xff]
    %v6147 = vld [vmem:[#allocation20 + $0x19a8] sm:$0xff]
    %v6148 = vld [vmem:[#allocation20 + $0x19b0] sm:$0xff]
    %v6149 = vld [vmem:[#allocation20 + $0x19b8] sm:$0xff]
    %v6150 = vld [vmem:[#allocation20 + $0x19c0] sm:$0xff]
    %v6151 = vld [vmem:[#allocation20 + $0x19c8] sm:$0xff]
    %v6152 = vld [vmem:[#allocation20 + $0x19d0] sm:$0xff]
    %v6153 = vld [vmem:[#allocation20 + $0x19d8] sm:$0xff]
    %v6154 = vld [vmem:[#allocation20 + $0x19e0] sm:$0xff]
    %v6155 = vld [vmem:[#allocation20 + $0x19e8] sm:$0xff]
    %v6156 = vld [vmem:[#allocation20 + $0x19f0] sm:$0xff]
    %v6157 = vld [vmem:[#allocation20 + $0x19f8] sm:$0xff]
    %v6158 = vld [vmem:[#allocation20 + $0x1a00] sm:$0xff]
    %v6159 = vld [vmem:[#allocation20 + $0x1a08] sm:$0xff]
    %v6160 = vld [vmem:[#allocation20 + $0x1a10] sm:$0xff]
    %v6161 = vld [vmem:[#allocation20 + $0x1a18] sm:$0xff]
    %v6162 = vld [vmem:[#allocation20 + $0x1a20] sm:$0xff]
    %v6163 = vld [vmem:[#allocation20 + $0x1a28] sm:$0xff]
    %v6164 = vld [vmem:[#allocation20 + $0x1a30] sm:$0xff]
    %v6165 = vld [vmem:[#allocation20 + $0x1a38] sm:$0xff]
    %v6166 = vld [vmem:[#allocation20 + $0x1a40] sm:$0xff]
    %v6167 = vld [vmem:[#allocation20 + $0x1a48] sm:$0xff]
    %v6168 = vld [vmem:[#allocation20 + $0x1a50] sm:$0xff]
    %v6169 = vld [vmem:[#allocation20 + $0x1a58] sm:$0xff]
    %v6170 = vld [vmem:[#allocation20 + $0x1a60] sm:$0xff]
    %v6171 = vld [vmem:[#allocation20 + $0x1a68] sm:$0xff]
    %v6172 = vld [vmem:[#allocation20 + $0x1a70] sm:$0xff]
    %v6173 = vld [vmem:[#allocation20 + $0x1a78] sm:$0xff]
    %v6174 = vld [vmem:[#allocation20 + $0x1a80] sm:$0xff]
    %v6175 = vld [vmem:[#allocation20 + $0x1a88] sm:$0xff]
    %v6176 = vld [vmem:[#allocation20 + $0x1a90] sm:$0xff]
    %v6177 = vld [vmem:[#allocation20 + $0x1a98] sm:$0xff]
    %v6178 = vld [vmem:[#allocation20 + $0x1aa0] sm:$0xff]
    %v6179 = vld [vmem:[#allocation20 + $0x1aa8] sm:$0xff]
    %v6180 = vld [vmem:[#allocation20 + $0x1ab0] sm:$0xff]
    %v6181 = vld [vmem:[#allocation20 + $0x1ab8] sm:$0xff]
    %v6182 = vld [vmem:[#allocation20 + $0x1ac0] sm:$0xff]
    %v6183 = vld [vmem:[#allocation20 + $0x1ac8] sm:$0xff]
    %v6184 = vld [vmem:[#allocation20 + $0x1ad0] sm:$0xff]
    %v6185 = vld [vmem:[#allocation20 + $0x1ad8] sm:$0xff]
    %v6186 = vld [vmem:[#allocation20 + $0x1ae0] sm:$0xff]
    %v6187 = vld [vmem:[#allocation20 + $0x1ae8] sm:$0xff]
    %v6188 = vld [vmem:[#allocation20 + $0x1af0] sm:$0xff]
    %v6189 = vld [vmem:[#allocation20 + $0x1af8] sm:$0xff]
    %v6190 = vld [vmem:[#allocation20 + $0x1b00] sm:$0xff]
    %v6191 = vld [vmem:[#allocation20 + $0x1b08] sm:$0xff]
    %v6192 = vld [vmem:[#allocation20 + $0x1b10] sm:$0xff]
    %v6193 = vld [vmem:[#allocation20 + $0x1b18] sm:$0xff]
    %v6194 = vld [vmem:[#allocation20 + $0x1b20] sm:$0xff]
    %v6195 = vld [vmem:[#allocation20 + $0x1b28] sm:$0xff]
    %v6196 = vld [vmem:[#allocation20 + $0x1b30] sm:$0xff]
    %v6197 = vld [vmem:[#allocation20 + $0x1b38] sm:$0xff]
    %v6198 = vld [vmem:[#allocation20 + $0x1b40] sm:$0xff]
    %v6199 = vld [vmem:[#allocation20 + $0x1b48] sm:$0xff]
    %v6200 = vld [vmem:[#allocation20 + $0x1b50] sm:$0xff]
    %v6201 = vld [vmem:[#allocation20 + $0x1b58] sm:$0xff]
    %v6202 = vld [vmem:[#allocation20 + $0x1b60] sm:$0xff]
    %v6203 = vld [vmem:[#allocation20 + $0x1b68] sm:$0xff]
    %v6204 = vld [vmem:[#allocation20 + $0x1b70] sm:$0xff]
    %v6205 = vld [vmem:[#allocation20 + $0x1b78] sm:$0xff]
    %v6206 = vld [vmem:[#allocation20 + $0x1b80] sm:$0xff]
    %v6207 = vld [vmem:[#allocation20 + $0x1b88] sm:$0xff]
    %v6208 = vld [vmem:[#allocation20 + $0x1b90] sm:$0xff]
    %v6209 = vld [vmem:[#allocation20 + $0x1b98] sm:$0xff]
    %v6210 = vld [vmem:[#allocation20 + $0x1ba0] sm:$0xff]
    %v6211 = vld [vmem:[#allocation20 + $0x1ba8] sm:$0xff]
    %v6212 = vld [vmem:[#allocation20 + $0x1bb0] sm:$0xff]
    %v6213 = vld [vmem:[#allocation20 + $0x1bb8] sm:$0xff]
    %v6214 = vld [vmem:[#allocation20 + $0x1bc0] sm:$0xff]
    %v6215 = vld [vmem:[#allocation20 + $0x1bc8] sm:$0xff]
    %v6216 = vld [vmem:[#allocation20 + $0x1bd0] sm:$0xff]
    %v6217 = vld [vmem:[#allocation20 + $0x1bd8] sm:$0xff]
    %v6218 = vld [vmem:[#allocation20 + $0x1be0] sm:$0xff]
    %v6219 = vld [vmem:[#allocation20 + $0x1be8] sm:$0xff]
    %v6220 = vld [vmem:[#allocation20 + $0x1bf0] sm:$0xff]
    %v6221 = vld [vmem:[#allocation20 + $0x1bf8] sm:$0xff]
    %v6222 = vld [vmem:[#allocation20 + $0x1c00] sm:$0xff]
    %v6223 = vld [vmem:[#allocation20 + $0x1c08] sm:$0xff]
    %v6224 = vld [vmem:[#allocation20 + $0x1c10] sm:$0xff]
    %v6225 = vld [vmem:[#allocation20 + $0x1c18] sm:$0xff]
    %v6226 = vld [vmem:[#allocation20 + $0x1c20] sm:$0xff]
    %v6227 = vld [vmem:[#allocation20 + $0x1c28] sm:$0xff]
    %v6228 = vld [vmem:[#allocation20 + $0x1c30] sm:$0xff]
    %v6229 = vld [vmem:[#allocation20 + $0x1c38] sm:$0xff]
    %v6230 = vld [vmem:[#allocation20 + $0x1c40] sm:$0xff]
    %v6231 = vld [vmem:[#allocation20 + $0x1c48] sm:$0xff]
    %v6232 = vld [vmem:[#allocation20 + $0x1c50] sm:$0xff]
    %v6233 = vld [vmem:[#allocation20 + $0x1c58] sm:$0xff]
    %v6234 = vld [vmem:[#allocation20 + $0x1c60] sm:$0xff]
    %v6235 = vld [vmem:[#allocation20 + $0x1c68] sm:$0xff]
    %v6236 = vld [vmem:[#allocation20 + $0x1c70] sm:$0xff]
    %v6237 = vld [vmem:[#allocation20 + $0x1c78] sm:$0xff]
    %v6238 = vld [vmem:[#allocation20 + $0x1c80] sm:$0xff]
    %v6239 = vld [vmem:[#allocation20 + $0x1c88] sm:$0xff]
    %v6240 = vld [vmem:[#allocation20 + $0x1c90] sm:$0xff]
    %v6241 = vld [vmem:[#allocation20 + $0x1c98] sm:$0xff]
    %v6242 = vld [vmem:[#allocation20 + $0x1ca0] sm:$0xff]
    %v6243 = vld [vmem:[#allocation20 + $0x1ca8] sm:$0xff]
    %v6244 = vld [vmem:[#allocation20 + $0x1cb0] sm:$0xff]
    %v6245 = vld [vmem:[#allocation20 + $0x1cb8] sm:$0xff]
    %v6246 = vld [vmem:[#allocation20 + $0x1cc0] sm:$0xff]
    %v6247 = vld [vmem:[#allocation20 + $0x1cc8] sm:$0xff]
    %v6248 = vld [vmem:[#allocation20 + $0x1cd0] sm:$0xff]
    %v6249 = vld [vmem:[#allocation20 + $0x1cd8] sm:$0xff]
    %v6250 = vld [vmem:[#allocation20 + $0x1ce0] sm:$0xff]
    %v6251 = vld [vmem:[#allocation20 + $0x1ce8] sm:$0xff]
    %v6252 = vld [vmem:[#allocation20 + $0x1cf0] sm:$0xff]
    %v6253 = vld [vmem:[#allocation20 + $0x1cf8] sm:$0xff]
    %v6254 = vld [vmem:[#allocation20 + $0x1d00] sm:$0xff]
    %v6255 = vld [vmem:[#allocation20 + $0x1d08] sm:$0xff]
    %v6256 = vld [vmem:[#allocation20 + $0x1d10] sm:$0xff]
    %v6257 = vld [vmem:[#allocation20 + $0x1d18] sm:$0xff]
    %v6258 = vld [vmem:[#allocation20 + $0x1d20] sm:$0xff]
    %v6259 = vld [vmem:[#allocation20 + $0x1d28] sm:$0xff]
    %v6260 = vld [vmem:[#allocation20 + $0x1d30] sm:$0xff]
    %v6261 = vld [vmem:[#allocation20 + $0x1d38] sm:$0xff]
    %v6262 = vld [vmem:[#allocation20 + $0x1d40] sm:$0xff]
    %v6263 = vld [vmem:[#allocation20 + $0x1d48] sm:$0xff]
    %v6264 = vld [vmem:[#allocation20 + $0x1d50] sm:$0xff]
    %v6265 = vld [vmem:[#allocation20 + $0x1d58] sm:$0xff]
    %v6266 = vld [vmem:[#allocation20 + $0x1d60] sm:$0xff]
    %v6267 = vld [vmem:[#allocation20 + $0x1d68] sm:$0xff]
    %v6268 = vld [vmem:[#allocation20 + $0x1d70] sm:$0xff]
    %v6269 = vld [vmem:[#allocation20 + $0x1d78] sm:$0xff]
    %v6270 = vld [vmem:[#allocation20 + $0x1d80] sm:$0xff]
    %v6271 = vld [vmem:[#allocation20 + $0x1d88] sm:$0xff]
    %v6272 = vld [vmem:[#allocation20 + $0x1d90] sm:$0xff]
    %v6273 = vld [vmem:[#allocation20 + $0x1d98] sm:$0xff]
    %v6274 = vld [vmem:[#allocation20 + $0x1da0] sm:$0xff]
    %v6275 = vld [vmem:[#allocation20 + $0x1da8] sm:$0xff]
    %v6276 = vld [vmem:[#allocation20 + $0x1db0] sm:$0xff]
    %v6277 = vld [vmem:[#allocation20 + $0x1db8] sm:$0xff]
    %v6278 = vld [vmem:[#allocation20 + $0x1dc0] sm:$0xff]
    %v6279 = vld [vmem:[#allocation20 + $0x1dc8] sm:$0xff]
    %v6280 = vld [vmem:[#allocation20 + $0x1dd0] sm:$0xff]
    %v6281 = vld [vmem:[#allocation20 + $0x1dd8] sm:$0xff]
    %v6282 = vld [vmem:[#allocation20 + $0x1de0] sm:$0xff]
    %v6283 = vld [vmem:[#allocation20 + $0x1de8] sm:$0xff]
    %v6284 = vld [vmem:[#allocation20 + $0x1df0] sm:$0xff]
    %v6285 = vld [vmem:[#allocation20 + $0x1df8] sm:$0xff]
    %v6286 = vld [vmem:[#allocation20 + $0x1e00] sm:$0xff]
    %v6287 = vld [vmem:[#allocation20 + $0x1e08] sm:$0xff]
    %v6288 = vld [vmem:[#allocation20 + $0x1e10] sm:$0xff]
    %v6289 = vld [vmem:[#allocation20 + $0x1e18] sm:$0xff]
    %v6290 = vld [vmem:[#allocation20 + $0x1e20] sm:$0xff]
    %v6291 = vld [vmem:[#allocation20 + $0x1e28] sm:$0xff]
    %v6292 = vld [vmem:[#allocation20 + $0x1e30] sm:$0xff]
    %v6293 = vld [vmem:[#allocation20 + $0x1e38] sm:$0xff]
    %v6294 = vld [vmem:[#allocation20 + $0x1e40] sm:$0xff]
    %v6295 = vld [vmem:[#allocation20 + $0x1e48] sm:$0xff]
    %v6296 = vld [vmem:[#allocation20 + $0x1e50] sm:$0xff]
    %v6297 = vld [vmem:[#allocation20 + $0x1e58] sm:$0xff]
    %v6298 = vld [vmem:[#allocation20 + $0x1e60] sm:$0xff]
    %v6299 = vld [vmem:[#allocation20 + $0x1e68] sm:$0xff]
    %v6300 = vld [vmem:[#allocation20 + $0x1e70] sm:$0xff]
    %v6301 = vld [vmem:[#allocation20 + $0x1e78] sm:$0xff]
    %v6302 = vld [vmem:[#allocation20 + $0x1e80] sm:$0xff]
    %v6303 = vld [vmem:[#allocation20 + $0x1e88] sm:$0xff]
    %v6304 = vld [vmem:[#allocation20 + $0x1e90] sm:$0xff]
    %v6305 = vld [vmem:[#allocation20 + $0x1e98] sm:$0xff]
    %v6306 = vld [vmem:[#allocation20 + $0x1ea0] sm:$0xff]
    %v6307 = vld [vmem:[#allocation20 + $0x1ea8] sm:$0xff]
    %v6308 = vld [vmem:[#allocation20 + $0x1eb0] sm:$0xff]
    %v6309 = vld [vmem:[#allocation20 + $0x1eb8] sm:$0xff]
    %v6310 = vld [vmem:[#allocation20 + $0x1ec0] sm:$0xff]
    %v6311 = vld [vmem:[#allocation20 + $0x1ec8] sm:$0xff]
    %v6312 = vld [vmem:[#allocation20 + $0x1ed0] sm:$0xff]
    %v6313 = vld [vmem:[#allocation20 + $0x1ed8] sm:$0xff]
    %v6314 = vld [vmem:[#allocation20 + $0x1ee0] sm:$0xff]
    %v6315 = vld [vmem:[#allocation20 + $0x1ee8] sm:$0xff]
    %v6316 = vld [vmem:[#allocation20 + $0x1ef0] sm:$0xff]
    %v6317 = vld [vmem:[#allocation20 + $0x1ef8] sm:$0xff]
    %v6318 = vld [vmem:[#allocation20 + $0x1f00] sm:$0xff]
    %v6319 = vld [vmem:[#allocation20 + $0x1f08] sm:$0xff]
    %v6320 = vld [vmem:[#allocation20 + $0x1f10] sm:$0xff]
    %v6321 = vld [vmem:[#allocation20 + $0x1f18] sm:$0xff]
    %v6322 = vld [vmem:[#allocation20 + $0x1f20] sm:$0xff]
    %v6323 = vld [vmem:[#allocation20 + $0x1f28] sm:$0xff]
    %v6324 = vld [vmem:[#allocation20 + $0x1f30] sm:$0xff]
    %v6325 = vld [vmem:[#allocation20 + $0x1f38] sm:$0xff]
    %v6326 = vld [vmem:[#allocation20 + $0x1f40] sm:$0xff]
    %v6327 = vld [vmem:[#allocation20 + $0x1f48] sm:$0xff]
    %v6328 = vld [vmem:[#allocation20 + $0x1f50] sm:$0xff]
    %v6329 = vld [vmem:[#allocation20 + $0x1f58] sm:$0xff]
    %v6330 = vld [vmem:[#allocation20 + $0x1f60] sm:$0xff]
    %v6331 = vld [vmem:[#allocation20 + $0x1f68] sm:$0xff]
    %v6332 = vld [vmem:[#allocation20 + $0x1f70] sm:$0xff]
    %v6333 = vld [vmem:[#allocation20 + $0x1f78] sm:$0xff]
    %v6334 = vld [vmem:[#allocation20 + $0x1f80] sm:$0xff]
    %v6335 = vld [vmem:[#allocation20 + $0x1f88] sm:$0xff]
    %v6336 = vld [vmem:[#allocation20 + $0x1f90] sm:$0xff]
    %v6337 = vld [vmem:[#allocation20 + $0x1f98] sm:$0xff]
    %v6338 = vld [vmem:[#allocation20 + $0x1fa0] sm:$0xff]
    %v6339 = vld [vmem:[#allocation20 + $0x1fa8] sm:$0xff]
    %v6340 = vld [vmem:[#allocation20 + $0x1fb0] sm:$0xff]
    %v6341 = vld [vmem:[#allocation20 + $0x1fb8] sm:$0xff]
    %v6342 = vld [vmem:[#allocation20 + $0x1fc0] sm:$0xff]
    %v6343 = vld [vmem:[#allocation20 + $0x1fc8] sm:$0xff]
    %v6344 = vld [vmem:[#allocation20 + $0x1fd0] sm:$0xff]
    %v6345 = vld [vmem:[#allocation20 + $0x1fd8] sm:$0xff]
    %v6346 = vld [vmem:[#allocation20 + $0x1fe0] sm:$0xff]
    %v6347 = vld [vmem:[#allocation20 + $0x1fe8] sm:$0xff]
    %v6348 = vld [vmem:[#allocation20 + $0x1ff0] sm:$0xff]
    %v6349 = vld [vmem:[#allocation20 + $0x1ff8] sm:$0xff]
    %v6350 = vld [vmem:[#allocation22] sm:$0xff]
    %v6351 = vld [vmem:[#allocation22 + $0x8] sm:$0xff]
    %v6354 = vlaneseq
    %v6355 = vshrl.u32 %v6354, 7
    %v6356 = vsub.s32 0, %v6355
    %v6357 = vrot.slane %v6350, %v6356
    %v6358 = vlaneseq
    %v6359 = vshrl.u32 %v6358, 7
    %v6360 = vsub.s32 1, %v6359
    %v6361 = vrot.slane %v6350, %v6360
    %v6362 = vlaneseq
    %v6363 = vshrl.u32 %v6362, 7
    %v6364 = vsub.s32 2, %v6363
    %v6365 = vrot.slane %v6350, %v6364
    %v6366 = vlaneseq
    %v6367 = vshrl.u32 %v6366, 7
    %v6368 = vsub.s32 3, %v6367
    %v6369 = vrot.slane %v6350, %v6368
    %v6370 = vlaneseq
    %v6371 = vshrl.u32 %v6370, 7
    %v6372 = vsub.s32 4, %v6371
    %v6373 = vrot.slane %v6350, %v6372
    %v6374 = vlaneseq
    %v6375 = vshrl.u32 %v6374, 7
    %v6376 = vsub.s32 5, %v6375
    %v6377 = vrot.slane %v6350, %v6376
    %v6378 = vlaneseq
    %v6379 = vshrl.u32 %v6378, 7
    %v6380 = vsub.s32 6, %v6379
    %v6381 = vrot.slane %v6350, %v6380
    %v6382 = vlaneseq
    %v6383 = vshrl.u32 %v6382, 7
    %v6384 = vsub.s32 7, %v6383
    %v6385 = vrot.slane %v6350, %v6384
    %v6386 = vlaneseq
    %v6387 = vshrl.u32 %v6386, 7
    %v6388 = vsub.s32 0, %v6387
    %v6389 = vrot.slane %v6351, %v6388
    %v6390 = vlaneseq
    %v6391 = vshrl.u32 %v6390, 7
    %v6392 = vsub.s32 1, %v6391
    %v6393 = vrot.slane %v6351, %v6392
    %v6394 = vlaneseq
    %v6395 = vshrl.u32 %v6394, 7
    %v6396 = vsub.s32 2, %v6395
    %v6397 = vrot.slane %v6351, %v6396
    %v6398 = vlaneseq
    %v6399 = vshrl.u32 %v6398, 7
    %v6400 = vsub.s32 3, %v6399
    %v6401 = vrot.slane %v6351, %v6400
    %v6402 = vlaneseq
    %v6403 = vshrl.u32 %v6402, 7
    %v6404 = vsub.s32 4, %v6403
    %v6405 = vrot.slane %v6351, %v6404
    %v6406 = vlaneseq
    %v6407 = vshrl.u32 %v6406, 7
    %v6408 = vsub.s32 5, %v6407
    %v6409 = vrot.slane %v6351, %v6408
    %v6410 = vlaneseq
    %v6411 = vshrl.u32 %v6410, 7
    %v6412 = vsub.s32 6, %v6411
    %v6413 = vrot.slane %v6351, %v6412
    %v6414 = vlaneseq
    %v6415 = vshrl.u32 %v6414, 7
    %v6416 = vsub.s32 7, %v6415
    %v6417 = vrot.slane %v6351, %v6416
    %v7458 = vunpack.c.l.b16 %v5326
    %v7459 = vunpack.c.h.b16 %v5326
    %v7460 = vunpack.c.l.b16 %v5327
    %v7461 = vunpack.c.h.b16 %v5327
    %v7462 = vunpack.c.l.b16 %v5328
    %v7463 = vunpack.c.h.b16 %v5328
    %v7464 = vunpack.c.l.b16 %v5329
    %v7465 = vunpack.c.h.b16 %v5329
    %v7466 = vunpack.c.l.b16 %v5330
    %v7467 = vunpack.c.h.b16 %v5330
    %v7468 = vunpack.c.l.b16 %v5331
    %v7469 = vunpack.c.h.b16 %v5331
    %v7470 = vunpack.c.l.b16 %v5332
    %v7471 = vunpack.c.h.b16 %v5332
    %v7472 = vunpack.c.l.b16 %v5333
    %v7473 = vunpack.c.h.b16 %v5333
    %v7474 = vunpack.c.l.b16 %v5334
    %v7475 = vunpack.c.h.b16 %v5334
    %v7476 = vunpack.c.l.b16 %v5335
    %v7477 = vunpack.c.h.b16 %v5335
    %v7478 = vunpack.c.l.b16 %v5336
    %v7479 = vunpack.c.h.b16 %v5336
    %v7480 = vunpack.c.l.b16 %v5337
    %v7481 = vunpack.c.h.b16 %v5337
    %v7482 = vunpack.c.l.b16 %v5338
    %v7483 = vunpack.c.h.b16 %v5338
    %v7484 = vunpack.c.l.b16 %v5339
    %v7485 = vunpack.c.h.b16 %v5339
    %v7486 = vunpack.c.l.b16 %v5340
    %v7487 = vunpack.c.h.b16 %v5340
    %v7488 = vunpack.c.l.b16 %v5341
    %v7489 = vunpack.c.h.b16 %v5341
    %v7490 = vunpack.c.l.b16 %v5342
    %v7491 = vunpack.c.h.b16 %v5342
    %v7492 = vunpack.c.l.b16 %v5343
    %v7493 = vunpack.c.h.b16 %v5343
    %v7494 = vunpack.c.l.b16 %v5344
    %v7495 = vunpack.c.h.b16 %v5344
    %v7496 = vunpack.c.l.b16 %v5345
    %v7497 = vunpack.c.h.b16 %v5345
    %v7498 = vunpack.c.l.b16 %v5346
    %v7499 = vunpack.c.h.b16 %v5346
    %v7500 = vunpack.c.l.b16 %v5347
    %v7501 = vunpack.c.h.b16 %v5347
    %v7502 = vunpack.c.l.b16 %v5348
    %v7503 = vunpack.c.h.b16 %v5348
    %v7504 = vunpack.c.l.b16 %v5349
    %v7505 = vunpack.c.h.b16 %v5349
    %v7506 = vunpack.c.l.b16 %v5350
    %v7507 = vunpack.c.h.b16 %v5350
    %v7508 = vunpack.c.l.b16 %v5351
    %v7509 = vunpack.c.h.b16 %v5351
    %v7510 = vunpack.c.l.b16 %v5352
    %v7511 = vunpack.c.h.b16 %v5352
    %v7512 = vunpack.c.l.b16 %v5353
    %v7513 = vunpack.c.h.b16 %v5353
    %v7514 = vunpack.c.l.b16 %v5354
    %v7515 = vunpack.c.h.b16 %v5354
    %v7516 = vunpack.c.l.b16 %v5355
    %v7517 = vunpack.c.h.b16 %v5355
    %v7518 = vunpack.c.l.b16 %v5356
    %v7519 = vunpack.c.h.b16 %v5356
    %v7520 = vunpack.c.l.b16 %v5357
    %v7521 = vunpack.c.h.b16 %v5357
    %v7522 = vunpack.c.l.b16 %v5358
    %v7523 = vunpack.c.h.b16 %v5358
    %v7524 = vunpack.c.l.b16 %v5359
    %v7525 = vunpack.c.h.b16 %v5359
    %v7526 = vunpack.c.l.b16 %v5360
    %v7527 = vunpack.c.h.b16 %v5360
    %v7528 = vunpack.c.l.b16 %v5361
    %v7529 = vunpack.c.h.b16 %v5361
    %v7530 = vunpack.c.l.b16 %v5362
    %v7531 = vunpack.c.h.b16 %v5362
    %v7532 = vunpack.c.l.b16 %v5363
    %v7533 = vunpack.c.h.b16 %v5363
    %v7534 = vunpack.c.l.b16 %v5364
    %v7535 = vunpack.c.h.b16 %v5364
    %v7536 = vunpack.c.l.b16 %v5365
    %v7537 = vunpack.c.h.b16 %v5365
    %v7538 = vunpack.c.l.b16 %v5366
    %v7539 = vunpack.c.h.b16 %v5366
    %v7540 = vunpack.c.l.b16 %v5367
    %v7541 = vunpack.c.h.b16 %v5367
    %v7542 = vunpack.c.l.b16 %v5368
    %v7543 = vunpack.c.h.b16 %v5368
    %v7544 = vunpack.c.l.b16 %v5369
    %v7545 = vunpack.c.h.b16 %v5369
    %v7546 = vunpack.c.l.b16 %v5370
    %v7547 = vunpack.c.h.b16 %v5370
    %v7548 = vunpack.c.l.b16 %v5371
    %v7549 = vunpack.c.h.b16 %v5371
    %v7550 = vunpack.c.l.b16 %v5372
    %v7551 = vunpack.c.h.b16 %v5372
    %v7552 = vunpack.c.l.b16 %v5373
    %v7553 = vunpack.c.h.b16 %v5373
    %v7554 = vunpack.c.l.b16 %v5374
    %v7555 = vunpack.c.h.b16 %v5374
    %v7556 = vunpack.c.l.b16 %v5375
    %v7557 = vunpack.c.h.b16 %v5375
    %v7558 = vunpack.c.l.b16 %v5376
    %v7559 = vunpack.c.h.b16 %v5376
    %v7560 = vunpack.c.l.b16 %v5377
    %v7561 = vunpack.c.h.b16 %v5377
    %v7562 = vunpack.c.l.b16 %v5378
    %v7563 = vunpack.c.h.b16 %v5378
    %v7564 = vunpack.c.l.b16 %v5379
    %v7565 = vunpack.c.h.b16 %v5379
    %v7566 = vunpack.c.l.b16 %v5380
    %v7567 = vunpack.c.h.b16 %v5380
    %v7568 = vunpack.c.l.b16 %v5381
    %v7569 = vunpack.c.h.b16 %v5381
    %v7570 = vunpack.c.l.b16 %v5382
    %v7571 = vunpack.c.h.b16 %v5382
    %v7572 = vunpack.c.l.b16 %v5383
    %v7573 = vunpack.c.h.b16 %v5383
    %v7574 = vunpack.c.l.b16 %v5384
    %v7575 = vunpack.c.h.b16 %v5384
    %v7576 = vunpack.c.l.b16 %v5385
    %v7577 = vunpack.c.h.b16 %v5385
    %v7578 = vunpack.c.l.b16 %v5386
    %v7579 = vunpack.c.h.b16 %v5386
    %v7580 = vunpack.c.l.b16 %v5387
    %v7581 = vunpack.c.h.b16 %v5387
    %v7582 = vunpack.c.l.b16 %v5388
    %v7583 = vunpack.c.h.b16 %v5388
    %v7584 = vunpack.c.l.b16 %v5389
    %v7585 = vunpack.c.h.b16 %v5389
    %v7586 = vunpack.c.l.b16 %v5390
    %v7587 = vunpack.c.h.b16 %v5390
    %v7588 = vunpack.c.l.b16 %v5391
    %v7589 = vunpack.c.h.b16 %v5391
    %v7590 = vunpack.c.l.b16 %v5392
    %v7591 = vunpack.c.h.b16 %v5392
    %v7592 = vunpack.c.l.b16 %v5393
    %v7593 = vunpack.c.h.b16 %v5393
    %v7594 = vunpack.c.l.b16 %v5394
    %v7595 = vunpack.c.h.b16 %v5394
    %v7596 = vunpack.c.l.b16 %v5395
    %v7597 = vunpack.c.h.b16 %v5395
    %v7598 = vunpack.c.l.b16 %v5396
    %v7599 = vunpack.c.h.b16 %v5396
    %v7600 = vunpack.c.l.b16 %v5397
    %v7601 = vunpack.c.h.b16 %v5397
    %v7602 = vunpack.c.l.b16 %v5398
    %v7603 = vunpack.c.h.b16 %v5398
    %v7604 = vunpack.c.l.b16 %v5399
    %v7605 = vunpack.c.h.b16 %v5399
    %v7606 = vunpack.c.l.b16 %v5400
    %v7607 = vunpack.c.h.b16 %v5400
    %v7608 = vunpack.c.l.b16 %v5401
    %v7609 = vunpack.c.h.b16 %v5401
    %v7610 = vunpack.c.l.b16 %v5402
    %v7611 = vunpack.c.h.b16 %v5402
    %v7612 = vunpack.c.l.b16 %v5403
    %v7613 = vunpack.c.h.b16 %v5403
    %v7614 = vunpack.c.l.b16 %v5404
    %v7615 = vunpack.c.h.b16 %v5404
    %v7616 = vunpack.c.l.b16 %v5405
    %v7617 = vunpack.c.h.b16 %v5405
    %v7618 = vunpack.c.l.b16 %v5406
    %v7619 = vunpack.c.h.b16 %v5406
    %v7620 = vunpack.c.l.b16 %v5407
    %v7621 = vunpack.c.h.b16 %v5407
    %v7622 = vunpack.c.l.b16 %v5408
    %v7623 = vunpack.c.h.b16 %v5408
    %v7624 = vunpack.c.l.b16 %v5409
    %v7625 = vunpack.c.h.b16 %v5409
    %v7626 = vunpack.c.l.b16 %v5410
    %v7627 = vunpack.c.h.b16 %v5410
    %v7628 = vunpack.c.l.b16 %v5411
    %v7629 = vunpack.c.h.b16 %v5411
    %v7630 = vunpack.c.l.b16 %v5412
    %v7631 = vunpack.c.h.b16 %v5412
    %v7632 = vunpack.c.l.b16 %v5413
    %v7633 = vunpack.c.h.b16 %v5413
    %v7634 = vunpack.c.l.b16 %v5414
    %v7635 = vunpack.c.h.b16 %v5414
    %v7636 = vunpack.c.l.b16 %v5415
    %v7637 = vunpack.c.h.b16 %v5415
    %v7638 = vunpack.c.l.b16 %v5416
    %v7639 = vunpack.c.h.b16 %v5416
    %v7640 = vunpack.c.l.b16 %v5417
    %v7641 = vunpack.c.h.b16 %v5417
    %v7642 = vunpack.c.l.b16 %v5418
    %v7643 = vunpack.c.h.b16 %v5418
    %v7644 = vunpack.c.l.b16 %v5419
    %v7645 = vunpack.c.h.b16 %v5419
    %v7646 = vunpack.c.l.b16 %v5420
    %v7647 = vunpack.c.h.b16 %v5420
    %v7648 = vunpack.c.l.b16 %v5421
    %v7649 = vunpack.c.h.b16 %v5421
    %v7650 = vunpack.c.l.b16 %v5422
    %v7651 = vunpack.c.h.b16 %v5422
    %v7652 = vunpack.c.l.b16 %v5423
    %v7653 = vunpack.c.h.b16 %v5423
    %v7654 = vunpack.c.l.b16 %v5424
    %v7655 = vunpack.c.h.b16 %v5424
    %v7656 = vunpack.c.l.b16 %v5425
    %v7657 = vunpack.c.h.b16 %v5425
    %v7658 = vunpack.c.l.b16 %v5426
    %v7659 = vunpack.c.h.b16 %v5426
    %v7660 = vunpack.c.l.b16 %v5427
    %v7661 = vunpack.c.h.b16 %v5427
    %v7662 = vunpack.c.l.b16 %v5428
    %v7663 = vunpack.c.h.b16 %v5428
    %v7664 = vunpack.c.l.b16 %v5429
    %v7665 = vunpack.c.h.b16 %v5429
    %v7666 = vunpack.c.l.b16 %v5430
    %v7667 = vunpack.c.h.b16 %v5430
    %v7668 = vunpack.c.l.b16 %v5431
    %v7669 = vunpack.c.h.b16 %v5431
    %v7670 = vunpack.c.l.b16 %v5432
    %v7671 = vunpack.c.h.b16 %v5432
    %v7672 = vunpack.c.l.b16 %v5433
    %v7673 = vunpack.c.h.b16 %v5433
    %v7674 = vunpack.c.l.b16 %v5434
    %v7675 = vunpack.c.h.b16 %v5434
    %v7676 = vunpack.c.l.b16 %v5435
    %v7677 = vunpack.c.h.b16 %v5435
    %v7678 = vunpack.c.l.b16 %v5436
    %v7679 = vunpack.c.h.b16 %v5436
    %v7680 = vunpack.c.l.b16 %v5437
    %v7681 = vunpack.c.h.b16 %v5437
    %v7682 = vunpack.c.l.b16 %v5438
    %v7683 = vunpack.c.h.b16 %v5438
    %v7684 = vunpack.c.l.b16 %v5439
    %v7685 = vunpack.c.h.b16 %v5439
    %v7686 = vunpack.c.l.b16 %v5440
    %v7687 = vunpack.c.h.b16 %v5440
    %v7688 = vunpack.c.l.b16 %v5441
    %v7689 = vunpack.c.h.b16 %v5441
    %v7690 = vunpack.c.l.b16 %v5442
    %v7691 = vunpack.c.h.b16 %v5442
    %v7692 = vunpack.c.l.b16 %v5443
    %v7693 = vunpack.c.h.b16 %v5443
    %v7694 = vunpack.c.l.b16 %v5444
    %v7695 = vunpack.c.h.b16 %v5444
    %v7696 = vunpack.c.l.b16 %v5445
    %v7697 = vunpack.c.h.b16 %v5445
    %v7698 = vunpack.c.l.b16 %v5446
    %v7699 = vunpack.c.h.b16 %v5446
    %v7700 = vunpack.c.l.b16 %v5447
    %v7701 = vunpack.c.h.b16 %v5447
    %v7702 = vunpack.c.l.b16 %v5448
    %v7703 = vunpack.c.h.b16 %v5448
    %v7704 = vunpack.c.l.b16 %v5449
    %v7705 = vunpack.c.h.b16 %v5449
    %v7706 = vunpack.c.l.b16 %v5450
    %v7707 = vunpack.c.h.b16 %v5450
    %v7708 = vunpack.c.l.b16 %v5451
    %v7709 = vunpack.c.h.b16 %v5451
    %v7710 = vunpack.c.l.b16 %v5452
    %v7711 = vunpack.c.h.b16 %v5452
    %v7712 = vunpack.c.l.b16 %v5453
    %v7713 = vunpack.c.h.b16 %v5453
    %v7714 = vunpack.c.l.b16 %v5454
    %v7715 = vunpack.c.h.b16 %v5454
    %v7716 = vunpack.c.l.b16 %v5455
    %v7717 = vunpack.c.h.b16 %v5455
    %v7718 = vunpack.c.l.b16 %v5456
    %v7719 = vunpack.c.h.b16 %v5456
    %v7720 = vunpack.c.l.b16 %v5457
    %v7721 = vunpack.c.h.b16 %v5457
    %v7722 = vunpack.c.l.b16 %v5458
    %v7723 = vunpack.c.h.b16 %v5458
    %v7724 = vunpack.c.l.b16 %v5459
    %v7725 = vunpack.c.h.b16 %v5459
    %v7726 = vunpack.c.l.b16 %v5460
    %v7727 = vunpack.c.h.b16 %v5460
    %v7728 = vunpack.c.l.b16 %v5461
    %v7729 = vunpack.c.h.b16 %v5461
    %v7730 = vunpack.c.l.b16 %v5462
    %v7731 = vunpack.c.h.b16 %v5462
    %v7732 = vunpack.c.l.b16 %v5463
    %v7733 = vunpack.c.h.b16 %v5463
    %v7734 = vunpack.c.l.b16 %v5464
    %v7735 = vunpack.c.h.b16 %v5464
    %v7736 = vunpack.c.l.b16 %v5465
    %v7737 = vunpack.c.h.b16 %v5465
    %v7738 = vunpack.c.l.b16 %v5466
    %v7739 = vunpack.c.h.b16 %v5466
    %v7740 = vunpack.c.l.b16 %v5467
    %v7741 = vunpack.c.h.b16 %v5467
    %v7742 = vunpack.c.l.b16 %v5468
    %v7743 = vunpack.c.h.b16 %v5468
    %v7744 = vunpack.c.l.b16 %v5469
    %v7745 = vunpack.c.h.b16 %v5469
    %v7746 = vunpack.c.l.b16 %v5470
    %v7747 = vunpack.c.h.b16 %v5470
    %v7748 = vunpack.c.l.b16 %v5471
    %v7749 = vunpack.c.h.b16 %v5471
    %v7750 = vunpack.c.l.b16 %v5472
    %v7751 = vunpack.c.h.b16 %v5472
    %v7752 = vunpack.c.l.b16 %v5473
    %v7753 = vunpack.c.h.b16 %v5473
    %v7754 = vunpack.c.l.b16 %v5474
    %v7755 = vunpack.c.h.b16 %v5474
    %v7756 = vunpack.c.l.b16 %v5475
    %v7757 = vunpack.c.h.b16 %v5475
    %v7758 = vunpack.c.l.b16 %v5476
    %v7759 = vunpack.c.h.b16 %v5476
    %v7760 = vunpack.c.l.b16 %v5477
    %v7761 = vunpack.c.h.b16 %v5477
    %v7762 = vunpack.c.l.b16 %v5478
    %v7763 = vunpack.c.h.b16 %v5478
    %v7764 = vunpack.c.l.b16 %v5479
    %v7765 = vunpack.c.h.b16 %v5479
    %v7766 = vunpack.c.l.b16 %v5480
    %v7767 = vunpack.c.h.b16 %v5480
    %v7768 = vunpack.c.l.b16 %v5481
    %v7769 = vunpack.c.h.b16 %v5481
    %v7770 = vunpack.c.l.b16 %v5482
    %v7771 = vunpack.c.h.b16 %v5482
    %v7772 = vunpack.c.l.b16 %v5483
    %v7773 = vunpack.c.h.b16 %v5483
    %v7774 = vunpack.c.l.b16 %v5484
    %v7775 = vunpack.c.h.b16 %v5484
    %v7776 = vunpack.c.l.b16 %v5485
    %v7777 = vunpack.c.h.b16 %v5485
    %v7778 = vunpack.c.l.b16 %v5486
    %v7779 = vunpack.c.h.b16 %v5486
    %v7780 = vunpack.c.l.b16 %v5487
    %v7781 = vunpack.c.h.b16 %v5487
    %v7782 = vunpack.c.l.b16 %v5488
    %v7783 = vunpack.c.h.b16 %v5488
    %v7784 = vunpack.c.l.b16 %v5489
    %v7785 = vunpack.c.h.b16 %v5489
    %v7786 = vunpack.c.l.b16 %v5490
    %v7787 = vunpack.c.h.b16 %v5490
    %v7788 = vunpack.c.l.b16 %v5491
    %v7789 = vunpack.c.h.b16 %v5491
    %v7790 = vunpack.c.l.b16 %v5492
    %v7791 = vunpack.c.h.b16 %v5492
    %v7792 = vunpack.c.l.b16 %v5493
    %v7793 = vunpack.c.h.b16 %v5493
    %v7794 = vunpack.c.l.b16 %v5494
    %v7795 = vunpack.c.h.b16 %v5494
    %v7796 = vunpack.c.l.b16 %v5495
    %v7797 = vunpack.c.h.b16 %v5495
    %v7798 = vunpack.c.l.b16 %v5496
    %v7799 = vunpack.c.h.b16 %v5496
    %v7800 = vunpack.c.l.b16 %v5497
    %v7801 = vunpack.c.h.b16 %v5497
    %v7802 = vunpack.c.l.b16 %v5498
    %v7803 = vunpack.c.h.b16 %v5498
    %v7804 = vunpack.c.l.b16 %v5499
    %v7805 = vunpack.c.h.b16 %v5499
    %v7806 = vunpack.c.l.b16 %v5500
    %v7807 = vunpack.c.h.b16 %v5500
    %v7808 = vunpack.c.l.b16 %v5501
    %v7809 = vunpack.c.h.b16 %v5501
    %v7810 = vunpack.c.l.b16 %v5502
    %v7811 = vunpack.c.h.b16 %v5502
    %v7812 = vunpack.c.l.b16 %v5503
    %v7813 = vunpack.c.h.b16 %v5503
    %v7814 = vunpack.c.l.b16 %v5504
    %v7815 = vunpack.c.h.b16 %v5504
    %v7816 = vunpack.c.l.b16 %v5505
    %v7817 = vunpack.c.h.b16 %v5505
    %v7818 = vunpack.c.l.b16 %v5506
    %v7819 = vunpack.c.h.b16 %v5506
    %v7820 = vunpack.c.l.b16 %v5507
    %v7821 = vunpack.c.h.b16 %v5507
    %v7822 = vunpack.c.l.b16 %v5508
    %v7823 = vunpack.c.h.b16 %v5508
    %v7824 = vunpack.c.l.b16 %v5509
    %v7825 = vunpack.c.h.b16 %v5509
    %v7826 = vunpack.c.l.b16 %v5510
    %v7827 = vunpack.c.h.b16 %v5510
    %v7828 = vunpack.c.l.b16 %v5511
    %v7829 = vunpack.c.h.b16 %v5511
    %v7830 = vunpack.c.l.b16 %v5512
    %v7831 = vunpack.c.h.b16 %v5512
    %v7832 = vunpack.c.l.b16 %v5513
    %v7833 = vunpack.c.h.b16 %v5513
    %v7834 = vunpack.c.l.b16 %v5514
    %v7835 = vunpack.c.h.b16 %v5514
    %v7836 = vunpack.c.l.b16 %v5515
    %v7837 = vunpack.c.h.b16 %v5515
    %v7838 = vunpack.c.l.b16 %v5516
    %v7839 = vunpack.c.h.b16 %v5516
    %v7840 = vunpack.c.l.b16 %v5517
    %v7841 = vunpack.c.h.b16 %v5517
    %v7842 = vunpack.c.l.b16 %v5518
    %v7843 = vunpack.c.h.b16 %v5518
    %v7844 = vunpack.c.l.b16 %v5519
    %v7845 = vunpack.c.h.b16 %v5519
    %v7846 = vunpack.c.l.b16 %v5520
    %v7847 = vunpack.c.h.b16 %v5520
    %v7848 = vunpack.c.l.b16 %v5521
    %v7849 = vunpack.c.h.b16 %v5521
    %v7850 = vunpack.c.l.b16 %v5522
    %v7851 = vunpack.c.h.b16 %v5522
    %v7852 = vunpack.c.l.b16 %v5523
    %v7853 = vunpack.c.h.b16 %v5523
    %v7854 = vunpack.c.l.b16 %v5524
    %v7855 = vunpack.c.h.b16 %v5524
    %v7856 = vunpack.c.l.b16 %v5525
    %v7857 = vunpack.c.h.b16 %v5525
    %v7858 = vunpack.c.l.b16 %v5526
    %v7859 = vunpack.c.h.b16 %v5526
    %v7860 = vunpack.c.l.b16 %v5527
    %v7861 = vunpack.c.h.b16 %v5527
    %v7862 = vunpack.c.l.b16 %v5528
    %v7863 = vunpack.c.h.b16 %v5528
    %v7864 = vunpack.c.l.b16 %v5529
    %v7865 = vunpack.c.h.b16 %v5529
    %v7866 = vunpack.c.l.b16 %v5530
    %v7867 = vunpack.c.h.b16 %v5530
    %v7868 = vunpack.c.l.b16 %v5531
    %v7869 = vunpack.c.h.b16 %v5531
    %v7870 = vunpack.c.l.b16 %v5532
    %v7871 = vunpack.c.h.b16 %v5532
    %v7872 = vunpack.c.l.b16 %v5533
    %v7873 = vunpack.c.h.b16 %v5533
    %v7874 = vunpack.c.l.b16 %v5534
    %v7875 = vunpack.c.h.b16 %v5534
    %v7876 = vunpack.c.l.b16 %v5535
    %v7877 = vunpack.c.h.b16 %v5535
    %v7878 = vunpack.c.l.b16 %v5536
    %v7879 = vunpack.c.h.b16 %v5536
    %v7880 = vunpack.c.l.b16 %v5537
    %v7881 = vunpack.c.h.b16 %v5537
    %v7882 = vunpack.c.l.b16 %v5538
    %v7883 = vunpack.c.h.b16 %v5538
    %v7884 = vunpack.c.l.b16 %v5539
    %v7885 = vunpack.c.h.b16 %v5539
    %v7886 = vunpack.c.l.b16 %v5540
    %v7887 = vunpack.c.h.b16 %v5540
    %v7888 = vunpack.c.l.b16 %v5541
    %v7889 = vunpack.c.h.b16 %v5541
    %v7890 = vunpack.c.l.b16 %v5542
    %v7891 = vunpack.c.h.b16 %v5542
    %v7892 = vunpack.c.l.b16 %v5543
    %v7893 = vunpack.c.h.b16 %v5543
    %v7894 = vunpack.c.l.b16 %v5544
    %v7895 = vunpack.c.h.b16 %v5544
    %v7896 = vunpack.c.l.b16 %v5545
    %v7897 = vunpack.c.h.b16 %v5545
    %v7898 = vunpack.c.l.b16 %v5546
    %v7899 = vunpack.c.h.b16 %v5546
    %v7900 = vunpack.c.l.b16 %v5547
    %v7901 = vunpack.c.h.b16 %v5547
    %v7902 = vunpack.c.l.b16 %v5548
    %v7903 = vunpack.c.h.b16 %v5548
    %v7904 = vunpack.c.l.b16 %v5549
    %v7905 = vunpack.c.h.b16 %v5549
    %v7906 = vunpack.c.l.b16 %v5550
    %v7907 = vunpack.c.h.b16 %v5550
    %v7908 = vunpack.c.l.b16 %v5551
    %v7909 = vunpack.c.h.b16 %v5551
    %v7910 = vunpack.c.l.b16 %v5552
    %v7911 = vunpack.c.h.b16 %v5552
    %v7912 = vunpack.c.l.b16 %v5553
    %v7913 = vunpack.c.h.b16 %v5553
    %v7914 = vunpack.c.l.b16 %v5554
    %v7915 = vunpack.c.h.b16 %v5554
    %v7916 = vunpack.c.l.b16 %v5555
    %v7917 = vunpack.c.h.b16 %v5555
    %v7918 = vunpack.c.l.b16 %v5556
    %v7919 = vunpack.c.h.b16 %v5556
    %v7920 = vunpack.c.l.b16 %v5557
    %v7921 = vunpack.c.h.b16 %v5557
    %v7922 = vunpack.c.l.b16 %v5558
    %v7923 = vunpack.c.h.b16 %v5558
    %v7924 = vunpack.c.l.b16 %v5559
    %v7925 = vunpack.c.h.b16 %v5559
    %v7926 = vunpack.c.l.b16 %v5560
    %v7927 = vunpack.c.h.b16 %v5560
    %v7928 = vunpack.c.l.b16 %v5561
    %v7929 = vunpack.c.h.b16 %v5561
    %v7930 = vunpack.c.l.b16 %v5562
    %v7931 = vunpack.c.h.b16 %v5562
    %v7932 = vunpack.c.l.b16 %v5563
    %v7933 = vunpack.c.h.b16 %v5563
    %v7934 = vunpack.c.l.b16 %v5564
    %v7935 = vunpack.c.h.b16 %v5564
    %v7936 = vunpack.c.l.b16 %v5565
    %v7937 = vunpack.c.h.b16 %v5565
    %v7938 = vunpack.c.l.b16 %v5566
    %v7939 = vunpack.c.h.b16 %v5566
    %v7940 = vunpack.c.l.b16 %v5567
    %v7941 = vunpack.c.h.b16 %v5567
    %v7942 = vunpack.c.l.b16 %v5568
    %v7943 = vunpack.c.h.b16 %v5568
    %v7944 = vunpack.c.l.b16 %v5569
    %v7945 = vunpack.c.h.b16 %v5569
    %v7946 = vunpack.c.l.b16 %v5570
    %v7947 = vunpack.c.h.b16 %v5570
    %v7948 = vunpack.c.l.b16 %v5571
    %v7949 = vunpack.c.h.b16 %v5571
    %v7950 = vunpack.c.l.b16 %v5572
    %v7951 = vunpack.c.h.b16 %v5572
    %v7952 = vunpack.c.l.b16 %v5573
    %v7953 = vunpack.c.h.b16 %v5573
    %v7954 = vunpack.c.l.b16 %v5574
    %v7955 = vunpack.c.h.b16 %v5574
    %v7956 = vunpack.c.l.b16 %v5575
    %v7957 = vunpack.c.h.b16 %v5575
    %v7958 = vunpack.c.l.b16 %v5576
    %v7959 = vunpack.c.h.b16 %v5576
    %v7960 = vunpack.c.l.b16 %v5577
    %v7961 = vunpack.c.h.b16 %v5577
    %v7962 = vunpack.c.l.b16 %v5578
    %v7963 = vunpack.c.h.b16 %v5578
    %v7964 = vunpack.c.l.b16 %v5579
    %v7965 = vunpack.c.h.b16 %v5579
    %v7966 = vunpack.c.l.b16 %v5580
    %v7967 = vunpack.c.h.b16 %v5580
    %v7968 = vunpack.c.l.b16 %v5581
    %v7969 = vunpack.c.h.b16 %v5581
    %v7970 = vunpack.c.l.b16 %v5582
    %v7971 = vunpack.c.h.b16 %v5582
    %v7972 = vunpack.c.l.b16 %v5583
    %v7973 = vunpack.c.h.b16 %v5583
    %v7974 = vunpack.c.l.b16 %v5584
    %v7975 = vunpack.c.h.b16 %v5584
    %v7976 = vunpack.c.l.b16 %v5585
    %v7977 = vunpack.c.h.b16 %v5585
    %v7978 = vunpack.c.l.b16 %v5586
    %v7979 = vunpack.c.h.b16 %v5586
    %v7980 = vunpack.c.l.b16 %v5587
    %v7981 = vunpack.c.h.b16 %v5587
    %v7982 = vunpack.c.l.b16 %v5588
    %v7983 = vunpack.c.h.b16 %v5588
    %v7984 = vunpack.c.l.b16 %v5589
    %v7985 = vunpack.c.h.b16 %v5589
    %v7986 = vunpack.c.l.b16 %v5590
    %v7987 = vunpack.c.h.b16 %v5590
    %v7988 = vunpack.c.l.b16 %v5591
    %v7989 = vunpack.c.h.b16 %v5591
    %v7990 = vunpack.c.l.b16 %v5592
    %v7991 = vunpack.c.h.b16 %v5592
    %v7992 = vunpack.c.l.b16 %v5593
    %v7993 = vunpack.c.h.b16 %v5593
    %v7994 = vunpack.c.l.b16 %v5594
    %v7995 = vunpack.c.h.b16 %v5594
    %v7996 = vunpack.c.l.b16 %v5595
    %v7997 = vunpack.c.h.b16 %v5595
    %v7998 = vunpack.c.l.b16 %v5596
    %v7999 = vunpack.c.h.b16 %v5596
    %v8000 = vunpack.c.l.b16 %v5597
    %v8001 = vunpack.c.h.b16 %v5597
    %v8002 = vunpack.c.l.b16 %v5598
    %v8003 = vunpack.c.h.b16 %v5598
    %v8004 = vunpack.c.l.b16 %v5599
    %v8005 = vunpack.c.h.b16 %v5599
    %v8006 = vunpack.c.l.b16 %v5600
    %v8007 = vunpack.c.h.b16 %v5600
    %v8008 = vunpack.c.l.b16 %v5601
    %v8009 = vunpack.c.h.b16 %v5601
    %v8010 = vunpack.c.l.b16 %v5602
    %v8011 = vunpack.c.h.b16 %v5602
    %v8012 = vunpack.c.l.b16 %v5603
    %v8013 = vunpack.c.h.b16 %v5603
    %v8014 = vunpack.c.l.b16 %v5604
    %v8015 = vunpack.c.h.b16 %v5604
    %v8016 = vunpack.c.l.b16 %v5605
    %v8017 = vunpack.c.h.b16 %v5605
    %v8018 = vunpack.c.l.b16 %v5606
    %v8019 = vunpack.c.h.b16 %v5606
    %v8020 = vunpack.c.l.b16 %v5607
    %v8021 = vunpack.c.h.b16 %v5607
    %v8022 = vunpack.c.l.b16 %v5608
    %v8023 = vunpack.c.h.b16 %v5608
    %v8024 = vunpack.c.l.b16 %v5609
    %v8025 = vunpack.c.h.b16 %v5609
    %v8026 = vunpack.c.l.b16 %v5610
    %v8027 = vunpack.c.h.b16 %v5610
    %v8028 = vunpack.c.l.b16 %v5611
    %v8029 = vunpack.c.h.b16 %v5611
    %v8030 = vunpack.c.l.b16 %v5612
    %v8031 = vunpack.c.h.b16 %v5612
    %v8032 = vunpack.c.l.b16 %v5613
    %v8033 = vunpack.c.h.b16 %v5613
    %v8034 = vunpack.c.l.b16 %v5614
    %v8035 = vunpack.c.h.b16 %v5614
    %v8036 = vunpack.c.l.b16 %v5615
    %v8037 = vunpack.c.h.b16 %v5615
    %v8038 = vunpack.c.l.b16 %v5616
    %v8039 = vunpack.c.h.b16 %v5616
    %v8040 = vunpack.c.l.b16 %v5617
    %v8041 = vunpack.c.h.b16 %v5617
    %v8042 = vunpack.c.l.b16 %v5618
    %v8043 = vunpack.c.h.b16 %v5618
    %v8044 = vunpack.c.l.b16 %v5619
    %v8045 = vunpack.c.h.b16 %v5619
    %v8046 = vunpack.c.l.b16 %v5620
    %v8047 = vunpack.c.h.b16 %v5620
    %v8048 = vunpack.c.l.b16 %v5621
    %v8049 = vunpack.c.h.b16 %v5621
    %v8050 = vunpack.c.l.b16 %v5622
    %v8051 = vunpack.c.h.b16 %v5622
    %v8052 = vunpack.c.l.b16 %v5623
    %v8053 = vunpack.c.h.b16 %v5623
    %v8054 = vunpack.c.l.b16 %v5624
    %v8055 = vunpack.c.h.b16 %v5624
    %v8056 = vunpack.c.l.b16 %v5625
    %v8057 = vunpack.c.h.b16 %v5625
    %v8058 = vunpack.c.l.b16 %v5626
    %v8059 = vunpack.c.h.b16 %v5626
    %v8060 = vunpack.c.l.b16 %v5627
    %v8061 = vunpack.c.h.b16 %v5627
    %v8062 = vunpack.c.l.b16 %v5628
    %v8063 = vunpack.c.h.b16 %v5628
    %v8064 = vunpack.c.l.b16 %v5629
    %v8065 = vunpack.c.h.b16 %v5629
    %v8066 = vunpack.c.l.b16 %v5630
    %v8067 = vunpack.c.h.b16 %v5630
    %v8068 = vunpack.c.l.b16 %v5631
    %v8069 = vunpack.c.h.b16 %v5631
    %v8070 = vunpack.c.l.b16 %v5632
    %v8071 = vunpack.c.h.b16 %v5632
    %v8072 = vunpack.c.l.b16 %v5633
    %v8073 = vunpack.c.h.b16 %v5633
    %v8074 = vunpack.c.l.b16 %v5634
    %v8075 = vunpack.c.h.b16 %v5634
    %v8076 = vunpack.c.l.b16 %v5635
    %v8077 = vunpack.c.h.b16 %v5635
    %v8078 = vunpack.c.l.b16 %v5636
    %v8079 = vunpack.c.h.b16 %v5636
    %v8080 = vunpack.c.l.b16 %v5637
    %v8081 = vunpack.c.h.b16 %v5637
    %v8082 = vunpack.c.l.b16 %v5638
    %v8083 = vunpack.c.h.b16 %v5638
    %v8084 = vunpack.c.l.b16 %v5639
    %v8085 = vunpack.c.h.b16 %v5639
    %v8086 = vunpack.c.l.b16 %v5640
    %v8087 = vunpack.c.h.b16 %v5640
    %v8088 = vunpack.c.l.b16 %v5641
    %v8089 = vunpack.c.h.b16 %v5641
    %v8090 = vunpack.c.l.b16 %v5642
    %v8091 = vunpack.c.h.b16 %v5642
    %v8092 = vunpack.c.l.b16 %v5643
    %v8093 = vunpack.c.h.b16 %v5643
    %v8094 = vunpack.c.l.b16 %v5644
    %v8095 = vunpack.c.h.b16 %v5644
    %v8096 = vunpack.c.l.b16 %v5645
    %v8097 = vunpack.c.h.b16 %v5645
    %v8098 = vunpack.c.l.b16 %v5646
    %v8099 = vunpack.c.h.b16 %v5646
    %v8100 = vunpack.c.l.b16 %v5647
    %v8101 = vunpack.c.h.b16 %v5647
    %v8102 = vunpack.c.l.b16 %v5648
    %v8103 = vunpack.c.h.b16 %v5648
    %v8104 = vunpack.c.l.b16 %v5649
    %v8105 = vunpack.c.h.b16 %v5649
    %v8106 = vunpack.c.l.b16 %v5650
    %v8107 = vunpack.c.h.b16 %v5650
    %v8108 = vunpack.c.l.b16 %v5651
    %v8109 = vunpack.c.h.b16 %v5651
    %v8110 = vunpack.c.l.b16 %v5652
    %v8111 = vunpack.c.h.b16 %v5652
    %v8112 = vunpack.c.l.b16 %v5653
    %v8113 = vunpack.c.h.b16 %v5653
    %v8114 = vunpack.c.l.b16 %v5654
    %v8115 = vunpack.c.h.b16 %v5654
    %v8116 = vunpack.c.l.b16 %v5655
    %v8117 = vunpack.c.h.b16 %v5655
    %v8118 = vunpack.c.l.b16 %v5656
    %v8119 = vunpack.c.h.b16 %v5656
    %v8120 = vunpack.c.l.b16 %v5657
    %v8121 = vunpack.c.h.b16 %v5657
    %v8122 = vunpack.c.l.b16 %v5658
    %v8123 = vunpack.c.h.b16 %v5658
    %v8124 = vunpack.c.l.b16 %v5659
    %v8125 = vunpack.c.h.b16 %v5659
    %v8126 = vunpack.c.l.b16 %v5660
    %v8127 = vunpack.c.h.b16 %v5660
    %v8128 = vunpack.c.l.b16 %v5661
    %v8129 = vunpack.c.h.b16 %v5661
    %v8130 = vunpack.c.l.b16 %v5662
    %v8131 = vunpack.c.h.b16 %v5662
    %v8132 = vunpack.c.l.b16 %v5663
    %v8133 = vunpack.c.h.b16 %v5663
    %v8134 = vunpack.c.l.b16 %v5664
    %v8135 = vunpack.c.h.b16 %v5664
    %v8136 = vunpack.c.l.b16 %v5665
    %v8137 = vunpack.c.h.b16 %v5665
    %v8138 = vunpack.c.l.b16 %v5666
    %v8139 = vunpack.c.h.b16 %v5666
    %v8140 = vunpack.c.l.b16 %v5667
    %v8141 = vunpack.c.h.b16 %v5667
    %v8142 = vunpack.c.l.b16 %v5668
    %v8143 = vunpack.c.h.b16 %v5668
    %v8144 = vunpack.c.l.b16 %v5669
    %v8145 = vunpack.c.h.b16 %v5669
    %v8146 = vunpack.c.l.b16 %v5670
    %v8147 = vunpack.c.h.b16 %v5670
    %v8148 = vunpack.c.l.b16 %v5671
    %v8149 = vunpack.c.h.b16 %v5671
    %v8150 = vunpack.c.l.b16 %v5672
    %v8151 = vunpack.c.h.b16 %v5672
    %v8152 = vunpack.c.l.b16 %v5673
    %v8153 = vunpack.c.h.b16 %v5673
    %v8154 = vunpack.c.l.b16 %v5674
    %v8155 = vunpack.c.h.b16 %v5674
    %v8156 = vunpack.c.l.b16 %v5675
    %v8157 = vunpack.c.h.b16 %v5675
    %v8158 = vunpack.c.l.b16 %v5676
    %v8159 = vunpack.c.h.b16 %v5676
    %v8160 = vunpack.c.l.b16 %v5677
    %v8161 = vunpack.c.h.b16 %v5677
    %v8162 = vunpack.c.l.b16 %v5678
    %v8163 = vunpack.c.h.b16 %v5678
    %v8164 = vunpack.c.l.b16 %v5679
    %v8165 = vunpack.c.h.b16 %v5679
    %v8166 = vunpack.c.l.b16 %v5680
    %v8167 = vunpack.c.h.b16 %v5680
    %v8168 = vunpack.c.l.b16 %v5681
    %v8169 = vunpack.c.h.b16 %v5681
    %v8170 = vunpack.c.l.b16 %v5682
    %v8171 = vunpack.c.h.b16 %v5682
    %v8172 = vunpack.c.l.b16 %v5683
    %v8173 = vunpack.c.h.b16 %v5683
    %v8174 = vunpack.c.l.b16 %v5684
    %v8175 = vunpack.c.h.b16 %v5684
    %v8176 = vunpack.c.l.b16 %v5685
    %v8177 = vunpack.c.h.b16 %v5685
    %v8178 = vunpack.c.l.b16 %v5686
    %v8179 = vunpack.c.h.b16 %v5686
    %v8180 = vunpack.c.l.b16 %v5687
    %v8181 = vunpack.c.h.b16 %v5687
    %v8182 = vunpack.c.l.b16 %v5688
    %v8183 = vunpack.c.h.b16 %v5688
    %v8184 = vunpack.c.l.b16 %v5689
    %v8185 = vunpack.c.h.b16 %v5689
    %v8186 = vunpack.c.l.b16 %v5690
    %v8187 = vunpack.c.h.b16 %v5690
    %v8188 = vunpack.c.l.b16 %v5691
    %v8189 = vunpack.c.h.b16 %v5691
    %v8190 = vunpack.c.l.b16 %v5692
    %v8191 = vunpack.c.h.b16 %v5692
    %v8192 = vunpack.c.l.b16 %v5693
    %v8193 = vunpack.c.h.b16 %v5693
    %v8194 = vunpack.c.l.b16 %v5694
    %v8195 = vunpack.c.h.b16 %v5694
    %v8196 = vunpack.c.l.b16 %v5695
    %v8197 = vunpack.c.h.b16 %v5695
    %v8198 = vunpack.c.l.b16 %v5696
    %v8199 = vunpack.c.h.b16 %v5696
    %v8200 = vunpack.c.l.b16 %v5697
    %v8201 = vunpack.c.h.b16 %v5697
    %v8202 = vunpack.c.l.b16 %v5698
    %v8203 = vunpack.c.h.b16 %v5698
    %v8204 = vunpack.c.l.b16 %v5699
    %v8205 = vunpack.c.h.b16 %v5699
    %v8206 = vunpack.c.l.b16 %v5700
    %v8207 = vunpack.c.h.b16 %v5700
    %v8208 = vunpack.c.l.b16 %v5701
    %v8209 = vunpack.c.h.b16 %v5701
    %v8210 = vunpack.c.l.b16 %v5702
    %v8211 = vunpack.c.h.b16 %v5702
    %v8212 = vunpack.c.l.b16 %v5703
    %v8213 = vunpack.c.h.b16 %v5703
    %v8214 = vunpack.c.l.b16 %v5704
    %v8215 = vunpack.c.h.b16 %v5704
    %v8216 = vunpack.c.l.b16 %v5705
    %v8217 = vunpack.c.h.b16 %v5705
    %v8218 = vunpack.c.l.b16 %v5706
    %v8219 = vunpack.c.h.b16 %v5706
    %v8220 = vunpack.c.l.b16 %v5707
    %v8221 = vunpack.c.h.b16 %v5707
    %v8222 = vunpack.c.l.b16 %v5708
    %v8223 = vunpack.c.h.b16 %v5708
    %v8224 = vunpack.c.l.b16 %v5709
    %v8225 = vunpack.c.h.b16 %v5709
    %v8226 = vunpack.c.l.b16 %v5710
    %v8227 = vunpack.c.h.b16 %v5710
    %v8228 = vunpack.c.l.b16 %v5711
    %v8229 = vunpack.c.h.b16 %v5711
    %v8230 = vunpack.c.l.b16 %v5712
    %v8231 = vunpack.c.h.b16 %v5712
    %v8232 = vunpack.c.l.b16 %v5713
    %v8233 = vunpack.c.h.b16 %v5713
    %v8234 = vunpack.c.l.b16 %v5714
    %v8235 = vunpack.c.h.b16 %v5714
    %v8236 = vunpack.c.l.b16 %v5715
    %v8237 = vunpack.c.h.b16 %v5715
    %v8238 = vunpack.c.l.b16 %v5716
    %v8239 = vunpack.c.h.b16 %v5716
    %v8240 = vunpack.c.l.b16 %v5717
    %v8241 = vunpack.c.h.b16 %v5717
    %v8242 = vunpack.c.l.b16 %v5718
    %v8243 = vunpack.c.h.b16 %v5718
    %v8244 = vunpack.c.l.b16 %v5719
    %v8245 = vunpack.c.h.b16 %v5719
    %v8246 = vunpack.c.l.b16 %v5720
    %v8247 = vunpack.c.h.b16 %v5720
    %v8248 = vunpack.c.l.b16 %v5721
    %v8249 = vunpack.c.h.b16 %v5721
    %v8250 = vunpack.c.l.b16 %v5722
    %v8251 = vunpack.c.h.b16 %v5722
    %v8252 = vunpack.c.l.b16 %v5723
    %v8253 = vunpack.c.h.b16 %v5723
    %v8254 = vunpack.c.l.b16 %v5724
    %v8255 = vunpack.c.h.b16 %v5724
    %v8256 = vunpack.c.l.b16 %v5725
    %v8257 = vunpack.c.h.b16 %v5725
    %v8258 = vunpack.c.l.b16 %v5726
    %v8259 = vunpack.c.h.b16 %v5726
    %v8260 = vunpack.c.l.b16 %v5727
    %v8261 = vunpack.c.h.b16 %v5727
    %v8262 = vunpack.c.l.b16 %v5728
    %v8263 = vunpack.c.h.b16 %v5728
    %v8264 = vunpack.c.l.b16 %v5729
    %v8265 = vunpack.c.h.b16 %v5729
    %v8266 = vunpack.c.l.b16 %v5730
    %v8267 = vunpack.c.h.b16 %v5730
    %v8268 = vunpack.c.l.b16 %v5731
    %v8269 = vunpack.c.h.b16 %v5731
    %v8270 = vunpack.c.l.b16 %v5732
    %v8271 = vunpack.c.h.b16 %v5732
    %v8272 = vunpack.c.l.b16 %v5733
    %v8273 = vunpack.c.h.b16 %v5733
    %v8274 = vunpack.c.l.b16 %v5734
    %v8275 = vunpack.c.h.b16 %v5734
    %v8276 = vunpack.c.l.b16 %v5735
    %v8277 = vunpack.c.h.b16 %v5735
    %v8278 = vunpack.c.l.b16 %v5736
    %v8279 = vunpack.c.h.b16 %v5736
    %v8280 = vunpack.c.l.b16 %v5737
    %v8281 = vunpack.c.h.b16 %v5737
    %v8282 = vunpack.c.l.b16 %v5738
    %v8283 = vunpack.c.h.b16 %v5738
    %v8284 = vunpack.c.l.b16 %v5739
    %v8285 = vunpack.c.h.b16 %v5739
    %v8286 = vunpack.c.l.b16 %v5740
    %v8287 = vunpack.c.h.b16 %v5740
    %v8288 = vunpack.c.l.b16 %v5741
    %v8289 = vunpack.c.h.b16 %v5741
    %v8290 = vunpack.c.l.b16 %v5742
    %v8291 = vunpack.c.h.b16 %v5742
    %v8292 = vunpack.c.l.b16 %v5743
    %v8293 = vunpack.c.h.b16 %v5743
    %v8294 = vunpack.c.l.b16 %v5744
    %v8295 = vunpack.c.h.b16 %v5744
    %v8296 = vunpack.c.l.b16 %v5745
    %v8297 = vunpack.c.h.b16 %v5745
    %v8298 = vunpack.c.l.b16 %v5746
    %v8299 = vunpack.c.h.b16 %v5746
    %v8300 = vunpack.c.l.b16 %v5747
    %v8301 = vunpack.c.h.b16 %v5747
    %v8302 = vunpack.c.l.b16 %v5748
    %v8303 = vunpack.c.h.b16 %v5748
    %v8304 = vunpack.c.l.b16 %v5749
    %v8305 = vunpack.c.h.b16 %v5749
    %v8306 = vunpack.c.l.b16 %v5750
    %v8307 = vunpack.c.h.b16 %v5750
    %v8308 = vunpack.c.l.b16 %v5751
    %v8309 = vunpack.c.h.b16 %v5751
    %v8310 = vunpack.c.l.b16 %v5752
    %v8311 = vunpack.c.h.b16 %v5752
    %v8312 = vunpack.c.l.b16 %v5753
    %v8313 = vunpack.c.h.b16 %v5753
    %v8314 = vunpack.c.l.b16 %v5754
    %v8315 = vunpack.c.h.b16 %v5754
    %v8316 = vunpack.c.l.b16 %v5755
    %v8317 = vunpack.c.h.b16 %v5755
    %v8318 = vunpack.c.l.b16 %v5756
    %v8319 = vunpack.c.h.b16 %v5756
    %v8320 = vunpack.c.l.b16 %v5757
    %v8321 = vunpack.c.h.b16 %v5757
    %v8322 = vunpack.c.l.b16 %v5758
    %v8323 = vunpack.c.h.b16 %v5758
    %v8324 = vunpack.c.l.b16 %v5759
    %v8325 = vunpack.c.h.b16 %v5759
    %v8326 = vunpack.c.l.b16 %v5760
    %v8327 = vunpack.c.h.b16 %v5760
    %v8328 = vunpack.c.l.b16 %v5761
    %v8329 = vunpack.c.h.b16 %v5761
    %v8330 = vunpack.c.l.b16 %v5762
    %v8331 = vunpack.c.h.b16 %v5762
    %v8332 = vunpack.c.l.b16 %v5763
    %v8333 = vunpack.c.h.b16 %v5763
    %v8334 = vunpack.c.l.b16 %v5764
    %v8335 = vunpack.c.h.b16 %v5764
    %v8336 = vunpack.c.l.b16 %v5765
    %v8337 = vunpack.c.h.b16 %v5765
    %v8338 = vunpack.c.l.b16 %v5766
    %v8339 = vunpack.c.h.b16 %v5766
    %v8340 = vunpack.c.l.b16 %v5767
    %v8341 = vunpack.c.h.b16 %v5767
    %v8342 = vunpack.c.l.b16 %v5768
    %v8343 = vunpack.c.h.b16 %v5768
    %v8344 = vunpack.c.l.b16 %v5769
    %v8345 = vunpack.c.h.b16 %v5769
    %v8346 = vunpack.c.l.b16 %v5770
    %v8347 = vunpack.c.h.b16 %v5770
    %v8348 = vunpack.c.l.b16 %v5771
    %v8349 = vunpack.c.h.b16 %v5771
    %v8350 = vunpack.c.l.b16 %v5772
    %v8351 = vunpack.c.h.b16 %v5772
    %v8352 = vunpack.c.l.b16 %v5773
    %v8353 = vunpack.c.h.b16 %v5773
    %v8354 = vunpack.c.l.b16 %v5774
    %v8355 = vunpack.c.h.b16 %v5774
    %v8356 = vunpack.c.l.b16 %v5775
    %v8357 = vunpack.c.h.b16 %v5775
    %v8358 = vunpack.c.l.b16 %v5776
    %v8359 = vunpack.c.h.b16 %v5776
    %v8360 = vunpack.c.l.b16 %v5777
    %v8361 = vunpack.c.h.b16 %v5777
    %v8362 = vunpack.c.l.b16 %v5778
    %v8363 = vunpack.c.h.b16 %v5778
    %v8364 = vunpack.c.l.b16 %v5779
    %v8365 = vunpack.c.h.b16 %v5779
    %v8366 = vunpack.c.l.b16 %v5780
    %v8367 = vunpack.c.h.b16 %v5780
    %v8368 = vunpack.c.l.b16 %v5781
    %v8369 = vunpack.c.h.b16 %v5781
    %v8370 = vunpack.c.l.b16 %v5782
    %v8371 = vunpack.c.h.b16 %v5782
    %v8372 = vunpack.c.l.b16 %v5783
    %v8373 = vunpack.c.h.b16 %v5783
    %v8374 = vunpack.c.l.b16 %v5784
    %v8375 = vunpack.c.h.b16 %v5784
    %v8376 = vunpack.c.l.b16 %v5785
    %v8377 = vunpack.c.h.b16 %v5785
    %v8378 = vunpack.c.l.b16 %v5786
    %v8379 = vunpack.c.h.b16 %v5786
    %v8380 = vunpack.c.l.b16 %v5787
    %v8381 = vunpack.c.h.b16 %v5787
    %v8382 = vunpack.c.l.b16 %v5788
    %v8383 = vunpack.c.h.b16 %v5788
    %v8384 = vunpack.c.l.b16 %v5789
    %v8385 = vunpack.c.h.b16 %v5789
    %v8386 = vunpack.c.l.b16 %v5790
    %v8387 = vunpack.c.h.b16 %v5790
    %v8388 = vunpack.c.l.b16 %v5791
    %v8389 = vunpack.c.h.b16 %v5791
    %v8390 = vunpack.c.l.b16 %v5792
    %v8391 = vunpack.c.h.b16 %v5792
    %v8392 = vunpack.c.l.b16 %v5793
    %v8393 = vunpack.c.h.b16 %v5793
    %v8394 = vunpack.c.l.b16 %v5794
    %v8395 = vunpack.c.h.b16 %v5794
    %v8396 = vunpack.c.l.b16 %v5795
    %v8397 = vunpack.c.h.b16 %v5795
    %v8398 = vunpack.c.l.b16 %v5796
    %v8399 = vunpack.c.h.b16 %v5796
    %v8400 = vunpack.c.l.b16 %v5797
    %v8401 = vunpack.c.h.b16 %v5797
    %v8402 = vunpack.c.l.b16 %v5798
    %v8403 = vunpack.c.h.b16 %v5798
    %v8404 = vunpack.c.l.b16 %v5799
    %v8405 = vunpack.c.h.b16 %v5799
    %v8406 = vunpack.c.l.b16 %v5800
    %v8407 = vunpack.c.h.b16 %v5800
    %v8408 = vunpack.c.l.b16 %v5801
    %v8409 = vunpack.c.h.b16 %v5801
    %v8410 = vunpack.c.l.b16 %v5802
    %v8411 = vunpack.c.h.b16 %v5802
    %v8412 = vunpack.c.l.b16 %v5803
    %v8413 = vunpack.c.h.b16 %v5803
    %v8414 = vunpack.c.l.b16 %v5804
    %v8415 = vunpack.c.h.b16 %v5804
    %v8416 = vunpack.c.l.b16 %v5805
    %v8417 = vunpack.c.h.b16 %v5805
    %v8418 = vunpack.c.l.b16 %v5806
    %v8419 = vunpack.c.h.b16 %v5806
    %v8420 = vunpack.c.l.b16 %v5807
    %v8421 = vunpack.c.h.b16 %v5807
    %v8422 = vunpack.c.l.b16 %v5808
    %v8423 = vunpack.c.h.b16 %v5808
    %v8424 = vunpack.c.l.b16 %v5809
    %v8425 = vunpack.c.h.b16 %v5809
    %v8426 = vunpack.c.l.b16 %v5810
    %v8427 = vunpack.c.h.b16 %v5810
    %v8428 = vunpack.c.l.b16 %v5811
    %v8429 = vunpack.c.h.b16 %v5811
    %v8430 = vunpack.c.l.b16 %v5812
    %v8431 = vunpack.c.h.b16 %v5812
    %v8432 = vunpack.c.l.b16 %v5813
    %v8433 = vunpack.c.h.b16 %v5813
    %v8434 = vunpack.c.l.b16 %v5814
    %v8435 = vunpack.c.h.b16 %v5814
    %v8436 = vunpack.c.l.b16 %v5815
    %v8437 = vunpack.c.h.b16 %v5815
    %v8438 = vunpack.c.l.b16 %v5816
    %v8439 = vunpack.c.h.b16 %v5816
    %v8440 = vunpack.c.l.b16 %v5817
    %v8441 = vunpack.c.h.b16 %v5817
    %v8442 = vunpack.c.l.b16 %v5818
    %v8443 = vunpack.c.h.b16 %v5818
    %v8444 = vunpack.c.l.b16 %v5819
    %v8445 = vunpack.c.h.b16 %v5819
    %v8446 = vunpack.c.l.b16 %v5820
    %v8447 = vunpack.c.h.b16 %v5820
    %v8448 = vunpack.c.l.b16 %v5821
    %v8449 = vunpack.c.h.b16 %v5821
    %v8450 = vunpack.c.l.b16 %v5822
    %v8451 = vunpack.c.h.b16 %v5822
    %v8452 = vunpack.c.l.b16 %v5823
    %v8453 = vunpack.c.h.b16 %v5823
    %v8454 = vunpack.c.l.b16 %v5824
    %v8455 = vunpack.c.h.b16 %v5824
    %v8456 = vunpack.c.l.b16 %v5825
    %v8457 = vunpack.c.h.b16 %v5825
    %v8458 = vunpack.c.l.b16 %v5826
    %v8459 = vunpack.c.h.b16 %v5826
    %v8460 = vunpack.c.l.b16 %v5827
    %v8461 = vunpack.c.h.b16 %v5827
    %v8462 = vunpack.c.l.b16 %v5828
    %v8463 = vunpack.c.h.b16 %v5828
    %v8464 = vunpack.c.l.b16 %v5829
    %v8465 = vunpack.c.h.b16 %v5829
    %v8466 = vunpack.c.l.b16 %v5830
    %v8467 = vunpack.c.h.b16 %v5830
    %v8468 = vunpack.c.l.b16 %v5831
    %v8469 = vunpack.c.h.b16 %v5831
    %v8470 = vunpack.c.l.b16 %v5832
    %v8471 = vunpack.c.h.b16 %v5832
    %v8472 = vunpack.c.l.b16 %v5833
    %v8473 = vunpack.c.h.b16 %v5833
    %v8474 = vunpack.c.l.b16 %v5834
    %v8475 = vunpack.c.h.b16 %v5834
    %v8476 = vunpack.c.l.b16 %v5835
    %v8477 = vunpack.c.h.b16 %v5835
    %v8478 = vunpack.c.l.b16 %v5836
    %v8479 = vunpack.c.h.b16 %v5836
    %v8480 = vunpack.c.l.b16 %v5837
    %v8481 = vunpack.c.h.b16 %v5837
    %v8482 = vunpack.c.l.b16 %v5838
    %v8483 = vunpack.c.h.b16 %v5838
    %v8484 = vunpack.c.l.b16 %v5839
    %v8485 = vunpack.c.h.b16 %v5839
    %v8486 = vunpack.c.l.b16 %v5840
    %v8487 = vunpack.c.h.b16 %v5840
    %v8488 = vunpack.c.l.b16 %v5841
    %v8489 = vunpack.c.h.b16 %v5841
    %v8490 = vunpack.c.l.b16 %v5842
    %v8491 = vunpack.c.h.b16 %v5842
    %v8492 = vunpack.c.l.b16 %v5843
    %v8493 = vunpack.c.h.b16 %v5843
    %v8494 = vunpack.c.l.b16 %v5844
    %v8495 = vunpack.c.h.b16 %v5844
    %v8496 = vunpack.c.l.b16 %v5845
    %v8497 = vunpack.c.h.b16 %v5845
    %v8498 = vunpack.c.l.b16 %v5846
    %v8499 = vunpack.c.h.b16 %v5846
    %v8500 = vunpack.c.l.b16 %v5847
    %v8501 = vunpack.c.h.b16 %v5847
    %v8502 = vunpack.c.l.b16 %v5848
    %v8503 = vunpack.c.h.b16 %v5848
    %v8504 = vunpack.c.l.b16 %v5849
    %v8505 = vunpack.c.h.b16 %v5849
    %v8506 = vunpack.c.l.b16 %v5850
    %v8507 = vunpack.c.h.b16 %v5850
    %v8508 = vunpack.c.l.b16 %v5851
    %v8509 = vunpack.c.h.b16 %v5851
    %v8510 = vunpack.c.l.b16 %v5852
    %v8511 = vunpack.c.h.b16 %v5852
    %v8512 = vunpack.c.l.b16 %v5853
    %v8513 = vunpack.c.h.b16 %v5853
    %v8514 = vunpack.c.l.b16 %v5854
    %v8515 = vunpack.c.h.b16 %v5854
    %v8516 = vunpack.c.l.b16 %v5855
    %v8517 = vunpack.c.h.b16 %v5855
    %v8518 = vunpack.c.l.b16 %v5856
    %v8519 = vunpack.c.h.b16 %v5856
    %v8520 = vunpack.c.l.b16 %v5857
    %v8521 = vunpack.c.h.b16 %v5857
    %v8522 = vunpack.c.l.b16 %v5858
    %v8523 = vunpack.c.h.b16 %v5858
    %v8524 = vunpack.c.l.b16 %v5859
    %v8525 = vunpack.c.h.b16 %v5859
    %v8526 = vunpack.c.l.b16 %v5860
    %v8527 = vunpack.c.h.b16 %v5860
    %v8528 = vunpack.c.l.b16 %v5861
    %v8529 = vunpack.c.h.b16 %v5861
    %v8530 = vunpack.c.l.b16 %v5862
    %v8531 = vunpack.c.h.b16 %v5862
    %v8532 = vunpack.c.l.b16 %v5863
    %v8533 = vunpack.c.h.b16 %v5863
    %v8534 = vunpack.c.l.b16 %v5864
    %v8535 = vunpack.c.h.b16 %v5864
    %v8536 = vunpack.c.l.b16 %v5865
    %v8537 = vunpack.c.h.b16 %v5865
    %v8538 = vunpack.c.l.b16 %v5866
    %v8539 = vunpack.c.h.b16 %v5866
    %v8540 = vunpack.c.l.b16 %v5867
    %v8541 = vunpack.c.h.b16 %v5867
    %v8542 = vunpack.c.l.b16 %v5868
    %v8543 = vunpack.c.h.b16 %v5868
    %v8544 = vunpack.c.l.b16 %v5869
    %v8545 = vunpack.c.h.b16 %v5869
    %v8546 = vunpack.c.l.b16 %v5870
    %v8547 = vunpack.c.h.b16 %v5870
    %v8548 = vunpack.c.l.b16 %v5871
    %v8549 = vunpack.c.h.b16 %v5871
    %v8550 = vunpack.c.l.b16 %v5872
    %v8551 = vunpack.c.h.b16 %v5872
    %v8552 = vunpack.c.l.b16 %v5873
    %v8553 = vunpack.c.h.b16 %v5873
    %v8554 = vunpack.c.l.b16 %v5874
    %v8555 = vunpack.c.h.b16 %v5874
    %v8556 = vunpack.c.l.b16 %v5875
    %v8557 = vunpack.c.h.b16 %v5875
    %v8558 = vunpack.c.l.b16 %v5876
    %v8559 = vunpack.c.h.b16 %v5876
    %v8560 = vunpack.c.l.b16 %v5877
    %v8561 = vunpack.c.h.b16 %v5877
    %v8562 = vunpack.c.l.b16 %v5878
    %v8563 = vunpack.c.h.b16 %v5878
    %v8564 = vunpack.c.l.b16 %v5879
    %v8565 = vunpack.c.h.b16 %v5879
    %v8566 = vunpack.c.l.b16 %v5880
    %v8567 = vunpack.c.h.b16 %v5880
    %v8568 = vunpack.c.l.b16 %v5881
    %v8569 = vunpack.c.h.b16 %v5881
    %v8570 = vunpack.c.l.b16 %v5882
    %v8571 = vunpack.c.h.b16 %v5882
    %v8572 = vunpack.c.l.b16 %v5883
    %v8573 = vunpack.c.h.b16 %v5883
    %v8574 = vunpack.c.l.b16 %v5884
    %v8575 = vunpack.c.h.b16 %v5884
    %v8576 = vunpack.c.l.b16 %v5885
    %v8577 = vunpack.c.h.b16 %v5885
    %v8578 = vunpack.c.l.b16 %v5886
    %v8579 = vunpack.c.h.b16 %v5886
    %v8580 = vunpack.c.l.b16 %v5887
    %v8581 = vunpack.c.h.b16 %v5887
    %v8582 = vunpack.c.l.b16 %v5888
    %v8583 = vunpack.c.h.b16 %v5888
    %v8584 = vunpack.c.l.b16 %v5889
    %v8585 = vunpack.c.h.b16 %v5889
    %v8586 = vunpack.c.l.b16 %v5890
    %v8587 = vunpack.c.h.b16 %v5890
    %v8588 = vunpack.c.l.b16 %v5891
    %v8589 = vunpack.c.h.b16 %v5891
    %v8590 = vunpack.c.l.b16 %v5892
    %v8591 = vunpack.c.h.b16 %v5892
    %v8592 = vunpack.c.l.b16 %v5893
    %v8593 = vunpack.c.h.b16 %v5893
    %v8594 = vunpack.c.l.b16 %v5894
    %v8595 = vunpack.c.h.b16 %v5894
    %v8596 = vunpack.c.l.b16 %v5895
    %v8597 = vunpack.c.h.b16 %v5895
    %v8598 = vunpack.c.l.b16 %v5896
    %v8599 = vunpack.c.h.b16 %v5896
    %v8600 = vunpack.c.l.b16 %v5897
    %v8601 = vunpack.c.h.b16 %v5897
    %v8602 = vunpack.c.l.b16 %v5898
    %v8603 = vunpack.c.h.b16 %v5898
    %v8604 = vunpack.c.l.b16 %v5899
    %v8605 = vunpack.c.h.b16 %v5899
    %v8606 = vunpack.c.l.b16 %v5900
    %v8607 = vunpack.c.h.b16 %v5900
    %v8608 = vunpack.c.l.b16 %v5901
    %v8609 = vunpack.c.h.b16 %v5901
    %v8610 = vunpack.c.l.b16 %v5902
    %v8611 = vunpack.c.h.b16 %v5902
    %v8612 = vunpack.c.l.b16 %v5903
    %v8613 = vunpack.c.h.b16 %v5903
    %v8614 = vunpack.c.l.b16 %v5904
    %v8615 = vunpack.c.h.b16 %v5904
    %v8616 = vunpack.c.l.b16 %v5905
    %v8617 = vunpack.c.h.b16 %v5905
    %v8618 = vunpack.c.l.b16 %v5906
    %v8619 = vunpack.c.h.b16 %v5906
    %v8620 = vunpack.c.l.b16 %v5907
    %v8621 = vunpack.c.h.b16 %v5907
    %v8622 = vunpack.c.l.b16 %v5908
    %v8623 = vunpack.c.h.b16 %v5908
    %v8624 = vunpack.c.l.b16 %v5909
    %v8625 = vunpack.c.h.b16 %v5909
    %v8626 = vunpack.c.l.b16 %v5910
    %v8627 = vunpack.c.h.b16 %v5910
    %v8628 = vunpack.c.l.b16 %v5911
    %v8629 = vunpack.c.h.b16 %v5911
    %v8630 = vunpack.c.l.b16 %v5912
    %v8631 = vunpack.c.h.b16 %v5912
    %v8632 = vunpack.c.l.b16 %v5913
    %v8633 = vunpack.c.h.b16 %v5913
    %v8634 = vunpack.c.l.b16 %v5914
    %v8635 = vunpack.c.h.b16 %v5914
    %v8636 = vunpack.c.l.b16 %v5915
    %v8637 = vunpack.c.h.b16 %v5915
    %v8638 = vunpack.c.l.b16 %v5916
    %v8639 = vunpack.c.h.b16 %v5916
    %v8640 = vunpack.c.l.b16 %v5917
    %v8641 = vunpack.c.h.b16 %v5917
    %v8642 = vunpack.c.l.b16 %v5918
    %v8643 = vunpack.c.h.b16 %v5918
    %v8644 = vunpack.c.l.b16 %v5919
    %v8645 = vunpack.c.h.b16 %v5919
    %v8646 = vunpack.c.l.b16 %v5920
    %v8647 = vunpack.c.h.b16 %v5920
    %v8648 = vunpack.c.l.b16 %v5921
    %v8649 = vunpack.c.h.b16 %v5921
    %v8650 = vunpack.c.l.b16 %v5922
    %v8651 = vunpack.c.h.b16 %v5922
    %v8652 = vunpack.c.l.b16 %v5923
    %v8653 = vunpack.c.h.b16 %v5923
    %v8654 = vunpack.c.l.b16 %v5924
    %v8655 = vunpack.c.h.b16 %v5924
    %v8656 = vunpack.c.l.b16 %v5925
    %v8657 = vunpack.c.h.b16 %v5925
    %v8658 = vunpack.c.l.b16 %v5926
    %v8659 = vunpack.c.h.b16 %v5926
    %v8660 = vunpack.c.l.b16 %v5927
    %v8661 = vunpack.c.h.b16 %v5927
    %v8662 = vunpack.c.l.b16 %v5928
    %v8663 = vunpack.c.h.b16 %v5928
    %v8664 = vunpack.c.l.b16 %v5929
    %v8665 = vunpack.c.h.b16 %v5929
    %v8666 = vunpack.c.l.b16 %v5930
    %v8667 = vunpack.c.h.b16 %v5930
    %v8668 = vunpack.c.l.b16 %v5931
    %v8669 = vunpack.c.h.b16 %v5931
    %v8670 = vunpack.c.l.b16 %v5932
    %v8671 = vunpack.c.h.b16 %v5932
    %v8672 = vunpack.c.l.b16 %v5933
    %v8673 = vunpack.c.h.b16 %v5933
    %v8674 = vunpack.c.l.b16 %v5934
    %v8675 = vunpack.c.h.b16 %v5934
    %v8676 = vunpack.c.l.b16 %v5935
    %v8677 = vunpack.c.h.b16 %v5935
    %v8678 = vunpack.c.l.b16 %v5936
    %v8679 = vunpack.c.h.b16 %v5936
    %v8680 = vunpack.c.l.b16 %v5937
    %v8681 = vunpack.c.h.b16 %v5937
    %v8682 = vunpack.c.l.b16 %v5938
    %v8683 = vunpack.c.h.b16 %v5938
    %v8684 = vunpack.c.l.b16 %v5939
    %v8685 = vunpack.c.h.b16 %v5939
    %v8686 = vunpack.c.l.b16 %v5940
    %v8687 = vunpack.c.h.b16 %v5940
    %v8688 = vunpack.c.l.b16 %v5941
    %v8689 = vunpack.c.h.b16 %v5941
    %v8690 = vunpack.c.l.b16 %v5942
    %v8691 = vunpack.c.h.b16 %v5942
    %v8692 = vunpack.c.l.b16 %v5943
    %v8693 = vunpack.c.h.b16 %v5943
    %v8694 = vunpack.c.l.b16 %v5944
    %v8695 = vunpack.c.h.b16 %v5944
    %v8696 = vunpack.c.l.b16 %v5945
    %v8697 = vunpack.c.h.b16 %v5945
    %v8698 = vunpack.c.l.b16 %v5946
    %v8699 = vunpack.c.h.b16 %v5946
    %v8700 = vunpack.c.l.b16 %v5947
    %v8701 = vunpack.c.h.b16 %v5947
    %v8702 = vunpack.c.l.b16 %v5948
    %v8703 = vunpack.c.h.b16 %v5948
    %v8704 = vunpack.c.l.b16 %v5949
    %v8705 = vunpack.c.h.b16 %v5949
    %v8706 = vunpack.c.l.b16 %v5950
    %v8707 = vunpack.c.h.b16 %v5950
    %v8708 = vunpack.c.l.b16 %v5951
    %v8709 = vunpack.c.h.b16 %v5951
    %v8710 = vunpack.c.l.b16 %v5952
    %v8711 = vunpack.c.h.b16 %v5952
    %v8712 = vunpack.c.l.b16 %v5953
    %v8713 = vunpack.c.h.b16 %v5953
    %v8714 = vunpack.c.l.b16 %v5954
    %v8715 = vunpack.c.h.b16 %v5954
    %v8716 = vunpack.c.l.b16 %v5955
    %v8717 = vunpack.c.h.b16 %v5955
    %v8718 = vunpack.c.l.b16 %v5956
    %v8719 = vunpack.c.h.b16 %v5956
    %v8720 = vunpack.c.l.b16 %v5957
    %v8721 = vunpack.c.h.b16 %v5957
    %v8722 = vunpack.c.l.b16 %v5958
    %v8723 = vunpack.c.h.b16 %v5958
    %v8724 = vunpack.c.l.b16 %v5959
    %v8725 = vunpack.c.h.b16 %v5959
    %v8726 = vunpack.c.l.b16 %v5960
    %v8727 = vunpack.c.h.b16 %v5960
    %v8728 = vunpack.c.l.b16 %v5961
    %v8729 = vunpack.c.h.b16 %v5961
    %v8730 = vunpack.c.l.b16 %v5962
    %v8731 = vunpack.c.h.b16 %v5962
    %v8732 = vunpack.c.l.b16 %v5963
    %v8733 = vunpack.c.h.b16 %v5963
    %v8734 = vunpack.c.l.b16 %v5964
    %v8735 = vunpack.c.h.b16 %v5964
    %v8736 = vunpack.c.l.b16 %v5965
    %v8737 = vunpack.c.h.b16 %v5965
    %v8738 = vunpack.c.l.b16 %v5966
    %v8739 = vunpack.c.h.b16 %v5966
    %v8740 = vunpack.c.l.b16 %v5967
    %v8741 = vunpack.c.h.b16 %v5967
    %v8742 = vunpack.c.l.b16 %v5968
    %v8743 = vunpack.c.h.b16 %v5968
    %v8744 = vunpack.c.l.b16 %v5969
    %v8745 = vunpack.c.h.b16 %v5969
    %v8746 = vunpack.c.l.b16 %v5970
    %v8747 = vunpack.c.h.b16 %v5970
    %v8748 = vunpack.c.l.b16 %v5971
    %v8749 = vunpack.c.h.b16 %v5971
    %v8750 = vunpack.c.l.b16 %v5972
    %v8751 = vunpack.c.h.b16 %v5972
    %v8752 = vunpack.c.l.b16 %v5973
    %v8753 = vunpack.c.h.b16 %v5973
    %v8754 = vunpack.c.l.b16 %v5974
    %v8755 = vunpack.c.h.b16 %v5974
    %v8756 = vunpack.c.l.b16 %v5975
    %v8757 = vunpack.c.h.b16 %v5975
    %v8758 = vunpack.c.l.b16 %v5976
    %v8759 = vunpack.c.h.b16 %v5976
    %v8760 = vunpack.c.l.b16 %v5977
    %v8761 = vunpack.c.h.b16 %v5977
    %v8762 = vunpack.c.l.b16 %v5978
    %v8763 = vunpack.c.h.b16 %v5978
    %v8764 = vunpack.c.l.b16 %v5979
    %v8765 = vunpack.c.h.b16 %v5979
    %v8766 = vunpack.c.l.b16 %v5980
    %v8767 = vunpack.c.h.b16 %v5980
    %v8768 = vunpack.c.l.b16 %v5981
    %v8769 = vunpack.c.h.b16 %v5981
    %v8770 = vunpack.c.l.b16 %v5982
    %v8771 = vunpack.c.h.b16 %v5982
    %v8772 = vunpack.c.l.b16 %v5983
    %v8773 = vunpack.c.h.b16 %v5983
    %v8774 = vunpack.c.l.b16 %v5984
    %v8775 = vunpack.c.h.b16 %v5984
    %v8776 = vunpack.c.l.b16 %v5985
    %v8777 = vunpack.c.h.b16 %v5985
    %v8778 = vunpack.c.l.b16 %v5986
    %v8779 = vunpack.c.h.b16 %v5986
    %v8780 = vunpack.c.l.b16 %v5987
    %v8781 = vunpack.c.h.b16 %v5987
    %v8782 = vunpack.c.l.b16 %v5988
    %v8783 = vunpack.c.h.b16 %v5988
    %v8784 = vunpack.c.l.b16 %v5989
    %v8785 = vunpack.c.h.b16 %v5989
    %v8786 = vunpack.c.l.b16 %v5990
    %v8787 = vunpack.c.h.b16 %v5990
    %v8788 = vunpack.c.l.b16 %v5991
    %v8789 = vunpack.c.h.b16 %v5991
    %v8790 = vunpack.c.l.b16 %v5992
    %v8791 = vunpack.c.h.b16 %v5992
    %v8792 = vunpack.c.l.b16 %v5993
    %v8793 = vunpack.c.h.b16 %v5993
    %v8794 = vunpack.c.l.b16 %v5994
    %v8795 = vunpack.c.h.b16 %v5994
    %v8796 = vunpack.c.l.b16 %v5995
    %v8797 = vunpack.c.h.b16 %v5995
    %v8798 = vunpack.c.l.b16 %v5996
    %v8799 = vunpack.c.h.b16 %v5996
    %v8800 = vunpack.c.l.b16 %v5997
    %v8801 = vunpack.c.h.b16 %v5997
    %v8802 = vunpack.c.l.b16 %v5998
    %v8803 = vunpack.c.h.b16 %v5998
    %v8804 = vunpack.c.l.b16 %v5999
    %v8805 = vunpack.c.h.b16 %v5999
    %v8806 = vunpack.c.l.b16 %v6000
    %v8807 = vunpack.c.h.b16 %v6000
    %v8808 = vunpack.c.l.b16 %v6001
    %v8809 = vunpack.c.h.b16 %v6001
    %v8810 = vunpack.c.l.b16 %v6002
    %v8811 = vunpack.c.h.b16 %v6002
    %v8812 = vunpack.c.l.b16 %v6003
    %v8813 = vunpack.c.h.b16 %v6003
    %v8814 = vunpack.c.l.b16 %v6004
    %v8815 = vunpack.c.h.b16 %v6004
    %v8816 = vunpack.c.l.b16 %v6005
    %v8817 = vunpack.c.h.b16 %v6005
    %v8818 = vunpack.c.l.b16 %v6006
    %v8819 = vunpack.c.h.b16 %v6006
    %v8820 = vunpack.c.l.b16 %v6007
    %v8821 = vunpack.c.h.b16 %v6007
    %v8822 = vunpack.c.l.b16 %v6008
    %v8823 = vunpack.c.h.b16 %v6008
    %v8824 = vunpack.c.l.b16 %v6009
    %v8825 = vunpack.c.h.b16 %v6009
    %v8826 = vunpack.c.l.b16 %v6010
    %v8827 = vunpack.c.h.b16 %v6010
    %v8828 = vunpack.c.l.b16 %v6011
    %v8829 = vunpack.c.h.b16 %v6011
    %v8830 = vunpack.c.l.b16 %v6012
    %v8831 = vunpack.c.h.b16 %v6012
    %v8832 = vunpack.c.l.b16 %v6013
    %v8833 = vunpack.c.h.b16 %v6013
    %v8834 = vunpack.c.l.b16 %v6014
    %v8835 = vunpack.c.h.b16 %v6014
    %v8836 = vunpack.c.l.b16 %v6015
    %v8837 = vunpack.c.h.b16 %v6015
    %v8838 = vunpack.c.l.b16 %v6016
    %v8839 = vunpack.c.h.b16 %v6016
    %v8840 = vunpack.c.l.b16 %v6017
    %v8841 = vunpack.c.h.b16 %v6017
    %v8842 = vunpack.c.l.b16 %v6018
    %v8843 = vunpack.c.h.b16 %v6018
    %v8844 = vunpack.c.l.b16 %v6019
    %v8845 = vunpack.c.h.b16 %v6019
    %v8846 = vunpack.c.l.b16 %v6020
    %v8847 = vunpack.c.h.b16 %v6020
    %v8848 = vunpack.c.l.b16 %v6021
    %v8849 = vunpack.c.h.b16 %v6021
    %v8850 = vunpack.c.l.b16 %v6022
    %v8851 = vunpack.c.h.b16 %v6022
    %v8852 = vunpack.c.l.b16 %v6023
    %v8853 = vunpack.c.h.b16 %v6023
    %v8854 = vunpack.c.l.b16 %v6024
    %v8855 = vunpack.c.h.b16 %v6024
    %v8856 = vunpack.c.l.b16 %v6025
    %v8857 = vunpack.c.h.b16 %v6025
    %v8858 = vunpack.c.l.b16 %v6026
    %v8859 = vunpack.c.h.b16 %v6026
    %v8860 = vunpack.c.l.b16 %v6027
    %v8861 = vunpack.c.h.b16 %v6027
    %v8862 = vunpack.c.l.b16 %v6028
    %v8863 = vunpack.c.h.b16 %v6028
    %v8864 = vunpack.c.l.b16 %v6029
    %v8865 = vunpack.c.h.b16 %v6029
    %v8866 = vunpack.c.l.b16 %v6030
    %v8867 = vunpack.c.h.b16 %v6030
    %v8868 = vunpack.c.l.b16 %v6031
    %v8869 = vunpack.c.h.b16 %v6031
    %v8870 = vunpack.c.l.b16 %v6032
    %v8871 = vunpack.c.h.b16 %v6032
    %v8872 = vunpack.c.l.b16 %v6033
    %v8873 = vunpack.c.h.b16 %v6033
    %v8874 = vunpack.c.l.b16 %v6034
    %v8875 = vunpack.c.h.b16 %v6034
    %v8876 = vunpack.c.l.b16 %v6035
    %v8877 = vunpack.c.h.b16 %v6035
    %v8878 = vunpack.c.l.b16 %v6036
    %v8879 = vunpack.c.h.b16 %v6036
    %v8880 = vunpack.c.l.b16 %v6037
    %v8881 = vunpack.c.h.b16 %v6037
    %v8882 = vunpack.c.l.b16 %v6038
    %v8883 = vunpack.c.h.b16 %v6038
    %v8884 = vunpack.c.l.b16 %v6039
    %v8885 = vunpack.c.h.b16 %v6039
    %v8886 = vunpack.c.l.b16 %v6040
    %v8887 = vunpack.c.h.b16 %v6040
    %v8888 = vunpack.c.l.b16 %v6041
    %v8889 = vunpack.c.h.b16 %v6041
    %v8890 = vunpack.c.l.b16 %v6042
    %v8891 = vunpack.c.h.b16 %v6042
    %v8892 = vunpack.c.l.b16 %v6043
    %v8893 = vunpack.c.h.b16 %v6043
    %v8894 = vunpack.c.l.b16 %v6044
    %v8895 = vunpack.c.h.b16 %v6044
    %v8896 = vunpack.c.l.b16 %v6045
    %v8897 = vunpack.c.h.b16 %v6045
    %v8898 = vunpack.c.l.b16 %v6046
    %v8899 = vunpack.c.h.b16 %v6046
    %v8900 = vunpack.c.l.b16 %v6047
    %v8901 = vunpack.c.h.b16 %v6047
    %v8902 = vunpack.c.l.b16 %v6048
    %v8903 = vunpack.c.h.b16 %v6048
    %v8904 = vunpack.c.l.b16 %v6049
    %v8905 = vunpack.c.h.b16 %v6049
    %v8906 = vunpack.c.l.b16 %v6050
    %v8907 = vunpack.c.h.b16 %v6050
    %v8908 = vunpack.c.l.b16 %v6051
    %v8909 = vunpack.c.h.b16 %v6051
    %v8910 = vunpack.c.l.b16 %v6052
    %v8911 = vunpack.c.h.b16 %v6052
    %v8912 = vunpack.c.l.b16 %v6053
    %v8913 = vunpack.c.h.b16 %v6053
    %v8914 = vunpack.c.l.b16 %v6054
    %v8915 = vunpack.c.h.b16 %v6054
    %v8916 = vunpack.c.l.b16 %v6055
    %v8917 = vunpack.c.h.b16 %v6055
    %v8918 = vunpack.c.l.b16 %v6056
    %v8919 = vunpack.c.h.b16 %v6056
    %v8920 = vunpack.c.l.b16 %v6057
    %v8921 = vunpack.c.h.b16 %v6057
    %v8922 = vunpack.c.l.b16 %v6058
    %v8923 = vunpack.c.h.b16 %v6058
    %v8924 = vunpack.c.l.b16 %v6059
    %v8925 = vunpack.c.h.b16 %v6059
    %v8926 = vunpack.c.l.b16 %v6060
    %v8927 = vunpack.c.h.b16 %v6060
    %v8928 = vunpack.c.l.b16 %v6061
    %v8929 = vunpack.c.h.b16 %v6061
    %v8930 = vunpack.c.l.b16 %v6062
    %v8931 = vunpack.c.h.b16 %v6062
    %v8932 = vunpack.c.l.b16 %v6063
    %v8933 = vunpack.c.h.b16 %v6063
    %v8934 = vunpack.c.l.b16 %v6064
    %v8935 = vunpack.c.h.b16 %v6064
    %v8936 = vunpack.c.l.b16 %v6065
    %v8937 = vunpack.c.h.b16 %v6065
    %v8938 = vunpack.c.l.b16 %v6066
    %v8939 = vunpack.c.h.b16 %v6066
    %v8940 = vunpack.c.l.b16 %v6067
    %v8941 = vunpack.c.h.b16 %v6067
    %v8942 = vunpack.c.l.b16 %v6068
    %v8943 = vunpack.c.h.b16 %v6068
    %v8944 = vunpack.c.l.b16 %v6069
    %v8945 = vunpack.c.h.b16 %v6069
    %v8946 = vunpack.c.l.b16 %v6070
    %v8947 = vunpack.c.h.b16 %v6070
    %v8948 = vunpack.c.l.b16 %v6071
    %v8949 = vunpack.c.h.b16 %v6071
    %v8950 = vunpack.c.l.b16 %v6072
    %v8951 = vunpack.c.h.b16 %v6072
    %v8952 = vunpack.c.l.b16 %v6073
    %v8953 = vunpack.c.h.b16 %v6073
    %v8954 = vunpack.c.l.b16 %v6074
    %v8955 = vunpack.c.h.b16 %v6074
    %v8956 = vunpack.c.l.b16 %v6075
    %v8957 = vunpack.c.h.b16 %v6075
    %v8958 = vunpack.c.l.b16 %v6076
    %v8959 = vunpack.c.h.b16 %v6076
    %v8960 = vunpack.c.l.b16 %v6077
    %v8961 = vunpack.c.h.b16 %v6077
    %v8962 = vunpack.c.l.b16 %v6078
    %v8963 = vunpack.c.h.b16 %v6078
    %v8964 = vunpack.c.l.b16 %v6079
    %v8965 = vunpack.c.h.b16 %v6079
    %v8966 = vunpack.c.l.b16 %v6080
    %v8967 = vunpack.c.h.b16 %v6080
    %v8968 = vunpack.c.l.b16 %v6081
    %v8969 = vunpack.c.h.b16 %v6081
    %v8970 = vunpack.c.l.b16 %v6082
    %v8971 = vunpack.c.h.b16 %v6082
    %v8972 = vunpack.c.l.b16 %v6083
    %v8973 = vunpack.c.h.b16 %v6083
    %v8974 = vunpack.c.l.b16 %v6084
    %v8975 = vunpack.c.h.b16 %v6084
    %v8976 = vunpack.c.l.b16 %v6085
    %v8977 = vunpack.c.h.b16 %v6085
    %v8978 = vunpack.c.l.b16 %v6086
    %v8979 = vunpack.c.h.b16 %v6086
    %v8980 = vunpack.c.l.b16 %v6087
    %v8981 = vunpack.c.h.b16 %v6087
    %v8982 = vunpack.c.l.b16 %v6088
    %v8983 = vunpack.c.h.b16 %v6088
    %v8984 = vunpack.c.l.b16 %v6089
    %v8985 = vunpack.c.h.b16 %v6089
    %v8986 = vunpack.c.l.b16 %v6090
    %v8987 = vunpack.c.h.b16 %v6090
    %v8988 = vunpack.c.l.b16 %v6091
    %v8989 = vunpack.c.h.b16 %v6091
    %v8990 = vunpack.c.l.b16 %v6092
    %v8991 = vunpack.c.h.b16 %v6092
    %v8992 = vunpack.c.l.b16 %v6093
    %v8993 = vunpack.c.h.b16 %v6093
    %v8994 = vunpack.c.l.b16 %v6094
    %v8995 = vunpack.c.h.b16 %v6094
    %v8996 = vunpack.c.l.b16 %v6095
    %v8997 = vunpack.c.h.b16 %v6095
    %v8998 = vunpack.c.l.b16 %v6096
    %v8999 = vunpack.c.h.b16 %v6096
    %v9000 = vunpack.c.l.b16 %v6097
    %v9001 = vunpack.c.h.b16 %v6097
    %v9002 = vunpack.c.l.b16 %v6098
    %v9003 = vunpack.c.h.b16 %v6098
    %v9004 = vunpack.c.l.b16 %v6099
    %v9005 = vunpack.c.h.b16 %v6099
    %v9006 = vunpack.c.l.b16 %v6100
    %v9007 = vunpack.c.h.b16 %v6100
    %v9008 = vunpack.c.l.b16 %v6101
    %v9009 = vunpack.c.h.b16 %v6101
    %v9010 = vunpack.c.l.b16 %v6102
    %v9011 = vunpack.c.h.b16 %v6102
    %v9012 = vunpack.c.l.b16 %v6103
    %v9013 = vunpack.c.h.b16 %v6103
    %v9014 = vunpack.c.l.b16 %v6104
    %v9015 = vunpack.c.h.b16 %v6104
    %v9016 = vunpack.c.l.b16 %v6105
    %v9017 = vunpack.c.h.b16 %v6105
    %v9018 = vunpack.c.l.b16 %v6106
    %v9019 = vunpack.c.h.b16 %v6106
    %v9020 = vunpack.c.l.b16 %v6107
    %v9021 = vunpack.c.h.b16 %v6107
    %v9022 = vunpack.c.l.b16 %v6108
    %v9023 = vunpack.c.h.b16 %v6108
    %v9024 = vunpack.c.l.b16 %v6109
    %v9025 = vunpack.c.h.b16 %v6109
    %v9026 = vunpack.c.l.b16 %v6110
    %v9027 = vunpack.c.h.b16 %v6110
    %v9028 = vunpack.c.l.b16 %v6111
    %v9029 = vunpack.c.h.b16 %v6111
    %v9030 = vunpack.c.l.b16 %v6112
    %v9031 = vunpack.c.h.b16 %v6112
    %v9032 = vunpack.c.l.b16 %v6113
    %v9033 = vunpack.c.h.b16 %v6113
    %v9034 = vunpack.c.l.b16 %v6114
    %v9035 = vunpack.c.h.b16 %v6114
    %v9036 = vunpack.c.l.b16 %v6115
    %v9037 = vunpack.c.h.b16 %v6115
    %v9038 = vunpack.c.l.b16 %v6116
    %v9039 = vunpack.c.h.b16 %v6116
    %v9040 = vunpack.c.l.b16 %v6117
    %v9041 = vunpack.c.h.b16 %v6117
    %v9042 = vunpack.c.l.b16 %v6118
    %v9043 = vunpack.c.h.b16 %v6118
    %v9044 = vunpack.c.l.b16 %v6119
    %v9045 = vunpack.c.h.b16 %v6119
    %v9046 = vunpack.c.l.b16 %v6120
    %v9047 = vunpack.c.h.b16 %v6120
    %v9048 = vunpack.c.l.b16 %v6121
    %v9049 = vunpack.c.h.b16 %v6121
    %v9050 = vunpack.c.l.b16 %v6122
    %v9051 = vunpack.c.h.b16 %v6122
    %v9052 = vunpack.c.l.b16 %v6123
    %v9053 = vunpack.c.h.b16 %v6123
    %v9054 = vunpack.c.l.b16 %v6124
    %v9055 = vunpack.c.h.b16 %v6124
    %v9056 = vunpack.c.l.b16 %v6125
    %v9057 = vunpack.c.h.b16 %v6125
    %v9058 = vunpack.c.l.b16 %v6126
    %v9059 = vunpack.c.h.b16 %v6126
    %v9060 = vunpack.c.l.b16 %v6127
    %v9061 = vunpack.c.h.b16 %v6127
    %v9062 = vunpack.c.l.b16 %v6128
    %v9063 = vunpack.c.h.b16 %v6128
    %v9064 = vunpack.c.l.b16 %v6129
    %v9065 = vunpack.c.h.b16 %v6129
    %v9066 = vunpack.c.l.b16 %v6130
    %v9067 = vunpack.c.h.b16 %v6130
    %v9068 = vunpack.c.l.b16 %v6131
    %v9069 = vunpack.c.h.b16 %v6131
    %v9070 = vunpack.c.l.b16 %v6132
    %v9071 = vunpack.c.h.b16 %v6132
    %v9072 = vunpack.c.l.b16 %v6133
    %v9073 = vunpack.c.h.b16 %v6133
    %v9074 = vunpack.c.l.b16 %v6134
    %v9075 = vunpack.c.h.b16 %v6134
    %v9076 = vunpack.c.l.b16 %v6135
    %v9077 = vunpack.c.h.b16 %v6135
    %v9078 = vunpack.c.l.b16 %v6136
    %v9079 = vunpack.c.h.b16 %v6136
    %v9080 = vunpack.c.l.b16 %v6137
    %v9081 = vunpack.c.h.b16 %v6137
    %v9082 = vunpack.c.l.b16 %v6138
    %v9083 = vunpack.c.h.b16 %v6138
    %v9084 = vunpack.c.l.b16 %v6139
    %v9085 = vunpack.c.h.b16 %v6139
    %v9086 = vunpack.c.l.b16 %v6140
    %v9087 = vunpack.c.h.b16 %v6140
    %v9088 = vunpack.c.l.b16 %v6141
    %v9089 = vunpack.c.h.b16 %v6141
    %v9090 = vunpack.c.l.b16 %v6142
    %v9091 = vunpack.c.h.b16 %v6142
    %v9092 = vunpack.c.l.b16 %v6143
    %v9093 = vunpack.c.h.b16 %v6143
    %v9094 = vunpack.c.l.b16 %v6144
    %v9095 = vunpack.c.h.b16 %v6144
    %v9096 = vunpack.c.l.b16 %v6145
    %v9097 = vunpack.c.h.b16 %v6145
    %v9098 = vunpack.c.l.b16 %v6146
    %v9099 = vunpack.c.h.b16 %v6146
    %v9100 = vunpack.c.l.b16 %v6147
    %v9101 = vunpack.c.h.b16 %v6147
    %v9102 = vunpack.c.l.b16 %v6148
    %v9103 = vunpack.c.h.b16 %v6148
    %v9104 = vunpack.c.l.b16 %v6149
    %v9105 = vunpack.c.h.b16 %v6149
    %v9106 = vunpack.c.l.b16 %v6150
    %v9107 = vunpack.c.h.b16 %v6150
    %v9108 = vunpack.c.l.b16 %v6151
    %v9109 = vunpack.c.h.b16 %v6151
    %v9110 = vunpack.c.l.b16 %v6152
    %v9111 = vunpack.c.h.b16 %v6152
    %v9112 = vunpack.c.l.b16 %v6153
    %v9113 = vunpack.c.h.b16 %v6153
    %v9114 = vunpack.c.l.b16 %v6154
    %v9115 = vunpack.c.h.b16 %v6154
    %v9116 = vunpack.c.l.b16 %v6155
    %v9117 = vunpack.c.h.b16 %v6155
    %v9118 = vunpack.c.l.b16 %v6156
    %v9119 = vunpack.c.h.b16 %v6156
    %v9120 = vunpack.c.l.b16 %v6157
    %v9121 = vunpack.c.h.b16 %v6157
    %v9122 = vunpack.c.l.b16 %v6158
    %v9123 = vunpack.c.h.b16 %v6158
    %v9124 = vunpack.c.l.b16 %v6159
    %v9125 = vunpack.c.h.b16 %v6159
    %v9126 = vunpack.c.l.b16 %v6160
    %v9127 = vunpack.c.h.b16 %v6160
    %v9128 = vunpack.c.l.b16 %v6161
    %v9129 = vunpack.c.h.b16 %v6161
    %v9130 = vunpack.c.l.b16 %v6162
    %v9131 = vunpack.c.h.b16 %v6162
    %v9132 = vunpack.c.l.b16 %v6163
    %v9133 = vunpack.c.h.b16 %v6163
    %v9134 = vunpack.c.l.b16 %v6164
    %v9135 = vunpack.c.h.b16 %v6164
    %v9136 = vunpack.c.l.b16 %v6165
    %v9137 = vunpack.c.h.b16 %v6165
    %v9138 = vunpack.c.l.b16 %v6166
    %v9139 = vunpack.c.h.b16 %v6166
    %v9140 = vunpack.c.l.b16 %v6167
    %v9141 = vunpack.c.h.b16 %v6167
    %v9142 = vunpack.c.l.b16 %v6168
    %v9143 = vunpack.c.h.b16 %v6168
    %v9144 = vunpack.c.l.b16 %v6169
    %v9145 = vunpack.c.h.b16 %v6169
    %v9146 = vunpack.c.l.b16 %v6170
    %v9147 = vunpack.c.h.b16 %v6170
    %v9148 = vunpack.c.l.b16 %v6171
    %v9149 = vunpack.c.h.b16 %v6171
    %v9150 = vunpack.c.l.b16 %v6172
    %v9151 = vunpack.c.h.b16 %v6172
    %v9152 = vunpack.c.l.b16 %v6173
    %v9153 = vunpack.c.h.b16 %v6173
    %v9154 = vunpack.c.l.b16 %v6174
    %v9155 = vunpack.c.h.b16 %v6174
    %v9156 = vunpack.c.l.b16 %v6175
    %v9157 = vunpack.c.h.b16 %v6175
    %v9158 = vunpack.c.l.b16 %v6176
    %v9159 = vunpack.c.h.b16 %v6176
    %v9160 = vunpack.c.l.b16 %v6177
    %v9161 = vunpack.c.h.b16 %v6177
    %v9162 = vunpack.c.l.b16 %v6178
    %v9163 = vunpack.c.h.b16 %v6178
    %v9164 = vunpack.c.l.b16 %v6179
    %v9165 = vunpack.c.h.b16 %v6179
    %v9166 = vunpack.c.l.b16 %v6180
    %v9167 = vunpack.c.h.b16 %v6180
    %v9168 = vunpack.c.l.b16 %v6181
    %v9169 = vunpack.c.h.b16 %v6181
    %v9170 = vunpack.c.l.b16 %v6182
    %v9171 = vunpack.c.h.b16 %v6182
    %v9172 = vunpack.c.l.b16 %v6183
    %v9173 = vunpack.c.h.b16 %v6183
    %v9174 = vunpack.c.l.b16 %v6184
    %v9175 = vunpack.c.h.b16 %v6184
    %v9176 = vunpack.c.l.b16 %v6185
    %v9177 = vunpack.c.h.b16 %v6185
    %v9178 = vunpack.c.l.b16 %v6186
    %v9179 = vunpack.c.h.b16 %v6186
    %v9180 = vunpack.c.l.b16 %v6187
    %v9181 = vunpack.c.h.b16 %v6187
    %v9182 = vunpack.c.l.b16 %v6188
    %v9183 = vunpack.c.h.b16 %v6188
    %v9184 = vunpack.c.l.b16 %v6189
    %v9185 = vunpack.c.h.b16 %v6189
    %v9186 = vunpack.c.l.b16 %v6190
    %v9187 = vunpack.c.h.b16 %v6190
    %v9188 = vunpack.c.l.b16 %v6191
    %v9189 = vunpack.c.h.b16 %v6191
    %v9190 = vunpack.c.l.b16 %v6192
    %v9191 = vunpack.c.h.b16 %v6192
    %v9192 = vunpack.c.l.b16 %v6193
    %v9193 = vunpack.c.h.b16 %v6193
    %v9194 = vunpack.c.l.b16 %v6194
    %v9195 = vunpack.c.h.b16 %v6194
    %v9196 = vunpack.c.l.b16 %v6195
    %v9197 = vunpack.c.h.b16 %v6195
    %v9198 = vunpack.c.l.b16 %v6196
    %v9199 = vunpack.c.h.b16 %v6196
    %v9200 = vunpack.c.l.b16 %v6197
    %v9201 = vunpack.c.h.b16 %v6197
    %v9202 = vunpack.c.l.b16 %v6198
    %v9203 = vunpack.c.h.b16 %v6198
    %v9204 = vunpack.c.l.b16 %v6199
    %v9205 = vunpack.c.h.b16 %v6199
    %v9206 = vunpack.c.l.b16 %v6200
    %v9207 = vunpack.c.h.b16 %v6200
    %v9208 = vunpack.c.l.b16 %v6201
    %v9209 = vunpack.c.h.b16 %v6201
    %v9210 = vunpack.c.l.b16 %v6202
    %v9211 = vunpack.c.h.b16 %v6202
    %v9212 = vunpack.c.l.b16 %v6203
    %v9213 = vunpack.c.h.b16 %v6203
    %v9214 = vunpack.c.l.b16 %v6204
    %v9215 = vunpack.c.h.b16 %v6204
    %v9216 = vunpack.c.l.b16 %v6205
    %v9217 = vunpack.c.h.b16 %v6205
    %v9218 = vunpack.c.l.b16 %v6206
    %v9219 = vunpack.c.h.b16 %v6206
    %v9220 = vunpack.c.l.b16 %v6207
    %v9221 = vunpack.c.h.b16 %v6207
    %v9222 = vunpack.c.l.b16 %v6208
    %v9223 = vunpack.c.h.b16 %v6208
    %v9224 = vunpack.c.l.b16 %v6209
    %v9225 = vunpack.c.h.b16 %v6209
    %v9226 = vunpack.c.l.b16 %v6210
    %v9227 = vunpack.c.h.b16 %v6210
    %v9228 = vunpack.c.l.b16 %v6211
    %v9229 = vunpack.c.h.b16 %v6211
    %v9230 = vunpack.c.l.b16 %v6212
    %v9231 = vunpack.c.h.b16 %v6212
    %v9232 = vunpack.c.l.b16 %v6213
    %v9233 = vunpack.c.h.b16 %v6213
    %v9234 = vunpack.c.l.b16 %v6214
    %v9235 = vunpack.c.h.b16 %v6214
    %v9236 = vunpack.c.l.b16 %v6215
    %v9237 = vunpack.c.h.b16 %v6215
    %v9238 = vunpack.c.l.b16 %v6216
    %v9239 = vunpack.c.h.b16 %v6216
    %v9240 = vunpack.c.l.b16 %v6217
    %v9241 = vunpack.c.h.b16 %v6217
    %v9242 = vunpack.c.l.b16 %v6218
    %v9243 = vunpack.c.h.b16 %v6218
    %v9244 = vunpack.c.l.b16 %v6219
    %v9245 = vunpack.c.h.b16 %v6219
    %v9246 = vunpack.c.l.b16 %v6220
    %v9247 = vunpack.c.h.b16 %v6220
    %v9248 = vunpack.c.l.b16 %v6221
    %v9249 = vunpack.c.h.b16 %v6221
    %v9250 = vunpack.c.l.b16 %v6222
    %v9251 = vunpack.c.h.b16 %v6222
    %v9252 = vunpack.c.l.b16 %v6223
    %v9253 = vunpack.c.h.b16 %v6223
    %v9254 = vunpack.c.l.b16 %v6224
    %v9255 = vunpack.c.h.b16 %v6224
    %v9256 = vunpack.c.l.b16 %v6225
    %v9257 = vunpack.c.h.b16 %v6225
    %v9258 = vunpack.c.l.b16 %v6226
    %v9259 = vunpack.c.h.b16 %v6226
    %v9260 = vunpack.c.l.b16 %v6227
    %v9261 = vunpack.c.h.b16 %v6227
    %v9262 = vunpack.c.l.b16 %v6228
    %v9263 = vunpack.c.h.b16 %v6228
    %v9264 = vunpack.c.l.b16 %v6229
    %v9265 = vunpack.c.h.b16 %v6229
    %v9266 = vunpack.c.l.b16 %v6230
    %v9267 = vunpack.c.h.b16 %v6230
    %v9268 = vunpack.c.l.b16 %v6231
    %v9269 = vunpack.c.h.b16 %v6231
    %v9270 = vunpack.c.l.b16 %v6232
    %v9271 = vunpack.c.h.b16 %v6232
    %v9272 = vunpack.c.l.b16 %v6233
    %v9273 = vunpack.c.h.b16 %v6233
    %v9274 = vunpack.c.l.b16 %v6234
    %v9275 = vunpack.c.h.b16 %v6234
    %v9276 = vunpack.c.l.b16 %v6235
    %v9277 = vunpack.c.h.b16 %v6235
    %v9278 = vunpack.c.l.b16 %v6236
    %v9279 = vunpack.c.h.b16 %v6236
    %v9280 = vunpack.c.l.b16 %v6237
    %v9281 = vunpack.c.h.b16 %v6237
    %v9282 = vunpack.c.l.b16 %v6238
    %v9283 = vunpack.c.h.b16 %v6238
    %v9284 = vunpack.c.l.b16 %v6239
    %v9285 = vunpack.c.h.b16 %v6239
    %v9286 = vunpack.c.l.b16 %v6240
    %v9287 = vunpack.c.h.b16 %v6240
    %v9288 = vunpack.c.l.b16 %v6241
    %v9289 = vunpack.c.h.b16 %v6241
    %v9290 = vunpack.c.l.b16 %v6242
    %v9291 = vunpack.c.h.b16 %v6242
    %v9292 = vunpack.c.l.b16 %v6243
    %v9293 = vunpack.c.h.b16 %v6243
    %v9294 = vunpack.c.l.b16 %v6244
    %v9295 = vunpack.c.h.b16 %v6244
    %v9296 = vunpack.c.l.b16 %v6245
    %v9297 = vunpack.c.h.b16 %v6245
    %v9298 = vunpack.c.l.b16 %v6246
    %v9299 = vunpack.c.h.b16 %v6246
    %v9300 = vunpack.c.l.b16 %v6247
    %v9301 = vunpack.c.h.b16 %v6247
    %v9302 = vunpack.c.l.b16 %v6248
    %v9303 = vunpack.c.h.b16 %v6248
    %v9304 = vunpack.c.l.b16 %v6249
    %v9305 = vunpack.c.h.b16 %v6249
    %v9306 = vunpack.c.l.b16 %v6250
    %v9307 = vunpack.c.h.b16 %v6250
    %v9308 = vunpack.c.l.b16 %v6251
    %v9309 = vunpack.c.h.b16 %v6251
    %v9310 = vunpack.c.l.b16 %v6252
    %v9311 = vunpack.c.h.b16 %v6252
    %v9312 = vunpack.c.l.b16 %v6253
    %v9313 = vunpack.c.h.b16 %v6253
    %v9314 = vunpack.c.l.b16 %v6254
    %v9315 = vunpack.c.h.b16 %v6254
    %v9316 = vunpack.c.l.b16 %v6255
    %v9317 = vunpack.c.h.b16 %v6255
    %v9318 = vunpack.c.l.b16 %v6256
    %v9319 = vunpack.c.h.b16 %v6256
    %v9320 = vunpack.c.l.b16 %v6257
    %v9321 = vunpack.c.h.b16 %v6257
    %v9322 = vunpack.c.l.b16 %v6258
    %v9323 = vunpack.c.h.b16 %v6258
    %v9324 = vunpack.c.l.b16 %v6259
    %v9325 = vunpack.c.h.b16 %v6259
    %v9326 = vunpack.c.l.b16 %v6260
    %v9327 = vunpack.c.h.b16 %v6260
    %v9328 = vunpack.c.l.b16 %v6261
    %v9329 = vunpack.c.h.b16 %v6261
    %v9330 = vunpack.c.l.b16 %v6262
    %v9331 = vunpack.c.h.b16 %v6262
    %v9332 = vunpack.c.l.b16 %v6263
    %v9333 = vunpack.c.h.b16 %v6263
    %v9334 = vunpack.c.l.b16 %v6264
    %v9335 = vunpack.c.h.b16 %v6264
    %v9336 = vunpack.c.l.b16 %v6265
    %v9337 = vunpack.c.h.b16 %v6265
    %v9338 = vunpack.c.l.b16 %v6266
    %v9339 = vunpack.c.h.b16 %v6266
    %v9340 = vunpack.c.l.b16 %v6267
    %v9341 = vunpack.c.h.b16 %v6267
    %v9342 = vunpack.c.l.b16 %v6268
    %v9343 = vunpack.c.h.b16 %v6268
    %v9344 = vunpack.c.l.b16 %v6269
    %v9345 = vunpack.c.h.b16 %v6269
    %v9346 = vunpack.c.l.b16 %v6270
    %v9347 = vunpack.c.h.b16 %v6270
    %v9348 = vunpack.c.l.b16 %v6271
    %v9349 = vunpack.c.h.b16 %v6271
    %v9350 = vunpack.c.l.b16 %v6272
    %v9351 = vunpack.c.h.b16 %v6272
    %v9352 = vunpack.c.l.b16 %v6273
    %v9353 = vunpack.c.h.b16 %v6273
    %v9354 = vunpack.c.l.b16 %v6274
    %v9355 = vunpack.c.h.b16 %v6274
    %v9356 = vunpack.c.l.b16 %v6275
    %v9357 = vunpack.c.h.b16 %v6275
    %v9358 = vunpack.c.l.b16 %v6276
    %v9359 = vunpack.c.h.b16 %v6276
    %v9360 = vunpack.c.l.b16 %v6277
    %v9361 = vunpack.c.h.b16 %v6277
    %v9362 = vunpack.c.l.b16 %v6278
    %v9363 = vunpack.c.h.b16 %v6278
    %v9364 = vunpack.c.l.b16 %v6279
    %v9365 = vunpack.c.h.b16 %v6279
    %v9366 = vunpack.c.l.b16 %v6280
    %v9367 = vunpack.c.h.b16 %v6280
    %v9368 = vunpack.c.l.b16 %v6281
    %v9369 = vunpack.c.h.b16 %v6281
    %v9370 = vunpack.c.l.b16 %v6282
    %v9371 = vunpack.c.h.b16 %v6282
    %v9372 = vunpack.c.l.b16 %v6283
    %v9373 = vunpack.c.h.b16 %v6283
    %v9374 = vunpack.c.l.b16 %v6284
    %v9375 = vunpack.c.h.b16 %v6284
    %v9376 = vunpack.c.l.b16 %v6285
    %v9377 = vunpack.c.h.b16 %v6285
    %v9378 = vunpack.c.l.b16 %v6286
    %v9379 = vunpack.c.h.b16 %v6286
    %v9380 = vunpack.c.l.b16 %v6287
    %v9381 = vunpack.c.h.b16 %v6287
    %v9382 = vunpack.c.l.b16 %v6288
    %v9383 = vunpack.c.h.b16 %v6288
    %v9384 = vunpack.c.l.b16 %v6289
    %v9385 = vunpack.c.h.b16 %v6289
    %v9386 = vunpack.c.l.b16 %v6290
    %v9387 = vunpack.c.h.b16 %v6290
    %v9388 = vunpack.c.l.b16 %v6291
    %v9389 = vunpack.c.h.b16 %v6291
    %v9390 = vunpack.c.l.b16 %v6292
    %v9391 = vunpack.c.h.b16 %v6292
    %v9392 = vunpack.c.l.b16 %v6293
    %v9393 = vunpack.c.h.b16 %v6293
    %v9394 = vunpack.c.l.b16 %v6294
    %v9395 = vunpack.c.h.b16 %v6294
    %v9396 = vunpack.c.l.b16 %v6295
    %v9397 = vunpack.c.h.b16 %v6295
    %v9398 = vunpack.c.l.b16 %v6296
    %v9399 = vunpack.c.h.b16 %v6296
    %v9400 = vunpack.c.l.b16 %v6297
    %v9401 = vunpack.c.h.b16 %v6297
    %v9402 = vunpack.c.l.b16 %v6298
    %v9403 = vunpack.c.h.b16 %v6298
    %v9404 = vunpack.c.l.b16 %v6299
    %v9405 = vunpack.c.h.b16 %v6299
    %v9406 = vunpack.c.l.b16 %v6300
    %v9407 = vunpack.c.h.b16 %v6300
    %v9408 = vunpack.c.l.b16 %v6301
    %v9409 = vunpack.c.h.b16 %v6301
    %v9410 = vunpack.c.l.b16 %v6302
    %v9411 = vunpack.c.h.b16 %v6302
    %v9412 = vunpack.c.l.b16 %v6303
    %v9413 = vunpack.c.h.b16 %v6303
    %v9414 = vunpack.c.l.b16 %v6304
    %v9415 = vunpack.c.h.b16 %v6304
    %v9416 = vunpack.c.l.b16 %v6305
    %v9417 = vunpack.c.h.b16 %v6305
    %v9418 = vunpack.c.l.b16 %v6306
    %v9419 = vunpack.c.h.b16 %v6306
    %v9420 = vunpack.c.l.b16 %v6307
    %v9421 = vunpack.c.h.b16 %v6307
    %v9422 = vunpack.c.l.b16 %v6308
    %v9423 = vunpack.c.h.b16 %v6308
    %v9424 = vunpack.c.l.b16 %v6309
    %v9425 = vunpack.c.h.b16 %v6309
    %v9426 = vunpack.c.l.b16 %v6310
    %v9427 = vunpack.c.h.b16 %v6310
    %v9428 = vunpack.c.l.b16 %v6311
    %v9429 = vunpack.c.h.b16 %v6311
    %v9430 = vunpack.c.l.b16 %v6312
    %v9431 = vunpack.c.h.b16 %v6312
    %v9432 = vunpack.c.l.b16 %v6313
    %v9433 = vunpack.c.h.b16 %v6313
    %v9434 = vunpack.c.l.b16 %v6314
    %v9435 = vunpack.c.h.b16 %v6314
    %v9436 = vunpack.c.l.b16 %v6315
    %v9437 = vunpack.c.h.b16 %v6315
    %v9438 = vunpack.c.l.b16 %v6316
    %v9439 = vunpack.c.h.b16 %v6316
    %v9440 = vunpack.c.l.b16 %v6317
    %v9441 = vunpack.c.h.b16 %v6317
    %v9442 = vunpack.c.l.b16 %v6318
    %v9443 = vunpack.c.h.b16 %v6318
    %v9444 = vunpack.c.l.b16 %v6319
    %v9445 = vunpack.c.h.b16 %v6319
    %v9446 = vunpack.c.l.b16 %v6320
    %v9447 = vunpack.c.h.b16 %v6320
    %v9448 = vunpack.c.l.b16 %v6321
    %v9449 = vunpack.c.h.b16 %v6321
    %v9450 = vunpack.c.l.b16 %v6322
    %v9451 = vunpack.c.h.b16 %v6322
    %v9452 = vunpack.c.l.b16 %v6323
    %v9453 = vunpack.c.h.b16 %v6323
    %v9454 = vunpack.c.l.b16 %v6324
    %v9455 = vunpack.c.h.b16 %v6324
    %v9456 = vunpack.c.l.b16 %v6325
    %v9457 = vunpack.c.h.b16 %v6325
    %v9458 = vunpack.c.l.b16 %v6326
    %v9459 = vunpack.c.h.b16 %v6326
    %v9460 = vunpack.c.l.b16 %v6327
    %v9461 = vunpack.c.h.b16 %v6327
    %v9462 = vunpack.c.l.b16 %v6328
    %v9463 = vunpack.c.h.b16 %v6328
    %v9464 = vunpack.c.l.b16 %v6329
    %v9465 = vunpack.c.h.b16 %v6329
    %v9466 = vunpack.c.l.b16 %v6330
    %v9467 = vunpack.c.h.b16 %v6330
    %v9468 = vunpack.c.l.b16 %v6331
    %v9469 = vunpack.c.h.b16 %v6331
    %v9470 = vunpack.c.l.b16 %v6332
    %v9471 = vunpack.c.h.b16 %v6332
    %v9472 = vunpack.c.l.b16 %v6333
    %v9473 = vunpack.c.h.b16 %v6333
    %v9474 = vunpack.c.l.b16 %v6334
    %v9475 = vunpack.c.h.b16 %v6334
    %v9476 = vunpack.c.l.b16 %v6335
    %v9477 = vunpack.c.h.b16 %v6335
    %v9478 = vunpack.c.l.b16 %v6336
    %v9479 = vunpack.c.h.b16 %v6336
    %v9480 = vunpack.c.l.b16 %v6337
    %v9481 = vunpack.c.h.b16 %v6337
    %v9482 = vunpack.c.l.b16 %v6338
    %v9483 = vunpack.c.h.b16 %v6338
    %v9484 = vunpack.c.l.b16 %v6339
    %v9485 = vunpack.c.h.b16 %v6339
    %v9486 = vunpack.c.l.b16 %v6340
    %v9487 = vunpack.c.h.b16 %v6340
    %v9488 = vunpack.c.l.b16 %v6341
    %v9489 = vunpack.c.h.b16 %v6341
    %v9490 = vunpack.c.l.b16 %v6342
    %v9491 = vunpack.c.h.b16 %v6342
    %v9492 = vunpack.c.l.b16 %v6343
    %v9493 = vunpack.c.h.b16 %v6343
    %v9494 = vunpack.c.l.b16 %v6344
    %v9495 = vunpack.c.h.b16 %v6344
    %v9496 = vunpack.c.l.b16 %v6345
    %v9497 = vunpack.c.h.b16 %v6345
    %v9498 = vunpack.c.l.b16 %v6346
    %v9499 = vunpack.c.h.b16 %v6346
    %v9500 = vunpack.c.l.b16 %v6347
    %v9501 = vunpack.c.h.b16 %v6347
    %v9502 = vunpack.c.l.b16 %v6348
    %v9503 = vunpack.c.h.b16 %v6348
    %v9504 = vunpack.c.l.b16 %v6349
    %v9505 = vunpack.c.h.b16 %v6349
    %v9506 = vpack.c.b16 %v7474, %v7458
    %v9507 = vpack.c.b16 %v7475, %v7459
    %v9508 = vpack.c.b16 %v7476, %v7460
    %v9509 = vpack.c.b16 %v7477, %v7461
    %v9510 = vpack.c.b16 %v7478, %v7462
    %v9511 = vpack.c.b16 %v7479, %v7463
    %v9512 = vpack.c.b16 %v7480, %v7464
    %v9513 = vpack.c.b16 %v7481, %v7465
    %v9514 = vpack.c.b16 %v7482, %v7466
    %v9515 = vpack.c.b16 %v7483, %v7467
    %v9516 = vpack.c.b16 %v7484, %v7468
    %v9517 = vpack.c.b16 %v7485, %v7469
    %v9518 = vpack.c.b16 %v7486, %v7470
    %v9519 = vpack.c.b16 %v7487, %v7471
    %v9520 = vpack.c.b16 %v7488, %v7472
    %v9521 = vpack.c.b16 %v7489, %v7473
    %v9522 = vpack.c.b16 %v7506, %v7490
    %v9523 = vpack.c.b16 %v7507, %v7491
    %v9524 = vpack.c.b16 %v7508, %v7492
    %v9525 = vpack.c.b16 %v7509, %v7493
    %v9526 = vpack.c.b16 %v7510, %v7494
    %v9527 = vpack.c.b16 %v7511, %v7495
    %v9528 = vpack.c.b16 %v7512, %v7496
    %v9529 = vpack.c.b16 %v7513, %v7497
    %v9530 = vpack.c.b16 %v7514, %v7498
    %v9531 = vpack.c.b16 %v7515, %v7499
    %v9532 = vpack.c.b16 %v7516, %v7500
    %v9533 = vpack.c.b16 %v7517, %v7501
    %v9534 = vpack.c.b16 %v7518, %v7502
    %v9535 = vpack.c.b16 %v7519, %v7503
    %v9536 = vpack.c.b16 %v7520, %v7504
    %v9537 = vpack.c.b16 %v7521, %v7505
    %v9538 = vpack.c.b16 %v7538, %v7522
    %v9539 = vpack.c.b16 %v7539, %v7523
    %v9540 = vpack.c.b16 %v7540, %v7524
    %v9541 = vpack.c.b16 %v7541, %v7525
    %v9542 = vpack.c.b16 %v7542, %v7526
    %v9543 = vpack.c.b16 %v7543, %v7527
    %v9544 = vpack.c.b16 %v7544, %v7528
    %v9545 = vpack.c.b16 %v7545, %v7529
    %v9546 = vpack.c.b16 %v7546, %v7530
    %v9547 = vpack.c.b16 %v7547, %v7531
    %v9548 = vpack.c.b16 %v7548, %v7532
    %v9549 = vpack.c.b16 %v7549, %v7533
    %v9550 = vpack.c.b16 %v7550, %v7534
    %v9551 = vpack.c.b16 %v7551, %v7535
    %v9552 = vpack.c.b16 %v7552, %v7536
    %v9553 = vpack.c.b16 %v7553, %v7537
    %v9554 = vpack.c.b16 %v7570, %v7554
    %v9555 = vpack.c.b16 %v7571, %v7555
    %v9556 = vpack.c.b16 %v7572, %v7556
    %v9557 = vpack.c.b16 %v7573, %v7557
    %v9558 = vpack.c.b16 %v7574, %v7558
    %v9559 = vpack.c.b16 %v7575, %v7559
    %v9560 = vpack.c.b16 %v7576, %v7560
    %v9561 = vpack.c.b16 %v7577, %v7561
    %v9562 = vpack.c.b16 %v7578, %v7562
    %v9563 = vpack.c.b16 %v7579, %v7563
    %v9564 = vpack.c.b16 %v7580, %v7564
    %v9565 = vpack.c.b16 %v7581, %v7565
    %v9566 = vpack.c.b16 %v7582, %v7566
    %v9567 = vpack.c.b16 %v7583, %v7567
    %v9568 = vpack.c.b16 %v7584, %v7568
    %v9569 = vpack.c.b16 %v7585, %v7569
    %v9570 = vpack.c.b16 %v7602, %v7586
    %v9571 = vpack.c.b16 %v7603, %v7587
    %v9572 = vpack.c.b16 %v7604, %v7588
    %v9573 = vpack.c.b16 %v7605, %v7589
    %v9574 = vpack.c.b16 %v7606, %v7590
    %v9575 = vpack.c.b16 %v7607, %v7591
    %v9576 = vpack.c.b16 %v7608, %v7592
    %v9577 = vpack.c.b16 %v7609, %v7593
    %v9578 = vpack.c.b16 %v7610, %v7594
    %v9579 = vpack.c.b16 %v7611, %v7595
    %v9580 = vpack.c.b16 %v7612, %v7596
    %v9581 = vpack.c.b16 %v7613, %v7597
    %v9582 = vpack.c.b16 %v7614, %v7598
    %v9583 = vpack.c.b16 %v7615, %v7599
    %v9584 = vpack.c.b16 %v7616, %v7600
    %v9585 = vpack.c.b16 %v7617, %v7601
    %v9586 = vpack.c.b16 %v7634, %v7618
    %v9587 = vpack.c.b16 %v7635, %v7619
    %v9588 = vpack.c.b16 %v7636, %v7620
    %v9589 = vpack.c.b16 %v7637, %v7621
    %v9590 = vpack.c.b16 %v7638, %v7622
    %v9591 = vpack.c.b16 %v7639, %v7623
    %v9592 = vpack.c.b16 %v7640, %v7624
    %v9593 = vpack.c.b16 %v7641, %v7625
    %v9594 = vpack.c.b16 %v7642, %v7626
    %v9595 = vpack.c.b16 %v7643, %v7627
    %v9596 = vpack.c.b16 %v7644, %v7628
    %v9597 = vpack.c.b16 %v7645, %v7629
    %v9598 = vpack.c.b16 %v7646, %v7630
    %v9599 = vpack.c.b16 %v7647, %v7631
    %v9600 = vpack.c.b16 %v7648, %v7632
    %v9601 = vpack.c.b16 %v7649, %v7633
    %v9602 = vpack.c.b16 %v7666, %v7650
    %v9603 = vpack.c.b16 %v7667, %v7651
    %v9604 = vpack.c.b16 %v7668, %v7652
    %v9605 = vpack.c.b16 %v7669, %v7653
    %v9606 = vpack.c.b16 %v7670, %v7654
    %v9607 = vpack.c.b16 %v7671, %v7655
    %v9608 = vpack.c.b16 %v7672, %v7656
    %v9609 = vpack.c.b16 %v7673, %v7657
    %v9610 = vpack.c.b16 %v7674, %v7658
    %v9611 = vpack.c.b16 %v7675, %v7659
    %v9612 = vpack.c.b16 %v7676, %v7660
    %v9613 = vpack.c.b16 %v7677, %v7661
    %v9614 = vpack.c.b16 %v7678, %v7662
    %v9615 = vpack.c.b16 %v7679, %v7663
    %v9616 = vpack.c.b16 %v7680, %v7664
    %v9617 = vpack.c.b16 %v7681, %v7665
    %v9618 = vpack.c.b16 %v7698, %v7682
    %v9619 = vpack.c.b16 %v7699, %v7683
    %v9620 = vpack.c.b16 %v7700, %v7684
    %v9621 = vpack.c.b16 %v7701, %v7685
    %v9622 = vpack.c.b16 %v7702, %v7686
    %v9623 = vpack.c.b16 %v7703, %v7687
    %v9624 = vpack.c.b16 %v7704, %v7688
    %v9625 = vpack.c.b16 %v7705, %v7689
    %v9626 = vpack.c.b16 %v7706, %v7690
    %v9627 = vpack.c.b16 %v7707, %v7691
    %v9628 = vpack.c.b16 %v7708, %v7692
    %v9629 = vpack.c.b16 %v7709, %v7693
    %v9630 = vpack.c.b16 %v7710, %v7694
    %v9631 = vpack.c.b16 %v7711, %v7695
    %v9632 = vpack.c.b16 %v7712, %v7696
    %v9633 = vpack.c.b16 %v7713, %v7697
    %v9634 = vpack.c.b16 %v7730, %v7714
    %v9635 = vpack.c.b16 %v7731, %v7715
    %v9636 = vpack.c.b16 %v7732, %v7716
    %v9637 = vpack.c.b16 %v7733, %v7717
    %v9638 = vpack.c.b16 %v7734, %v7718
    %v9639 = vpack.c.b16 %v7735, %v7719
    %v9640 = vpack.c.b16 %v7736, %v7720
    %v9641 = vpack.c.b16 %v7737, %v7721
    %v9642 = vpack.c.b16 %v7738, %v7722
    %v9643 = vpack.c.b16 %v7739, %v7723
    %v9644 = vpack.c.b16 %v7740, %v7724
    %v9645 = vpack.c.b16 %v7741, %v7725
    %v9646 = vpack.c.b16 %v7742, %v7726
    %v9647 = vpack.c.b16 %v7743, %v7727
    %v9648 = vpack.c.b16 %v7744, %v7728
    %v9649 = vpack.c.b16 %v7745, %v7729
    %v9650 = vpack.c.b16 %v7762, %v7746
    %v9651 = vpack.c.b16 %v7763, %v7747
    %v9652 = vpack.c.b16 %v7764, %v7748
    %v9653 = vpack.c.b16 %v7765, %v7749
    %v9654 = vpack.c.b16 %v7766, %v7750
    %v9655 = vpack.c.b16 %v7767, %v7751
    %v9656 = vpack.c.b16 %v7768, %v7752
    %v9657 = vpack.c.b16 %v7769, %v7753
    %v9658 = vpack.c.b16 %v7770, %v7754
    %v9659 = vpack.c.b16 %v7771, %v7755
    %v9660 = vpack.c.b16 %v7772, %v7756
    %v9661 = vpack.c.b16 %v7773, %v7757
    %v9662 = vpack.c.b16 %v7774, %v7758
    %v9663 = vpack.c.b16 %v7775, %v7759
    %v9664 = vpack.c.b16 %v7776, %v7760
    %v9665 = vpack.c.b16 %v7777, %v7761
    %v9666 = vpack.c.b16 %v7794, %v7778
    %v9667 = vpack.c.b16 %v7795, %v7779
    %v9668 = vpack.c.b16 %v7796, %v7780
    %v9669 = vpack.c.b16 %v7797, %v7781
    %v9670 = vpack.c.b16 %v7798, %v7782
    %v9671 = vpack.c.b16 %v7799, %v7783
    %v9672 = vpack.c.b16 %v7800, %v7784
    %v9673 = vpack.c.b16 %v7801, %v7785
    %v9674 = vpack.c.b16 %v7802, %v7786
    %v9675 = vpack.c.b16 %v7803, %v7787
    %v9676 = vpack.c.b16 %v7804, %v7788
    %v9677 = vpack.c.b16 %v7805, %v7789
    %v9678 = vpack.c.b16 %v7806, %v7790
    %v9679 = vpack.c.b16 %v7807, %v7791
    %v9680 = vpack.c.b16 %v7808, %v7792
    %v9681 = vpack.c.b16 %v7809, %v7793
    %v9682 = vpack.c.b16 %v7826, %v7810
    %v9683 = vpack.c.b16 %v7827, %v7811
    %v9684 = vpack.c.b16 %v7828, %v7812
    %v9685 = vpack.c.b16 %v7829, %v7813
    %v9686 = vpack.c.b16 %v7830, %v7814
    %v9687 = vpack.c.b16 %v7831, %v7815
    %v9688 = vpack.c.b16 %v7832, %v7816
    %v9689 = vpack.c.b16 %v7833, %v7817
    %v9690 = vpack.c.b16 %v7834, %v7818
    %v9691 = vpack.c.b16 %v7835, %v7819
    %v9692 = vpack.c.b16 %v7836, %v7820
    %v9693 = vpack.c.b16 %v7837, %v7821
    %v9694 = vpack.c.b16 %v7838, %v7822
    %v9695 = vpack.c.b16 %v7839, %v7823
    %v9696 = vpack.c.b16 %v7840, %v7824
    %v9697 = vpack.c.b16 %v7841, %v7825
    %v9698 = vpack.c.b16 %v7858, %v7842
    %v9699 = vpack.c.b16 %v7859, %v7843
    %v9700 = vpack.c.b16 %v7860, %v7844
    %v9701 = vpack.c.b16 %v7861, %v7845
    %v9702 = vpack.c.b16 %v7862, %v7846
    %v9703 = vpack.c.b16 %v7863, %v7847
    %v9704 = vpack.c.b16 %v7864, %v7848
    %v9705 = vpack.c.b16 %v7865, %v7849
    %v9706 = vpack.c.b16 %v7866, %v7850
    %v9707 = vpack.c.b16 %v7867, %v7851
    %v9708 = vpack.c.b16 %v7868, %v7852
    %v9709 = vpack.c.b16 %v7869, %v7853
    %v9710 = vpack.c.b16 %v7870, %v7854
    %v9711 = vpack.c.b16 %v7871, %v7855
    %v9712 = vpack.c.b16 %v7872, %v7856
    %v9713 = vpack.c.b16 %v7873, %v7857
    %v9714 = vpack.c.b16 %v7890, %v7874
    %v9715 = vpack.c.b16 %v7891, %v7875
    %v9716 = vpack.c.b16 %v7892, %v7876
    %v9717 = vpack.c.b16 %v7893, %v7877
    %v9718 = vpack.c.b16 %v7894, %v7878
    %v9719 = vpack.c.b16 %v7895, %v7879
    %v9720 = vpack.c.b16 %v7896, %v7880
    %v9721 = vpack.c.b16 %v7897, %v7881
    %v9722 = vpack.c.b16 %v7898, %v7882
    %v9723 = vpack.c.b16 %v7899, %v7883
    %v9724 = vpack.c.b16 %v7900, %v7884
    %v9725 = vpack.c.b16 %v7901, %v7885
    %v9726 = vpack.c.b16 %v7902, %v7886
    %v9727 = vpack.c.b16 %v7903, %v7887
    %v9728 = vpack.c.b16 %v7904, %v7888
    %v9729 = vpack.c.b16 %v7905, %v7889
    %v9730 = vpack.c.b16 %v7922, %v7906
    %v9731 = vpack.c.b16 %v7923, %v7907
    %v9732 = vpack.c.b16 %v7924, %v7908
    %v9733 = vpack.c.b16 %v7925, %v7909
    %v9734 = vpack.c.b16 %v7926, %v7910
    %v9735 = vpack.c.b16 %v7927, %v7911
    %v9736 = vpack.c.b16 %v7928, %v7912
    %v9737 = vpack.c.b16 %v7929, %v7913
    %v9738 = vpack.c.b16 %v7930, %v7914
    %v9739 = vpack.c.b16 %v7931, %v7915
    %v9740 = vpack.c.b16 %v7932, %v7916
    %v9741 = vpack.c.b16 %v7933, %v7917
    %v9742 = vpack.c.b16 %v7934, %v7918
    %v9743 = vpack.c.b16 %v7935, %v7919
    %v9744 = vpack.c.b16 %v7936, %v7920
    %v9745 = vpack.c.b16 %v7937, %v7921
    %v9746 = vpack.c.b16 %v7954, %v7938
    %v9747 = vpack.c.b16 %v7955, %v7939
    %v9748 = vpack.c.b16 %v7956, %v7940
    %v9749 = vpack.c.b16 %v7957, %v7941
    %v9750 = vpack.c.b16 %v7958, %v7942
    %v9751 = vpack.c.b16 %v7959, %v7943
    %v9752 = vpack.c.b16 %v7960, %v7944
    %v9753 = vpack.c.b16 %v7961, %v7945
    %v9754 = vpack.c.b16 %v7962, %v7946
    %v9755 = vpack.c.b16 %v7963, %v7947
    %v9756 = vpack.c.b16 %v7964, %v7948
    %v9757 = vpack.c.b16 %v7965, %v7949
    %v9758 = vpack.c.b16 %v7966, %v7950
    %v9759 = vpack.c.b16 %v7967, %v7951
    %v9760 = vpack.c.b16 %v7968, %v7952
    %v9761 = vpack.c.b16 %v7969, %v7953
    %v9762 = vpack.c.b16 %v7986, %v7970
    %v9763 = vpack.c.b16 %v7987, %v7971
    %v9764 = vpack.c.b16 %v7988, %v7972
    %v9765 = vpack.c.b16 %v7989, %v7973
    %v9766 = vpack.c.b16 %v7990, %v7974
    %v9767 = vpack.c.b16 %v7991, %v7975
    %v9768 = vpack.c.b16 %v7992, %v7976
    %v9769 = vpack.c.b16 %v7993, %v7977
    %v9770 = vpack.c.b16 %v7994, %v7978
    %v9771 = vpack.c.b16 %v7995, %v7979
    %v9772 = vpack.c.b16 %v7996, %v7980
    %v9773 = vpack.c.b16 %v7997, %v7981
    %v9774 = vpack.c.b16 %v7998, %v7982
    %v9775 = vpack.c.b16 %v7999, %v7983
    %v9776 = vpack.c.b16 %v8000, %v7984
    %v9777 = vpack.c.b16 %v8001, %v7985
    %v9778 = vpack.c.b16 %v8018, %v8002
    %v9779 = vpack.c.b16 %v8019, %v8003
    %v9780 = vpack.c.b16 %v8020, %v8004
    %v9781 = vpack.c.b16 %v8021, %v8005
    %v9782 = vpack.c.b16 %v8022, %v8006
    %v9783 = vpack.c.b16 %v8023, %v8007
    %v9784 = vpack.c.b16 %v8024, %v8008
    %v9785 = vpack.c.b16 %v8025, %v8009
    %v9786 = vpack.c.b16 %v8026, %v8010
    %v9787 = vpack.c.b16 %v8027, %v8011
    %v9788 = vpack.c.b16 %v8028, %v8012
    %v9789 = vpack.c.b16 %v8029, %v8013
    %v9790 = vpack.c.b16 %v8030, %v8014
    %v9791 = vpack.c.b16 %v8031, %v8015
    %v9792 = vpack.c.b16 %v8032, %v8016
    %v9793 = vpack.c.b16 %v8033, %v8017
    %v9794 = vpack.c.b16 %v8050, %v8034
    %v9795 = vpack.c.b16 %v8051, %v8035
    %v9796 = vpack.c.b16 %v8052, %v8036
    %v9797 = vpack.c.b16 %v8053, %v8037
    %v9798 = vpack.c.b16 %v8054, %v8038
    %v9799 = vpack.c.b16 %v8055, %v8039
    %v9800 = vpack.c.b16 %v8056, %v8040
    %v9801 = vpack.c.b16 %v8057, %v8041
    %v9802 = vpack.c.b16 %v8058, %v8042
    %v9803 = vpack.c.b16 %v8059, %v8043
    %v9804 = vpack.c.b16 %v8060, %v8044
    %v9805 = vpack.c.b16 %v8061, %v8045
    %v9806 = vpack.c.b16 %v8062, %v8046
    %v9807 = vpack.c.b16 %v8063, %v8047
    %v9808 = vpack.c.b16 %v8064, %v8048
    %v9809 = vpack.c.b16 %v8065, %v8049
    %v9810 = vpack.c.b16 %v8082, %v8066
    %v9811 = vpack.c.b16 %v8083, %v8067
    %v9812 = vpack.c.b16 %v8084, %v8068
    %v9813 = vpack.c.b16 %v8085, %v8069
    %v9814 = vpack.c.b16 %v8086, %v8070
    %v9815 = vpack.c.b16 %v8087, %v8071
    %v9816 = vpack.c.b16 %v8088, %v8072
    %v9817 = vpack.c.b16 %v8089, %v8073
    %v9818 = vpack.c.b16 %v8090, %v8074
    %v9819 = vpack.c.b16 %v8091, %v8075
    %v9820 = vpack.c.b16 %v8092, %v8076
    %v9821 = vpack.c.b16 %v8093, %v8077
    %v9822 = vpack.c.b16 %v8094, %v8078
    %v9823 = vpack.c.b16 %v8095, %v8079
    %v9824 = vpack.c.b16 %v8096, %v8080
    %v9825 = vpack.c.b16 %v8097, %v8081
    %v9826 = vpack.c.b16 %v8114, %v8098
    %v9827 = vpack.c.b16 %v8115, %v8099
    %v9828 = vpack.c.b16 %v8116, %v8100
    %v9829 = vpack.c.b16 %v8117, %v8101
    %v9830 = vpack.c.b16 %v8118, %v8102
    %v9831 = vpack.c.b16 %v8119, %v8103
    %v9832 = vpack.c.b16 %v8120, %v8104
    %v9833 = vpack.c.b16 %v8121, %v8105
    %v9834 = vpack.c.b16 %v8122, %v8106
    %v9835 = vpack.c.b16 %v8123, %v8107
    %v9836 = vpack.c.b16 %v8124, %v8108
    %v9837 = vpack.c.b16 %v8125, %v8109
    %v9838 = vpack.c.b16 %v8126, %v8110
    %v9839 = vpack.c.b16 %v8127, %v8111
    %v9840 = vpack.c.b16 %v8128, %v8112
    %v9841 = vpack.c.b16 %v8129, %v8113
    %v9842 = vpack.c.b16 %v8146, %v8130
    %v9843 = vpack.c.b16 %v8147, %v8131
    %v9844 = vpack.c.b16 %v8148, %v8132
    %v9845 = vpack.c.b16 %v8149, %v8133
    %v9846 = vpack.c.b16 %v8150, %v8134
    %v9847 = vpack.c.b16 %v8151, %v8135
    %v9848 = vpack.c.b16 %v8152, %v8136
    %v9849 = vpack.c.b16 %v8153, %v8137
    %v9850 = vpack.c.b16 %v8154, %v8138
    %v9851 = vpack.c.b16 %v8155, %v8139
    %v9852 = vpack.c.b16 %v8156, %v8140
    %v9853 = vpack.c.b16 %v8157, %v8141
    %v9854 = vpack.c.b16 %v8158, %v8142
    %v9855 = vpack.c.b16 %v8159, %v8143
    %v9856 = vpack.c.b16 %v8160, %v8144
    %v9857 = vpack.c.b16 %v8161, %v8145
    %v9858 = vpack.c.b16 %v8178, %v8162
    %v9859 = vpack.c.b16 %v8179, %v8163
    %v9860 = vpack.c.b16 %v8180, %v8164
    %v9861 = vpack.c.b16 %v8181, %v8165
    %v9862 = vpack.c.b16 %v8182, %v8166
    %v9863 = vpack.c.b16 %v8183, %v8167
    %v9864 = vpack.c.b16 %v8184, %v8168
    %v9865 = vpack.c.b16 %v8185, %v8169
    %v9866 = vpack.c.b16 %v8186, %v8170
    %v9867 = vpack.c.b16 %v8187, %v8171
    %v9868 = vpack.c.b16 %v8188, %v8172
    %v9869 = vpack.c.b16 %v8189, %v8173
    %v9870 = vpack.c.b16 %v8190, %v8174
    %v9871 = vpack.c.b16 %v8191, %v8175
    %v9872 = vpack.c.b16 %v8192, %v8176
    %v9873 = vpack.c.b16 %v8193, %v8177
    %v9874 = vpack.c.b16 %v8210, %v8194
    %v9875 = vpack.c.b16 %v8211, %v8195
    %v9876 = vpack.c.b16 %v8212, %v8196
    %v9877 = vpack.c.b16 %v8213, %v8197
    %v9878 = vpack.c.b16 %v8214, %v8198
    %v9879 = vpack.c.b16 %v8215, %v8199
    %v9880 = vpack.c.b16 %v8216, %v8200
    %v9881 = vpack.c.b16 %v8217, %v8201
    %v9882 = vpack.c.b16 %v8218, %v8202
    %v9883 = vpack.c.b16 %v8219, %v8203
    %v9884 = vpack.c.b16 %v8220, %v8204
    %v9885 = vpack.c.b16 %v8221, %v8205
    %v9886 = vpack.c.b16 %v8222, %v8206
    %v9887 = vpack.c.b16 %v8223, %v8207
    %v9888 = vpack.c.b16 %v8224, %v8208
    %v9889 = vpack.c.b16 %v8225, %v8209
    %v9890 = vpack.c.b16 %v8242, %v8226
    %v9891 = vpack.c.b16 %v8243, %v8227
    %v9892 = vpack.c.b16 %v8244, %v8228
    %v9893 = vpack.c.b16 %v8245, %v8229
    %v9894 = vpack.c.b16 %v8246, %v8230
    %v9895 = vpack.c.b16 %v8247, %v8231
    %v9896 = vpack.c.b16 %v8248, %v8232
    %v9897 = vpack.c.b16 %v8249, %v8233
    %v9898 = vpack.c.b16 %v8250, %v8234
    %v9899 = vpack.c.b16 %v8251, %v8235
    %v9900 = vpack.c.b16 %v8252, %v8236
    %v9901 = vpack.c.b16 %v8253, %v8237
    %v9902 = vpack.c.b16 %v8254, %v8238
    %v9903 = vpack.c.b16 %v8255, %v8239
    %v9904 = vpack.c.b16 %v8256, %v8240
    %v9905 = vpack.c.b16 %v8257, %v8241
    %v9906 = vpack.c.b16 %v8274, %v8258
    %v9907 = vpack.c.b16 %v8275, %v8259
    %v9908 = vpack.c.b16 %v8276, %v8260
    %v9909 = vpack.c.b16 %v8277, %v8261
    %v9910 = vpack.c.b16 %v8278, %v8262
    %v9911 = vpack.c.b16 %v8279, %v8263
    %v9912 = vpack.c.b16 %v8280, %v8264
    %v9913 = vpack.c.b16 %v8281, %v8265
    %v9914 = vpack.c.b16 %v8282, %v8266
    %v9915 = vpack.c.b16 %v8283, %v8267
    %v9916 = vpack.c.b16 %v8284, %v8268
    %v9917 = vpack.c.b16 %v8285, %v8269
    %v9918 = vpack.c.b16 %v8286, %v8270
    %v9919 = vpack.c.b16 %v8287, %v8271
    %v9920 = vpack.c.b16 %v8288, %v8272
    %v9921 = vpack.c.b16 %v8289, %v8273
    %v9922 = vpack.c.b16 %v8306, %v8290
    %v9923 = vpack.c.b16 %v8307, %v8291
    %v9924 = vpack.c.b16 %v8308, %v8292
    %v9925 = vpack.c.b16 %v8309, %v8293
    %v9926 = vpack.c.b16 %v8310, %v8294
    %v9927 = vpack.c.b16 %v8311, %v8295
    %v9928 = vpack.c.b16 %v8312, %v8296
    %v9929 = vpack.c.b16 %v8313, %v8297
    %v9930 = vpack.c.b16 %v8314, %v8298
    %v9931 = vpack.c.b16 %v8315, %v8299
    %v9932 = vpack.c.b16 %v8316, %v8300
    %v9933 = vpack.c.b16 %v8317, %v8301
    %v9934 = vpack.c.b16 %v8318, %v8302
    %v9935 = vpack.c.b16 %v8319, %v8303
    %v9936 = vpack.c.b16 %v8320, %v8304
    %v9937 = vpack.c.b16 %v8321, %v8305
    %v9938 = vpack.c.b16 %v8338, %v8322
    %v9939 = vpack.c.b16 %v8339, %v8323
    %v9940 = vpack.c.b16 %v8340, %v8324
    %v9941 = vpack.c.b16 %v8341, %v8325
    %v9942 = vpack.c.b16 %v8342, %v8326
    %v9943 = vpack.c.b16 %v8343, %v8327
    %v9944 = vpack.c.b16 %v8344, %v8328
    %v9945 = vpack.c.b16 %v8345, %v8329
    %v9946 = vpack.c.b16 %v8346, %v8330
    %v9947 = vpack.c.b16 %v8347, %v8331
    %v9948 = vpack.c.b16 %v8348, %v8332
    %v9949 = vpack.c.b16 %v8349, %v8333
    %v9950 = vpack.c.b16 %v8350, %v8334
    %v9951 = vpack.c.b16 %v8351, %v8335
    %v9952 = vpack.c.b16 %v8352, %v8336
    %v9953 = vpack.c.b16 %v8353, %v8337
    %v9954 = vpack.c.b16 %v8370, %v8354
    %v9955 = vpack.c.b16 %v8371, %v8355
    %v9956 = vpack.c.b16 %v8372, %v8356
    %v9957 = vpack.c.b16 %v8373, %v8357
    %v9958 = vpack.c.b16 %v8374, %v8358
    %v9959 = vpack.c.b16 %v8375, %v8359
    %v9960 = vpack.c.b16 %v8376, %v8360
    %v9961 = vpack.c.b16 %v8377, %v8361
    %v9962 = vpack.c.b16 %v8378, %v8362
    %v9963 = vpack.c.b16 %v8379, %v8363
    %v9964 = vpack.c.b16 %v8380, %v8364
    %v9965 = vpack.c.b16 %v8381, %v8365
    %v9966 = vpack.c.b16 %v8382, %v8366
    %v9967 = vpack.c.b16 %v8383, %v8367
    %v9968 = vpack.c.b16 %v8384, %v8368
    %v9969 = vpack.c.b16 %v8385, %v8369
    %v9970 = vpack.c.b16 %v8402, %v8386
    %v9971 = vpack.c.b16 %v8403, %v8387
    %v9972 = vpack.c.b16 %v8404, %v8388
    %v9973 = vpack.c.b16 %v8405, %v8389
    %v9974 = vpack.c.b16 %v8406, %v8390
    %v9975 = vpack.c.b16 %v8407, %v8391
    %v9976 = vpack.c.b16 %v8408, %v8392
    %v9977 = vpack.c.b16 %v8409, %v8393
    %v9978 = vpack.c.b16 %v8410, %v8394
    %v9979 = vpack.c.b16 %v8411, %v8395
    %v9980 = vpack.c.b16 %v8412, %v8396
    %v9981 = vpack.c.b16 %v8413, %v8397
    %v9982 = vpack.c.b16 %v8414, %v8398
    %v9983 = vpack.c.b16 %v8415, %v8399
    %v9984 = vpack.c.b16 %v8416, %v8400
    %v9985 = vpack.c.b16 %v8417, %v8401
    %v9986 = vpack.c.b16 %v8434, %v8418
    %v9987 = vpack.c.b16 %v8435, %v8419
    %v9988 = vpack.c.b16 %v8436, %v8420
    %v9989 = vpack.c.b16 %v8437, %v8421
    %v9990 = vpack.c.b16 %v8438, %v8422
    %v9991 = vpack.c.b16 %v8439, %v8423
    %v9992 = vpack.c.b16 %v8440, %v8424
    %v9993 = vpack.c.b16 %v8441, %v8425
    %v9994 = vpack.c.b16 %v8442, %v8426
    %v9995 = vpack.c.b16 %v8443, %v8427
    %v9996 = vpack.c.b16 %v8444, %v8428
    %v9997 = vpack.c.b16 %v8445, %v8429
    %v9998 = vpack.c.b16 %v8446, %v8430
    %v9999 = vpack.c.b16 %v8447, %v8431
    %v10000 = vpack.c.b16 %v8448, %v8432
    %v10001 = vpack.c.b16 %v8449, %v8433
    %v10002 = vpack.c.b16 %v8466, %v8450
    %v10003 = vpack.c.b16 %v8467, %v8451
    %v10004 = vpack.c.b16 %v8468, %v8452
    %v10005 = vpack.c.b16 %v8469, %v8453
    %v10006 = vpack.c.b16 %v8470, %v8454
    %v10007 = vpack.c.b16 %v8471, %v8455
    %v10008 = vpack.c.b16 %v8472, %v8456
    %v10009 = vpack.c.b16 %v8473, %v8457
    %v10010 = vpack.c.b16 %v8474, %v8458
    %v10011 = vpack.c.b16 %v8475, %v8459
    %v10012 = vpack.c.b16 %v8476, %v8460
    %v10013 = vpack.c.b16 %v8477, %v8461
    %v10014 = vpack.c.b16 %v8478, %v8462
    %v10015 = vpack.c.b16 %v8479, %v8463
    %v10016 = vpack.c.b16 %v8480, %v8464
    %v10017 = vpack.c.b16 %v8481, %v8465
    %v10018 = vpack.c.b16 %v8498, %v8482
    %v10019 = vpack.c.b16 %v8499, %v8483
    %v10020 = vpack.c.b16 %v8500, %v8484
    %v10021 = vpack.c.b16 %v8501, %v8485
    %v10022 = vpack.c.b16 %v8502, %v8486
    %v10023 = vpack.c.b16 %v8503, %v8487
    %v10024 = vpack.c.b16 %v8504, %v8488
    %v10025 = vpack.c.b16 %v8505, %v8489
    %v10026 = vpack.c.b16 %v8506, %v8490
    %v10027 = vpack.c.b16 %v8507, %v8491
    %v10028 = vpack.c.b16 %v8508, %v8492
    %v10029 = vpack.c.b16 %v8509, %v8493
    %v10030 = vpack.c.b16 %v8510, %v8494
    %v10031 = vpack.c.b16 %v8511, %v8495
    %v10032 = vpack.c.b16 %v8512, %v8496
    %v10033 = vpack.c.b16 %v8513, %v8497
    %v10034 = vpack.c.b16 %v8530, %v8514
    %v10035 = vpack.c.b16 %v8531, %v8515
    %v10036 = vpack.c.b16 %v8532, %v8516
    %v10037 = vpack.c.b16 %v8533, %v8517
    %v10038 = vpack.c.b16 %v8534, %v8518
    %v10039 = vpack.c.b16 %v8535, %v8519
    %v10040 = vpack.c.b16 %v8536, %v8520
    %v10041 = vpack.c.b16 %v8537, %v8521
    %v10042 = vpack.c.b16 %v8538, %v8522
    %v10043 = vpack.c.b16 %v8539, %v8523
    %v10044 = vpack.c.b16 %v8540, %v8524
    %v10045 = vpack.c.b16 %v8541, %v8525
    %v10046 = vpack.c.b16 %v8542, %v8526
    %v10047 = vpack.c.b16 %v8543, %v8527
    %v10048 = vpack.c.b16 %v8544, %v8528
    %v10049 = vpack.c.b16 %v8545, %v8529
    %v10050 = vpack.c.b16 %v8562, %v8546
    %v10051 = vpack.c.b16 %v8563, %v8547
    %v10052 = vpack.c.b16 %v8564, %v8548
    %v10053 = vpack.c.b16 %v8565, %v8549
    %v10054 = vpack.c.b16 %v8566, %v8550
    %v10055 = vpack.c.b16 %v8567, %v8551
    %v10056 = vpack.c.b16 %v8568, %v8552
    %v10057 = vpack.c.b16 %v8569, %v8553
    %v10058 = vpack.c.b16 %v8570, %v8554
    %v10059 = vpack.c.b16 %v8571, %v8555
    %v10060 = vpack.c.b16 %v8572, %v8556
    %v10061 = vpack.c.b16 %v8573, %v8557
    %v10062 = vpack.c.b16 %v8574, %v8558
    %v10063 = vpack.c.b16 %v8575, %v8559
    %v10064 = vpack.c.b16 %v8576, %v8560
    %v10065 = vpack.c.b16 %v8577, %v8561
    %v10066 = vpack.c.b16 %v8594, %v8578
    %v10067 = vpack.c.b16 %v8595, %v8579
    %v10068 = vpack.c.b16 %v8596, %v8580
    %v10069 = vpack.c.b16 %v8597, %v8581
    %v10070 = vpack.c.b16 %v8598, %v8582
    %v10071 = vpack.c.b16 %v8599, %v8583
    %v10072 = vpack.c.b16 %v8600, %v8584
    %v10073 = vpack.c.b16 %v8601, %v8585
    %v10074 = vpack.c.b16 %v8602, %v8586
    %v10075 = vpack.c.b16 %v8603, %v8587
    %v10076 = vpack.c.b16 %v8604, %v8588
    %v10077 = vpack.c.b16 %v8605, %v8589
    %v10078 = vpack.c.b16 %v8606, %v8590
    %v10079 = vpack.c.b16 %v8607, %v8591
    %v10080 = vpack.c.b16 %v8608, %v8592
    %v10081 = vpack.c.b16 %v8609, %v8593
    %v10082 = vpack.c.b16 %v8626, %v8610
    %v10083 = vpack.c.b16 %v8627, %v8611
    %v10084 = vpack.c.b16 %v8628, %v8612
    %v10085 = vpack.c.b16 %v8629, %v8613
    %v10086 = vpack.c.b16 %v8630, %v8614
    %v10087 = vpack.c.b16 %v8631, %v8615
    %v10088 = vpack.c.b16 %v8632, %v8616
    %v10089 = vpack.c.b16 %v8633, %v8617
    %v10090 = vpack.c.b16 %v8634, %v8618
    %v10091 = vpack.c.b16 %v8635, %v8619
    %v10092 = vpack.c.b16 %v8636, %v8620
    %v10093 = vpack.c.b16 %v8637, %v8621
    %v10094 = vpack.c.b16 %v8638, %v8622
    %v10095 = vpack.c.b16 %v8639, %v8623
    %v10096 = vpack.c.b16 %v8640, %v8624
    %v10097 = vpack.c.b16 %v8641, %v8625
    %v10098 = vpack.c.b16 %v8658, %v8642
    %v10099 = vpack.c.b16 %v8659, %v8643
    %v10100 = vpack.c.b16 %v8660, %v8644
    %v10101 = vpack.c.b16 %v8661, %v8645
    %v10102 = vpack.c.b16 %v8662, %v8646
    %v10103 = vpack.c.b16 %v8663, %v8647
    %v10104 = vpack.c.b16 %v8664, %v8648
    %v10105 = vpack.c.b16 %v8665, %v8649
    %v10106 = vpack.c.b16 %v8666, %v8650
    %v10107 = vpack.c.b16 %v8667, %v8651
    %v10108 = vpack.c.b16 %v8668, %v8652
    %v10109 = vpack.c.b16 %v8669, %v8653
    %v10110 = vpack.c.b16 %v8670, %v8654
    %v10111 = vpack.c.b16 %v8671, %v8655
    %v10112 = vpack.c.b16 %v8672, %v8656
    %v10113 = vpack.c.b16 %v8673, %v8657
    %v10114 = vpack.c.b16 %v8690, %v8674
    %v10115 = vpack.c.b16 %v8691, %v8675
    %v10116 = vpack.c.b16 %v8692, %v8676
    %v10117 = vpack.c.b16 %v8693, %v8677
    %v10118 = vpack.c.b16 %v8694, %v8678
    %v10119 = vpack.c.b16 %v8695, %v8679
    %v10120 = vpack.c.b16 %v8696, %v8680
    %v10121 = vpack.c.b16 %v8697, %v8681
    %v10122 = vpack.c.b16 %v8698, %v8682
    %v10123 = vpack.c.b16 %v8699, %v8683
    %v10124 = vpack.c.b16 %v8700, %v8684
    %v10125 = vpack.c.b16 %v8701, %v8685
    %v10126 = vpack.c.b16 %v8702, %v8686
    %v10127 = vpack.c.b16 %v8703, %v8687
    %v10128 = vpack.c.b16 %v8704, %v8688
    %v10129 = vpack.c.b16 %v8705, %v8689
    %v10130 = vpack.c.b16 %v8722, %v8706
    %v10131 = vpack.c.b16 %v8723, %v8707
    %v10132 = vpack.c.b16 %v8724, %v8708
    %v10133 = vpack.c.b16 %v8725, %v8709
    %v10134 = vpack.c.b16 %v8726, %v8710
    %v10135 = vpack.c.b16 %v8727, %v8711
    %v10136 = vpack.c.b16 %v8728, %v8712
    %v10137 = vpack.c.b16 %v8729, %v8713
    %v10138 = vpack.c.b16 %v8730, %v8714
    %v10139 = vpack.c.b16 %v8731, %v8715
    %v10140 = vpack.c.b16 %v8732, %v8716
    %v10141 = vpack.c.b16 %v8733, %v8717
    %v10142 = vpack.c.b16 %v8734, %v8718
    %v10143 = vpack.c.b16 %v8735, %v8719
    %v10144 = vpack.c.b16 %v8736, %v8720
    %v10145 = vpack.c.b16 %v8737, %v8721
    %v10146 = vpack.c.b16 %v8754, %v8738
    %v10147 = vpack.c.b16 %v8755, %v8739
    %v10148 = vpack.c.b16 %v8756, %v8740
    %v10149 = vpack.c.b16 %v8757, %v8741
    %v10150 = vpack.c.b16 %v8758, %v8742
    %v10151 = vpack.c.b16 %v8759, %v8743
    %v10152 = vpack.c.b16 %v8760, %v8744
    %v10153 = vpack.c.b16 %v8761, %v8745
    %v10154 = vpack.c.b16 %v8762, %v8746
    %v10155 = vpack.c.b16 %v8763, %v8747
    %v10156 = vpack.c.b16 %v8764, %v8748
    %v10157 = vpack.c.b16 %v8765, %v8749
    %v10158 = vpack.c.b16 %v8766, %v8750
    %v10159 = vpack.c.b16 %v8767, %v8751
    %v10160 = vpack.c.b16 %v8768, %v8752
    %v10161 = vpack.c.b16 %v8769, %v8753
    %v10162 = vpack.c.b16 %v8786, %v8770
    %v10163 = vpack.c.b16 %v8787, %v8771
    %v10164 = vpack.c.b16 %v8788, %v8772
    %v10165 = vpack.c.b16 %v8789, %v8773
    %v10166 = vpack.c.b16 %v8790, %v8774
    %v10167 = vpack.c.b16 %v8791, %v8775
    %v10168 = vpack.c.b16 %v8792, %v8776
    %v10169 = vpack.c.b16 %v8793, %v8777
    %v10170 = vpack.c.b16 %v8794, %v8778
    %v10171 = vpack.c.b16 %v8795, %v8779
    %v10172 = vpack.c.b16 %v8796, %v8780
    %v10173 = vpack.c.b16 %v8797, %v8781
    %v10174 = vpack.c.b16 %v8798, %v8782
    %v10175 = vpack.c.b16 %v8799, %v8783
    %v10176 = vpack.c.b16 %v8800, %v8784
    %v10177 = vpack.c.b16 %v8801, %v8785
    %v10178 = vpack.c.b16 %v8818, %v8802
    %v10179 = vpack.c.b16 %v8819, %v8803
    %v10180 = vpack.c.b16 %v8820, %v8804
    %v10181 = vpack.c.b16 %v8821, %v8805
    %v10182 = vpack.c.b16 %v8822, %v8806
    %v10183 = vpack.c.b16 %v8823, %v8807
    %v10184 = vpack.c.b16 %v8824, %v8808
    %v10185 = vpack.c.b16 %v8825, %v8809
    %v10186 = vpack.c.b16 %v8826, %v8810
    %v10187 = vpack.c.b16 %v8827, %v8811
    %v10188 = vpack.c.b16 %v8828, %v8812
    %v10189 = vpack.c.b16 %v8829, %v8813
    %v10190 = vpack.c.b16 %v8830, %v8814
    %v10191 = vpack.c.b16 %v8831, %v8815
    %v10192 = vpack.c.b16 %v8832, %v8816
    %v10193 = vpack.c.b16 %v8833, %v8817
    %v10194 = vpack.c.b16 %v8850, %v8834
    %v10195 = vpack.c.b16 %v8851, %v8835
    %v10196 = vpack.c.b16 %v8852, %v8836
    %v10197 = vpack.c.b16 %v8853, %v8837
    %v10198 = vpack.c.b16 %v8854, %v8838
    %v10199 = vpack.c.b16 %v8855, %v8839
    %v10200 = vpack.c.b16 %v8856, %v8840
    %v10201 = vpack.c.b16 %v8857, %v8841
    %v10202 = vpack.c.b16 %v8858, %v8842
    %v10203 = vpack.c.b16 %v8859, %v8843
    %v10204 = vpack.c.b16 %v8860, %v8844
    %v10205 = vpack.c.b16 %v8861, %v8845
    %v10206 = vpack.c.b16 %v8862, %v8846
    %v10207 = vpack.c.b16 %v8863, %v8847
    %v10208 = vpack.c.b16 %v8864, %v8848
    %v10209 = vpack.c.b16 %v8865, %v8849
    %v10210 = vpack.c.b16 %v8882, %v8866
    %v10211 = vpack.c.b16 %v8883, %v8867
    %v10212 = vpack.c.b16 %v8884, %v8868
    %v10213 = vpack.c.b16 %v8885, %v8869
    %v10214 = vpack.c.b16 %v8886, %v8870
    %v10215 = vpack.c.b16 %v8887, %v8871
    %v10216 = vpack.c.b16 %v8888, %v8872
    %v10217 = vpack.c.b16 %v8889, %v8873
    %v10218 = vpack.c.b16 %v8890, %v8874
    %v10219 = vpack.c.b16 %v8891, %v8875
    %v10220 = vpack.c.b16 %v8892, %v8876
    %v10221 = vpack.c.b16 %v8893, %v8877
    %v10222 = vpack.c.b16 %v8894, %v8878
    %v10223 = vpack.c.b16 %v8895, %v8879
    %v10224 = vpack.c.b16 %v8896, %v8880
    %v10225 = vpack.c.b16 %v8897, %v8881
    %v10226 = vpack.c.b16 %v8914, %v8898
    %v10227 = vpack.c.b16 %v8915, %v8899
    %v10228 = vpack.c.b16 %v8916, %v8900
    %v10229 = vpack.c.b16 %v8917, %v8901
    %v10230 = vpack.c.b16 %v8918, %v8902
    %v10231 = vpack.c.b16 %v8919, %v8903
    %v10232 = vpack.c.b16 %v8920, %v8904
    %v10233 = vpack.c.b16 %v8921, %v8905
    %v10234 = vpack.c.b16 %v8922, %v8906
    %v10235 = vpack.c.b16 %v8923, %v8907
    %v10236 = vpack.c.b16 %v8924, %v8908
    %v10237 = vpack.c.b16 %v8925, %v8909
    %v10238 = vpack.c.b16 %v8926, %v8910
    %v10239 = vpack.c.b16 %v8927, %v8911
    %v10240 = vpack.c.b16 %v8928, %v8912
    %v10241 = vpack.c.b16 %v8929, %v8913
    %v10242 = vpack.c.b16 %v8946, %v8930
    %v10243 = vpack.c.b16 %v8947, %v8931
    %v10244 = vpack.c.b16 %v8948, %v8932
    %v10245 = vpack.c.b16 %v8949, %v8933
    %v10246 = vpack.c.b16 %v8950, %v8934
    %v10247 = vpack.c.b16 %v8951, %v8935
    %v10248 = vpack.c.b16 %v8952, %v8936
    %v10249 = vpack.c.b16 %v8953, %v8937
    %v10250 = vpack.c.b16 %v8954, %v8938
    %v10251 = vpack.c.b16 %v8955, %v8939
    %v10252 = vpack.c.b16 %v8956, %v8940
    %v10253 = vpack.c.b16 %v8957, %v8941
    %v10254 = vpack.c.b16 %v8958, %v8942
    %v10255 = vpack.c.b16 %v8959, %v8943
    %v10256 = vpack.c.b16 %v8960, %v8944
    %v10257 = vpack.c.b16 %v8961, %v8945
    %v10258 = vpack.c.b16 %v8978, %v8962
    %v10259 = vpack.c.b16 %v8979, %v8963
    %v10260 = vpack.c.b16 %v8980, %v8964
    %v10261 = vpack.c.b16 %v8981, %v8965
    %v10262 = vpack.c.b16 %v8982, %v8966
    %v10263 = vpack.c.b16 %v8983, %v8967
    %v10264 = vpack.c.b16 %v8984, %v8968
    %v10265 = vpack.c.b16 %v8985, %v8969
    %v10266 = vpack.c.b16 %v8986, %v8970
    %v10267 = vpack.c.b16 %v8987, %v8971
    %v10268 = vpack.c.b16 %v8988, %v8972
    %v10269 = vpack.c.b16 %v8989, %v8973
    %v10270 = vpack.c.b16 %v8990, %v8974
    %v10271 = vpack.c.b16 %v8991, %v8975
    %v10272 = vpack.c.b16 %v8992, %v8976
    %v10273 = vpack.c.b16 %v8993, %v8977
    %v10274 = vpack.c.b16 %v9010, %v8994
    %v10275 = vpack.c.b16 %v9011, %v8995
    %v10276 = vpack.c.b16 %v9012, %v8996
    %v10277 = vpack.c.b16 %v9013, %v8997
    %v10278 = vpack.c.b16 %v9014, %v8998
    %v10279 = vpack.c.b16 %v9015, %v8999
    %v10280 = vpack.c.b16 %v9016, %v9000
    %v10281 = vpack.c.b16 %v9017, %v9001
    %v10282 = vpack.c.b16 %v9018, %v9002
    %v10283 = vpack.c.b16 %v9019, %v9003
    %v10284 = vpack.c.b16 %v9020, %v9004
    %v10285 = vpack.c.b16 %v9021, %v9005
    %v10286 = vpack.c.b16 %v9022, %v9006
    %v10287 = vpack.c.b16 %v9023, %v9007
    %v10288 = vpack.c.b16 %v9024, %v9008
    %v10289 = vpack.c.b16 %v9025, %v9009
    %v10290 = vpack.c.b16 %v9042, %v9026
    %v10291 = vpack.c.b16 %v9043, %v9027
    %v10292 = vpack.c.b16 %v9044, %v9028
    %v10293 = vpack.c.b16 %v9045, %v9029
    %v10294 = vpack.c.b16 %v9046, %v9030
    %v10295 = vpack.c.b16 %v9047, %v9031
    %v10296 = vpack.c.b16 %v9048, %v9032
    %v10297 = vpack.c.b16 %v9049, %v9033
    %v10298 = vpack.c.b16 %v9050, %v9034
    %v10299 = vpack.c.b16 %v9051, %v9035
    %v10300 = vpack.c.b16 %v9052, %v9036
    %v10301 = vpack.c.b16 %v9053, %v9037
    %v10302 = vpack.c.b16 %v9054, %v9038
    %v10303 = vpack.c.b16 %v9055, %v9039
    %v10304 = vpack.c.b16 %v9056, %v9040
    %v10305 = vpack.c.b16 %v9057, %v9041
    %v10306 = vpack.c.b16 %v9074, %v9058
    %v10307 = vpack.c.b16 %v9075, %v9059
    %v10308 = vpack.c.b16 %v9076, %v9060
    %v10309 = vpack.c.b16 %v9077, %v9061
    %v10310 = vpack.c.b16 %v9078, %v9062
    %v10311 = vpack.c.b16 %v9079, %v9063
    %v10312 = vpack.c.b16 %v9080, %v9064
    %v10313 = vpack.c.b16 %v9081, %v9065
    %v10314 = vpack.c.b16 %v9082, %v9066
    %v10315 = vpack.c.b16 %v9083, %v9067
    %v10316 = vpack.c.b16 %v9084, %v9068
    %v10317 = vpack.c.b16 %v9085, %v9069
    %v10318 = vpack.c.b16 %v9086, %v9070
    %v10319 = vpack.c.b16 %v9087, %v9071
    %v10320 = vpack.c.b16 %v9088, %v9072
    %v10321 = vpack.c.b16 %v9089, %v9073
    %v10322 = vpack.c.b16 %v9106, %v9090
    %v10323 = vpack.c.b16 %v9107, %v9091
    %v10324 = vpack.c.b16 %v9108, %v9092
    %v10325 = vpack.c.b16 %v9109, %v9093
    %v10326 = vpack.c.b16 %v9110, %v9094
    %v10327 = vpack.c.b16 %v9111, %v9095
    %v10328 = vpack.c.b16 %v9112, %v9096
    %v10329 = vpack.c.b16 %v9113, %v9097
    %v10330 = vpack.c.b16 %v9114, %v9098
    %v10331 = vpack.c.b16 %v9115, %v9099
    %v10332 = vpack.c.b16 %v9116, %v9100
    %v10333 = vpack.c.b16 %v9117, %v9101
    %v10334 = vpack.c.b16 %v9118, %v9102
    %v10335 = vpack.c.b16 %v9119, %v9103
    %v10336 = vpack.c.b16 %v9120, %v9104
    %v10337 = vpack.c.b16 %v9121, %v9105
    %v10338 = vpack.c.b16 %v9138, %v9122
    %v10339 = vpack.c.b16 %v9139, %v9123
    %v10340 = vpack.c.b16 %v9140, %v9124
    %v10341 = vpack.c.b16 %v9141, %v9125
    %v10342 = vpack.c.b16 %v9142, %v9126
    %v10343 = vpack.c.b16 %v9143, %v9127
    %v10344 = vpack.c.b16 %v9144, %v9128
    %v10345 = vpack.c.b16 %v9145, %v9129
    %v10346 = vpack.c.b16 %v9146, %v9130
    %v10347 = vpack.c.b16 %v9147, %v9131
    %v10348 = vpack.c.b16 %v9148, %v9132
    %v10349 = vpack.c.b16 %v9149, %v9133
    %v10350 = vpack.c.b16 %v9150, %v9134
    %v10351 = vpack.c.b16 %v9151, %v9135
    %v10352 = vpack.c.b16 %v9152, %v9136
    %v10353 = vpack.c.b16 %v9153, %v9137
    %v10354 = vpack.c.b16 %v9170, %v9154
    %v10355 = vpack.c.b16 %v9171, %v9155
    %v10356 = vpack.c.b16 %v9172, %v9156
    %v10357 = vpack.c.b16 %v9173, %v9157
    %v10358 = vpack.c.b16 %v9174, %v9158
    %v10359 = vpack.c.b16 %v9175, %v9159
    %v10360 = vpack.c.b16 %v9176, %v9160
    %v10361 = vpack.c.b16 %v9177, %v9161
    %v10362 = vpack.c.b16 %v9178, %v9162
    %v10363 = vpack.c.b16 %v9179, %v9163
    %v10364 = vpack.c.b16 %v9180, %v9164
    %v10365 = vpack.c.b16 %v9181, %v9165
    %v10366 = vpack.c.b16 %v9182, %v9166
    %v10367 = vpack.c.b16 %v9183, %v9167
    %v10368 = vpack.c.b16 %v9184, %v9168
    %v10369 = vpack.c.b16 %v9185, %v9169
    %v10370 = vpack.c.b16 %v9202, %v9186
    %v10371 = vpack.c.b16 %v9203, %v9187
    %v10372 = vpack.c.b16 %v9204, %v9188
    %v10373 = vpack.c.b16 %v9205, %v9189
    %v10374 = vpack.c.b16 %v9206, %v9190
    %v10375 = vpack.c.b16 %v9207, %v9191
    %v10376 = vpack.c.b16 %v9208, %v9192
    %v10377 = vpack.c.b16 %v9209, %v9193
    %v10378 = vpack.c.b16 %v9210, %v9194
    %v10379 = vpack.c.b16 %v9211, %v9195
    %v10380 = vpack.c.b16 %v9212, %v9196
    %v10381 = vpack.c.b16 %v9213, %v9197
    %v10382 = vpack.c.b16 %v9214, %v9198
    %v10383 = vpack.c.b16 %v9215, %v9199
    %v10384 = vpack.c.b16 %v9216, %v9200
    %v10385 = vpack.c.b16 %v9217, %v9201
    %v10386 = vpack.c.b16 %v9234, %v9218
    %v10387 = vpack.c.b16 %v9235, %v9219
    %v10388 = vpack.c.b16 %v9236, %v9220
    %v10389 = vpack.c.b16 %v9237, %v9221
    %v10390 = vpack.c.b16 %v9238, %v9222
    %v10391 = vpack.c.b16 %v9239, %v9223
    %v10392 = vpack.c.b16 %v9240, %v9224
    %v10393 = vpack.c.b16 %v9241, %v9225
    %v10394 = vpack.c.b16 %v9242, %v9226
    %v10395 = vpack.c.b16 %v9243, %v9227
    %v10396 = vpack.c.b16 %v9244, %v9228
    %v10397 = vpack.c.b16 %v9245, %v9229
    %v10398 = vpack.c.b16 %v9246, %v9230
    %v10399 = vpack.c.b16 %v9247, %v9231
    %v10400 = vpack.c.b16 %v9248, %v9232
    %v10401 = vpack.c.b16 %v9249, %v9233
    %v10402 = vpack.c.b16 %v9266, %v9250
    %v10403 = vpack.c.b16 %v9267, %v9251
    %v10404 = vpack.c.b16 %v9268, %v9252
    %v10405 = vpack.c.b16 %v9269, %v9253
    %v10406 = vpack.c.b16 %v9270, %v9254
    %v10407 = vpack.c.b16 %v9271, %v9255
    %v10408 = vpack.c.b16 %v9272, %v9256
    %v10409 = vpack.c.b16 %v9273, %v9257
    %v10410 = vpack.c.b16 %v9274, %v9258
    %v10411 = vpack.c.b16 %v9275, %v9259
    %v10412 = vpack.c.b16 %v9276, %v9260
    %v10413 = vpack.c.b16 %v9277, %v9261
    %v10414 = vpack.c.b16 %v9278, %v9262
    %v10415 = vpack.c.b16 %v9279, %v9263
    %v10416 = vpack.c.b16 %v9280, %v9264
    %v10417 = vpack.c.b16 %v9281, %v9265
    %v10418 = vpack.c.b16 %v9298, %v9282
    %v10419 = vpack.c.b16 %v9299, %v9283
    %v10420 = vpack.c.b16 %v9300, %v9284
    %v10421 = vpack.c.b16 %v9301, %v9285
    %v10422 = vpack.c.b16 %v9302, %v9286
    %v10423 = vpack.c.b16 %v9303, %v9287
    %v10424 = vpack.c.b16 %v9304, %v9288
    %v10425 = vpack.c.b16 %v9305, %v9289
    %v10426 = vpack.c.b16 %v9306, %v9290
    %v10427 = vpack.c.b16 %v9307, %v9291
    %v10428 = vpack.c.b16 %v9308, %v9292
    %v10429 = vpack.c.b16 %v9309, %v9293
    %v10430 = vpack.c.b16 %v9310, %v9294
    %v10431 = vpack.c.b16 %v9311, %v9295
    %v10432 = vpack.c.b16 %v9312, %v9296
    %v10433 = vpack.c.b16 %v9313, %v9297
    %v10434 = vpack.c.b16 %v9330, %v9314
    %v10435 = vpack.c.b16 %v9331, %v9315
    %v10436 = vpack.c.b16 %v9332, %v9316
    %v10437 = vpack.c.b16 %v9333, %v9317
    %v10438 = vpack.c.b16 %v9334, %v9318
    %v10439 = vpack.c.b16 %v9335, %v9319
    %v10440 = vpack.c.b16 %v9336, %v9320
    %v10441 = vpack.c.b16 %v9337, %v9321
    %v10442 = vpack.c.b16 %v9338, %v9322
    %v10443 = vpack.c.b16 %v9339, %v9323
    %v10444 = vpack.c.b16 %v9340, %v9324
    %v10445 = vpack.c.b16 %v9341, %v9325
    %v10446 = vpack.c.b16 %v9342, %v9326
    %v10447 = vpack.c.b16 %v9343, %v9327
    %v10448 = vpack.c.b16 %v9344, %v9328
    %v10449 = vpack.c.b16 %v9345, %v9329
    %v10450 = vpack.c.b16 %v9362, %v9346
    %v10451 = vpack.c.b16 %v9363, %v9347
    %v10452 = vpack.c.b16 %v9364, %v9348
    %v10453 = vpack.c.b16 %v9365, %v9349
    %v10454 = vpack.c.b16 %v9366, %v9350
    %v10455 = vpack.c.b16 %v9367, %v9351
    %v10456 = vpack.c.b16 %v9368, %v9352
    %v10457 = vpack.c.b16 %v9369, %v9353
    %v10458 = vpack.c.b16 %v9370, %v9354
    %v10459 = vpack.c.b16 %v9371, %v9355
    %v10460 = vpack.c.b16 %v9372, %v9356
    %v10461 = vpack.c.b16 %v9373, %v9357
    %v10462 = vpack.c.b16 %v9374, %v9358
    %v10463 = vpack.c.b16 %v9375, %v9359
    %v10464 = vpack.c.b16 %v9376, %v9360
    %v10465 = vpack.c.b16 %v9377, %v9361
    %v10466 = vpack.c.b16 %v9394, %v9378
    %v10467 = vpack.c.b16 %v9395, %v9379
    %v10468 = vpack.c.b16 %v9396, %v9380
    %v10469 = vpack.c.b16 %v9397, %v9381
    %v10470 = vpack.c.b16 %v9398, %v9382
    %v10471 = vpack.c.b16 %v9399, %v9383
    %v10472 = vpack.c.b16 %v9400, %v9384
    %v10473 = vpack.c.b16 %v9401, %v9385
    %v10474 = vpack.c.b16 %v9402, %v9386
    %v10475 = vpack.c.b16 %v9403, %v9387
    %v10476 = vpack.c.b16 %v9404, %v9388
    %v10477 = vpack.c.b16 %v9405, %v9389
    %v10478 = vpack.c.b16 %v9406, %v9390
    %v10479 = vpack.c.b16 %v9407, %v9391
    %v10480 = vpack.c.b16 %v9408, %v9392
    %v10481 = vpack.c.b16 %v9409, %v9393
    %v10482 = vpack.c.b16 %v9426, %v9410
    %v10483 = vpack.c.b16 %v9427, %v9411
    %v10484 = vpack.c.b16 %v9428, %v9412
    %v10485 = vpack.c.b16 %v9429, %v9413
    %v10486 = vpack.c.b16 %v9430, %v9414
    %v10487 = vpack.c.b16 %v9431, %v9415
    %v10488 = vpack.c.b16 %v9432, %v9416
    %v10489 = vpack.c.b16 %v9433, %v9417
    %v10490 = vpack.c.b16 %v9434, %v9418
    %v10491 = vpack.c.b16 %v9435, %v9419
    %v10492 = vpack.c.b16 %v9436, %v9420
    %v10493 = vpack.c.b16 %v9437, %v9421
    %v10494 = vpack.c.b16 %v9438, %v9422
    %v10495 = vpack.c.b16 %v9439, %v9423
    %v10496 = vpack.c.b16 %v9440, %v9424
    %v10497 = vpack.c.b16 %v9441, %v9425
    %v10498 = vpack.c.b16 %v9458, %v9442
    %v10499 = vpack.c.b16 %v9459, %v9443
    %v10500 = vpack.c.b16 %v9460, %v9444
    %v10501 = vpack.c.b16 %v9461, %v9445
    %v10502 = vpack.c.b16 %v9462, %v9446
    %v10503 = vpack.c.b16 %v9463, %v9447
    %v10504 = vpack.c.b16 %v9464, %v9448
    %v10505 = vpack.c.b16 %v9465, %v9449
    %v10506 = vpack.c.b16 %v9466, %v9450
    %v10507 = vpack.c.b16 %v9467, %v9451
    %v10508 = vpack.c.b16 %v9468, %v9452
    %v10509 = vpack.c.b16 %v9469, %v9453
    %v10510 = vpack.c.b16 %v9470, %v9454
    %v10511 = vpack.c.b16 %v9471, %v9455
    %v10512 = vpack.c.b16 %v9472, %v9456
    %v10513 = vpack.c.b16 %v9473, %v9457
    %v10514 = vpack.c.b16 %v9490, %v9474
    %v10515 = vpack.c.b16 %v9491, %v9475
    %v10516 = vpack.c.b16 %v9492, %v9476
    %v10517 = vpack.c.b16 %v9493, %v9477
    %v10518 = vpack.c.b16 %v9494, %v9478
    %v10519 = vpack.c.b16 %v9495, %v9479
    %v10520 = vpack.c.b16 %v9496, %v9480
    %v10521 = vpack.c.b16 %v9497, %v9481
    %v10522 = vpack.c.b16 %v9498, %v9482
    %v10523 = vpack.c.b16 %v9499, %v9483
    %v10524 = vpack.c.b16 %v9500, %v9484
    %v10525 = vpack.c.b16 %v9501, %v9485
    %v10526 = vpack.c.b16 %v9502, %v9486
    %v10527 = vpack.c.b16 %v9503, %v9487
    %v10528 = vpack.c.b16 %v9504, %v9488
    %v10529 = vpack.c.b16 %v9505, %v9489
    %11554 = vmatprep.subr.bf16.mxu0 %v9619
    %11555 = vmatpush1.bf16.msra.mxu0 %v9618
    %11556 = vmatprep.subr.bf16.mxu0 %v9603
    %11557 = vmatpush1.bf16.msra.mxu0 %v9602
    %11558 = vmatprep.subr.bf16.mxu0 %v9587
    %11559 = vmatpush1.bf16.msra.mxu0 %v9586
    %11560 = vmatprep.subr.bf16.mxu0 %v9571
    %11561 = vmatpush1.bf16.msra.mxu0 %v9570
    %11562 = vmatprep.subr.bf16.mxu0 %v9555
    %11563 = vmatpush1.bf16.msra.mxu0 %v9554
    %11564 = vmatprep.subr.bf16.mxu0 %v9539
    %11565 = vmatpush1.bf16.msra.mxu0 %v9538
    %11566 = vmatprep.subr.bf16.mxu0 %v9523
    %11567 = vmatpush1.bf16.msra.mxu0 %v9522
    %11568 = vmatprep.subr.bf16.mxu0 %v9507
    %11569 = vmatpush1.bf16.msra.mxu0 %v9506
    %11570 = vmatprep.subr.bf16.mxu0 %v9747
    %11571 = vmatpush2.bf16.msra.mxu0 %v9746
    %11572 = vmatprep.subr.bf16.mxu0 %v9731
    %11573 = vmatpush2.bf16.msra.mxu0 %v9730
    %11574 = vmatprep.subr.bf16.mxu0 %v9715
    %11575 = vmatpush2.bf16.msra.mxu0 %v9714
    %11576 = vmatprep.subr.bf16.mxu0 %v9699
    %11577 = vmatpush2.bf16.msra.mxu0 %v9698
    %11578 = vmatprep.subr.bf16.mxu0 %v9683
    %11579 = vmatpush2.bf16.msra.mxu0 %v9682
    %11580 = vmatprep.subr.bf16.mxu0 %v9667
    %11581 = vmatpush2.bf16.msra.mxu0 %v9666
    %11582 = vmatprep.subr.bf16.mxu0 %v9651
    %11583 = vmatpush2.bf16.msra.mxu0 %v9650
    %11584 = vmatprep.subr.bf16.mxu0 %v9635
    %11585 = vmatpush2.bf16.msra.mxu0 %v9634
    %11586 = vmatprep.mubr.bf16.mxu0 %v5319
    %11587 = vmatmul.mubr.bf16.gmra.mxu0 %v5318
    %v11588 = vpop.f32.mrf.mxu0
    %v11589 = vadd.f32 %v6357, %v11588
    %v11590 = vpop.f32.mrf.mxu0
    %v11591 = vadd.f32 %v6361, %v11590
    %v11592 = vpop.f32.mrf.mxu0
    %v11593 = vpop.f32.mrf.mxu0
    %11594 = vdwg.mxu0
    %11595 = vmatprep.subr.bf16.mxu0 %v9875
    %11596 = vmatpush1.bf16.msra.mxu0 %v9874
    %11597 = vmatprep.subr.bf16.mxu0 %v9859
    %11598 = vmatpush1.bf16.msra.mxu0 %v9858
    %11599 = vmatprep.subr.bf16.mxu0 %v9843
    %11600 = vmatpush1.bf16.msra.mxu0 %v9842
    %11601 = vmatprep.subr.bf16.mxu0 %v9827
    %11602 = vmatpush1.bf16.msra.mxu0 %v9826
    %11603 = vmatprep.subr.bf16.mxu0 %v9811
    %11604 = vmatpush1.bf16.msra.mxu0 %v9810
    %11605 = vmatprep.subr.bf16.mxu0 %v9795
    %11606 = vmatpush1.bf16.msra.mxu0 %v9794
    %11607 = vmatprep.subr.bf16.mxu0 %v9779
    %11608 = vmatpush1.bf16.msra.mxu0 %v9778
    %11609 = vmatprep.subr.bf16.mxu0 %v9763
    %11610 = vmatpush1.bf16.msra.mxu0 %v9762
    %11611 = vmatprep.subr.bf16.mxu0 %v10003
    %11612 = vmatpush2.bf16.msra.mxu0 %v10002
    %11613 = vmatprep.subr.bf16.mxu0 %v9987
    %11614 = vmatpush2.bf16.msra.mxu0 %v9986
    %11615 = vmatprep.subr.bf16.mxu0 %v9971
    %11616 = vmatpush2.bf16.msra.mxu0 %v9970
    %11617 = vmatprep.subr.bf16.mxu0 %v9955
    %11618 = vmatpush2.bf16.msra.mxu0 %v9954
    %11619 = vmatprep.subr.bf16.mxu0 %v9939
    %11620 = vmatpush2.bf16.msra.mxu0 %v9938
    %11621 = vmatprep.subr.bf16.mxu0 %v9923
    %11622 = vmatpush2.bf16.msra.mxu0 %v9922
    %11623 = vmatprep.subr.bf16.mxu0 %v9907
    %11624 = vmatpush2.bf16.msra.mxu0 %v9906
    %11625 = vmatprep.subr.bf16.mxu0 %v9891
    %11626 = vmatpush2.bf16.msra.mxu0 %v9890
    %11627 = vmatprep.mubr.bf16.mxu0 %v5321
    %11628 = vmatmul.mubr.bf16.gmra.mxu0 %v5320
    %v11629 = vpop.f32.mrf.mxu0
    %v11630 = vadd.f32 %v11589, %v11629
    %v11631 = vpop.f32.mrf.mxu0
    %v11632 = vadd.f32 %v11591, %v11631
    %v11633 = vpop.f32.mrf.mxu0
    %v11634 = vpop.f32.mrf.mxu0
    %11635 = vdwg.mxu0
    %11636 = vmatprep.subr.bf16.mxu0 %v10131
    %11637 = vmatpush1.bf16.msra.mxu0 %v10130
    %11638 = vmatprep.subr.bf16.mxu0 %v10115
    %11639 = vmatpush1.bf16.msra.mxu0 %v10114
    %11640 = vmatprep.subr.bf16.mxu0 %v10099
    %11641 = vmatpush1.bf16.msra.mxu0 %v10098
    %11642 = vmatprep.subr.bf16.mxu0 %v10083
    %11643 = vmatpush1.bf16.msra.mxu0 %v10082
    %11644 = vmatprep.subr.bf16.mxu0 %v10067
    %11645 = vmatpush1.bf16.msra.mxu0 %v10066
    %11646 = vmatprep.subr.bf16.mxu0 %v10051
    %11647 = vmatpush1.bf16.msra.mxu0 %v10050
    %11648 = vmatprep.subr.bf16.mxu0 %v10035
    %11649 = vmatpush1.bf16.msra.mxu0 %v10034
    %11650 = vmatprep.subr.bf16.mxu0 %v10019
    %11651 = vmatpush1.bf16.msra.mxu0 %v10018
    %11652 = vmatprep.subr.bf16.mxu0 %v10259
    %11653 = vmatpush2.bf16.msra.mxu0 %v10258
    %11654 = vmatprep.subr.bf16.mxu0 %v10243
    %11655 = vmatpush2.bf16.msra.mxu0 %v10242
    %11656 = vmatprep.subr.bf16.mxu0 %v10227
    %11657 = vmatpush2.bf16.msra.mxu0 %v10226
    %11658 = vmatprep.subr.bf16.mxu0 %v10211
    %11659 = vmatpush2.bf16.msra.mxu0 %v10210
    %11660 = vmatprep.subr.bf16.mxu0 %v10195
    %11661 = vmatpush2.bf16.msra.mxu0 %v10194
    %11662 = vmatprep.subr.bf16.mxu0 %v10179
    %11663 = vmatpush2.bf16.msra.mxu0 %v10178
    %11664 = vmatprep.subr.bf16.mxu0 %v10163
    %11665 = vmatpush2.bf16.msra.mxu0 %v10162
    %11666 = vmatprep.subr.bf16.mxu0 %v10147
    %11667 = vmatpush2.bf16.msra.mxu0 %v10146
    %11668 = vmatprep.mubr.bf16.mxu0 %v5323
    %11669 = vmatmul.mubr.bf16.gmra.mxu0 %v5322
    %v11670 = vpop.f32.mrf.mxu0
    %v11671 = vadd.f32 %v11630, %v11670
    %v11672 = vpop.f32.mrf.mxu0
    %v11673 = vadd.f32 %v11632, %v11672
    %v11674 = vpop.f32.mrf.mxu0
    %v11675 = vpop.f32.mrf.mxu0
    %11676 = vdwg.mxu0
    %11677 = vmatprep.subr.bf16.mxu0 %v10387
    %11678 = vmatpush1.bf16.msra.mxu0 %v10386
    %11679 = vmatprep.subr.bf16.mxu0 %v10371
    %11680 = vmatpush1.bf16.msra.mxu0 %v10370
    %11681 = vmatprep.subr.bf16.mxu0 %v10355
    %11682 = vmatpush1.bf16.msra.mxu0 %v10354
    %11683 = vmatprep.subr.bf16.mxu0 %v10339
    %11684 = vmatpush1.bf16.msra.mxu0 %v10338
    %11685 = vmatprep.subr.bf16.mxu0 %v10323
    %11686 = vmatpush1.bf16.msra.mxu0 %v10322
    %11687 = vmatprep.subr.bf16.mxu0 %v10307
    %11688 = vmatpush1.bf16.msra.mxu0 %v10306
    %11689 = vmatprep.subr.bf16.mxu0 %v10291
    %11690 = vmatpush1.bf16.msra.mxu0 %v10290
    %11691 = vmatprep.subr.bf16.mxu0 %v10275
    %11692 = vmatpush1.bf16.msra.mxu0 %v10274
    %11693 = vmatprep.subr.bf16.mxu0 %v10515
    %11694 = vmatpush2.bf16.msra.mxu0 %v10514
    %11695 = vmatprep.subr.bf16.mxu0 %v10499
    %11696 = vmatpush2.bf16.msra.mxu0 %v10498
    %11697 = vmatprep.subr.bf16.mxu0 %v10483
    %11698 = vmatpush2.bf16.msra.mxu0 %v10482
    %11699 = vmatprep.subr.bf16.mxu0 %v10467
    %11700 = vmatpush2.bf16.msra.mxu0 %v10466
    %11701 = vmatprep.subr.bf16.mxu0 %v10451
    %11702 = vmatpush2.bf16.msra.mxu0 %v10450
    %11703 = vmatprep.subr.bf16.mxu0 %v10435
    %11704 = vmatpush2.bf16.msra.mxu0 %v10434
    %11705 = vmatprep.subr.bf16.mxu0 %v10419
    %11706 = vmatpush2.bf16.msra.mxu0 %v10418
    %11707 = vmatprep.subr.bf16.mxu0 %v10403
    %11708 = vmatpush2.bf16.msra.mxu0 %v10402
    %11709 = vmatprep.mubr.bf16.mxu0 %v5325
    %11710 = vmatmul.mubr.bf16.gmra.mxu0 %v5324
    %v11711 = vpop.f32.mrf.mxu0
    %v11712 = vadd.f32 %v11671, %v11711
    %v11713 = vpop.f32.mrf.mxu0
    %v11714 = vadd.f32 %v11673, %v11713
    %v11715 = vpop.f32.mrf.mxu0
    %v11716 = vpop.f32.mrf.mxu0
    %11717 = vdwg.mxu0
    %11718 = vmatprep.subr.bf16.mxu0 %v9621
    %11719 = vmatpush1.bf16.msra.mxu0 %v9620
    %11720 = vmatprep.subr.bf16.mxu0 %v9605
    %11721 = vmatpush1.bf16.msra.mxu0 %v9604
    %11722 = vmatprep.subr.bf16.mxu0 %v9589
    %11723 = vmatpush1.bf16.msra.mxu0 %v9588
    %11724 = vmatprep.subr.bf16.mxu0 %v9573
    %11725 = vmatpush1.bf16.msra.mxu0 %v9572
    %11726 = vmatprep.subr.bf16.mxu0 %v9557
    %11727 = vmatpush1.bf16.msra.mxu0 %v9556
    %11728 = vmatprep.subr.bf16.mxu0 %v9541
    %11729 = vmatpush1.bf16.msra.mxu0 %v9540
    %11730 = vmatprep.subr.bf16.mxu0 %v9525
    %11731 = vmatpush1.bf16.msra.mxu0 %v9524
    %11732 = vmatprep.subr.bf16.mxu0 %v9509
    %11733 = vmatpush1.bf16.msra.mxu0 %v9508
    %11734 = vmatprep.subr.bf16.mxu0 %v9749
    %11735 = vmatpush2.bf16.msra.mxu0 %v9748
    %11736 = vmatprep.subr.bf16.mxu0 %v9733
    %11737 = vmatpush2.bf16.msra.mxu0 %v9732
    %11738 = vmatprep.subr.bf16.mxu0 %v9717
    %11739 = vmatpush2.bf16.msra.mxu0 %v9716
    %11740 = vmatprep.subr.bf16.mxu0 %v9701
    %11741 = vmatpush2.bf16.msra.mxu0 %v9700
    %11742 = vmatprep.subr.bf16.mxu0 %v9685
    %11743 = vmatpush2.bf16.msra.mxu0 %v9684
    %11744 = vmatprep.subr.bf16.mxu0 %v9669
    %11745 = vmatpush2.bf16.msra.mxu0 %v9668
    %11746 = vmatprep.subr.bf16.mxu0 %v9653
    %11747 = vmatpush2.bf16.msra.mxu0 %v9652
    %11748 = vmatprep.subr.bf16.mxu0 %v9637
    %11749 = vmatpush2.bf16.msra.mxu0 %v9636
    %11750 = vmatprep.mubr.bf16.mxu0 %v5319
    %11751 = vmatmul.mubr.bf16.gmra.mxu0 %v5318
    %v11752 = vpop.f32.mrf.mxu0
    %v11753 = vadd.f32 %v6365, %v11752
    %v11754 = vpop.f32.mrf.mxu0
    %v11755 = vadd.f32 %v6369, %v11754
    %v11756 = vpop.f32.mrf.mxu0
    %v11757 = vpop.f32.mrf.mxu0
    %11758 = vdwg.mxu0
    %11759 = vmatprep.subr.bf16.mxu0 %v9877
    %11760 = vmatpush1.bf16.msra.mxu0 %v9876
    %11761 = vmatprep.subr.bf16.mxu0 %v9861
    %11762 = vmatpush1.bf16.msra.mxu0 %v9860
    %11763 = vmatprep.subr.bf16.mxu0 %v9845
    %11764 = vmatpush1.bf16.msra.mxu0 %v9844
    %11765 = vmatprep.subr.bf16.mxu0 %v9829
    %11766 = vmatpush1.bf16.msra.mxu0 %v9828
    %11767 = vmatprep.subr.bf16.mxu0 %v9813
    %11768 = vmatpush1.bf16.msra.mxu0 %v9812
    %11769 = vmatprep.subr.bf16.mxu0 %v9797
    %11770 = vmatpush1.bf16.msra.mxu0 %v9796
    %11771 = vmatprep.subr.bf16.mxu0 %v9781
    %11772 = vmatpush1.bf16.msra.mxu0 %v9780
    %11773 = vmatprep.subr.bf16.mxu0 %v9765
    %11774 = vmatpush1.bf16.msra.mxu0 %v9764
    %11775 = vmatprep.subr.bf16.mxu0 %v10005
    %11776 = vmatpush2.bf16.msra.mxu0 %v10004
    %11777 = vmatprep.subr.bf16.mxu0 %v9989
    %11778 = vmatpush2.bf16.msra.mxu0 %v9988
    %11779 = vmatprep.subr.bf16.mxu0 %v9973
    %11780 = vmatpush2.bf16.msra.mxu0 %v9972
    %11781 = vmatprep.subr.bf16.mxu0 %v9957
    %11782 = vmatpush2.bf16.msra.mxu0 %v9956
    %11783 = vmatprep.subr.bf16.mxu0 %v9941
    %11784 = vmatpush2.bf16.msra.mxu0 %v9940
    %11785 = vmatprep.subr.bf16.mxu0 %v9925
    %11786 = vmatpush2.bf16.msra.mxu0 %v9924
    %11787 = vmatprep.subr.bf16.mxu0 %v9909
    %11788 = vmatpush2.bf16.msra.mxu0 %v9908
    %11789 = vmatprep.subr.bf16.mxu0 %v9893
    %11790 = vmatpush2.bf16.msra.mxu0 %v9892
    %11791 = vmatprep.mubr.bf16.mxu0 %v5321
    %11792 = vmatmul.mubr.bf16.gmra.mxu0 %v5320
    %v11793 = vpop.f32.mrf.mxu0
    %v11794 = vadd.f32 %v11753, %v11793
    %v11795 = vpop.f32.mrf.mxu0
    %v11796 = vadd.f32 %v11755, %v11795
    %v11797 = vpop.f32.mrf.mxu0
    %v11798 = vpop.f32.mrf.mxu0
    %11799 = vdwg.mxu0
    %11800 = vmatprep.subr.bf16.mxu0 %v10133
    %11801 = vmatpush1.bf16.msra.mxu0 %v10132
    %11802 = vmatprep.subr.bf16.mxu0 %v10117
    %11803 = vmatpush1.bf16.msra.mxu0 %v10116
    %11804 = vmatprep.subr.bf16.mxu0 %v10101
    %11805 = vmatpush1.bf16.msra.mxu0 %v10100
    %11806 = vmatprep.subr.bf16.mxu0 %v10085
    %11807 = vmatpush1.bf16.msra.mxu0 %v10084
    %11808 = vmatprep.subr.bf16.mxu0 %v10069
    %11809 = vmatpush1.bf16.msra.mxu0 %v10068
    %11810 = vmatprep.subr.bf16.mxu0 %v10053
    %11811 = vmatpush1.bf16.msra.mxu0 %v10052
    %11812 = vmatprep.subr.bf16.mxu0 %v10037
    %11813 = vmatpush1.bf16.msra.mxu0 %v10036
    %11814 = vmatprep.subr.bf16.mxu0 %v10021
    %11815 = vmatpush1.bf16.msra.mxu0 %v10020
    %11816 = vmatprep.subr.bf16.mxu0 %v10261
    %11817 = vmatpush2.bf16.msra.mxu0 %v10260
    %11818 = vmatprep.subr.bf16.mxu0 %v10245
    %11819 = vmatpush2.bf16.msra.mxu0 %v10244
    %11820 = vmatprep.subr.bf16.mxu0 %v10229
    %11821 = vmatpush2.bf16.msra.mxu0 %v10228
    %11822 = vmatprep.subr.bf16.mxu0 %v10213
    %11823 = vmatpush2.bf16.msra.mxu0 %v10212
    %11824 = vmatprep.subr.bf16.mxu0 %v10197
    %11825 = vmatpush2.bf16.msra.mxu0 %v10196
    %11826 = vmatprep.subr.bf16.mxu0 %v10181
    %11827 = vmatpush2.bf16.msra.mxu0 %v10180
    %11828 = vmatprep.subr.bf16.mxu0 %v10165
    %11829 = vmatpush2.bf16.msra.mxu0 %v10164
    %11830 = vmatprep.subr.bf16.mxu0 %v10149
    %11831 = vmatpush2.bf16.msra.mxu0 %v10148
    %11832 = vmatprep.mubr.bf16.mxu0 %v5323
    %11833 = vmatmul.mubr.bf16.gmra.mxu0 %v5322
    %v11834 = vpop.f32.mrf.mxu0
    %v11835 = vadd.f32 %v11794, %v11834
    %v11836 = vpop.f32.mrf.mxu0
    %v11837 = vadd.f32 %v11796, %v11836
    %v11838 = vpop.f32.mrf.mxu0
    %v11839 = vpop.f32.mrf.mxu0
    %11840 = vdwg.mxu0
    %11841 = vmatprep.subr.bf16.mxu0 %v10389
    %11842 = vmatpush1.bf16.msra.mxu0 %v10388
    %11843 = vmatprep.subr.bf16.mxu0 %v10373
    %11844 = vmatpush1.bf16.msra.mxu0 %v10372
    %11845 = vmatprep.subr.bf16.mxu0 %v10357
    %11846 = vmatpush1.bf16.msra.mxu0 %v10356
    %11847 = vmatprep.subr.bf16.mxu0 %v10341
    %11848 = vmatpush1.bf16.msra.mxu0 %v10340
    %11849 = vmatprep.subr.bf16.mxu0 %v10325
    %11850 = vmatpush1.bf16.msra.mxu0 %v10324
    %11851 = vmatprep.subr.bf16.mxu0 %v10309
    %11852 = vmatpush1.bf16.msra.mxu0 %v10308
    %11853 = vmatprep.subr.bf16.mxu0 %v10293
    %11854 = vmatpush1.bf16.msra.mxu0 %v10292
    %11855 = vmatprep.subr.bf16.mxu0 %v10277
    %11856 = vmatpush1.bf16.msra.mxu0 %v10276
    %11857 = vmatprep.subr.bf16.mxu0 %v10517
    %11858 = vmatpush2.bf16.msra.mxu0 %v10516
    %11859 = vmatprep.subr.bf16.mxu0 %v10501
    %11860 = vmatpush2.bf16.msra.mxu0 %v10500
    %11861 = vmatprep.subr.bf16.mxu0 %v10485
    %11862 = vmatpush2.bf16.msra.mxu0 %v10484
    %11863 = vmatprep.subr.bf16.mxu0 %v10469
    %11864 = vmatpush2.bf16.msra.mxu0 %v10468
    %11865 = vmatprep.subr.bf16.mxu0 %v10453
    %11866 = vmatpush2.bf16.msra.mxu0 %v10452
    %11867 = vmatprep.subr.bf16.mxu0 %v10437
    %11868 = vmatpush2.bf16.msra.mxu0 %v10436
    %11869 = vmatprep.subr.bf16.mxu0 %v10421
    %11870 = vmatpush2.bf16.msra.mxu0 %v10420
    %11871 = vmatprep.subr.bf16.mxu0 %v10405
    %11872 = vmatpush2.bf16.msra.mxu0 %v10404
    %11873 = vmatprep.mubr.bf16.mxu0 %v5325
    %11874 = vmatmul.mubr.bf16.gmra.mxu0 %v5324
    %v11875 = vpop.f32.mrf.mxu0
    %v11876 = vadd.f32 %v11835, %v11875
    %v11877 = vpop.f32.mrf.mxu0
    %v11878 = vadd.f32 %v11837, %v11877
    %v11879 = vpop.f32.mrf.mxu0
    %v11880 = vpop.f32.mrf.mxu0
    %11881 = vdwg.mxu0
    %11882 = vmatprep.subr.bf16.mxu0 %v9623
    %11883 = vmatpush1.bf16.msra.mxu0 %v9622
    %11884 = vmatprep.subr.bf16.mxu0 %v9607
    %11885 = vmatpush1.bf16.msra.mxu0 %v9606
    %11886 = vmatprep.subr.bf16.mxu0 %v9591
    %11887 = vmatpush1.bf16.msra.mxu0 %v9590
    %11888 = vmatprep.subr.bf16.mxu0 %v9575
    %11889 = vmatpush1.bf16.msra.mxu0 %v9574
    %11890 = vmatprep.subr.bf16.mxu0 %v9559
    %11891 = vmatpush1.bf16.msra.mxu0 %v9558
    %11892 = vmatprep.subr.bf16.mxu0 %v9543
    %11893 = vmatpush1.bf16.msra.mxu0 %v9542
    %11894 = vmatprep.subr.bf16.mxu0 %v9527
    %11895 = vmatpush1.bf16.msra.mxu0 %v9526
    %11896 = vmatprep.subr.bf16.mxu0 %v9511
    %11897 = vmatpush1.bf16.msra.mxu0 %v9510
    %11898 = vmatprep.subr.bf16.mxu0 %v9751
    %11899 = vmatpush2.bf16.msra.mxu0 %v9750
    %11900 = vmatprep.subr.bf16.mxu0 %v9735
    %11901 = vmatpush2.bf16.msra.mxu0 %v9734
    %11902 = vmatprep.subr.bf16.mxu0 %v9719
    %11903 = vmatpush2.bf16.msra.mxu0 %v9718
    %11904 = vmatprep.subr.bf16.mxu0 %v9703
    %11905 = vmatpush2.bf16.msra.mxu0 %v9702
    %11906 = vmatprep.subr.bf16.mxu0 %v9687
    %11907 = vmatpush2.bf16.msra.mxu0 %v9686
    %11908 = vmatprep.subr.bf16.mxu0 %v9671
    %11909 = vmatpush2.bf16.msra.mxu0 %v9670
    %11910 = vmatprep.subr.bf16.mxu0 %v9655
    %11911 = vmatpush2.bf16.msra.mxu0 %v9654
    %11912 = vmatprep.subr.bf16.mxu0 %v9639
    %11913 = vmatpush2.bf16.msra.mxu0 %v9638
    %11914 = vmatprep.mubr.bf16.mxu0 %v5319
    %11915 = vmatmul.mubr.bf16.gmra.mxu0 %v5318
    %v11916 = vpop.f32.mrf.mxu0
    %v11917 = vadd.f32 %v6373, %v11916
    %v11918 = vpop.f32.mrf.mxu0
    %v11919 = vadd.f32 %v6377, %v11918
    %v11920 = vpop.f32.mrf.mxu0
    %v11921 = vpop.f32.mrf.mxu0
    %11922 = vdwg.mxu0
    %11923 = vmatprep.subr.bf16.mxu0 %v9879
    %11924 = vmatpush1.bf16.msra.mxu0 %v9878
    %11925 = vmatprep.subr.bf16.mxu0 %v9863
    %11926 = vmatpush1.bf16.msra.mxu0 %v9862
    %11927 = vmatprep.subr.bf16.mxu0 %v9847
    %11928 = vmatpush1.bf16.msra.mxu0 %v9846
    %11929 = vmatprep.subr.bf16.mxu0 %v9831
    %11930 = vmatpush1.bf16.msra.mxu0 %v9830
    %11931 = vmatprep.subr.bf16.mxu0 %v9815
    %11932 = vmatpush1.bf16.msra.mxu0 %v9814
    %11933 = vmatprep.subr.bf16.mxu0 %v9799
    %11934 = vmatpush1.bf16.msra.mxu0 %v9798
    %11935 = vmatprep.subr.bf16.mxu0 %v9783
    %11936 = vmatpush1.bf16.msra.mxu0 %v9782
    %11937 = vmatprep.subr.bf16.mxu0 %v9767
    %11938 = vmatpush1.bf16.msra.mxu0 %v9766
    %11939 = vmatprep.subr.bf16.mxu0 %v10007
    %11940 = vmatpush2.bf16.msra.mxu0 %v10006
    %11941 = vmatprep.subr.bf16.mxu0 %v9991
    %11942 = vmatpush2.bf16.msra.mxu0 %v9990
    %11943 = vmatprep.subr.bf16.mxu0 %v9975
    %11944 = vmatpush2.bf16.msra.mxu0 %v9974
    %11945 = vmatprep.subr.bf16.mxu0 %v9959
    %11946 = vmatpush2.bf16.msra.mxu0 %v9958
    %11947 = vmatprep.subr.bf16.mxu0 %v9943
    %11948 = vmatpush2.bf16.msra.mxu0 %v9942
    %11949 = vmatprep.subr.bf16.mxu0 %v9927
    %11950 = vmatpush2.bf16.msra.mxu0 %v9926
    %11951 = vmatprep.subr.bf16.mxu0 %v9911
    %11952 = vmatpush2.bf16.msra.mxu0 %v9910
    %11953 = vmatprep.subr.bf16.mxu0 %v9895
    %11954 = vmatpush2.bf16.msra.mxu0 %v9894
    %11955 = vmatprep.mubr.bf16.mxu0 %v5321
    %11956 = vmatmul.mubr.bf16.gmra.mxu0 %v5320
    %v11957 = vpop.f32.mrf.mxu0
    %v11958 = vadd.f32 %v11917, %v11957
    %v11959 = vpop.f32.mrf.mxu0
    %v11960 = vadd.f32 %v11919, %v11959
    %v11961 = vpop.f32.mrf.mxu0
    %v11962 = vpop.f32.mrf.mxu0
    %11963 = vdwg.mxu0
    %11964 = vmatprep.subr.bf16.mxu0 %v10135
    %11965 = vmatpush1.bf16.msra.mxu0 %v10134
    %11966 = vmatprep.subr.bf16.mxu0 %v10119
    %11967 = vmatpush1.bf16.msra.mxu0 %v10118
    %11968 = vmatprep.subr.bf16.mxu0 %v10103
    %11969 = vmatpush1.bf16.msra.mxu0 %v10102
    %11970 = vmatprep.subr.bf16.mxu0 %v10087
    %11971 = vmatpush1.bf16.msra.mxu0 %v10086
    %11972 = vmatprep.subr.bf16.mxu0 %v10071
    %11973 = vmatpush1.bf16.msra.mxu0 %v10070
    %11974 = vmatprep.subr.bf16.mxu0 %v10055
    %11975 = vmatpush1.bf16.msra.mxu0 %v10054
    %11976 = vmatprep.subr.bf16.mxu0 %v10039
    %11977 = vmatpush1.bf16.msra.mxu0 %v10038
    %11978 = vmatprep.subr.bf16.mxu0 %v10023
    %11979 = vmatpush1.bf16.msra.mxu0 %v10022
    %11980 = vmatprep.subr.bf16.mxu0 %v10263
    %11981 = vmatpush2.bf16.msra.mxu0 %v10262
    %11982 = vmatprep.subr.bf16.mxu0 %v10247
    %11983 = vmatpush2.bf16.msra.mxu0 %v10246
    %11984 = vmatprep.subr.bf16.mxu0 %v10231
    %11985 = vmatpush2.bf16.msra.mxu0 %v10230
    %11986 = vmatprep.subr.bf16.mxu0 %v10215
    %11987 = vmatpush2.bf16.msra.mxu0 %v10214
    %11988 = vmatprep.subr.bf16.mxu0 %v10199
    %11989 = vmatpush2.bf16.msra.mxu0 %v10198
    %11990 = vmatprep.subr.bf16.mxu0 %v10183
    %11991 = vmatpush2.bf16.msra.mxu0 %v10182
    %11992 = vmatprep.subr.bf16.mxu0 %v10167
    %11993 = vmatpush2.bf16.msra.mxu0 %v10166
    %11994 = vmatprep.subr.bf16.mxu0 %v10151
    %11995 = vmatpush2.bf16.msra.mxu0 %v10150
    %11996 = vmatprep.mubr.bf16.mxu0 %v5323
    %11997 = vmatmul.mubr.bf16.gmra.mxu0 %v5322
    %v11998 = vpop.f32.mrf.mxu0
    %v11999 = vadd.f32 %v11958, %v11998
    %v12000 = vpop.f32.mrf.mxu0
    %v12001 = vadd.f32 %v11960, %v12000
    %v12002 = vpop.f32.mrf.mxu0
    %v12003 = vpop.f32.mrf.mxu0
    %12004 = vdwg.mxu0
    %12005 = vmatprep.subr.bf16.mxu0 %v10391
    %12006 = vmatpush1.bf16.msra.mxu0 %v10390
    %12007 = vmatprep.subr.bf16.mxu0 %v10375
    %12008 = vmatpush1.bf16.msra.mxu0 %v10374
    %12009 = vmatprep.subr.bf16.mxu0 %v10359
    %12010 = vmatpush1.bf16.msra.mxu0 %v10358
    %12011 = vmatprep.subr.bf16.mxu0 %v10343
    %12012 = vmatpush1.bf16.msra.mxu0 %v10342
    %12013 = vmatprep.subr.bf16.mxu0 %v10327
    %12014 = vmatpush1.bf16.msra.mxu0 %v10326
    %12015 = vmatprep.subr.bf16.mxu0 %v10311
    %12016 = vmatpush1.bf16.msra.mxu0 %v10310
    %12017 = vmatprep.subr.bf16.mxu0 %v10295
    %12018 = vmatpush1.bf16.msra.mxu0 %v10294
    %12019 = vmatprep.subr.bf16.mxu0 %v10279
    %12020 = vmatpush1.bf16.msra.mxu0 %v10278
    %12021 = vmatprep.subr.bf16.mxu0 %v10519
    %12022 = vmatpush2.bf16.msra.mxu0 %v10518
    %12023 = vmatprep.subr.bf16.mxu0 %v10503
    %12024 = vmatpush2.bf16.msra.mxu0 %v10502
    %12025 = vmatprep.subr.bf16.mxu0 %v10487
    %12026 = vmatpush2.bf16.msra.mxu0 %v10486
    %12027 = vmatprep.subr.bf16.mxu0 %v10471
    %12028 = vmatpush2.bf16.msra.mxu0 %v10470
    %12029 = vmatprep.subr.bf16.mxu0 %v10455
    %12030 = vmatpush2.bf16.msra.mxu0 %v10454
    %12031 = vmatprep.subr.bf16.mxu0 %v10439
    %12032 = vmatpush2.bf16.msra.mxu0 %v10438
    %12033 = vmatprep.subr.bf16.mxu0 %v10423
    %12034 = vmatpush2.bf16.msra.mxu0 %v10422
    %12035 = vmatprep.subr.bf16.mxu0 %v10407
    %12036 = vmatpush2.bf16.msra.mxu0 %v10406
    %12037 = vmatprep.mubr.bf16.mxu0 %v5325
    %12038 = vmatmul.mubr.bf16.gmra.mxu0 %v5324
    %v12039 = vpop.f32.mrf.mxu0
    %v12040 = vadd.f32 %v11999, %v12039
    %v12041 = vpop.f32.mrf.mxu0
    %v12042 = vadd.f32 %v12001, %v12041
    %v12043 = vpop.f32.mrf.mxu0
    %v12044 = vpop.f32.mrf.mxu0
    %12045 = vdwg.mxu0
    %12046 = vmatprep.subr.bf16.mxu0 %v9625
    %12047 = vmatpush1.bf16.msra.mxu0 %v9624
    %12048 = vmatprep.subr.bf16.mxu0 %v9609
    %12049 = vmatpush1.bf16.msra.mxu0 %v9608
    %12050 = vmatprep.subr.bf16.mxu0 %v9593
    %12051 = vmatpush1.bf16.msra.mxu0 %v9592
    %12052 = vmatprep.subr.bf16.mxu0 %v9577
    %12053 = vmatpush1.bf16.msra.mxu0 %v9576
    %12054 = vmatprep.subr.bf16.mxu0 %v9561
    %12055 = vmatpush1.bf16.msra.mxu0 %v9560
    %12056 = vmatprep.subr.bf16.mxu0 %v9545
    %12057 = vmatpush1.bf16.msra.mxu0 %v9544
    %12058 = vmatprep.subr.bf16.mxu0 %v9529
    %12059 = vmatpush1.bf16.msra.mxu0 %v9528
    %12060 = vmatprep.subr.bf16.mxu0 %v9513
    %12061 = vmatpush1.bf16.msra.mxu0 %v9512
    %12062 = vmatprep.subr.bf16.mxu0 %v9753
    %12063 = vmatpush2.bf16.msra.mxu0 %v9752
    %12064 = vmatprep.subr.bf16.mxu0 %v9737
    %12065 = vmatpush2.bf16.msra.mxu0 %v9736
    %12066 = vmatprep.subr.bf16.mxu0 %v9721
    %12067 = vmatpush2.bf16.msra.mxu0 %v9720
    %12068 = vmatprep.subr.bf16.mxu0 %v9705
    %12069 = vmatpush2.bf16.msra.mxu0 %v9704
    %12070 = vmatprep.subr.bf16.mxu0 %v9689
    %12071 = vmatpush2.bf16.msra.mxu0 %v9688
    %12072 = vmatprep.subr.bf16.mxu0 %v9673
    %12073 = vmatpush2.bf16.msra.mxu0 %v9672
    %12074 = vmatprep.subr.bf16.mxu0 %v9657
    %12075 = vmatpush2.bf16.msra.mxu0 %v9656
    %12076 = vmatprep.subr.bf16.mxu0 %v9641
    %12077 = vmatpush2.bf16.msra.mxu0 %v9640
    %12078 = vmatprep.mubr.bf16.mxu0 %v5319
    %12079 = vmatmul.mubr.bf16.gmra.mxu0 %v5318
    %v12080 = vpop.f32.mrf.mxu0
    %v12081 = vadd.f32 %v6381, %v12080
    %v12082 = vpop.f32.mrf.mxu0
    %v12083 = vadd.f32 %v6385, %v12082
    %v12084 = vpop.f32.mrf.mxu0
    %v12085 = vpop.f32.mrf.mxu0
    %12086 = vdwg.mxu0
    %12087 = vmatprep.subr.bf16.mxu0 %v9881
    %12088 = vmatpush1.bf16.msra.mxu0 %v9880
    %12089 = vmatprep.subr.bf16.mxu0 %v9865
    %12090 = vmatpush1.bf16.msra.mxu0 %v9864
    %12091 = vmatprep.subr.bf16.mxu0 %v9849
    %12092 = vmatpush1.bf16.msra.mxu0 %v9848
    %12093 = vmatprep.subr.bf16.mxu0 %v9833
    %12094 = vmatpush1.bf16.msra.mxu0 %v9832
    %12095 = vmatprep.subr.bf16.mxu0 %v9817
    %12096 = vmatpush1.bf16.msra.mxu0 %v9816
    %12097 = vmatprep.subr.bf16.mxu0 %v9801
    %12098 = vmatpush1.bf16.msra.mxu0 %v9800
    %12099 = vmatprep.subr.bf16.mxu0 %v9785
    %12100 = vmatpush1.bf16.msra.mxu0 %v9784
    %12101 = vmatprep.subr.bf16.mxu0 %v9769
    %12102 = vmatpush1.bf16.msra.mxu0 %v9768
    %12103 = vmatprep.subr.bf16.mxu0 %v10009
    %12104 = vmatpush2.bf16.msra.mxu0 %v10008
    %12105 = vmatprep.subr.bf16.mxu0 %v9993
    %12106 = vmatpush2.bf16.msra.mxu0 %v9992
    %12107 = vmatprep.subr.bf16.mxu0 %v9977
    %12108 = vmatpush2.bf16.msra.mxu0 %v9976
    %12109 = vmatprep.subr.bf16.mxu0 %v9961
    %12110 = vmatpush2.bf16.msra.mxu0 %v9960
    %12111 = vmatprep.subr.bf16.mxu0 %v9945
    %12112 = vmatpush2.bf16.msra.mxu0 %v9944
    %12113 = vmatprep.subr.bf16.mxu0 %v9929
    %12114 = vmatpush2.bf16.msra.mxu0 %v9928
    %12115 = vmatprep.subr.bf16.mxu0 %v9913
    %12116 = vmatpush2.bf16.msra.mxu0 %v9912
    %12117 = vmatprep.subr.bf16.mxu0 %v9897
    %12118 = vmatpush2.bf16.msra.mxu0 %v9896
    %12119 = vmatprep.mubr.bf16.mxu0 %v5321
    %12120 = vmatmul.mubr.bf16.gmra.mxu0 %v5320
    %v12121 = vpop.f32.mrf.mxu0
    %v12122 = vadd.f32 %v12081, %v12121
    %v12123 = vpop.f32.mrf.mxu0
    %v12124 = vadd.f32 %v12083, %v12123
    %v12125 = vpop.f32.mrf.mxu0
    %v12126 = vpop.f32.mrf.mxu0
    %12127 = vdwg.mxu0
    %12128 = vmatprep.subr.bf16.mxu0 %v10137
    %12129 = vmatpush1.bf16.msra.mxu0 %v10136
    %12130 = vmatprep.subr.bf16.mxu0 %v10121
    %12131 = vmatpush1.bf16.msra.mxu0 %v10120
    %12132 = vmatprep.subr.bf16.mxu0 %v10105
    %12133 = vmatpush1.bf16.msra.mxu0 %v10104
    %12134 = vmatprep.subr.bf16.mxu0 %v10089
    %12135 = vmatpush1.bf16.msra.mxu0 %v10088
    %12136 = vmatprep.subr.bf16.mxu0 %v10073
    %12137 = vmatpush1.bf16.msra.mxu0 %v10072
    %12138 = vmatprep.subr.bf16.mxu0 %v10057
    %12139 = vmatpush1.bf16.msra.mxu0 %v10056
    %12140 = vmatprep.subr.bf16.mxu0 %v10041
    %12141 = vmatpush1.bf16.msra.mxu0 %v10040
    %12142 = vmatprep.subr.bf16.mxu0 %v10025
    %12143 = vmatpush1.bf16.msra.mxu0 %v10024
    %12144 = vmatprep.subr.bf16.mxu0 %v10265
    %12145 = vmatpush2.bf16.msra.mxu0 %v10264
    %12146 = vmatprep.subr.bf16.mxu0 %v10249
    %12147 = vmatpush2.bf16.msra.mxu0 %v10248
    %12148 = vmatprep.subr.bf16.mxu0 %v10233
    %12149 = vmatpush2.bf16.msra.mxu0 %v10232
    %12150 = vmatprep.subr.bf16.mxu0 %v10217
    %12151 = vmatpush2.bf16.msra.mxu0 %v10216
    %12152 = vmatprep.subr.bf16.mxu0 %v10201
    %12153 = vmatpush2.bf16.msra.mxu0 %v10200
    %12154 = vmatprep.subr.bf16.mxu0 %v10185
    %12155 = vmatpush2.bf16.msra.mxu0 %v10184
    %12156 = vmatprep.subr.bf16.mxu0 %v10169
    %12157 = vmatpush2.bf16.msra.mxu0 %v10168
    %12158 = vmatprep.subr.bf16.mxu0 %v10153
    %12159 = vmatpush2.bf16.msra.mxu0 %v10152
    %12160 = vmatprep.mubr.bf16.mxu0 %v5323
    %12161 = vmatmul.mubr.bf16.gmra.mxu0 %v5322
    %v12162 = vpop.f32.mrf.mxu0
    %v12163 = vadd.f32 %v12122, %v12162
    %v12164 = vpop.f32.mrf.mxu0
    %v12165 = vadd.f32 %v12124, %v12164
    %v12166 = vpop.f32.mrf.mxu0
    %v12167 = vpop.f32.mrf.mxu0
    %12168 = vdwg.mxu0
    %12169 = vmatprep.subr.bf16.mxu0 %v10393
    %12170 = vmatpush1.bf16.msra.mxu0 %v10392
    %12171 = vmatprep.subr.bf16.mxu0 %v10377
    %12172 = vmatpush1.bf16.msra.mxu0 %v10376
    %12173 = vmatprep.subr.bf16.mxu0 %v10361
    %12174 = vmatpush1.bf16.msra.mxu0 %v10360
    %12175 = vmatprep.subr.bf16.mxu0 %v10345
    %12176 = vmatpush1.bf16.msra.mxu0 %v10344
    %12177 = vmatprep.subr.bf16.mxu0 %v10329
    %12178 = vmatpush1.bf16.msra.mxu0 %v10328
    %12179 = vmatprep.subr.bf16.mxu0 %v10313
    %12180 = vmatpush1.bf16.msra.mxu0 %v10312
    %12181 = vmatprep.subr.bf16.mxu0 %v10297
    %12182 = vmatpush1.bf16.msra.mxu0 %v10296
    %12183 = vmatprep.subr.bf16.mxu0 %v10281
    %12184 = vmatpush1.bf16.msra.mxu0 %v10280
    %12185 = vmatprep.subr.bf16.mxu0 %v10521
    %12186 = vmatpush2.bf16.msra.mxu0 %v10520
    %12187 = vmatprep.subr.bf16.mxu0 %v10505
    %12188 = vmatpush2.bf16.msra.mxu0 %v10504
    %12189 = vmatprep.subr.bf16.mxu0 %v10489
    %12190 = vmatpush2.bf16.msra.mxu0 %v10488
    %12191 = vmatprep.subr.bf16.mxu0 %v10473
    %12192 = vmatpush2.bf16.msra.mxu0 %v10472
    %12193 = vmatprep.subr.bf16.mxu0 %v10457
    %12194 = vmatpush2.bf16.msra.mxu0 %v10456
    %12195 = vmatprep.subr.bf16.mxu0 %v10441
    %12196 = vmatpush2.bf16.msra.mxu0 %v10440
    %12197 = vmatprep.subr.bf16.mxu0 %v10425
    %12198 = vmatpush2.bf16.msra.mxu0 %v10424
    %12199 = vmatprep.subr.bf16.mxu0 %v10409
    %12200 = vmatpush2.bf16.msra.mxu0 %v10408
    %12201 = vmatprep.mubr.bf16.mxu0 %v5325
    %12202 = vmatmul.mubr.bf16.gmra.mxu0 %v5324
    %v12203 = vpop.f32.mrf.mxu0
    %v12204 = vadd.f32 %v12163, %v12203
    %v12205 = vpop.f32.mrf.mxu0
    %v12206 = vadd.f32 %v12165, %v12205
    %v12207 = vpop.f32.mrf.mxu0
    %v12208 = vpop.f32.mrf.mxu0
    %12209 = vdwg.mxu0
    %12210 = vmatprep.subr.bf16.mxu0 %v9627
    %12211 = vmatpush1.bf16.msra.mxu0 %v9626
    %12212 = vmatprep.subr.bf16.mxu0 %v9611
    %12213 = vmatpush1.bf16.msra.mxu0 %v9610
    %12214 = vmatprep.subr.bf16.mxu0 %v9595
    %12215 = vmatpush1.bf16.msra.mxu0 %v9594
    %12216 = vmatprep.subr.bf16.mxu0 %v9579
    %12217 = vmatpush1.bf16.msra.mxu0 %v9578
    %12218 = vmatprep.subr.bf16.mxu0 %v9563
    %12219 = vmatpush1.bf16.msra.mxu0 %v9562
    %12220 = vmatprep.subr.bf16.mxu0 %v9547
    %12221 = vmatpush1.bf16.msra.mxu0 %v9546
    %12222 = vmatprep.subr.bf16.mxu0 %v9531
    %12223 = vmatpush1.bf16.msra.mxu0 %v9530
    %12224 = vmatprep.subr.bf16.mxu0 %v9515
    %12225 = vmatpush1.bf16.msra.mxu0 %v9514
    %12226 = vmatprep.subr.bf16.mxu0 %v9755
    %12227 = vmatpush2.bf16.msra.mxu0 %v9754
    %12228 = vmatprep.subr.bf16.mxu0 %v9739
    %12229 = vmatpush2.bf16.msra.mxu0 %v9738
    %12230 = vmatprep.subr.bf16.mxu0 %v9723
    %12231 = vmatpush2.bf16.msra.mxu0 %v9722
    %12232 = vmatprep.subr.bf16.mxu0 %v9707
    %12233 = vmatpush2.bf16.msra.mxu0 %v9706
    %12234 = vmatprep.subr.bf16.mxu0 %v9691
    %12235 = vmatpush2.bf16.msra.mxu0 %v9690
    %12236 = vmatprep.subr.bf16.mxu0 %v9675
    %12237 = vmatpush2.bf16.msra.mxu0 %v9674
    %12238 = vmatprep.subr.bf16.mxu0 %v9659
    %12239 = vmatpush2.bf16.msra.mxu0 %v9658
    %12240 = vmatprep.subr.bf16.mxu0 %v9643
    %12241 = vmatpush2.bf16.msra.mxu0 %v9642
    %12242 = vmatprep.mubr.bf16.mxu0 %v5319
    %12243 = vmatmul.mubr.bf16.gmra.mxu0 %v5318
    %v12244 = vpop.f32.mrf.mxu0
    %v12245 = vadd.f32 %v6389, %v12244
    %v12246 = vpop.f32.mrf.mxu0
    %v12247 = vadd.f32 %v6393, %v12246
    %v12248 = vpop.f32.mrf.mxu0
    %v12249 = vpop.f32.mrf.mxu0
    %12250 = vdwg.mxu0
    %12251 = vmatprep.subr.bf16.mxu0 %v9883
    %12252 = vmatpush1.bf16.msra.mxu0 %v9882
    %12253 = vmatprep.subr.bf16.mxu0 %v9867
    %12254 = vmatpush1.bf16.msra.mxu0 %v9866
    %12255 = vmatprep.subr.bf16.mxu0 %v9851
    %12256 = vmatpush1.bf16.msra.mxu0 %v9850
    %12257 = vmatprep.subr.bf16.mxu0 %v9835
    %12258 = vmatpush1.bf16.msra.mxu0 %v9834
    %12259 = vmatprep.subr.bf16.mxu0 %v9819
    %12260 = vmatpush1.bf16.msra.mxu0 %v9818
    %12261 = vmatprep.subr.bf16.mxu0 %v9803
    %12262 = vmatpush1.bf16.msra.mxu0 %v9802
    %12263 = vmatprep.subr.bf16.mxu0 %v9787
    %12264 = vmatpush1.bf16.msra.mxu0 %v9786
    %12265 = vmatprep.subr.bf16.mxu0 %v9771
    %12266 = vmatpush1.bf16.msra.mxu0 %v9770
    %12267 = vmatprep.subr.bf16.mxu0 %v10011
    %12268 = vmatpush2.bf16.msra.mxu0 %v10010
    %12269 = vmatprep.subr.bf16.mxu0 %v9995
    %12270 = vmatpush2.bf16.msra.mxu0 %v9994
    %12271 = vmatprep.subr.bf16.mxu0 %v9979
    %12272 = vmatpush2.bf16.msra.mxu0 %v9978
    %12273 = vmatprep.subr.bf16.mxu0 %v9963
    %12274 = vmatpush2.bf16.msra.mxu0 %v9962
    %12275 = vmatprep.subr.bf16.mxu0 %v9947
    %12276 = vmatpush2.bf16.msra.mxu0 %v9946
    %12277 = vmatprep.subr.bf16.mxu0 %v9931
    %12278 = vmatpush2.bf16.msra.mxu0 %v9930
    %12279 = vmatprep.subr.bf16.mxu0 %v9915
    %12280 = vmatpush2.bf16.msra.mxu0 %v9914
    %12281 = vmatprep.subr.bf16.mxu0 %v9899
    %12282 = vmatpush2.bf16.msra.mxu0 %v9898
    %12283 = vmatprep.mubr.bf16.mxu0 %v5321
    %12284 = vmatmul.mubr.bf16.gmra.mxu0 %v5320
    %v12285 = vpop.f32.mrf.mxu0
    %v12286 = vadd.f32 %v12245, %v12285
    %v12287 = vpop.f32.mrf.mxu0
    %v12288 = vadd.f32 %v12247, %v12287
    %v12289 = vpop.f32.mrf.mxu0
    %v12290 = vpop.f32.mrf.mxu0
    %12291 = vdwg.mxu0
    %12292 = vmatprep.subr.bf16.mxu0 %v10139
    %12293 = vmatpush1.bf16.msra.mxu0 %v10138
    %12294 = vmatprep.subr.bf16.mxu0 %v10123
    %12295 = vmatpush1.bf16.msra.mxu0 %v10122
    %12296 = vmatprep.subr.bf16.mxu0 %v10107
    %12297 = vmatpush1.bf16.msra.mxu0 %v10106
    %12298 = vmatprep.subr.bf16.mxu0 %v10091
    %12299 = vmatpush1.bf16.msra.mxu0 %v10090
    %12300 = vmatprep.subr.bf16.mxu0 %v10075
    %12301 = vmatpush1.bf16.msra.mxu0 %v10074
    %12302 = vmatprep.subr.bf16.mxu0 %v10059
    %12303 = vmatpush1.bf16.msra.mxu0 %v10058
    %12304 = vmatprep.subr.bf16.mxu0 %v10043
    %12305 = vmatpush1.bf16.msra.mxu0 %v10042
    %12306 = vmatprep.subr.bf16.mxu0 %v10027
    %12307 = vmatpush1.bf16.msra.mxu0 %v10026
    %12308 = vmatprep.subr.bf16.mxu0 %v10267
    %12309 = vmatpush2.bf16.msra.mxu0 %v10266
    %12310 = vmatprep.subr.bf16.mxu0 %v10251
    %12311 = vmatpush2.bf16.msra.mxu0 %v10250
    %12312 = vmatprep.subr.bf16.mxu0 %v10235
    %12313 = vmatpush2.bf16.msra.mxu0 %v10234
    %12314 = vmatprep.subr.bf16.mxu0 %v10219
    %12315 = vmatpush2.bf16.msra.mxu0 %v10218
    %12316 = vmatprep.subr.bf16.mxu0 %v10203
    %12317 = vmatpush2.bf16.msra.mxu0 %v10202
    %12318 = vmatprep.subr.bf16.mxu0 %v10187
    %12319 = vmatpush2.bf16.msra.mxu0 %v10186
    %12320 = vmatprep.subr.bf16.mxu0 %v10171
    %12321 = vmatpush2.bf16.msra.mxu0 %v10170
    %12322 = vmatprep.subr.bf16.mxu0 %v10155
    %12323 = vmatpush2.bf16.msra.mxu0 %v10154
    %12324 = vmatprep.mubr.bf16.mxu0 %v5323
    %12325 = vmatmul.mubr.bf16.gmra.mxu0 %v5322
    %v12326 = vpop.f32.mrf.mxu0
    %v12327 = vadd.f32 %v12286, %v12326
    %v12328 = vpop.f32.mrf.mxu0
    %v12329 = vadd.f32 %v12288, %v12328
    %v12330 = vpop.f32.mrf.mxu0
    %v12331 = vpop.f32.mrf.mxu0
    %12332 = vdwg.mxu0
    %12333 = vmatprep.subr.bf16.mxu0 %v10395
    %12334 = vmatpush1.bf16.msra.mxu0 %v10394
    %12335 = vmatprep.subr.bf16.mxu0 %v10379
    %12336 = vmatpush1.bf16.msra.mxu0 %v10378
    %12337 = vmatprep.subr.bf16.mxu0 %v10363
    %12338 = vmatpush1.bf16.msra.mxu0 %v10362
    %12339 = vmatprep.subr.bf16.mxu0 %v10347
    %12340 = vmatpush1.bf16.msra.mxu0 %v10346
    %12341 = vmatprep.subr.bf16.mxu0 %v10331
    %12342 = vmatpush1.bf16.msra.mxu0 %v10330
    %12343 = vmatprep.subr.bf16.mxu0 %v10315
    %12344 = vmatpush1.bf16.msra.mxu0 %v10314
    %12345 = vmatprep.subr.bf16.mxu0 %v10299
    %12346 = vmatpush1.bf16.msra.mxu0 %v10298
    %12347 = vmatprep.subr.bf16.mxu0 %v10283
    %12348 = vmatpush1.bf16.msra.mxu0 %v10282
    %12349 = vmatprep.subr.bf16.mxu0 %v10523
    %12350 = vmatpush2.bf16.msra.mxu0 %v10522
    %12351 = vmatprep.subr.bf16.mxu0 %v10507
    %12352 = vmatpush2.bf16.msra.mxu0 %v10506
    %12353 = vmatprep.subr.bf16.mxu0 %v10491
    %12354 = vmatpush2.bf16.msra.mxu0 %v10490
    %12355 = vmatprep.subr.bf16.mxu0 %v10475
    %12356 = vmatpush2.bf16.msra.mxu0 %v10474
    %12357 = vmatprep.subr.bf16.mxu0 %v10459
    %12358 = vmatpush2.bf16.msra.mxu0 %v10458
    %12359 = vmatprep.subr.bf16.mxu0 %v10443
    %12360 = vmatpush2.bf16.msra.mxu0 %v10442
    %12361 = vmatprep.subr.bf16.mxu0 %v10427
    %12362 = vmatpush2.bf16.msra.mxu0 %v10426
    %12363 = vmatprep.subr.bf16.mxu0 %v10411
    %12364 = vmatpush2.bf16.msra.mxu0 %v10410
    %12365 = vmatprep.mubr.bf16.mxu0 %v5325
    %12366 = vmatmul.mubr.bf16.gmra.mxu0 %v5324
    %v12367 = vpop.f32.mrf.mxu0
    %v12368 = vadd.f32 %v12327, %v12367
    %v12369 = vpop.f32.mrf.mxu0
    %v12370 = vadd.f32 %v12329, %v12369
    %v12371 = vpop.f32.mrf.mxu0
    %v12372 = vpop.f32.mrf.mxu0
    %12373 = vdwg.mxu0
    %12374 = vmatprep.subr.bf16.mxu0 %v9629
    %12375 = vmatpush1.bf16.msra.mxu0 %v9628
    %12376 = vmatprep.subr.bf16.mxu0 %v9613
    %12377 = vmatpush1.bf16.msra.mxu0 %v9612
    %12378 = vmatprep.subr.bf16.mxu0 %v9597
    %12379 = vmatpush1.bf16.msra.mxu0 %v9596
    %12380 = vmatprep.subr.bf16.mxu0 %v9581
    %12381 = vmatpush1.bf16.msra.mxu0 %v9580
    %12382 = vmatprep.subr.bf16.mxu0 %v9565
    %12383 = vmatpush1.bf16.msra.mxu0 %v9564
    %12384 = vmatprep.subr.bf16.mxu0 %v9549
    %12385 = vmatpush1.bf16.msra.mxu0 %v9548
    %12386 = vmatprep.subr.bf16.mxu0 %v9533
    %12387 = vmatpush1.bf16.msra.mxu0 %v9532
    %12388 = vmatprep.subr.bf16.mxu0 %v9517
    %12389 = vmatpush1.bf16.msra.mxu0 %v9516
    %12390 = vmatprep.subr.bf16.mxu0 %v9757
    %12391 = vmatpush2.bf16.msra.mxu0 %v9756
    %12392 = vmatprep.subr.bf16.mxu0 %v9741
    %12393 = vmatpush2.bf16.msra.mxu0 %v9740
    %12394 = vmatprep.subr.bf16.mxu0 %v9725
    %12395 = vmatpush2.bf16.msra.mxu0 %v9724
    %12396 = vmatprep.subr.bf16.mxu0 %v9709
    %12397 = vmatpush2.bf16.msra.mxu0 %v9708
    %12398 = vmatprep.subr.bf16.mxu0 %v9693
    %12399 = vmatpush2.bf16.msra.mxu0 %v9692
    %12400 = vmatprep.subr.bf16.mxu0 %v9677
    %12401 = vmatpush2.bf16.msra.mxu0 %v9676
    %12402 = vmatprep.subr.bf16.mxu0 %v9661
    %12403 = vmatpush2.bf16.msra.mxu0 %v9660
    %12404 = vmatprep.subr.bf16.mxu0 %v9645
    %12405 = vmatpush2.bf16.msra.mxu0 %v9644
    %12406 = vmatprep.mubr.bf16.mxu0 %v5319
    %12407 = vmatmul.mubr.bf16.gmra.mxu0 %v5318
    %v12408 = vpop.f32.mrf.mxu0
    %v12409 = vadd.f32 %v6397, %v12408
    %v12410 = vpop.f32.mrf.mxu0
    %v12411 = vadd.f32 %v6401, %v12410
    %v12412 = vpop.f32.mrf.mxu0
    %v12413 = vpop.f32.mrf.mxu0
    %12414 = vdwg.mxu0
    %12415 = vmatprep.subr.bf16.mxu0 %v9885
    %12416 = vmatpush1.bf16.msra.mxu0 %v9884
    %12417 = vmatprep.subr.bf16.mxu0 %v9869
    %12418 = vmatpush1.bf16.msra.mxu0 %v9868
    %12419 = vmatprep.subr.bf16.mxu0 %v9853
    %12420 = vmatpush1.bf16.msra.mxu0 %v9852
    %12421 = vmatprep.subr.bf16.mxu0 %v9837
    %12422 = vmatpush1.bf16.msra.mxu0 %v9836
    %12423 = vmatprep.subr.bf16.mxu0 %v9821
    %12424 = vmatpush1.bf16.msra.mxu0 %v9820
    %12425 = vmatprep.subr.bf16.mxu0 %v9805
    %12426 = vmatpush1.bf16.msra.mxu0 %v9804
    %12427 = vmatprep.subr.bf16.mxu0 %v9789
    %12428 = vmatpush1.bf16.msra.mxu0 %v9788
    %12429 = vmatprep.subr.bf16.mxu0 %v9773
    %12430 = vmatpush1.bf16.msra.mxu0 %v9772
    %12431 = vmatprep.subr.bf16.mxu0 %v10013
    %12432 = vmatpush2.bf16.msra.mxu0 %v10012
    %12433 = vmatprep.subr.bf16.mxu0 %v9997
    %12434 = vmatpush2.bf16.msra.mxu0 %v9996
    %12435 = vmatprep.subr.bf16.mxu0 %v9981
    %12436 = vmatpush2.bf16.msra.mxu0 %v9980
    %12437 = vmatprep.subr.bf16.mxu0 %v9965
    %12438 = vmatpush2.bf16.msra.mxu0 %v9964
    %12439 = vmatprep.subr.bf16.mxu0 %v9949
    %12440 = vmatpush2.bf16.msra.mxu0 %v9948
    %12441 = vmatprep.subr.bf16.mxu0 %v9933
    %12442 = vmatpush2.bf16.msra.mxu0 %v9932
    %12443 = vmatprep.subr.bf16.mxu0 %v9917
    %12444 = vmatpush2.bf16.msra.mxu0 %v9916
    %12445 = vmatprep.subr.bf16.mxu0 %v9901
    %12446 = vmatpush2.bf16.msra.mxu0 %v9900
    %12447 = vmatprep.mubr.bf16.mxu0 %v5321
    %12448 = vmatmul.mubr.bf16.gmra.mxu0 %v5320
    %v12449 = vpop.f32.mrf.mxu0
    %v12450 = vadd.f32 %v12409, %v12449
    %v12451 = vpop.f32.mrf.mxu0
    %v12452 = vadd.f32 %v12411, %v12451
    %v12453 = vpop.f32.mrf.mxu0
    %v12454 = vpop.f32.mrf.mxu0
    %12455 = vdwg.mxu0
    %12456 = vmatprep.subr.bf16.mxu0 %v10141
    %12457 = vmatpush1.bf16.msra.mxu0 %v10140
    %12458 = vmatprep.subr.bf16.mxu0 %v10125
    %12459 = vmatpush1.bf16.msra.mxu0 %v10124
    %12460 = vmatprep.subr.bf16.mxu0 %v10109
    %12461 = vmatpush1.bf16.msra.mxu0 %v10108
    %12462 = vmatprep.subr.bf16.mxu0 %v10093
    %12463 = vmatpush1.bf16.msra.mxu0 %v10092
    %12464 = vmatprep.subr.bf16.mxu0 %v10077
    %12465 = vmatpush1.bf16.msra.mxu0 %v10076
    %12466 = vmatprep.subr.bf16.mxu0 %v10061
    %12467 = vmatpush1.bf16.msra.mxu0 %v10060
    %12468 = vmatprep.subr.bf16.mxu0 %v10045
    %12469 = vmatpush1.bf16.msra.mxu0 %v10044
    %12470 = vmatprep.subr.bf16.mxu0 %v10029
    %12471 = vmatpush1.bf16.msra.mxu0 %v10028
    %12472 = vmatprep.subr.bf16.mxu0 %v10269
    %12473 = vmatpush2.bf16.msra.mxu0 %v10268
    %12474 = vmatprep.subr.bf16.mxu0 %v10253
    %12475 = vmatpush2.bf16.msra.mxu0 %v10252
    %12476 = vmatprep.subr.bf16.mxu0 %v10237
    %12477 = vmatpush2.bf16.msra.mxu0 %v10236
    %12478 = vmatprep.subr.bf16.mxu0 %v10221
    %12479 = vmatpush2.bf16.msra.mxu0 %v10220
    %12480 = vmatprep.subr.bf16.mxu0 %v10205
    %12481 = vmatpush2.bf16.msra.mxu0 %v10204
    %12482 = vmatprep.subr.bf16.mxu0 %v10189
    %12483 = vmatpush2.bf16.msra.mxu0 %v10188
    %12484 = vmatprep.subr.bf16.mxu0 %v10173
    %12485 = vmatpush2.bf16.msra.mxu0 %v10172
    %12486 = vmatprep.subr.bf16.mxu0 %v10157
    %12487 = vmatpush2.bf16.msra.mxu0 %v10156
    %12488 = vmatprep.mubr.bf16.mxu0 %v5323
    %12489 = vmatmul.mubr.bf16.gmra.mxu0 %v5322
    %v12490 = vpop.f32.mrf.mxu0
    %v12491 = vadd.f32 %v12450, %v12490
    %v12492 = vpop.f32.mrf.mxu0
    %v12493 = vadd.f32 %v12452, %v12492
    %v12494 = vpop.f32.mrf.mxu0
    %v12495 = vpop.f32.mrf.mxu0
    %12496 = vdwg.mxu0
    %12497 = vmatprep.subr.bf16.mxu0 %v10397
    %12498 = vmatpush1.bf16.msra.mxu0 %v10396
    %12499 = vmatprep.subr.bf16.mxu0 %v10381
    %12500 = vmatpush1.bf16.msra.mxu0 %v10380
    %12501 = vmatprep.subr.bf16.mxu0 %v10365
    %12502 = vmatpush1.bf16.msra.mxu0 %v10364
    %12503 = vmatprep.subr.bf16.mxu0 %v10349
    %12504 = vmatpush1.bf16.msra.mxu0 %v10348
    %12505 = vmatprep.subr.bf16.mxu0 %v10333
    %12506 = vmatpush1.bf16.msra.mxu0 %v10332
    %12507 = vmatprep.subr.bf16.mxu0 %v10317
    %12508 = vmatpush1.bf16.msra.mxu0 %v10316
    %12509 = vmatprep.subr.bf16.mxu0 %v10301
    %12510 = vmatpush1.bf16.msra.mxu0 %v10300
    %12511 = vmatprep.subr.bf16.mxu0 %v10285
    %12512 = vmatpush1.bf16.msra.mxu0 %v10284
    %12513 = vmatprep.subr.bf16.mxu0 %v10525
    %12514 = vmatpush2.bf16.msra.mxu0 %v10524
    %12515 = vmatprep.subr.bf16.mxu0 %v10509
    %12516 = vmatpush2.bf16.msra.mxu0 %v10508
    %12517 = vmatprep.subr.bf16.mxu0 %v10493
    %12518 = vmatpush2.bf16.msra.mxu0 %v10492
    %12519 = vmatprep.subr.bf16.mxu0 %v10477
    %12520 = vmatpush2.bf16.msra.mxu0 %v10476
    %12521 = vmatprep.subr.bf16.mxu0 %v10461
    %12522 = vmatpush2.bf16.msra.mxu0 %v10460
    %12523 = vmatprep.subr.bf16.mxu0 %v10445
    %12524 = vmatpush2.bf16.msra.mxu0 %v10444
    %12525 = vmatprep.subr.bf16.mxu0 %v10429
    %12526 = vmatpush2.bf16.msra.mxu0 %v10428
    %12527 = vmatprep.subr.bf16.mxu0 %v10413
    %12528 = vmatpush2.bf16.msra.mxu0 %v10412
    %12529 = vmatprep.mubr.bf16.mxu0 %v5325
    %12530 = vmatmul.mubr.bf16.gmra.mxu0 %v5324
    %v12531 = vpop.f32.mrf.mxu0
    %v12532 = vadd.f32 %v12491, %v12531
    %v12533 = vpop.f32.mrf.mxu0
    %v12534 = vadd.f32 %v12493, %v12533
    %v12535 = vpop.f32.mrf.mxu0
    %v12536 = vpop.f32.mrf.mxu0
    %12537 = vdwg.mxu0
    %12538 = vmatprep.subr.bf16.mxu0 %v9631
    %12539 = vmatpush1.bf16.msra.mxu0 %v9630
    %12540 = vmatprep.subr.bf16.mxu0 %v9615
    %12541 = vmatpush1.bf16.msra.mxu0 %v9614
    %12542 = vmatprep.subr.bf16.mxu0 %v9599
    %12543 = vmatpush1.bf16.msra.mxu0 %v9598
    %12544 = vmatprep.subr.bf16.mxu0 %v9583
    %12545 = vmatpush1.bf16.msra.mxu0 %v9582
    %12546 = vmatprep.subr.bf16.mxu0 %v9567
    %12547 = vmatpush1.bf16.msra.mxu0 %v9566
    %12548 = vmatprep.subr.bf16.mxu0 %v9551
    %12549 = vmatpush1.bf16.msra.mxu0 %v9550
    %12550 = vmatprep.subr.bf16.mxu0 %v9535
    %12551 = vmatpush1.bf16.msra.mxu0 %v9534
    %12552 = vmatprep.subr.bf16.mxu0 %v9519
    %12553 = vmatpush1.bf16.msra.mxu0 %v9518
    %12554 = vmatprep.subr.bf16.mxu0 %v9759
    %12555 = vmatpush2.bf16.msra.mxu0 %v9758
    %12556 = vmatprep.subr.bf16.mxu0 %v9743
    %12557 = vmatpush2.bf16.msra.mxu0 %v9742
    %12558 = vmatprep.subr.bf16.mxu0 %v9727
    %12559 = vmatpush2.bf16.msra.mxu0 %v9726
    %12560 = vmatprep.subr.bf16.mxu0 %v9711
    %12561 = vmatpush2.bf16.msra.mxu0 %v9710
    %12562 = vmatprep.subr.bf16.mxu0 %v9695
    %12563 = vmatpush2.bf16.msra.mxu0 %v9694
    %12564 = vmatprep.subr.bf16.mxu0 %v9679
    %12565 = vmatpush2.bf16.msra.mxu0 %v9678
    %12566 = vmatprep.subr.bf16.mxu0 %v9663
    %12567 = vmatpush2.bf16.msra.mxu0 %v9662
    %12568 = vmatprep.subr.bf16.mxu0 %v9647
    %12569 = vmatpush2.bf16.msra.mxu0 %v9646
    %12570 = vmatprep.mubr.bf16.mxu0 %v5319
    %12571 = vmatmul.mubr.bf16.gmra.mxu0 %v5318
    %v12572 = vpop.f32.mrf.mxu0
    %v12573 = vadd.f32 %v6405, %v12572
    %v12574 = vpop.f32.mrf.mxu0
    %v12575 = vadd.f32 %v6409, %v12574
    %v12576 = vpop.f32.mrf.mxu0
    %v12577 = vpop.f32.mrf.mxu0
    %12578 = vdwg.mxu0
    %12579 = vmatprep.subr.bf16.mxu0 %v9887
    %12580 = vmatpush1.bf16.msra.mxu0 %v9886
    %12581 = vmatprep.subr.bf16.mxu0 %v9871
    %12582 = vmatpush1.bf16.msra.mxu0 %v9870
    %12583 = vmatprep.subr.bf16.mxu0 %v9855
    %12584 = vmatpush1.bf16.msra.mxu0 %v9854
    %12585 = vmatprep.subr.bf16.mxu0 %v9839
    %12586 = vmatpush1.bf16.msra.mxu0 %v9838
    %12587 = vmatprep.subr.bf16.mxu0 %v9823
    %12588 = vmatpush1.bf16.msra.mxu0 %v9822
    %12589 = vmatprep.subr.bf16.mxu0 %v9807
    %12590 = vmatpush1.bf16.msra.mxu0 %v9806
    %12591 = vmatprep.subr.bf16.mxu0 %v9791
    %12592 = vmatpush1.bf16.msra.mxu0 %v9790
    %12593 = vmatprep.subr.bf16.mxu0 %v9775
    %12594 = vmatpush1.bf16.msra.mxu0 %v9774
    %12595 = vmatprep.subr.bf16.mxu0 %v10015
    %12596 = vmatpush2.bf16.msra.mxu0 %v10014
    %12597 = vmatprep.subr.bf16.mxu0 %v9999
    %12598 = vmatpush2.bf16.msra.mxu0 %v9998
    %12599 = vmatprep.subr.bf16.mxu0 %v9983
    %12600 = vmatpush2.bf16.msra.mxu0 %v9982
    %12601 = vmatprep.subr.bf16.mxu0 %v9967
    %12602 = vmatpush2.bf16.msra.mxu0 %v9966
    %12603 = vmatprep.subr.bf16.mxu0 %v9951
    %12604 = vmatpush2.bf16.msra.mxu0 %v9950
    %12605 = vmatprep.subr.bf16.mxu0 %v9935
    %12606 = vmatpush2.bf16.msra.mxu0 %v9934
    %12607 = vmatprep.subr.bf16.mxu0 %v9919
    %12608 = vmatpush2.bf16.msra.mxu0 %v9918
    %12609 = vmatprep.subr.bf16.mxu0 %v9903
    %12610 = vmatpush2.bf16.msra.mxu0 %v9902
    %12611 = vmatprep.mubr.bf16.mxu0 %v5321
    %12612 = vmatmul.mubr.bf16.gmra.mxu0 %v5320
    %v12613 = vpop.f32.mrf.mxu0
    %v12614 = vadd.f32 %v12573, %v12613
    %v12615 = vpop.f32.mrf.mxu0
    %v12616 = vadd.f32 %v12575, %v12615
    %v12617 = vpop.f32.mrf.mxu0
    %v12618 = vpop.f32.mrf.mxu0
    %12619 = vdwg.mxu0
    %12620 = vmatprep.subr.bf16.mxu0 %v10143
    %12621 = vmatpush1.bf16.msra.mxu0 %v10142
    %12622 = vmatprep.subr.bf16.mxu0 %v10127
    %12623 = vmatpush1.bf16.msra.mxu0 %v10126
    %12624 = vmatprep.subr.bf16.mxu0 %v10111
    %12625 = vmatpush1.bf16.msra.mxu0 %v10110
    %12626 = vmatprep.subr.bf16.mxu0 %v10095
    %12627 = vmatpush1.bf16.msra.mxu0 %v10094
    %12628 = vmatprep.subr.bf16.mxu0 %v10079
    %12629 = vmatpush1.bf16.msra.mxu0 %v10078
    %12630 = vmatprep.subr.bf16.mxu0 %v10063
    %12631 = vmatpush1.bf16.msra.mxu0 %v10062
    %12632 = vmatprep.subr.bf16.mxu0 %v10047
    %12633 = vmatpush1.bf16.msra.mxu0 %v10046
    %12634 = vmatprep.subr.bf16.mxu0 %v10031
    %12635 = vmatpush1.bf16.msra.mxu0 %v10030
    %12636 = vmatprep.subr.bf16.mxu0 %v10271
    %12637 = vmatpush2.bf16.msra.mxu0 %v10270
    %12638 = vmatprep.subr.bf16.mxu0 %v10255
    %12639 = vmatpush2.bf16.msra.mxu0 %v10254
    %12640 = vmatprep.subr.bf16.mxu0 %v10239
    %12641 = vmatpush2.bf16.msra.mxu0 %v10238
    %12642 = vmatprep.subr.bf16.mxu0 %v10223
    %12643 = vmatpush2.bf16.msra.mxu0 %v10222
    %12644 = vmatprep.subr.bf16.mxu0 %v10207
    %12645 = vmatpush2.bf16.msra.mxu0 %v10206
    %12646 = vmatprep.subr.bf16.mxu0 %v10191
    %12647 = vmatpush2.bf16.msra.mxu0 %v10190
    %12648 = vmatprep.subr.bf16.mxu0 %v10175
    %12649 = vmatpush2.bf16.msra.mxu0 %v10174
    %12650 = vmatprep.subr.bf16.mxu0 %v10159
    %12651 = vmatpush2.bf16.msra.mxu0 %v10158
    %12652 = vmatprep.mubr.bf16.mxu0 %v5323
    %12653 = vmatmul.mubr.bf16.gmra.mxu0 %v5322
    %v12654 = vpop.f32.mrf.mxu0
    %v12655 = vadd.f32 %v12614, %v12654
    %v12656 = vpop.f32.mrf.mxu0
    %v12657 = vadd.f32 %v12616, %v12656
    %v12658 = vpop.f32.mrf.mxu0
    %v12659 = vpop.f32.mrf.mxu0
    %12660 = vdwg.mxu0
    %12661 = vmatprep.subr.bf16.mxu0 %v10399
    %12662 = vmatpush1.bf16.msra.mxu0 %v10398
    %12663 = vmatprep.subr.bf16.mxu0 %v10383
    %12664 = vmatpush1.bf16.msra.mxu0 %v10382
    %12665 = vmatprep.subr.bf16.mxu0 %v10367
    %12666 = vmatpush1.bf16.msra.mxu0 %v10366
    %12667 = vmatprep.subr.bf16.mxu0 %v10351
    %12668 = vmatpush1.bf16.msra.mxu0 %v10350
    %12669 = vmatprep.subr.bf16.mxu0 %v10335
    %12670 = vmatpush1.bf16.msra.mxu0 %v10334
    %12671 = vmatprep.subr.bf16.mxu0 %v10319
    %12672 = vmatpush1.bf16.msra.mxu0 %v10318
    %12673 = vmatprep.subr.bf16.mxu0 %v10303
    %12674 = vmatpush1.bf16.msra.mxu0 %v10302
    %12675 = vmatprep.subr.bf16.mxu0 %v10287
    %12676 = vmatpush1.bf16.msra.mxu0 %v10286
    %12677 = vmatprep.subr.bf16.mxu0 %v10527
    %12678 = vmatpush2.bf16.msra.mxu0 %v10526
    %12679 = vmatprep.subr.bf16.mxu0 %v10511
    %12680 = vmatpush2.bf16.msra.mxu0 %v10510
    %12681 = vmatprep.subr.bf16.mxu0 %v10495
    %12682 = vmatpush2.bf16.msra.mxu0 %v10494
    %12683 = vmatprep.subr.bf16.mxu0 %v10479
    %12684 = vmatpush2.bf16.msra.mxu0 %v10478
    %12685 = vmatprep.subr.bf16.mxu0 %v10463
    %12686 = vmatpush2.bf16.msra.mxu0 %v10462
    %12687 = vmatprep.subr.bf16.mxu0 %v10447
    %12688 = vmatpush2.bf16.msra.mxu0 %v10446
    %12689 = vmatprep.subr.bf16.mxu0 %v10431
    %12690 = vmatpush2.bf16.msra.mxu0 %v10430
    %12691 = vmatprep.subr.bf16.mxu0 %v10415
    %12692 = vmatpush2.bf16.msra.mxu0 %v10414
    %12693 = vmatprep.mubr.bf16.mxu0 %v5325
    %12694 = vmatmul.mubr.bf16.gmra.mxu0 %v5324
    %v12695 = vpop.f32.mrf.mxu0
    %v12696 = vadd.f32 %v12655, %v12695
    %v12697 = vpop.f32.mrf.mxu0
    %v12698 = vadd.f32 %v12657, %v12697
    %v12699 = vpop.f32.mrf.mxu0
    %v12700 = vpop.f32.mrf.mxu0
    %12701 = vdwg.mxu0
    %12702 = vmatprep.subr.bf16.mxu0 %v9633
    %12703 = vmatpush1.bf16.msra.mxu0 %v9632
    %12704 = vmatprep.subr.bf16.mxu0 %v9617
    %12705 = vmatpush1.bf16.msra.mxu0 %v9616
    %12706 = vmatprep.subr.bf16.mxu0 %v9601
    %12707 = vmatpush1.bf16.msra.mxu0 %v9600
    %12708 = vmatprep.subr.bf16.mxu0 %v9585
    %12709 = vmatpush1.bf16.msra.mxu0 %v9584
    %12710 = vmatprep.subr.bf16.mxu0 %v9569
    %12711 = vmatpush1.bf16.msra.mxu0 %v9568
    %12712 = vmatprep.subr.bf16.mxu0 %v9553
    %12713 = vmatpush1.bf16.msra.mxu0 %v9552
    %12714 = vmatprep.subr.bf16.mxu0 %v9537
    %12715 = vmatpush1.bf16.msra.mxu0 %v9536
    %12716 = vmatprep.subr.bf16.mxu0 %v9521
    %12717 = vmatpush1.bf16.msra.mxu0 %v9520
    %12718 = vmatprep.subr.bf16.mxu0 %v9761
    %12719 = vmatpush2.bf16.msra.mxu0 %v9760
    %12720 = vmatprep.subr.bf16.mxu0 %v9745
    %12721 = vmatpush2.bf16.msra.mxu0 %v9744
    %12722 = vmatprep.subr.bf16.mxu0 %v9729
    %12723 = vmatpush2.bf16.msra.mxu0 %v9728
    %12724 = vmatprep.subr.bf16.mxu0 %v9713
    %12725 = vmatpush2.bf16.msra.mxu0 %v9712
    %12726 = vmatprep.subr.bf16.mxu0 %v9697
    %12727 = vmatpush2.bf16.msra.mxu0 %v9696
    %12728 = vmatprep.subr.bf16.mxu0 %v9681
    %12729 = vmatpush2.bf16.msra.mxu0 %v9680
    %12730 = vmatprep.subr.bf16.mxu0 %v9665
    %12731 = vmatpush2.bf16.msra.mxu0 %v9664
    %12732 = vmatprep.subr.bf16.mxu0 %v9649
    %12733 = vmatpush2.bf16.msra.mxu0 %v9648
    %12734 = vmatprep.mubr.bf16.mxu0 %v5319
    %12735 = vmatmul.mubr.bf16.gmra.mxu0 %v5318
    %v12736 = vpop.f32.mrf.mxu0
    %v12737 = vadd.f32 %v6413, %v12736
    %v12738 = vpop.f32.mrf.mxu0
    %v12739 = vadd.f32 %v6417, %v12738
    %v12740 = vpop.f32.mrf.mxu0
    %v12741 = vpop.f32.mrf.mxu0
    %12742 = vdwg.mxu0
    %12743 = vmatprep.subr.bf16.mxu0 %v9889
    %12744 = vmatpush1.bf16.msra.mxu0 %v9888
    %12745 = vmatprep.subr.bf16.mxu0 %v9873
    %12746 = vmatpush1.bf16.msra.mxu0 %v9872
    %12747 = vmatprep.subr.bf16.mxu0 %v9857
    %12748 = vmatpush1.bf16.msra.mxu0 %v9856
    %12749 = vmatprep.subr.bf16.mxu0 %v9841
    %12750 = vmatpush1.bf16.msra.mxu0 %v9840
    %12751 = vmatprep.subr.bf16.mxu0 %v9825
    %12752 = vmatpush1.bf16.msra.mxu0 %v9824
    %12753 = vmatprep.subr.bf16.mxu0 %v9809
    %12754 = vmatpush1.bf16.msra.mxu0 %v9808
    %12755 = vmatprep.subr.bf16.mxu0 %v9793
    %12756 = vmatpush1.bf16.msra.mxu0 %v9792
    %12757 = vmatprep.subr.bf16.mxu0 %v9777
    %12758 = vmatpush1.bf16.msra.mxu0 %v9776
    %12759 = vmatprep.subr.bf16.mxu0 %v10017
    %12760 = vmatpush2.bf16.msra.mxu0 %v10016
    %12761 = vmatprep.subr.bf16.mxu0 %v10001
    %12762 = vmatpush2.bf16.msra.mxu0 %v10000
    %12763 = vmatprep.subr.bf16.mxu0 %v9985
    %12764 = vmatpush2.bf16.msra.mxu0 %v9984
    %12765 = vmatprep.subr.bf16.mxu0 %v9969
    %12766 = vmatpush2.bf16.msra.mxu0 %v9968
    %12767 = vmatprep.subr.bf16.mxu0 %v9953
    %12768 = vmatpush2.bf16.msra.mxu0 %v9952
    %12769 = vmatprep.subr.bf16.mxu0 %v9937
    %12770 = vmatpush2.bf16.msra.mxu0 %v9936
    %12771 = vmatprep.subr.bf16.mxu0 %v9921
    %12772 = vmatpush2.bf16.msra.mxu0 %v9920
    %12773 = vmatprep.subr.bf16.mxu0 %v9905
    %12774 = vmatpush2.bf16.msra.mxu0 %v9904
    %12775 = vmatprep.mubr.bf16.mxu0 %v5321
    %12776 = vmatmul.mubr.bf16.gmra.mxu0 %v5320
    %v12777 = vpop.f32.mrf.mxu0
    %v12778 = vadd.f32 %v12737, %v12777
    %v12779 = vpop.f32.mrf.mxu0
    %v12780 = vadd.f32 %v12739, %v12779
    %v12781 = vpop.f32.mrf.mxu0
    %v12782 = vpop.f32.mrf.mxu0
    %12783 = vdwg.mxu0
    %12784 = vmatprep.subr.bf16.mxu0 %v10145
    %12785 = vmatpush1.bf16.msra.mxu0 %v10144
    %12786 = vmatprep.subr.bf16.mxu0 %v10129
    %12787 = vmatpush1.bf16.msra.mxu0 %v10128
    %12788 = vmatprep.subr.bf16.mxu0 %v10113
    %12789 = vmatpush1.bf16.msra.mxu0 %v10112
    %12790 = vmatprep.subr.bf16.mxu0 %v10097
    %12791 = vmatpush1.bf16.msra.mxu0 %v10096
    %12792 = vmatprep.subr.bf16.mxu0 %v10081
    %12793 = vmatpush1.bf16.msra.mxu0 %v10080
    %12794 = vmatprep.subr.bf16.mxu0 %v10065
    %12795 = vmatpush1.bf16.msra.mxu0 %v10064
    %12796 = vmatprep.subr.bf16.mxu0 %v10049
    %12797 = vmatpush1.bf16.msra.mxu0 %v10048
    %12798 = vmatprep.subr.bf16.mxu0 %v10033
    %12799 = vmatpush1.bf16.msra.mxu0 %v10032
    %12800 = vmatprep.subr.bf16.mxu0 %v10273
    %12801 = vmatpush2.bf16.msra.mxu0 %v10272
    %12802 = vmatprep.subr.bf16.mxu0 %v10257
    %12803 = vmatpush2.bf16.msra.mxu0 %v10256
    %12804 = vmatprep.subr.bf16.mxu0 %v10241
    %12805 = vmatpush2.bf16.msra.mxu0 %v10240
    %12806 = vmatprep.subr.bf16.mxu0 %v10225
    %12807 = vmatpush2.bf16.msra.mxu0 %v10224
    %12808 = vmatprep.subr.bf16.mxu0 %v10209
    %12809 = vmatpush2.bf16.msra.mxu0 %v10208
    %12810 = vmatprep.subr.bf16.mxu0 %v10193
    %12811 = vmatpush2.bf16.msra.mxu0 %v10192
    %12812 = vmatprep.subr.bf16.mxu0 %v10177
    %12813 = vmatpush2.bf16.msra.mxu0 %v10176
    %12814 = vmatprep.subr.bf16.mxu0 %v10161
    %12815 = vmatpush2.bf16.msra.mxu0 %v10160
    %12816 = vmatprep.mubr.bf16.mxu0 %v5323
    %12817 = vmatmul.mubr.bf16.gmra.mxu0 %v5322
    %v12818 = vpop.f32.mrf.mxu0
    %v12819 = vadd.f32 %v12778, %v12818
    %v12820 = vpop.f32.mrf.mxu0
    %v12821 = vadd.f32 %v12780, %v12820
    %v12822 = vpop.f32.mrf.mxu0
    %v12823 = vpop.f32.mrf.mxu0
    %12824 = vdwg.mxu0
    %12825 = vmatprep.subr.bf16.mxu0 %v10401
    %12826 = vmatpush1.bf16.msra.mxu0 %v10400
    %12827 = vmatprep.subr.bf16.mxu0 %v10385
    %12828 = vmatpush1.bf16.msra.mxu0 %v10384
    %12829 = vmatprep.subr.bf16.mxu0 %v10369
    %12830 = vmatpush1.bf16.msra.mxu0 %v10368
    %12831 = vmatprep.subr.bf16.mxu0 %v10353
    %12832 = vmatpush1.bf16.msra.mxu0 %v10352
    %12833 = vmatprep.subr.bf16.mxu0 %v10337
    %12834 = vmatpush1.bf16.msra.mxu0 %v10336
    %12835 = vmatprep.subr.bf16.mxu0 %v10321
    %12836 = vmatpush1.bf16.msra.mxu0 %v10320
    %12837 = vmatprep.subr.bf16.mxu0 %v10305
    %12838 = vmatpush1.bf16.msra.mxu0 %v10304
    %12839 = vmatprep.subr.bf16.mxu0 %v10289
    %12840 = vmatpush1.bf16.msra.mxu0 %v10288
    %12841 = vmatprep.subr.bf16.mxu0 %v10529
    %12842 = vmatpush2.bf16.msra.mxu0 %v10528
    %12843 = vmatprep.subr.bf16.mxu0 %v10513
    %12844 = vmatpush2.bf16.msra.mxu0 %v10512
    %12845 = vmatprep.subr.bf16.mxu0 %v10497
    %12846 = vmatpush2.bf16.msra.mxu0 %v10496
    %12847 = vmatprep.subr.bf16.mxu0 %v10481
    %12848 = vmatpush2.bf16.msra.mxu0 %v10480
    %12849 = vmatprep.subr.bf16.mxu0 %v10465
    %12850 = vmatpush2.bf16.msra.mxu0 %v10464
    %12851 = vmatprep.subr.bf16.mxu0 %v10449
    %12852 = vmatpush2.bf16.msra.mxu0 %v10448
    %12853 = vmatprep.subr.bf16.mxu0 %v10433
    %12854 = vmatpush2.bf16.msra.mxu0 %v10432
    %12855 = vmatprep.subr.bf16.mxu0 %v10417
    %12856 = vmatpush2.bf16.msra.mxu0 %v10416
    %12857 = vmatprep.mubr.bf16.mxu0 %v5325
    %12858 = vmatmul.mubr.bf16.gmra.mxu0 %v5324
    %v12859 = vpop.f32.mrf.mxu0
    %v12860 = vadd.f32 %v12819, %v12859
    %v12861 = vpop.f32.mrf.mxu0
    %v12862 = vadd.f32 %v12821, %v12861
    %v12863 = vpop.f32.mrf.mxu0
    %v12864 = vpop.f32.mrf.mxu0
    %12865 = vdwg.mxu0
    %12866 = vst [vmem:[#allocation23] sm:$0xff] %v11712
    %12867 = vst [vmem:[#allocation23 + $0x8] sm:$0xff] %v11714
    %12868 = vst [vmem:[#allocation23 + $0x10] sm:$0xff] %v11876
    %12869 = vst [vmem:[#allocation23 + $0x18] sm:$0xff] %v11878
    %12870 = vst [vmem:[#allocation23 + $0x20] sm:$0xff] %v12040
    %12871 = vst [vmem:[#allocation23 + $0x28] sm:$0xff] %v12042
    %12872 = vst [vmem:[#allocation23 + $0x30] sm:$0xff] %v12204
    %12873 = vst [vmem:[#allocation23 + $0x38] sm:$0xff] %v12206
    %12874 = vst [vmem:[#allocation23 + $0x40] sm:$0xff] %v12368
    %12875 = vst [vmem:[#allocation23 + $0x48] sm:$0xff] %v12370
    %12876 = vst [vmem:[#allocation23 + $0x50] sm:$0xff] %v12532
    %12877 = vst [vmem:[#allocation23 + $0x58] sm:$0xff] %v12534
    %12878 = vst [vmem:[#allocation23 + $0x60] sm:$0xff] %v12696
    %12879 = vst [vmem:[#allocation23 + $0x68] sm:$0xff] %v12698
    %12880 = vst [vmem:[#allocation23 + $0x70] sm:$0xff] %v12860
    %12881 = vst [vmem:[#allocation23 + $0x78] sm:$0xff] %v12862
    // Predicated region
    $region106: #{policy_pallas.1} parent=1 // pred_check
      _
    $region107: #{policy_pallas.1} parent=1 // pred_check_branch
      %12883 = sbr.rel (0) target = $region109
    $region108: #{policy_pallas.1} parent=1 // pred_region
      %s12885 = ssub.s32 2048, 2048
      %12886 = vsyncadd [#allocation4], %s12885
      %s12888 = sshll.u32 [#allocation23], 4
      %s12889 = int_to_ptr.vmem [resolvable:$true] %s12888
      %12891 = dma.vmem_to_hbm [thread:$0]  %s12889, 2048, %s13, [#allocation4]
    $region109: #{policy_pallas.1} parent=1 // pred_fallthru
      _
    // Predicated region
    $region110: #{policy_pallas.1} parent=1 // pred_check
      _
    $region111: #{policy_pallas.1} parent=1 // pred_check_branch
      %12893 = sbr.rel (0) target = $region113
    $region112: #{policy_pallas.1} parent=1 // pred_region
      %12894 = dma.done [#allocation4], 2048
    $region113: #{policy_pallas.1} parent=1 // pred_fallthru
      _
    %12895 = vsyncpa [#allocation3], 1
    %12896 = vsyncpa [#allocation6], 1
    %12897 = vsyncpa [#allocation9], 1
    %12898 = vsyncpa [#allocation12], 1
    %12899 = vsyncpa [#allocation15], 1
    %12900 = vsyncpa [#allocation18], 1
    %12901 = vsyncpa [#allocation21], 1
    %12902 = vsyncpa [#allocation4], 1

</llo_original>
